<compile_context>
chip_gen: v6e
topology: v6e:2x2x1
jax: 0.10.0
libtpu: 0.0.40
codegen_flags: <defaults>
</compile_context>

<pallas_src>
import math
import functools
import numpy as np
import jax
import jax.numpy as jnp
from jax import lax
from jax.experimental import pallas as pl
from jax.experimental.pallas import tpu as pltpu


# ----------------------------- Pallas kernel --------------------------------

def decoder_stack_kernel(
    enc_valid_ref,                    # SMEM [B] int32 (scalar prefetch)
    x_ref, enc_ref,                   # (Bt,S,H) f32, (Bt,Se,H) f32
    wqkv1_ref,                        # (nb, 3*nh, H, hd) bf16  self-attn Q|K|V per head
    wo1_ref,                          # (nb, nh, hd, H)  bf16
    wq2_ref,                          # (nb, nh, H, hd)  bf16   cross-attn Q per head
    wkv2_ref,                         # (nb, 2*nh, H, hd) bf16  cross-attn K|V per head
    wo2_ref,                          # (nb, nh, hd, H)  bf16
    wf1_ref, wf2_ref,                 # (nb, H, F), (nb, F, H) bf16
    vec_ref,                          # (nb, 8, P) f32  lane-aligned gammas/betas/biases
    out_ref,                          # (Bt,S,H) f32
    *, num_heads):
    Bt, S, H = x_ref.shape
    Se = enc_ref.shape[1]
    nb, _, F = wf1_ref.shape
    nh = num_heads
    hd = H // nh
    L = Bt * S
    scale = 1.0 / math.sqrt(hd)
    bf16 = jnp.bfloat16
    gi = pl.program_id(0)

    # ---- layer-invariant values, hoisted out of the layer loop ----
    x0 = x_ref[...].reshape(L, H)                               # (L,H) f32
    enc_b16 = enc_ref[...].reshape(Bt * Se, H).astype(bf16)     # (Bt*Se,H) bf16

    row = lax.broadcasted_iota(jnp.int32, (S, S), 0)
    col = lax.broadcasted_iota(jnp.int32, (S, S), 1)
    causal = jnp.broadcast_to((col <= row)[None], (nh, S, S))   # training-mode causal
    ccol = lax.broadcasted_iota(jnp.int32, (S, Se), 1)
    cross_masks = [
        jnp.broadcast_to((ccol < enc_valid_ref[gi * Bt + bi])[None], (nh, S, Se))
        for bi in range(Bt)
    ]

    def layer_norm(z, gamma, beta, eps=1e-12):
        mu = jnp.mean(z, axis=-1, keepdims=True)
        var = jnp.mean((z - mu) ** 2, axis=-1, keepdims=True)
        return gamma * ((z - mu) * lax.rsqrt(var + eps)) + beta

    def attend(q, k, v, mask, wo):
        # q:(nh,Lq,hd), k/v:(nh,Lk,hd) bf16; mask:(nh,Lq,Lk); wo:(nh,hd,H) bf16
        s = jnp.einsum('nqd,nkd->nqk', q, k,
                       preferred_element_type=jnp.float32)
        s = jnp.where(mask, s, 1e-06)             # PyTorch masked_softmax fill value
        m = jnp.max(s, axis=-1, keepdims=True)
        e = jnp.exp(s - m)
        p = e * pl.reciprocal(jnp.sum(e, axis=-1, keepdims=True), approx=True)
        hds = jnp.einsum('nqk,nkd->nqd', p.astype(bf16), v,
                         preferred_element_type=jnp.float32)
        o = jnp.einsum('nqd,ndh->nqh', hds.astype(bf16), wo,
                       preferred_element_type=jnp.float32)
        return jnp.sum(o, axis=0)                 # == concat(heads) @ W_o, no lane concat

    def layer(l, act):                            # act: (L,H) f32
        wqkv1, wo1 = wqkv1_ref[l], wo1_ref[l]
        wq2, wkv2, wo2 = wq2_ref[l], wkv2_ref[l], wo2_ref[l]
        wf1, wf2 = wf1_ref[l], wf2_ref[l]
        vec = vec_ref[l]                          # (8,P): every vector at lane offset 0
        g1, b1 = vec[0:1, :H], vec[1:2, :H]
        g2, b2 = vec[2:3, :H], vec[3:4, :H]
        g3, b3 = vec[4:5, :H], vec[5:6, :H]
        bf1, bf2 = vec[6:7, :F], vec[7:8, :H]

        # ---- masked self-attention (heads batched on the leading dim) ----
        act_b16 = act.astype(bf16)
        qkv = jnp.einsum('nlh,nhd->nld',
                         jnp.broadcast_to(act_b16, (3 * nh, L, H)), wqkv1,
                         preferred_element_type=jnp.float32)        # (3nh,L,hd)
        q = (qkv[:nh] * scale).astype(bf16)       # scale folded into Q once
        k = qkv[nh:2 * nh].astype(bf16)
        v = qkv[2 * nh:].astype(bf16)
        sa = jnp.concatenate(
            [attend(q[:, bi * S:(bi + 1) * S], k[:, bi * S:(bi + 1) * S],
                    v[:, bi * S:(bi + 1) * S], causal, wo1)
             for bi in range(Bt)], axis=0)                           # (L,H)
        y1 = layer_norm(sa + act, g1, b1)

        # ---- encoder-decoder cross attention ----
        q2 = (jnp.einsum('nlh,nhd->nld',
                         jnp.broadcast_to(y1.astype(bf16), (nh, L, H)), wq2,
                         preferred_element_type=jnp.float32) * scale).astype(bf16)
        kv2 = jnp.einsum('nlh,nhd->nld',
                         jnp.broadcast_to(enc_b16, (2 * nh, Bt * Se, H)), wkv2,
                         preferred_element_type=jnp.float32)         # (2nh,Bt*Se,hd)
        k2 = kv2[:nh].astype(bf16)
        v2 = kv2[nh:].astype(bf16)
        ca = jnp.concatenate(
            [attend(q2[:, bi * S:(bi + 1) * S], k2[:, bi * Se:(bi + 1) * Se],
                    v2[:, bi * Se:(bi + 1) * Se], cross_masks[bi], wo2)
             for bi in range(Bt)], axis=0)                           # (L,H)
        y2 = layer_norm(ca + y1, g2, b2)

        # ---- positionwise FFN (batch folded into matmul rows) ----
        hid = jnp.maximum(
            jnp.dot(y2.astype(bf16), wf1, preferred_element_type=jnp.float32) + bf1,
            0.0)
        ffn = jnp.dot(hid.astype(bf16), wf2, preferred_element_type=jnp.float32) + bf2
        return layer_norm(ffn + y2, g3, b3)

    out = lax.fori_loop(0, nb, layer, x0, unroll=True)
    out_ref[...] = out.reshape(Bt, S, H)


def decoder_stack(x, enc, enc_valid_len, sp, num_heads, batch_tile=1):
    B, S, H = x.shape
    Se = enc.shape[1]
    Bt = batch_tile
    assert B % Bt == 0

    act_map = lambda g, ev: (g, 0, 0)            # batch-tile indexed
    full3 = lambda g, ev: (0, 0, 0)              # full array, resident across grid steps
    full4 = lambda g, ev: (0, 0, 0, 0)

    in_specs = [
        pl.BlockSpec((Bt, S, H), act_map),       # embedded decoder input
        pl.BlockSpec((Bt, Se, H), act_map),      # enc_output
        pl.BlockSpec(sp["wqkv1"].shape, full4),
        pl.BlockSpec(sp["wo1"].shape, full4),
        pl.BlockSpec(sp["wq2"].shape, full4),
        pl.BlockSpec(sp["wkv2"].shape, full4),
        pl.BlockSpec(sp["wo2"].shape, full4),
        pl.BlockSpec(sp["wf1"].shape, full3),
        pl.BlockSpec(sp["wf2"].shape, full3),
        pl.BlockSpec(sp["vecs"].shape, full3),
    ]
    out_spec = pl.BlockSpec((Bt, S, H), act_map)

    fn = pl.pallas_call(
        functools.partial(decoder_stack_kernel, num_heads=num_heads),
        out_shape=jax.ShapeDtypeStruct((B, S, H), jnp.float32),
        grid_spec=pltpu.PrefetchScalarGridSpec(
            num_scalar_prefetch=1,
            grid=(B // Bt,),
            in_specs=in_specs,
            out_specs=out_spec),
        compiler_params=pltpu.CompilerParams(
            dimension_semantics=("parallel",)),
    )
    return fn(enc_valid_len, x, enc,
              sp["wqkv1"], sp["wo1"], sp["wq2"], sp["wkv2"], sp["wo2"],
              sp["wf1"], sp["wf2"], sp["vecs"])


# ----------------------------- glue / params --------------------------------

def make_pos_encoding(seq_max_len, hidden):
    pos = jnp.zeros((seq_max_len, hidden), jnp.float32)
    tmp = jnp.arange(seq_max_len, dtype=jnp.float32).reshape(-1, 1)
    tmp2 = jnp.power(10000.0, jnp.arange(0, hidden, 2, dtype=jnp.float32) / hidden)
    tmp3 = tmp / tmp2
    pos = pos.at[:, 0::2].set(jnp.sin(tmp3))
    pos = pos.at[:, 1::2].set(jnp.cos(tmp3))
    return pos


def pack_block_params(blocks, num_heads):
    """Stack per-block weights; split attention weights per head so the kernel's
    attention is a leading-batch-dim einsum; pack bias/gamma/beta lane-aligned."""
    H = blocks[0]["wq1"].shape[0]
    F = blocks[0]["wf1"].shape[1]
    hd = H // num_heads
    P = ((max(H, F) + 127) // 128) * 128

    def heads_out(w):   # (H,H) -> (nh,H,hd): head n = output columns n*hd:(n+1)*hd
        return jnp.transpose(w.reshape(H, num_heads, hd), (1, 0, 2))

    def heads_in(w):    # (H,H) -> (nh,hd,H): head n = input rows n*hd:(n+1)*hd
        return w.reshape(num_heads, hd, H)

    def pad_row(v):     # (1,w) -> (1,P), lane offset 0
        return jnp.pad(v, ((0, 0), (0, P - v.shape[1])))

    def one(p):
        return dict(
            wqkv1=jnp.concatenate([heads_out(p["wq1"]), heads_out(p["wk1"]),
                                   heads_out(p["wv1"])], axis=0),
            wo1=heads_in(p["wo1"]),
            wq2=heads_out(p["wq2"]),
            wkv2=jnp.concatenate([heads_out(p["wk2"]), heads_out(p["wv2"])], axis=0),
            wo2=heads_in(p["wo2"]),
            wf1=p["wf1"], wf2=p["wf2"],
            # rows: g1|b1|g2|b2|g3|b3|bf1|bf2 (order matched in kernel)
            vec=jnp.concatenate([pad_row(p["g1"]), pad_row(p["b1"]),
                                 pad_row(p["g2"]), pad_row(p["b2"]),
                                 pad_row(p["g3"]), pad_row(p["b3"]),
                                 pad_row(p["bf1"]), pad_row(p["bf2"])], axis=0),
        )

    per = [one(p) for p in blocks]
    stack = lambda k: jnp.stack([d[k] for d in per], axis=0)
    sp = {k: stack(k).astype(jnp.bfloat16)
          for k in ("wqkv1", "wo1", "wq2", "wkv2", "wo2", "wf1", "wf2")}
    sp["vecs"] = stack("vec")      # keep f32 (LayerNorm / bias math stays f32)
    return sp


def init_params(key, vocab, H, F, num_blks, seq_max_len, num_heads):
    keys = jax.random.split(key, 1 + num_blks)
    embedding = jax.random.normal(keys[0], (vocab, H), jnp.float32) * 0.1
    blocks = []
    for i in range(num_blks):
        ks = jax.random.split(keys[1 + i], 12)
        lin = lambda k, di, do: jax.random.normal(k, (di, do), jnp.float32) / math.sqrt(di)
        blocks.append(dict(
            wq1=lin(ks[0], H, H), wk1=lin(ks[1], H, H),
            wv1=lin(ks[2], H, H), wo1=lin(ks[3], H, H),
            g1=jnp.ones((1, H), jnp.float32), b1=jnp.zeros((1, H), jnp.float32),
            wq2=lin(ks[4], H, H), wk2=lin(ks[5], H, H),
            wv2=lin(ks[6], H, H), wo2=lin(ks[7], H, H),
            g2=jnp.ones((1, H), jnp.float32), b2=jnp.zeros((1, H), jnp.float32),
            wf1=lin(ks[8], H, F), bf1=jax.random.normal(ks[9], (1, F), jnp.float32) * 0.01,
            wf2=lin(ks[10], F, H), bf2=jax.random.normal(ks[11], (1, H), jnp.float32) * 0.01,
            g3=jnp.ones((1, H), jnp.float32), b3=jnp.zeros((1, H), jnp.float32),
        ))
    return dict(embedding=embedding, pos_enc=make_pos_encoding(seq_max_len, H),
                blocks=blocks, stacked=pack_block_params(blocks, num_heads))


def transformer_decoder_forward(tokens, enc_output, enc_valid_len, params,
                                num_heads, H, batch_tile=1):
    # embedding lookup + sqrt(H) scaling + positional encoding (glue, plain JAX)
    x = params["embedding"][tokens] * math.sqrt(H)
    x = x + params["pos_enc"][: tokens.shape[1]][None]
    return decoder_stack(x, enc_output, enc_valid_len, params["stacked"],
                         num_heads, batch_tile=batch_tile)


# -------------------------- pure-JAX f32 reference ---------------------------

def _ref_ln(x, g, b, eps=1e-12):
    m = x.mean(-1, keepdims=True)
    v = ((x - m) ** 2).mean(-1, keepdims=True)
    return g * ((x - m) / jnp.sqrt(v + eps)) + b


def _ref_mha(q_in, kv_in, wq, wk, wv, wo, mask, num_heads):
    B, Lq, H = q_in.shape
    hd = H // num_heads
    split = lambda t: t.reshape(t.shape[0], t.shape[1], num_heads, hd).transpose(0, 2, 1, 3)
    qh, kh, vh = split(q_in @ wq), split(kv_in @ wk), split(kv_in @ wv)
    scores = jnp.einsum("bhqd,bhkd->bhqk", qh, kh) / math.sqrt(hd)
    scores = jnp.where(mask, scores, 1e-06)
    attn = jax.nn.softmax(scores, axis=-1)
    o = jnp.einsum("bhqk,bhkd->bhqd", attn, vh).transpose(0, 2, 1, 3).reshape(B, Lq, H)
    return o @ wo


def _ref_block(x, enc, enc_valid_len, p, num_heads):
    B, S, H = x.shape
    Se = enc.shape[1]
    self_mask = (jnp.arange(S)[None, :] <= jnp.arange(S)[:, None])[None, None]
    sa = _ref_mha(x, x, p["wq1"], p["wk1"], p["wv1"], p["wo1"], self_mask, num_heads)
    y1 = _ref_ln(sa + x, p["g1"], p["b1"])
    cross_mask = (jnp.arange(Se)[None, :] < enc_valid_len[:, None])[:, None, None, :]
    ca = _ref_mha(y1, enc, p["wq2"], p["wk2"], p["wv2"], p["wo2"], cross_mask, num_heads)
    y2 = _ref_ln(ca + y1, p["g2"], p["b2"])
    ffn = jax.nn.relu(y2 @ p["wf1"] + p["bf1"]) @ p["wf2"] + p["bf2"]
    return _ref_ln(ffn + y2, p["g3"], p["b3"])


def ref_forward(tokens, enc_output, enc_valid_len, params, num_heads, H):
    x = params["embedding"][tokens] * math.sqrt(H)
    x = x + params["pos_enc"][: tokens.shape[1]][None]
    for p in params["blocks"]:
        x = _ref_block(x, enc_output, enc_valid_len, p, num_heads)
    return x


# --------------------------------- main --------------------------------------

if __name__ == "__main__":
    B, S, Se = 2, 8, 16
    H, F, num_heads = 32, 64, 4
    num_blks, vocab, seq_max = 2, 50, 32

    key = jax.random.PRNGKey(0)
    kp, kt, ke = jax.random.split(key, 3)
    params = init_params(kp, vocab, H, F, num_blks, seq_max, num_heads)
    tokens = jax.random.randint(kt, (B, S), 0, vocab, dtype=jnp.int32)
    enc_output = jax.random.normal(ke, (B, Se, H), jnp.float32)
    enc_valid_len = jnp.array([Se, Se // 2], dtype=jnp.int32)

    # batch_tile=1 keeps grid=(2,) "parallel" (v7x megacore); raise it to fold more
    # batch rows into each matmul tile when B grows (weights are only fetched once
    # regardless, since their block index is constant across grid steps).
    out = transformer_decoder_forward(tokens, enc_output, enc_valid_len,
                                      params, num_heads, H, batch_tile=1)
    out = jax.block_until_ready(out)

    # Tolerance accounts for bf16 MXU operands + approx reciprocal vs f32 reference.
    ref = ref_forward(tokens, enc_output, enc_valid_len, params, num_heads, H)
    np.testing.assert_allclose(np.asarray(out), np.asarray(ref), rtol=5e-2, atol=5e-2)
    print("KERNEL_OK")
</pallas_src>

<mosaic_0001>
module attributes {stable_mosaic.version = 11 : i64} {
  func.func @decoder_stack_kernel(%arg0: i32, %arg1: memref<2xi32, #tpu.memory_space<smem>>, %arg2: memref<1x8x32xf32, #tpu.memory_space<vmem>>, %arg3: memref<1x16x32xf32, #tpu.memory_space<vmem>>, %arg4: memref<2x12x32x8xbf16, #tpu.memory_space<vmem>>, %arg5: memref<2x4x8x32xbf16, #tpu.memory_space<vmem>>, %arg6: memref<2x4x32x8xbf16, #tpu.memory_space<vmem>>, %arg7: memref<2x8x32x8xbf16, #tpu.memory_space<vmem>>, %arg8: memref<2x4x8x32xbf16, #tpu.memory_space<vmem>>, %arg9: memref<2x32x64xbf16, #tpu.memory_space<vmem>>, %arg10: memref<2x64x32xbf16, #tpu.memory_space<vmem>>, %arg11: memref<2x8x128xf32, #tpu.memory_space<vmem>>, %arg12: memref<1x8x32xf32, #tpu.memory_space<vmem>>) attributes {dimension_semantics = [#tpu.dimension_semantics<parallel>], iteration_bounds = array<i64: 2>, scalar_prefetch = 1 : i64, scratch_operands = 0 : i64, tpu.core_type = #tpu.core_type<tc>, window_params = [{transform_indices = @transform_0, window_bounds = array<i64: 1, 8, 32>}, {transform_indices = @transform_1, window_bounds = array<i64: 1, 16, 32>}, {pipeline_mode = #tpu.pipeline_mode<synchronous>, transform_indices = @transform_2, window_bounds = array<i64: 2, 12, 32, 8>}, {pipeline_mode = #tpu.pipeline_mode<synchronous>, transform_indices = @transform_3, window_bounds = array<i64: 2, 4, 8, 32>}, {pipeline_mode = #tpu.pipeline_mode<synchronous>, transform_indices = @transform_4, window_bounds = array<i64: 2, 4, 32, 8>}, {pipeline_mode = #tpu.pipeline_mode<synchronous>, transform_indices = @transform_5, window_bounds = array<i64: 2, 8, 32, 8>}, {pipeline_mode = #tpu.pipeline_mode<synchronous>, transform_indices = @transform_6, window_bounds = array<i64: 2, 4, 8, 32>}, {pipeline_mode = #tpu.pipeline_mode<synchronous>, transform_indices = @transform_7, window_bounds = array<i64: 2, 32, 64>}, {pipeline_mode = #tpu.pipeline_mode<synchronous>, transform_indices = @transform_8, window_bounds = array<i64: 2, 64, 32>}, {pipeline_mode = #tpu.pipeline_mode<synchronous>, transform_indices = @transform_9, window_bounds = array<i64: 2, 8, 128>}, {transform_indices = @transform_10, window_bounds = array<i64: 1, 8, 32>}]} {
    %c0 = arith.constant 0 : index
    %c0_0 = arith.constant 0 : index
    %c0_1 = arith.constant 0 : index
    %0 = vector.load %arg2[%c0, %c0_0, %c0_1] : memref<1x8x32xf32, #tpu.memory_space<vmem>>, vector<1x8x32xf32>
    %1 = vector.shape_cast %0 : vector<1x8x32xf32> to vector<8x32xf32>
    %c0_2 = arith.constant 0 : index
    %c0_3 = arith.constant 0 : index
    %c0_4 = arith.constant 0 : index
    %2 = vector.load %arg3[%c0_2, %c0_3, %c0_4] : memref<1x16x32xf32, #tpu.memory_space<vmem>>, vector<1x16x32xf32>
    %3 = vector.shape_cast %2 : vector<1x16x32xf32> to vector<16x32xf32>
    %4 = arith.truncf %3 : vector<16x32xf32> to vector<16x32xbf16>
    %5 = tpu.iota {dimensions = array<i32: 0>} : vector<8x8xi32>
    %6 = tpu.iota {dimensions = array<i32: 1>} : vector<8x8xi32>
    %7 = arith.cmpi sle, %6, %5 : vector<8x8xi32>
    %8 = vector.shape_cast %7 : vector<8x8xi1> to vector<1x8x8xi1>
    %9 = vector.shape_cast %8 : vector<1x8x8xi1> to vector<1x8x8xi1>
    %10 = vector.broadcast %9 : vector<1x8x8xi1> to vector<4x8x8xi1>
    %11 = tpu.iota {dimensions = array<i32: 1>} : vector<8x16xi32>
    %c1_i32 = arith.constant 1 : i32
    %12 = arith.muli %arg0, %c1_i32 : i32
    %c0_i32 = arith.constant 0 : i32
    %13 = arith.addi %12, %c0_i32 : i32
    %14 = arith.index_cast %13 : i32 to index
    %15 = memref.load %arg1[%14] : memref<2xi32, #tpu.memory_space<smem>>
    %16 = vector.broadcast %15 : i32 to vector<8x16xi32>
    %17 = arith.cmpi slt, %11, %16 : vector<8x16xi32>
    %18 = vector.shape_cast %17 : vector<8x16xi1> to vector<1x8x16xi1>
    %19 = vector.shape_cast %18 : vector<1x8x16xi1> to vector<1x8x16xi1>
    %20 = vector.broadcast %19 : vector<1x8x16xi1> to vector<4x8x16xi1>
    %c0_i32_5 = arith.constant 0 : i32
    %21 = arith.index_cast %c0_i32_5 : i32 to index
    %c0_6 = arith.constant 0 : index
    %c0_7 = arith.constant 0 : index
    %c0_8 = arith.constant 0 : index
    %22 = vector.load %arg4[%21, %c0_6, %c0_7, %c0_8] : memref<2x12x32x8xbf16, #tpu.memory_space<vmem>>, vector<1x12x32x8xbf16>
    %23 = vector.shape_cast %22 : vector<1x12x32x8xbf16> to vector<12x32x8xbf16>
    %24 = arith.index_cast %c0_i32_5 : i32 to index
    %c0_9 = arith.constant 0 : index
    %c0_10 = arith.constant 0 : index
    %c0_11 = arith.constant 0 : index
    %25 = vector.load %arg5[%24, %c0_9, %c0_10, %c0_11] : memref<2x4x8x32xbf16, #tpu.memory_space<vmem>>, vector<1x4x8x32xbf16>
    %26 = vector.shape_cast %25 : vector<1x4x8x32xbf16> to vector<4x8x32xbf16>
    %27 = arith.index_cast %c0_i32_5 : i32 to index
    %c0_12 = arith.constant 0 : index
    %c0_13 = arith.constant 0 : index
    %c0_14 = arith.constant 0 : index
    %28 = vector.load %arg6[%27, %c0_12, %c0_13, %c0_14] : memref<2x4x32x8xbf16, #tpu.memory_space<vmem>>, vector<1x4x32x8xbf16>
    %29 = vector.shape_cast %28 : vector<1x4x32x8xbf16> to vector<4x32x8xbf16>
    %30 = arith.index_cast %c0_i32_5 : i32 to index
    %c0_15 = arith.constant 0 : index
    %c0_16 = arith.constant 0 : index
    %c0_17 = arith.constant 0 : index
    %31 = vector.load %arg7[%30, %c0_15, %c0_16, %c0_17] : memref<2x8x32x8xbf16, #tpu.memory_space<vmem>>, vector<1x8x32x8xbf16>
    %32 = vector.shape_cast %31 : vector<1x8x32x8xbf16> to vector<8x32x8xbf16>
    %33 = arith.index_cast %c0_i32_5 : i32 to index
    %c0_18 = arith.constant 0 : index
    %c0_19 = arith.constant 0 : index
    %c0_20 = arith.constant 0 : index
    %34 = vector.load %arg8[%33, %c0_18, %c0_19, %c0_20] : memref<2x4x8x32xbf16, #tpu.memory_space<vmem>>, vector<1x4x8x32xbf16>
    %35 = vector.shape_cast %34 : vector<1x4x8x32xbf16> to vector<4x8x32xbf16>
    %36 = arith.index_cast %c0_i32_5 : i32 to index
    %c0_21 = arith.constant 0 : index
    %c0_22 = arith.constant 0 : index
    %37 = vector.load %arg9[%36, %c0_21, %c0_22] : memref<2x32x64xbf16, #tpu.memory_space<vmem>>, vector<1x32x64xbf16>
    %38 = vector.shape_cast %37 : vector<1x32x64xbf16> to vector<32x64xbf16>
    %39 = arith.index_cast %c0_i32_5 : i32 to index
    %c0_23 = arith.constant 0 : index
    %c0_24 = arith.constant 0 : index
    %40 = vector.load %arg10[%39, %c0_23, %c0_24] : memref<2x64x32xbf16, #tpu.memory_space<vmem>>, vector<1x64x32xbf16>
    %41 = vector.shape_cast %40 : vector<1x64x32xbf16> to vector<64x32xbf16>
    %42 = arith.index_cast %c0_i32_5 : i32 to index
    %c0_25 = arith.constant 0 : index
    %c0_26 = arith.constant 0 : index
    %43 = vector.load %arg11[%42, %c0_25, %c0_26] : memref<2x8x128xf32, #tpu.memory_space<vmem>>, vector<1x8x128xf32>
    %44 = vector.shape_cast %43 : vector<1x8x128xf32> to vector<8x128xf32>
    %45 = vector.extract_strided_slice %44 {offsets = [0, 0], sizes = [1, 32], strides = [1, 1]} : vector<8x128xf32> to vector<1x32xf32>
    %46 = vector.extract_strided_slice %44 {offsets = [1, 0], sizes = [1, 32], strides = [1, 1]} : vector<8x128xf32> to vector<1x32xf32>
    %47 = vector.extract_strided_slice %44 {offsets = [2, 0], sizes = [1, 32], strides = [1, 1]} : vector<8x128xf32> to vector<1x32xf32>
    %48 = vector.extract_strided_slice %44 {offsets = [3, 0], sizes = [1, 32], strides = [1, 1]} : vector<8x128xf32> to vector<1x32xf32>
    %49 = vector.extract_strided_slice %44 {offsets = [4, 0], sizes = [1, 32], strides = [1, 1]} : vector<8x128xf32> to vector<1x32xf32>
    %50 = vector.extract_strided_slice %44 {offsets = [5, 0], sizes = [1, 32], strides = [1, 1]} : vector<8x128xf32> to vector<1x32xf32>
    %51 = vector.extract_strided_slice %44 {offsets = [6, 0], sizes = [1, 64], strides = [1, 1]} : vector<8x128xf32> to vector<1x64xf32>
    %52 = vector.extract_strided_slice %44 {offsets = [7, 0], sizes = [1, 32], strides = [1, 1]} : vector<8x128xf32> to vector<1x32xf32>
    %53 = arith.truncf %1 : vector<8x32xf32> to vector<8x32xbf16>
    %54 = vector.shape_cast %53 : vector<8x32xbf16> to vector<1x8x32xbf16>
    %55 = vector.broadcast %54 : vector<1x8x32xbf16> to vector<12x8x32xbf16>
    "tpu.trace_start"() <{level = 10 : i32, message = "nlh,nhd->nld"}> : () -> ()
    %cst = arith.constant dense<0.000000e+00> : vector<12x8x8xf32>
    %56 = tpu.matmul %55, %23, %cst {dimension_numbers = #tpu.dot_dimension_numbers<[2], [1], [1], [2], [0, 0, 0, 1, 1, 2], [0], [0]>} : vector<12x8x32xbf16>, vector<12x32x8xbf16>, vector<12x8x8xf32> -> vector<12x8x8xf32>
    "tpu.trace_stop"() : () -> ()
    %57 = vector.extract_strided_slice %56 {offsets = [0, 0, 0], sizes = [4, 8, 8], strides = [1, 1, 1]} : vector<12x8x8xf32> to vector<4x8x8xf32>
    %cst_27 = arith.constant 0.353553385 : f32
    %58 = vector.broadcast %cst_27 : f32 to vector<4x8x8xf32>
    %59 = arith.mulf %57, %58 : vector<4x8x8xf32>
    %60 = arith.truncf %59 : vector<4x8x8xf32> to vector<4x8x8xbf16>
    %61 = vector.extract_strided_slice %56 {offsets = [4, 0, 0], sizes = [4, 8, 8], strides = [1, 1, 1]} : vector<12x8x8xf32> to vector<4x8x8xf32>
    %62 = arith.truncf %61 : vector<4x8x8xf32> to vector<4x8x8xbf16>
    %63 = vector.extract_strided_slice %56 {offsets = [8, 0, 0], sizes = [4, 8, 8], strides = [1, 1, 1]} : vector<12x8x8xf32> to vector<4x8x8xf32>
    %64 = arith.truncf %63 : vector<4x8x8xf32> to vector<4x8x8xbf16>
    "tpu.trace_start"() <{level = 10 : i32, message = "nqd,nkd->nqk"}> : () -> ()
    %cst_28 = arith.constant dense<0.000000e+00> : vector<4x8x8xf32>
    %65 = tpu.matmul %60, %62, %cst_28 {dimension_numbers = #tpu.dot_dimension_numbers<[2], [2], [1], [1], [0, 0, 0, 1, 1, 1], [0], [0]>} : vector<4x8x8xbf16>, vector<4x8x8xbf16>, vector<4x8x8xf32> -> vector<4x8x8xf32>
    %cst_29 = arith.constant 9.99999997E-7 : f32
    "tpu.trace_stop"() : () -> ()
    %66 = vector.broadcast %cst_29 : f32 to vector<4x8x8xf32>
    %67 = arith.select %10, %65, %66 : vector<4x8x8xi1>, vector<4x8x8xf32>
    %cst_30 = arith.constant dense<0xFF800000> : vector<4x8xf32>
    %68 = vector.multi_reduction <maximumf>, %67, %cst_30 [2] : vector<4x8x8xf32> to vector<4x8xf32>
    %69 = vector.shape_cast %68 : vector<4x8xf32> to vector<4x8x1xf32>
    %70 = vector.broadcast %69 : vector<4x8x1xf32> to vector<4x8x8xf32>
    %71 = arith.subf %67, %70 : vector<4x8x8xf32>
    %72 = math.exp %71 : vector<4x8x8xf32>
    %cst_31 = arith.constant dense<0.000000e+00> : vector<4x8xf32>
    %73 = vector.multi_reduction <add>, %72, %cst_31 [2] : vector<4x8x8xf32> to vector<4x8xf32>
    %74 = vector.shape_cast %73 : vector<4x8xf32> to vector<4x8x1xf32>
    %75 = tpu.reciprocal %74 {approx = true} : vector<4x8x1xf32> -> vector<4x8x1xf32>
    %76 = vector.broadcast %75 : vector<4x8x1xf32> to vector<4x8x8xf32>
    %77 = arith.mulf %72, %76 : vector<4x8x8xf32>
    %78 = arith.truncf %77 : vector<4x8x8xf32> to vector<4x8x8xbf16>
    "tpu.trace_start"() <{level = 10 : i32, message = "nqk,nkd->nqd"}> : () -> ()
    %cst_32 = arith.constant dense<0.000000e+00> : vector<4x8x8xf32>
    %79 = tpu.matmul %78, %64, %cst_32 {dimension_numbers = #tpu.dot_dimension_numbers<[2], [1], [1], [2], [0, 0, 0, 1, 1, 2], [0], [0]>} : vector<4x8x8xbf16>, vector<4x8x8xbf16>, vector<4x8x8xf32> -> vector<4x8x8xf32>
    "tpu.trace_stop"() : () -> ()
    %80 = arith.truncf %79 : vector<4x8x8xf32> to vector<4x8x8xbf16>
    "tpu.trace_start"() <{level = 10 : i32, message = "nqd,ndh->nqh"}> : () -> ()
    %cst_33 = arith.constant dense<0.000000e+00> : vector<4x8x32xf32>
    %81 = tpu.matmul %80, %26, %cst_33 {dimension_numbers = #tpu.dot_dimension_numbers<[2], [1], [1], [2], [0, 0, 0, 1, 1, 2], [0], [0]>} : vector<4x8x8xbf16>, vector<4x8x32xbf16>, vector<4x8x32xf32> -> vector<4x8x32xf32>
    "tpu.trace_stop"() : () -> ()
    %cst_34 = arith.constant dense<0.000000e+00> : vector<8x32xf32>
    %82 = vector.multi_reduction <add>, %81, %cst_34 [0] : vector<4x8x32xf32> to vector<8x32xf32>
    %83 = arith.addf %82, %1 : vector<8x32xf32>
    %cst_35 = arith.constant dense<0.000000e+00> : vector<8xf32>
    %84 = vector.multi_reduction <add>, %83, %cst_35 [1] : vector<8x32xf32> to vector<8xf32>
    %85 = vector.shape_cast %84 : vector<8xf32> to vector<8x1xf32>
    %cst_36 = arith.constant 3.200000e+01 : f32
    %86 = vector.broadcast %cst_36 : f32 to vector<8x1xf32>
    %87 = arith.divf %85, %86 : vector<8x1xf32>
    %88 = vector.broadcast %87 : vector<8x1xf32> to vector<8x32xf32>
    %89 = arith.subf %83, %88 : vector<8x32xf32>
    %90 = arith.mulf %89, %89 : vector<8x32xf32>
    %cst_37 = arith.constant dense<0.000000e+00> : vector<8xf32>
    %91 = vector.multi_reduction <add>, %90, %cst_37 [1] : vector<8x32xf32> to vector<8xf32>
    %92 = vector.shape_cast %91 : vector<8xf32> to vector<8x1xf32>
    %cst_38 = arith.constant 3.200000e+01 : f32
    %93 = vector.broadcast %cst_38 : f32 to vector<8x1xf32>
    %94 = arith.divf %92, %93 : vector<8x1xf32>
    %95 = vector.broadcast %87 : vector<8x1xf32> to vector<8x32xf32>
    %96 = arith.subf %83, %95 : vector<8x32xf32>
    %cst_39 = arith.constant 9.99999996E-13 : f32
    %97 = vector.broadcast %cst_39 : f32 to vector<8x1xf32>
    %98 = arith.addf %94, %97 : vector<8x1xf32>
    %99 = math.rsqrt %98 : vector<8x1xf32>
    %100 = vector.broadcast %99 : vector<8x1xf32> to vector<8x32xf32>
    %101 = arith.mulf %96, %100 : vector<8x32xf32>
    %102 = vector.broadcast %45 : vector<1x32xf32> to vector<8x32xf32>
    %103 = arith.mulf %102, %101 : vector<8x32xf32>
    %104 = vector.broadcast %46 : vector<1x32xf32> to vector<8x32xf32>
    %105 = arith.addf %103, %104 : vector<8x32xf32>
    %106 = arith.truncf %105 : vector<8x32xf32> to vector<8x32xbf16>
    %107 = vector.shape_cast %106 : vector<8x32xbf16> to vector<1x8x32xbf16>
    %108 = vector.broadcast %107 : vector<1x8x32xbf16> to vector<4x8x32xbf16>
    "tpu.trace_start"() <{level = 10 : i32, message = "nlh,nhd->nld"}> : () -> ()
    %cst_40 = arith.constant dense<0.000000e+00> : vector<4x8x8xf32>
    %109 = tpu.matmul %108, %29, %cst_40 {dimension_numbers = #tpu.dot_dimension_numbers<[2], [1], [1], [2], [0, 0, 0, 1, 1, 2], [0], [0]>} : vector<4x8x32xbf16>, vector<4x32x8xbf16>, vector<4x8x8xf32> -> vector<4x8x8xf32>
    "tpu.trace_stop"() : () -> ()
    %cst_41 = arith.constant 0.353553385 : f32
    %110 = vector.broadcast %cst_41 : f32 to vector<4x8x8xf32>
    %111 = arith.mulf %109, %110 : vector<4x8x8xf32>
    %112 = arith.truncf %111 : vector<4x8x8xf32> to vector<4x8x8xbf16>
    %113 = vector.shape_cast %4 : vector<16x32xbf16> to vector<1x16x32xbf16>
    %114 = vector.broadcast %113 : vector<1x16x32xbf16> to vector<8x16x32xbf16>
    "tpu.trace_start"() <{level = 10 : i32, message = "nlh,nhd->nld"}> : () -> ()
    %cst_42 = arith.constant dense<0.000000e+00> : vector<8x16x8xf32>
    %115 = tpu.matmul %114, %32, %cst_42 {dimension_numbers = #tpu.dot_dimension_numbers<[2], [1], [1], [2], [0, 0, 0, 1, 1, 2], [0], [0]>} : vector<8x16x32xbf16>, vector<8x32x8xbf16>, vector<8x16x8xf32> -> vector<8x16x8xf32>
    "tpu.trace_stop"() : () -> ()
    %116 = vector.extract_strided_slice %115 {offsets = [0, 0, 0], sizes = [4, 16, 8], strides = [1, 1, 1]} : vector<8x16x8xf32> to vector<4x16x8xf32>
    %117 = arith.truncf %116 : vector<4x16x8xf32> to vector<4x16x8xbf16>
    %118 = vector.extract_strided_slice %115 {offsets = [4, 0, 0], sizes = [4, 16, 8], strides = [1, 1, 1]} : vector<8x16x8xf32> to vector<4x16x8xf32>
    %119 = arith.truncf %118 : vector<4x16x8xf32> to vector<4x16x8xbf16>
    "tpu.trace_start"() <{level = 10 : i32, message = "nqd,nkd->nqk"}> : () -> ()
    %cst_43 = arith.constant dense<0.000000e+00> : vector<4x8x16xf32>
    %120 = tpu.matmul %112, %117, %cst_43 {dimension_numbers = #tpu.dot_dimension_numbers<[2], [2], [1], [1], [0, 0, 0, 1, 1, 1], [0], [0]>} : vector<4x8x8xbf16>, vector<4x16x8xbf16>, vector<4x8x16xf32> -> vector<4x8x16xf32>
    %cst_44 = arith.constant 9.99999997E-7 : f32
    "tpu.trace_stop"() : () -> ()
    %121 = vector.broadcast %cst_44 : f32 to vector<4x8x16xf32>
    %122 = arith.select %20, %120, %121 : vector<4x8x16xi1>, vector<4x8x16xf32>
    %cst_45 = arith.constant dense<0xFF800000> : vector<4x8xf32>
    %123 = vector.multi_reduction <maximumf>, %122, %cst_45 [2] : vector<4x8x16xf32> to vector<4x8xf32>
    %124 = vector.shape_cast %123 : vector<4x8xf32> to vector<4x8x1xf32>
    %125 = vector.broadcast %124 : vector<4x8x1xf32> to vector<4x8x16xf32>
    %126 = arith.subf %122, %125 : vector<4x8x16xf32>
    %127 = math.exp %126 : vector<4x8x16xf32>
    %cst_46 = arith.constant dense<0.000000e+00> : vector<4x8xf32>
    %128 = vector.multi_reduction <add>, %127, %cst_46 [2] : vector<4x8x16xf32> to vector<4x8xf32>
    %129 = vector.shape_cast %128 : vector<4x8xf32> to vector<4x8x1xf32>
    %130 = tpu.reciprocal %129 {approx = true} : vector<4x8x1xf32> -> vector<4x8x1xf32>
    %131 = vector.broadcast %130 : vector<4x8x1xf32> to vector<4x8x16xf32>
    %132 = arith.mulf %127, %131 : vector<4x8x16xf32>
    %133 = arith.truncf %132 : vector<4x8x16xf32> to vector<4x8x16xbf16>
    "tpu.trace_start"() <{level = 10 : i32, message = "nqk,nkd->nqd"}> : () -> ()
    %cst_47 = arith.constant dense<0.000000e+00> : vector<4x8x8xf32>
    %134 = tpu.matmul %133, %119, %cst_47 {dimension_numbers = #tpu.dot_dimension_numbers<[2], [1], [1], [2], [0, 0, 0, 1, 1, 2], [0], [0]>} : vector<4x8x16xbf16>, vector<4x16x8xbf16>, vector<4x8x8xf32> -> vector<4x8x8xf32>
    "tpu.trace_stop"() : () -> ()
    %135 = arith.truncf %134 : vector<4x8x8xf32> to vector<4x8x8xbf16>
    "tpu.trace_start"() <{level = 10 : i32, message = "nqd,ndh->nqh"}> : () -> ()
    %cst_48 = arith.constant dense<0.000000e+00> : vector<4x8x32xf32>
    %136 = tpu.matmul %135, %35, %cst_48 {dimension_numbers = #tpu.dot_dimension_numbers<[2], [1], [1], [2], [0, 0, 0, 1, 1, 2], [0], [0]>} : vector<4x8x8xbf16>, vector<4x8x32xbf16>, vector<4x8x32xf32> -> vector<4x8x32xf32>
    "tpu.trace_stop"() : () -> ()
    %cst_49 = arith.constant dense<0.000000e+00> : vector<8x32xf32>
    %137 = vector.multi_reduction <add>, %136, %cst_49 [0] : vector<4x8x32xf32> to vector<8x32xf32>
    %138 = arith.addf %137, %105 : vector<8x32xf32>
    %cst_50 = arith.constant dense<0.000000e+00> : vector<8xf32>
    %139 = vector.multi_reduction <add>, %138, %cst_50 [1] : vector<8x32xf32> to vector<8xf32>
    %140 = vector.shape_cast %139 : vector<8xf32> to vector<8x1xf32>
    %cst_51 = arith.constant 3.200000e+01 : f32
    %141 = vector.broadcast %cst_51 : f32 to vector<8x1xf32>
    %142 = arith.divf %140, %141 : vector<8x1xf32>
    %143 = vector.broadcast %142 : vector<8x1xf32> to vector<8x32xf32>
    %144 = arith.subf %138, %143 : vector<8x32xf32>
    %145 = arith.mulf %144, %144 : vector<8x32xf32>
    %cst_52 = arith.constant dense<0.000000e+00> : vector<8xf32>
    %146 = vector.multi_reduction <add>, %145, %cst_52 [1] : vector<8x32xf32> to vector<8xf32>
    %147 = vector.shape_cast %146 : vector<8xf32> to vector<8x1xf32>
    %cst_53 = arith.constant 3.200000e+01 : f32
    %148 = vector.broadcast %cst_53 : f32 to vector<8x1xf32>
    %149 = arith.divf %147, %148 : vector<8x1xf32>
    %150 = vector.broadcast %142 : vector<8x1xf32> to vector<8x32xf32>
    %151 = arith.subf %138, %150 : vector<8x32xf32>
    %cst_54 = arith.constant 9.99999996E-13 : f32
    %152 = vector.broadcast %cst_54 : f32 to vector<8x1xf32>
    %153 = arith.addf %149, %152 : vector<8x1xf32>
    %154 = math.rsqrt %153 : vector<8x1xf32>
    %155 = vector.broadcast %154 : vector<8x1xf32> to vector<8x32xf32>
    %156 = arith.mulf %151, %155 : vector<8x32xf32>
    %157 = vector.broadcast %47 : vector<1x32xf32> to vector<8x32xf32>
    %158 = arith.mulf %157, %156 : vector<8x32xf32>
    %159 = vector.broadcast %48 : vector<1x32xf32> to vector<8x32xf32>
    %160 = arith.addf %158, %159 : vector<8x32xf32>
    %161 = arith.truncf %160 : vector<8x32xf32> to vector<8x32xbf16>
    %cst_55 = arith.constant dense<0.000000e+00> : vector<8x64xf32>
    %162 = tpu.matmul %161, %38, %cst_55 {dimension_numbers = #tpu.dot_dimension_numbers<[1], [0], [0], [1], [0, 0, 1, 1], [], []>} : vector<8x32xbf16>, vector<32x64xbf16>, vector<8x64xf32> -> vector<8x64xf32>
    %163 = vector.broadcast %51 : vector<1x64xf32> to vector<8x64xf32>
    %164 = arith.addf %162, %163 : vector<8x64xf32>
    %cst_56 = arith.constant 0.000000e+00 : f32
    %165 = vector.broadcast %cst_56 : f32 to vector<8x64xf32>
    %166 = arith.maximumf %164, %165 : vector<8x64xf32>
    %167 = arith.truncf %166 : vector<8x64xf32> to vector<8x64xbf16>
    %cst_57 = arith.constant dense<0.000000e+00> : vector<8x32xf32>
    %168 = tpu.matmul %167, %41, %cst_57 {dimension_numbers = #tpu.dot_dimension_numbers<[1], [0], [0], [1], [0, 0, 1, 1], [], []>} : vector<8x64xbf16>, vector<64x32xbf16>, vector<8x32xf32> -> vector<8x32xf32>
    %169 = vector.broadcast %52 : vector<1x32xf32> to vector<8x32xf32>
    %170 = arith.addf %168, %169 : vector<8x32xf32>
    %171 = arith.addf %170, %160 : vector<8x32xf32>
    %cst_58 = arith.constant dense<0.000000e+00> : vector<8xf32>
    %172 = vector.multi_reduction <add>, %171, %cst_58 [1] : vector<8x32xf32> to vector<8xf32>
    %173 = vector.shape_cast %172 : vector<8xf32> to vector<8x1xf32>
    %cst_59 = arith.constant 3.200000e+01 : f32
    %174 = vector.broadcast %cst_59 : f32 to vector<8x1xf32>
    %175 = arith.divf %173, %174 : vector<8x1xf32>
    %176 = vector.broadcast %175 : vector<8x1xf32> to vector<8x32xf32>
    %177 = arith.subf %171, %176 : vector<8x32xf32>
    %178 = arith.mulf %177, %177 : vector<8x32xf32>
    %cst_60 = arith.constant dense<0.000000e+00> : vector<8xf32>
    %179 = vector.multi_reduction <add>, %178, %cst_60 [1] : vector<8x32xf32> to vector<8xf32>
    %180 = vector.shape_cast %179 : vector<8xf32> to vector<8x1xf32>
    %cst_61 = arith.constant 3.200000e+01 : f32
    %181 = vector.broadcast %cst_61 : f32 to vector<8x1xf32>
    %182 = arith.divf %180, %181 : vector<8x1xf32>
    %183 = vector.broadcast %175 : vector<8x1xf32> to vector<8x32xf32>
    %184 = arith.subf %171, %183 : vector<8x32xf32>
    %cst_62 = arith.constant 9.99999996E-13 : f32
    %185 = vector.broadcast %cst_62 : f32 to vector<8x1xf32>
    %186 = arith.addf %182, %185 : vector<8x1xf32>
    %187 = math.rsqrt %186 : vector<8x1xf32>
    %188 = vector.broadcast %187 : vector<8x1xf32> to vector<8x32xf32>
    %189 = arith.mulf %184, %188 : vector<8x32xf32>
    %190 = vector.broadcast %49 : vector<1x32xf32> to vector<8x32xf32>
    %191 = arith.mulf %190, %189 : vector<8x32xf32>
    %192 = vector.broadcast %50 : vector<1x32xf32> to vector<8x32xf32>
    %193 = arith.addf %191, %192 : vector<8x32xf32>
    %c1_i32_63 = arith.constant 1 : i32
    %194 = arith.index_cast %c1_i32_63 : i32 to index
    %c0_64 = arith.constant 0 : index
    %c0_65 = arith.constant 0 : index
    %c0_66 = arith.constant 0 : index
    %195 = vector.load %arg4[%194, %c0_64, %c0_65, %c0_66] : memref<2x12x32x8xbf16, #tpu.memory_space<vmem>>, vector<1x12x32x8xbf16>
    %196 = vector.shape_cast %195 : vector<1x12x32x8xbf16> to vector<12x32x8xbf16>
    %197 = arith.index_cast %c1_i32_63 : i32 to index
    %c0_67 = arith.constant 0 : index
    %c0_68 = arith.constant 0 : index
    %c0_69 = arith.constant 0 : index
    %198 = vector.load %arg5[%197, %c0_67, %c0_68, %c0_69] : memref<2x4x8x32xbf16, #tpu.memory_space<vmem>>, vector<1x4x8x32xbf16>
    %199 = vector.shape_cast %198 : vector<1x4x8x32xbf16> to vector<4x8x32xbf16>
    %200 = arith.index_cast %c1_i32_63 : i32 to index
    %c0_70 = arith.constant 0 : index
    %c0_71 = arith.constant 0 : index
    %c0_72 = arith.constant 0 : index
    %201 = vector.load %arg6[%200, %c0_70, %c0_71, %c0_72] : memref<2x4x32x8xbf16, #tpu.memory_space<vmem>>, vector<1x4x32x8xbf16>
    %202 = vector.shape_cast %201 : vector<1x4x32x8xbf16> to vector<4x32x8xbf16>
    %203 = arith.index_cast %c1_i32_63 : i32 to index
    %c0_73 = arith.constant 0 : index
    %c0_74 = arith.constant 0 : index
    %c0_75 = arith.constant 0 : index
    %204 = vector.load %arg7[%203, %c0_73, %c0_74, %c0_75] : memref<2x8x32x8xbf16, #tpu.memory_space<vmem>>, vector<1x8x32x8xbf16>
    %205 = vector.shape_cast %204 : vector<1x8x32x8xbf16> to vector<8x32x8xbf16>
    %206 = arith.index_cast %c1_i32_63 : i32 to index
    %c0_76 = arith.constant 0 : index
    %c0_77 = arith.constant 0 : index
    %c0_78 = arith.constant 0 : index
    %207 = vector.load %arg8[%206, %c0_76, %c0_77, %c0_78] : memref<2x4x8x32xbf16, #tpu.memory_space<vmem>>, vector<1x4x8x32xbf16>
    %208 = vector.shape_cast %207 : vector<1x4x8x32xbf16> to vector<4x8x32xbf16>
    %209 = arith.index_cast %c1_i32_63 : i32 to index
    %c0_79 = arith.constant 0 : index
    %c0_80 = arith.constant 0 : index
    %210 = vector.load %arg9[%209, %c0_79, %c0_80] : memref<2x32x64xbf16, #tpu.memory_space<vmem>>, vector<1x32x64xbf16>
    %211 = vector.shape_cast %210 : vector<1x32x64xbf16> to vector<32x64xbf16>
    %212 = arith.index_cast %c1_i32_63 : i32 to index
    %c0_81 = arith.constant 0 : index
    %c0_82 = arith.constant 0 : index
    %213 = vector.load %arg10[%212, %c0_81, %c0_82] : memref<2x64x32xbf16, #tpu.memory_space<vmem>>, vector<1x64x32xbf16>
    %214 = vector.shape_cast %213 : vector<1x64x32xbf16> to vector<64x32xbf16>
    %215 = arith.index_cast %c1_i32_63 : i32 to index
    %c0_83 = arith.constant 0 : index
    %c0_84 = arith.constant 0 : index
    %216 = vector.load %arg11[%215, %c0_83, %c0_84] : memref<2x8x128xf32, #tpu.memory_space<vmem>>, vector<1x8x128xf32>
    %217 = vector.shape_cast %216 : vector<1x8x128xf32> to vector<8x128xf32>
    %218 = vector.extract_strided_slice %217 {offsets = [0, 0], sizes = [1, 32], strides = [1, 1]} : vector<8x128xf32> to vector<1x32xf32>
    %219 = vector.extract_strided_slice %217 {offsets = [1, 0], sizes = [1, 32], strides = [1, 1]} : vector<8x128xf32> to vector<1x32xf32>
    %220 = vector.extract_strided_slice %217 {offsets = [2, 0], sizes = [1, 32], strides = [1, 1]} : vector<8x128xf32> to vector<1x32xf32>
    %221 = vector.extract_strided_slice %217 {offsets = [3, 0], sizes = [1, 32], strides = [1, 1]} : vector<8x128xf32> to vector<1x32xf32>
    %222 = vector.extract_strided_slice %217 {offsets = [4, 0], sizes = [1, 32], strides = [1, 1]} : vector<8x128xf32> to vector<1x32xf32>
    %223 = vector.extract_strided_slice %217 {offsets = [5, 0], sizes = [1, 32], strides = [1, 1]} : vector<8x128xf32> to vector<1x32xf32>
    %224 = vector.extract_strided_slice %217 {offsets = [6, 0], sizes = [1, 64], strides = [1, 1]} : vector<8x128xf32> to vector<1x64xf32>
    %225 = vector.extract_strided_slice %217 {offsets = [7, 0], sizes = [1, 32], strides = [1, 1]} : vector<8x128xf32> to vector<1x32xf32>
    %226 = arith.truncf %193 : vector<8x32xf32> to vector<8x32xbf16>
    %227 = vector.shape_cast %226 : vector<8x32xbf16> to vector<1x8x32xbf16>
    %228 = vector.broadcast %227 : vector<1x8x32xbf16> to vector<12x8x32xbf16>
    "tpu.trace_start"() <{level = 10 : i32, message = "nlh,nhd->nld"}> : () -> ()
    %cst_85 = arith.constant dense<0.000000e+00> : vector<12x8x8xf32>
    %229 = tpu.matmul %228, %196, %cst_85 {dimension_numbers = #tpu.dot_dimension_numbers<[2], [1], [1], [2], [0, 0, 0, 1, 1, 2], [0], [0]>} : vector<12x8x32xbf16>, vector<12x32x8xbf16>, vector<12x8x8xf32> -> vector<12x8x8xf32>
    "tpu.trace_stop"() : () -> ()
    %230 = vector.extract_strided_slice %229 {offsets = [0, 0, 0], sizes = [4, 8, 8], strides = [1, 1, 1]} : vector<12x8x8xf32> to vector<4x8x8xf32>
    %cst_86 = arith.constant 0.353553385 : f32
    %231 = vector.broadcast %cst_86 : f32 to vector<4x8x8xf32>
    %232 = arith.mulf %230, %231 : vector<4x8x8xf32>
    %233 = arith.truncf %232 : vector<4x8x8xf32> to vector<4x8x8xbf16>
    %234 = vector.extract_strided_slice %229 {offsets = [4, 0, 0], sizes = [4, 8, 8], strides = [1, 1, 1]} : vector<12x8x8xf32> to vector<4x8x8xf32>
    %235 = arith.truncf %234 : vector<4x8x8xf32> to vector<4x8x8xbf16>
    %236 = vector.extract_strided_slice %229 {offsets = [8, 0, 0], sizes = [4, 8, 8], strides = [1, 1, 1]} : vector<12x8x8xf32> to vector<4x8x8xf32>
    %237 = arith.truncf %236 : vector<4x8x8xf32> to vector<4x8x8xbf16>
    "tpu.trace_start"() <{level = 10 : i32, message = "nqd,nkd->nqk"}> : () -> ()
    %cst_87 = arith.constant dense<0.000000e+00> : vector<4x8x8xf32>
    %238 = tpu.matmul %233, %235, %cst_87 {dimension_numbers = #tpu.dot_dimension_numbers<[2], [2], [1], [1], [0, 0, 0, 1, 1, 1], [0], [0]>} : vector<4x8x8xbf16>, vector<4x8x8xbf16>, vector<4x8x8xf32> -> vector<4x8x8xf32>
    %cst_88 = arith.constant 9.99999997E-7 : f32
    "tpu.trace_stop"() : () -> ()
    %239 = vector.broadcast %cst_88 : f32 to vector<4x8x8xf32>
    %240 = arith.select %10, %238, %239 : vector<4x8x8xi1>, vector<4x8x8xf32>
    %cst_89 = arith.constant dense<0xFF800000> : vector<4x8xf32>
    %241 = vector.multi_reduction <maximumf>, %240, %cst_89 [2] : vector<4x8x8xf32> to vector<4x8xf32>
    %242 = vector.shape_cast %241 : vector<4x8xf32> to vector<4x8x1xf32>
    %243 = vector.broadcast %242 : vector<4x8x1xf32> to vector<4x8x8xf32>
    %244 = arith.subf %240, %243 : vector<4x8x8xf32>
    %245 = math.exp %244 : vector<4x8x8xf32>
    %cst_90 = arith.constant dense<0.000000e+00> : vector<4x8xf32>
    %246 = vector.multi_reduction <add>, %245, %cst_90 [2] : vector<4x8x8xf32> to vector<4x8xf32>
    %247 = vector.shape_cast %246 : vector<4x8xf32> to vector<4x8x1xf32>
    %248 = tpu.reciprocal %247 {approx = true} : vector<4x8x1xf32> -> vector<4x8x1xf32>
    %249 = vector.broadcast %248 : vector<4x8x1xf32> to vector<4x8x8xf32>
    %250 = arith.mulf %245, %249 : vector<4x8x8xf32>
    %251 = arith.truncf %250 : vector<4x8x8xf32> to vector<4x8x8xbf16>
    "tpu.trace_start"() <{level = 10 : i32, message = "nqk,nkd->nqd"}> : () -> ()
    %cst_91 = arith.constant dense<0.000000e+00> : vector<4x8x8xf32>
    %252 = tpu.matmul %251, %237, %cst_91 {dimension_numbers = #tpu.dot_dimension_numbers<[2], [1], [1], [2], [0, 0, 0, 1, 1, 2], [0], [0]>} : vector<4x8x8xbf16>, vector<4x8x8xbf16>, vector<4x8x8xf32> -> vector<4x8x8xf32>
    "tpu.trace_stop"() : () -> ()
    %253 = arith.truncf %252 : vector<4x8x8xf32> to vector<4x8x8xbf16>
    "tpu.trace_start"() <{level = 10 : i32, message = "nqd,ndh->nqh"}> : () -> ()
    %cst_92 = arith.constant dense<0.000000e+00> : vector<4x8x32xf32>
    %254 = tpu.matmul %253, %199, %cst_92 {dimension_numbers = #tpu.dot_dimension_numbers<[2], [1], [1], [2], [0, 0, 0, 1, 1, 2], [0], [0]>} : vector<4x8x8xbf16>, vector<4x8x32xbf16>, vector<4x8x32xf32> -> vector<4x8x32xf32>
    "tpu.trace_stop"() : () -> ()
    %cst_93 = arith.constant dense<0.000000e+00> : vector<8x32xf32>
    %255 = vector.multi_reduction <add>, %254, %cst_93 [0] : vector<4x8x32xf32> to vector<8x32xf32>
    %256 = arith.addf %255, %193 : vector<8x32xf32>
    %cst_94 = arith.constant dense<0.000000e+00> : vector<8xf32>
    %257 = vector.multi_reduction <add>, %256, %cst_94 [1] : vector<8x32xf32> to vector<8xf32>
    %258 = vector.shape_cast %257 : vector<8xf32> to vector<8x1xf32>
    %cst_95 = arith.constant 3.200000e+01 : f32
    %259 = vector.broadcast %cst_95 : f32 to vector<8x1xf32>
    %260 = arith.divf %258, %259 : vector<8x1xf32>
    %261 = vector.broadcast %260 : vector<8x1xf32> to vector<8x32xf32>
    %262 = arith.subf %256, %261 : vector<8x32xf32>
    %263 = arith.mulf %262, %262 : vector<8x32xf32>
    %cst_96 = arith.constant dense<0.000000e+00> : vector<8xf32>
    %264 = vector.multi_reduction <add>, %263, %cst_96 [1] : vector<8x32xf32> to vector<8xf32>
    %265 = vector.shape_cast %264 : vector<8xf32> to vector<8x1xf32>
    %cst_97 = arith.constant 3.200000e+01 : f32
    %266 = vector.broadcast %cst_97 : f32 to vector<8x1xf32>
    %267 = arith.divf %265, %266 : vector<8x1xf32>
    %268 = vector.broadcast %260 : vector<8x1xf32> to vector<8x32xf32>
    %269 = arith.subf %256, %268 : vector<8x32xf32>
    %cst_98 = arith.constant 9.99999996E-13 : f32
    %270 = vector.broadcast %cst_98 : f32 to vector<8x1xf32>
    %271 = arith.addf %267, %270 : vector<8x1xf32>
    %272 = math.rsqrt %271 : vector<8x1xf32>
    %273 = vector.broadcast %272 : vector<8x1xf32> to vector<8x32xf32>
    %274 = arith.mulf %269, %273 : vector<8x32xf32>
    %275 = vector.broadcast %218 : vector<1x32xf32> to vector<8x32xf32>
    %276 = arith.mulf %275, %274 : vector<8x32xf32>
    %277 = vector.broadcast %219 : vector<1x32xf32> to vector<8x32xf32>
    %278 = arith.addf %276, %277 : vector<8x32xf32>
    %279 = arith.truncf %278 : vector<8x32xf32> to vector<8x32xbf16>
    %280 = vector.shape_cast %279 : vector<8x32xbf16> to vector<1x8x32xbf16>
    %281 = vector.broadcast %280 : vector<1x8x32xbf16> to vector<4x8x32xbf16>
    "tpu.trace_start"() <{level = 10 : i32, message = "nlh,nhd->nld"}> : () -> ()
    %cst_99 = arith.constant dense<0.000000e+00> : vector<4x8x8xf32>
    %282 = tpu.matmul %281, %202, %cst_99 {dimension_numbers = #tpu.dot_dimension_numbers<[2], [1], [1], [2], [0, 0, 0, 1, 1, 2], [0], [0]>} : vector<4x8x32xbf16>, vector<4x32x8xbf16>, vector<4x8x8xf32> -> vector<4x8x8xf32>
    "tpu.trace_stop"() : () -> ()
    %cst_100 = arith.constant 0.353553385 : f32
    %283 = vector.broadcast %cst_100 : f32 to vector<4x8x8xf32>
    %284 = arith.mulf %282, %283 : vector<4x8x8xf32>
    %285 = arith.truncf %284 : vector<4x8x8xf32> to vector<4x8x8xbf16>
    %286 = vector.shape_cast %4 : vector<16x32xbf16> to vector<1x16x32xbf16>
    %287 = vector.broadcast %286 : vector<1x16x32xbf16> to vector<8x16x32xbf16>
    "tpu.trace_start"() <{level = 10 : i32, message = "nlh,nhd->nld"}> : () -> ()
    %cst_101 = arith.constant dense<0.000000e+00> : vector<8x16x8xf32>
    %288 = tpu.matmul %287, %205, %cst_101 {dimension_numbers = #tpu.dot_dimension_numbers<[2], [1], [1], [2], [0, 0, 0, 1, 1, 2], [0], [0]>} : vector<8x16x32xbf16>, vector<8x32x8xbf16>, vector<8x16x8xf32> -> vector<8x16x8xf32>
    "tpu.trace_stop"() : () -> ()
    %289 = vector.extract_strided_slice %288 {offsets = [0, 0, 0], sizes = [4, 16, 8], strides = [1, 1, 1]} : vector<8x16x8xf32> to vector<4x16x8xf32>
    %290 = arith.truncf %289 : vector<4x16x8xf32> to vector<4x16x8xbf16>
    %291 = vector.extract_strided_slice %288 {offsets = [4, 0, 0], sizes = [4, 16, 8], strides = [1, 1, 1]} : vector<8x16x8xf32> to vector<4x16x8xf32>
    %292 = arith.truncf %291 : vector<4x16x8xf32> to vector<4x16x8xbf16>
    "tpu.trace_start"() <{level = 10 : i32, message = "nqd,nkd->nqk"}> : () -> ()
    %cst_102 = arith.constant dense<0.000000e+00> : vector<4x8x16xf32>
    %293 = tpu.matmul %285, %290, %cst_102 {dimension_numbers = #tpu.dot_dimension_numbers<[2], [2], [1], [1], [0, 0, 0, 1, 1, 1], [0], [0]>} : vector<4x8x8xbf16>, vector<4x16x8xbf16>, vector<4x8x16xf32> -> vector<4x8x16xf32>
    %cst_103 = arith.constant 9.99999997E-7 : f32
    "tpu.trace_stop"() : () -> ()
    %294 = vector.broadcast %cst_103 : f32 to vector<4x8x16xf32>
    %295 = arith.select %20, %293, %294 : vector<4x8x16xi1>, vector<4x8x16xf32>
    %cst_104 = arith.constant dense<0xFF800000> : vector<4x8xf32>
    %296 = vector.multi_reduction <maximumf>, %295, %cst_104 [2] : vector<4x8x16xf32> to vector<4x8xf32>
    %297 = vector.shape_cast %296 : vector<4x8xf32> to vector<4x8x1xf32>
    %298 = vector.broadcast %297 : vector<4x8x1xf32> to vector<4x8x16xf32>
    %299 = arith.subf %295, %298 : vector<4x8x16xf32>
    %300 = math.exp %299 : vector<4x8x16xf32>
    %cst_105 = arith.constant dense<0.000000e+00> : vector<4x8xf32>
    %301 = vector.multi_reduction <add>, %300, %cst_105 [2] : vector<4x8x16xf32> to vector<4x8xf32>
    %302 = vector.shape_cast %301 : vector<4x8xf32> to vector<4x8x1xf32>
    %303 = tpu.reciprocal %302 {approx = true} : vector<4x8x1xf32> -> vector<4x8x1xf32>
    %304 = vector.broadcast %303 : vector<4x8x1xf32> to vector<4x8x16xf32>
    %305 = arith.mulf %300, %304 : vector<4x8x16xf32>
    %306 = arith.truncf %305 : vector<4x8x16xf32> to vector<4x8x16xbf16>
    "tpu.trace_start"() <{level = 10 : i32, message = "nqk,nkd->nqd"}> : () -> ()
    %cst_106 = arith.constant dense<0.000000e+00> : vector<4x8x8xf32>
    %307 = tpu.matmul %306, %292, %cst_106 {dimension_numbers = #tpu.dot_dimension_numbers<[2], [1], [1], [2], [0, 0, 0, 1, 1, 2], [0], [0]>} : vector<4x8x16xbf16>, vector<4x16x8xbf16>, vector<4x8x8xf32> -> vector<4x8x8xf32>
    "tpu.trace_stop"() : () -> ()
    %308 = arith.truncf %307 : vector<4x8x8xf32> to vector<4x8x8xbf16>
    "tpu.trace_start"() <{level = 10 : i32, message = "nqd,ndh->nqh"}> : () -> ()
    %cst_107 = arith.constant dense<0.000000e+00> : vector<4x8x32xf32>
    %309 = tpu.matmul %308, %208, %cst_107 {dimension_numbers = #tpu.dot_dimension_numbers<[2], [1], [1], [2], [0, 0, 0, 1, 1, 2], [0], [0]>} : vector<4x8x8xbf16>, vector<4x8x32xbf16>, vector<4x8x32xf32> -> vector<4x8x32xf32>
    "tpu.trace_stop"() : () -> ()
    %cst_108 = arith.constant dense<0.000000e+00> : vector<8x32xf32>
    %310 = vector.multi_reduction <add>, %309, %cst_108 [0] : vector<4x8x32xf32> to vector<8x32xf32>
    %311 = arith.addf %310, %278 : vector<8x32xf32>
    %cst_109 = arith.constant dense<0.000000e+00> : vector<8xf32>
    %312 = vector.multi_reduction <add>, %311, %cst_109 [1] : vector<8x32xf32> to vector<8xf32>
    %313 = vector.shape_cast %312 : vector<8xf32> to vector<8x1xf32>
    %cst_110 = arith.constant 3.200000e+01 : f32
    %314 = vector.broadcast %cst_110 : f32 to vector<8x1xf32>
    %315 = arith.divf %313, %314 : vector<8x1xf32>
    %316 = vector.broadcast %315 : vector<8x1xf32> to vector<8x32xf32>
    %317 = arith.subf %311, %316 : vector<8x32xf32>
    %318 = arith.mulf %317, %317 : vector<8x32xf32>
    %cst_111 = arith.constant dense<0.000000e+00> : vector<8xf32>
    %319 = vector.multi_reduction <add>, %318, %cst_111 [1] : vector<8x32xf32> to vector<8xf32>
    %320 = vector.shape_cast %319 : vector<8xf32> to vector<8x1xf32>
    %cst_112 = arith.constant 3.200000e+01 : f32
    %321 = vector.broadcast %cst_112 : f32 to vector<8x1xf32>
    %322 = arith.divf %320, %321 : vector<8x1xf32>
    %323 = vector.broadcast %315 : vector<8x1xf32> to vector<8x32xf32>
    %324 = arith.subf %311, %323 : vector<8x32xf32>
    %cst_113 = arith.constant 9.99999996E-13 : f32
    %325 = vector.broadcast %cst_113 : f32 to vector<8x1xf32>
    %326 = arith.addf %322, %325 : vector<8x1xf32>
    %327 = math.rsqrt %326 : vector<8x1xf32>
    %328 = vector.broadcast %327 : vector<8x1xf32> to vector<8x32xf32>
    %329 = arith.mulf %324, %328 : vector<8x32xf32>
    %330 = vector.broadcast %220 : vector<1x32xf32> to vector<8x32xf32>
    %331 = arith.mulf %330, %329 : vector<8x32xf32>
    %332 = vector.broadcast %221 : vector<1x32xf32> to vector<8x32xf32>
    %333 = arith.addf %331, %332 : vector<8x32xf32>
    %334 = arith.truncf %333 : vector<8x32xf32> to vector<8x32xbf16>
    %cst_114 = arith.constant dense<0.000000e+00> : vector<8x64xf32>
    %335 = tpu.matmul %334, %211, %cst_114 {dimension_numbers = #tpu.dot_dimension_numbers<[1], [0], [0], [1], [0, 0, 1, 1], [], []>} : vector<8x32xbf16>, vector<32x64xbf16>, vector<8x64xf32> -> vector<8x64xf32>
    %336 = vector.broadcast %224 : vector<1x64xf32> to vector<8x64xf32>
    %337 = arith.addf %335, %336 : vector<8x64xf32>
    %cst_115 = arith.constant 0.000000e+00 : f32
    %338 = vector.broadcast %cst_115 : f32 to vector<8x64xf32>
    %339 = arith.maximumf %337, %338 : vector<8x64xf32>
    %340 = arith.truncf %339 : vector<8x64xf32> to vector<8x64xbf16>
    %cst_116 = arith.constant dense<0.000000e+00> : vector<8x32xf32>
    %341 = tpu.matmul %340, %214, %cst_116 {dimension_numbers = #tpu.dot_dimension_numbers<[1], [0], [0], [1], [0, 0, 1, 1], [], []>} : vector<8x64xbf16>, vector<64x32xbf16>, vector<8x32xf32> -> vector<8x32xf32>
    %342 = vector.broadcast %225 : vector<1x32xf32> to vector<8x32xf32>
    %343 = arith.addf %341, %342 : vector<8x32xf32>
    %344 = arith.addf %343, %333 : vector<8x32xf32>
    %cst_117 = arith.constant dense<0.000000e+00> : vector<8xf32>
    %345 = vector.multi_reduction <add>, %344, %cst_117 [1] : vector<8x32xf32> to vector<8xf32>
    %346 = vector.shape_cast %345 : vector<8xf32> to vector<8x1xf32>
    %cst_118 = arith.constant 3.200000e+01 : f32
    %347 = vector.broadcast %cst_118 : f32 to vector<8x1xf32>
    %348 = arith.divf %346, %347 : vector<8x1xf32>
    %349 = vector.broadcast %348 : vector<8x1xf32> to vector<8x32xf32>
    %350 = arith.subf %344, %349 : vector<8x32xf32>
    %351 = arith.mulf %350, %350 : vector<8x32xf32>
    %cst_119 = arith.constant dense<0.000000e+00> : vector<8xf32>
    %352 = vector.multi_reduction <add>, %351, %cst_119 [1] : vector<8x32xf32> to vector<8xf32>
    %353 = vector.shape_cast %352 : vector<8xf32> to vector<8x1xf32>
    %cst_120 = arith.constant 3.200000e+01 : f32
    %354 = vector.broadcast %cst_120 : f32 to vector<8x1xf32>
    %355 = arith.divf %353, %354 : vector<8x1xf32>
    %356 = vector.broadcast %348 : vector<8x1xf32> to vector<8x32xf32>
    %357 = arith.subf %344, %356 : vector<8x32xf32>
    %cst_121 = arith.constant 9.99999996E-13 : f32
    %358 = vector.broadcast %cst_121 : f32 to vector<8x1xf32>
    %359 = arith.addf %355, %358 : vector<8x1xf32>
    %360 = math.rsqrt %359 : vector<8x1xf32>
    %361 = vector.broadcast %360 : vector<8x1xf32> to vector<8x32xf32>
    %362 = arith.mulf %357, %361 : vector<8x32xf32>
    %363 = vector.broadcast %222 : vector<1x32xf32> to vector<8x32xf32>
    %364 = arith.mulf %363, %362 : vector<8x32xf32>
    %365 = vector.broadcast %223 : vector<1x32xf32> to vector<8x32xf32>
    %366 = arith.addf %364, %365 : vector<8x32xf32>
    %c2_i32 = arith.constant 2 : i32
    %367 = vector.shape_cast %366 : vector<8x32xf32> to vector<1x8x32xf32>
    %c0_122 = arith.constant 0 : index
    %c0_123 = arith.constant 0 : index
    %c0_124 = arith.constant 0 : index
    %368 = vector.load %arg12[%c0_122, %c0_123, %c0_124] : memref<1x8x32xf32, #tpu.memory_space<vmem>>, vector<1x8x32xf32>
    tpu.vector_store %arg12[%c0_122, %c0_123, %c0_124], %367 {strides = array<i32>} : memref<1x8x32xf32, #tpu.memory_space<vmem>>, vector<1x8x32xf32>,
    return
  }
  func.func @transform_0(%arg0: i32, %arg1: memref<2xi32, #tpu.memory_space<smem>>) -> (i32, i32, i32) {
    %c0_i32 = arith.constant 0 : i32
    %c0_i32_0 = arith.constant 0 : i32
    %c0_i32_1 = arith.constant 0 : i32
    return %arg0, %c0_i32, %c0_i32_0 : i32, i32, i32
  }
  func.func @transform_1(%arg0: i32, %arg1: memref<2xi32, #tpu.memory_space<smem>>) -> (i32, i32, i32) {
    %c0_i32 = arith.constant 0 : i32
    %c0_i32_0 = arith.constant 0 : i32
    %c0_i32_1 = arith.constant 0 : i32
    return %arg0, %c0_i32, %c0_i32_0 : i32, i32, i32
  }
  func.func @transform_2(%arg0: i32, %arg1: memref<2xi32, #tpu.memory_space<smem>>) -> (i32, i32, i32, i32) {
    %c0_i32 = arith.constant 0 : i32
    %c0_i32_0 = arith.constant 0 : i32
    %c0_i32_1 = arith.constant 0 : i32
    %c0_i32_2 = arith.constant 0 : i32
    %c0_i32_3 = arith.constant 0 : i32
    return %c0_i32, %c0_i32_0, %c0_i32_1, %c0_i32_2 : i32, i32, i32, i32
  }
  func.func @transform_3(%arg0: i32, %arg1: memref<2xi32, #tpu.memory_space<smem>>) -> (i32, i32, i32, i32) {
    %c0_i32 = arith.constant 0 : i32
    %c0_i32_0 = arith.constant 0 : i32
    %c0_i32_1 = arith.constant 0 : i32
    %c0_i32_2 = arith.constant 0 : i32
    %c0_i32_3 = arith.constant 0 : i32
    return %c0_i32, %c0_i32_0, %c0_i32_1, %c0_i32_2 : i32, i32, i32, i32
  }
  func.func @transform_4(%arg0: i32, %arg1: memref<2xi32, #tpu.memory_space<smem>>) -> (i32, i32, i32, i32) {
    %c0_i32 = arith.constant 0 : i32
    %c0_i32_0 = arith.constant 0 : i32
    %c0_i32_1 = arith.constant 0 : i32
    %c0_i32_2 = arith.constant 0 : i32
    %c0_i32_3 = arith.constant 0 : i32
    return %c0_i32, %c0_i32_0, %c0_i32_1, %c0_i32_2 : i32, i32, i32, i32
  }
  func.func @transform_5(%arg0: i32, %arg1: memref<2xi32, #tpu.memory_space<smem>>) -> (i32, i32, i32, i32) {
    %c0_i32 = arith.constant 0 : i32
    %c0_i32_0 = arith.constant 0 : i32
    %c0_i32_1 = arith.constant 0 : i32
    %c0_i32_2 = arith.constant 0 : i32
    %c0_i32_3 = arith.constant 0 : i32
    return %c0_i32, %c0_i32_0, %c0_i32_1, %c0_i32_2 : i32, i32, i32, i32
  }
  func.func @transform_6(%arg0: i32, %arg1: memref<2xi32, #tpu.memory_space<smem>>) -> (i32, i32, i32, i32) {
    %c0_i32 = arith.constant 0 : i32
    %c0_i32_0 = arith.constant 0 : i32
    %c0_i32_1 = arith.constant 0 : i32
    %c0_i32_2 = arith.constant 0 : i32
    %c0_i32_3 = arith.constant 0 : i32
    return %c0_i32, %c0_i32_0, %c0_i32_1, %c0_i32_2 : i32, i32, i32, i32
  }
  func.func @transform_7(%arg0: i32, %arg1: memref<2xi32, #tpu.memory_space<smem>>) -> (i32, i32, i32) {
    %c0_i32 = arith.constant 0 : i32
    %c0_i32_0 = arith.constant 0 : i32
    %c0_i32_1 = arith.constant 0 : i32
    %c0_i32_2 = arith.constant 0 : i32
    return %c0_i32, %c0_i32_0, %c0_i32_1 : i32, i32, i32
  }
  func.func @transform_8(%arg0: i32, %arg1: memref<2xi32, #tpu.memory_space<smem>>) -> (i32, i32, i32) {
    %c0_i32 = arith.constant 0 : i32
    %c0_i32_0 = arith.constant 0 : i32
    %c0_i32_1 = arith.constant 0 : i32
    %c0_i32_2 = arith.constant 0 : i32
    return %c0_i32, %c0_i32_0, %c0_i32_1 : i32, i32, i32
  }
  func.func @transform_9(%arg0: i32, %arg1: memref<2xi32, #tpu.memory_space<smem>>) -> (i32, i32, i32) {
    %c0_i32 = arith.constant 0 : i32
    %c0_i32_0 = arith.constant 0 : i32
    %c0_i32_1 = arith.constant 0 : i32
    %c0_i32_2 = arith.constant 0 : i32
    return %c0_i32, %c0_i32_0, %c0_i32_1 : i32, i32, i32
  }
  func.func @transform_10(%arg0: i32, %arg1: memref<2xi32, #tpu.memory_space<smem>>) -> (i32, i32, i32) {
    %c0_i32 = arith.constant 0 : i32
    %c0_i32_0 = arith.constant 0 : i32
    %c0_i32_1 = arith.constant 0 : i32
    return %arg0, %c0_i32, %c0_i32_0 : i32, i32, i32
  }
}

</mosaic_0001>

<llo_original>
// kernel: tpu_custom_call.1
$region0: #{tpu_custom_call.1}
  #allocation0 [shape = 'u32[]', space=smem, size = 0x4, offset = 0x4, fixed_abs, tag = 'smem constant byte address 0x4 - core index']
  #allocation1 [shape = 'u32[144,128]{1,0:T(1,128)}', space=vmem, size = 0x12000, scoped, tag = 'internal scratch']
  #allocation2 [shape = 's32[1]{0}', space=sflag, size = 0x4, scoped, tag = 'scoped memory for tpu_custom_call.1']
  #allocation3 [shape = 'u8[512]{0}', space=smem, size = 0x200, scoped, tag = 'prefetched SMEM operand 0']
  %s0 = inlined_call_operand.vmem [shape: s32[2], index: 0, kind: input, shape index: {}]
  %s1 = inlined_call_operand.vmem [shape: f32[2,8,32], index: 1, kind: input, shape index: {}]
  %s2 = inlined_call_operand.vmem [shape: f32[2,16,32], index: 2, kind: input, shape index: {}]
  %s3 = inlined_call_operand.vmem [shape: bf16[2,12,32,8], index: 3, kind: input, shape index: {}]
  %s4 = inlined_call_operand.vmem [shape: bf16[2,4,8,32], index: 4, kind: input, shape index: {}]
  %s5 = inlined_call_operand.vmem [shape: bf16[2,4,32,8], index: 5, kind: input, shape index: {}]
  %s6 = inlined_call_operand.vmem [shape: bf16[2,8,32,8], index: 6, kind: input, shape index: {}]
  %s7 = inlined_call_operand.vmem [shape: bf16[2,4,8,32], index: 7, kind: input, shape index: {}]
  %s8 = inlined_call_operand.vmem [shape: bf16[2,32,64], index: 8, kind: input, shape index: {}]
  %s9 = inlined_call_operand.vmem [shape: bf16[2,64,32], index: 9, kind: input, shape index: {}]
  %s10 = inlined_call_operand.vmem [shape: f32[2,8,128], index: 10, kind: input, shape index: {}]
  %s11 = inlined_call_operand.hbm [shape: f32[2,8,32], index: 11, kind: output, shape index: {}]
  %s12 = sld [smem:[#allocation0]]
  $region73: #{tpu_custom_call.1} parent=0
    _
  %s14 = ssub.s32 1, %s12
  %s15 = scalar_select 0, %s14, %s12
  %s16 = sshll.u32 %s0, 4
  %s17 = int_to_ptr.vmem [resolvable:$true] %s16
  %19 = dma.vmem_to_smem %s17, 16, [#allocation3], [#allocation2]
  %20 = dma.done [#allocation2], 16
  %21 = sfence
  $region1: #{tpu_custom_call.1} parent=0
    #allocation4 [shape = 'u8[8192]{0}', space=vmem, size = 0x2000, scoped, tag = 'output window, operand 0']
    #allocation5 [shape = 's32[2]{0}', space=sflag, size = 0x8, scoped, tag = 'scoped memory for tpu_custom_call.1']
    %22 = vsyncpa [#allocation5], 0
    %s23 = scalar_lea.sflag [#allocation5], 1
    %24 = vsyncpa %s23, 0
    loop: start=0, step=1, limit=4
    $region2: #{tpu_custom_call.1} parent=1 // loop_pre_header
      _
    $region3: #{tpu_custom_call.1} parent=1 // loop_header
      %s26 = sphi 0, %s30
      %p27 = scmp.ge.s32.totalorder %s26, 4
      %s36 = sphi 0, %s38
      %s39 = sphi 0, %s36
      %s40 = sphi 0, %s39
      %s56 = sphi 0, %s40
      %s62 = sphi 0, %s64
      %s65 = sphi 0, %s62
      %s66 = sphi 0, %s65
      %s82 = sphi 0, %s66
      %s86 = sphi 0, %s86
      %s88 = sphi 0, %s86
      %s89 = sphi 0, %s88
      %s103 = sphi 0, %s89
      %s107 = sphi 0, %s107
      %s109 = sphi 0, %s107
      %s110 = sphi 0, %s109
      %s124 = sphi 0, %s110
      %s128 = sphi 0, %s128
      %s130 = sphi 0, %s128
      %s131 = sphi 0, %s130
      %s145 = sphi 0, %s131
      %s149 = sphi 0, %s149
      %s151 = sphi 0, %s149
      %s152 = sphi 0, %s151
      %s166 = sphi 0, %s152
      %s170 = sphi 0, %s170
      %s172 = sphi 0, %s170
      %s173 = sphi 0, %s172
      %s187 = sphi 0, %s173
      %s191 = sphi 0, %s191
      %s193 = sphi 0, %s191
      %s194 = sphi 0, %s193
      %s208 = sphi 0, %s194
      %s212 = sphi 0, %s212
      %s214 = sphi 0, %s212
      %s215 = sphi 0, %s214
      %s229 = sphi 0, %s215
      %s233 = sphi 0, %s233
      %s235 = sphi 0, %s233
      %s236 = sphi 0, %s235
      %s250 = sphi 0, %s236
      %s256 = sphi 0, %s258
      %s259 = sphi 0, %s256
      %s260 = sphi 0, %s259
      %s276 = sphi 0, %s260
    $region4: #{tpu_custom_call.1} parent=1 // loop_header_branch
      %29 = sbr.rel (%p27) target = $region8
    $region5: #{tpu_custom_call.1} parent=1 // loop_body
      %s31 = ssub.s32 %s26, 1
      %s32 = ssub.s32 %s26, 2
      %s33 = sadd.s32 %s26, 1
      %s34 = ssub.s32 %s26, %s33
      %p35 = scmp.eq.s32.totalorder %s34, 0
      %s37 = sadd.s32 %s36, 1
      %s38 = scalar_select %p35, %s36, %s37
      %p41 = pneg %p35
      %p42 = scmp.eq.s32.totalorder %s26, 1
      %p43 = por %p41, %p42
      %p44 = scmp.ne.s32.totalorder %s36, %s39
      %p45 = scmp.eq.s32.totalorder %s26, 0
      %p46 = por %p44, %p45
      %p47 = scmp.ne.s32.totalorder %s36, %s39
      %p48 = scmp.eq.s32.totalorder %s31, 1
      %p49 = por %p47, %p48
      %p50 = scmp.ne.s32.totalorder %s39, %s40
      %p51 = scmp.eq.s32.totalorder %s31, 0
      %p52 = por %p50, %p51
      %p53 = scmp.ne.s32.totalorder %s39, %s40
      %p54 = scmp.eq.s32.totalorder %s32, 1
      %p55 = por %p53, %p54
      %p57 = scmp.ne.s32.totalorder %s40, %s56
      %p58 = scmp.eq.s32.totalorder %s32, 0
      %p59 = por %p57, %p58
      %s60 = ssub.s32 %s26, %s33
      %p61 = scmp.eq.s32.totalorder %s60, 0
      %s63 = sadd.s32 %s62, 1
      %s64 = scalar_select %p61, %s62, %s63
      %p67 = pneg %p61
      %p68 = scmp.eq.s32.totalorder %s26, 1
      %p69 = por %p67, %p68
      %p70 = scmp.ne.s32.totalorder %s62, %s65
      %p71 = scmp.eq.s32.totalorder %s26, 0
      %p72 = por %p70, %p71
      %p73 = scmp.ne.s32.totalorder %s62, %s65
      %p74 = scmp.eq.s32.totalorder %s31, 1
      %p75 = por %p73, %p74
      %p76 = scmp.ne.s32.totalorder %s65, %s66
      %p77 = scmp.eq.s32.totalorder %s31, 0
      %p78 = por %p76, %p77
      %p79 = scmp.ne.s32.totalorder %s65, %s66
      %p80 = scmp.eq.s32.totalorder %s32, 1
      %p81 = por %p79, %p80
      %p83 = scmp.ne.s32.totalorder %s66, %s82
      %p84 = scmp.eq.s32.totalorder %s32, 0
      %p85 = por %p83, %p84
      %s87 = sadd.s32 %s86, 1
      %p90 = scmp.eq.s32.totalorder %s26, 1
      %p91 = scmp.ne.s32.totalorder %s86, %s88
      %p92 = scmp.eq.s32.totalorder %s26, 0
      %p93 = por %p91, %p92
      %p94 = scmp.ne.s32.totalorder %s86, %s88
      %p95 = scmp.eq.s32.totalorder %s31, 1
      %p96 = por %p94, %p95
      %p97 = scmp.ne.s32.totalorder %s88, %s89
      %p98 = scmp.eq.s32.totalorder %s31, 0
      %p99 = por %p97, %p98
      %p100 = scmp.ne.s32.totalorder %s88, %s89
      %p101 = scmp.eq.s32.totalorder %s32, 1
      %p102 = por %p100, %p101
      %p104 = scmp.ne.s32.totalorder %s89, %s103
      %p105 = scmp.eq.s32.totalorder %s32, 0
      %p106 = por %p104, %p105
      %s108 = sadd.s32 %s107, 1
      %p111 = scmp.eq.s32.totalorder %s26, 1
      %p112 = scmp.ne.s32.totalorder %s107, %s109
      %p113 = scmp.eq.s32.totalorder %s26, 0
      %p114 = por %p112, %p113
      %p115 = scmp.ne.s32.totalorder %s107, %s109
      %p116 = scmp.eq.s32.totalorder %s31, 1
      %p117 = por %p115, %p116
      %p118 = scmp.ne.s32.totalorder %s109, %s110
      %p119 = scmp.eq.s32.totalorder %s31, 0
      %p120 = por %p118, %p119
      %p121 = scmp.ne.s32.totalorder %s109, %s110
      %p122 = scmp.eq.s32.totalorder %s32, 1
      %p123 = por %p121, %p122
      %p125 = scmp.ne.s32.totalorder %s110, %s124
      %p126 = scmp.eq.s32.totalorder %s32, 0
      %p127 = por %p125, %p126
      %s129 = sadd.s32 %s128, 1
      %p132 = scmp.eq.s32.totalorder %s26, 1
      %p133 = scmp.ne.s32.totalorder %s128, %s130
      %p134 = scmp.eq.s32.totalorder %s26, 0
      %p135 = por %p133, %p134
      %p136 = scmp.ne.s32.totalorder %s128, %s130
      %p137 = scmp.eq.s32.totalorder %s31, 1
      %p138 = por %p136, %p137
      %p139 = scmp.ne.s32.totalorder %s130, %s131
      %p140 = scmp.eq.s32.totalorder %s31, 0
      %p141 = por %p139, %p140
      %p142 = scmp.ne.s32.totalorder %s130, %s131
      %p143 = scmp.eq.s32.totalorder %s32, 1
      %p144 = por %p142, %p143
      %p146 = scmp.ne.s32.totalorder %s131, %s145
      %p147 = scmp.eq.s32.totalorder %s32, 0
      %p148 = por %p146, %p147
      %s150 = sadd.s32 %s149, 1
      %p153 = scmp.eq.s32.totalorder %s26, 1
      %p154 = scmp.ne.s32.totalorder %s149, %s151
      %p155 = scmp.eq.s32.totalorder %s26, 0
      %p156 = por %p154, %p155
      %p157 = scmp.ne.s32.totalorder %s149, %s151
      %p158 = scmp.eq.s32.totalorder %s31, 1
      %p159 = por %p157, %p158
      %p160 = scmp.ne.s32.totalorder %s151, %s152
      %p161 = scmp.eq.s32.totalorder %s31, 0
      %p162 = por %p160, %p161
      %p163 = scmp.ne.s32.totalorder %s151, %s152
      %p164 = scmp.eq.s32.totalorder %s32, 1
      %p165 = por %p163, %p164
      %p167 = scmp.ne.s32.totalorder %s152, %s166
      %p168 = scmp.eq.s32.totalorder %s32, 0
      %p169 = por %p167, %p168
      %s171 = sadd.s32 %s170, 1
      %p174 = scmp.eq.s32.totalorder %s26, 1
      %p175 = scmp.ne.s32.totalorder %s170, %s172
      %p176 = scmp.eq.s32.totalorder %s26, 0
      %p177 = por %p175, %p176
      %p178 = scmp.ne.s32.totalorder %s170, %s172
      %p179 = scmp.eq.s32.totalorder %s31, 1
      %p180 = por %p178, %p179
      %p181 = scmp.ne.s32.totalorder %s172, %s173
      %p182 = scmp.eq.s32.totalorder %s31, 0
      %p183 = por %p181, %p182
      %p184 = scmp.ne.s32.totalorder %s172, %s173
      %p185 = scmp.eq.s32.totalorder %s32, 1
      %p186 = por %p184, %p185
      %p188 = scmp.ne.s32.totalorder %s173, %s187
      %p189 = scmp.eq.s32.totalorder %s32, 0
      %p190 = por %p188, %p189
      %s192 = sadd.s32 %s191, 1
      %p195 = scmp.eq.s32.totalorder %s26, 1
      %p196 = scmp.ne.s32.totalorder %s191, %s193
      %p197 = scmp.eq.s32.totalorder %s26, 0
      %p198 = por %p196, %p197
      %p199 = scmp.ne.s32.totalorder %s191, %s193
      %p200 = scmp.eq.s32.totalorder %s31, 1
      %p201 = por %p199, %p200
      %p202 = scmp.ne.s32.totalorder %s193, %s194
      %p203 = scmp.eq.s32.totalorder %s31, 0
      %p204 = por %p202, %p203
      %p205 = scmp.ne.s32.totalorder %s193, %s194
      %p206 = scmp.eq.s32.totalorder %s32, 1
      %p207 = por %p205, %p206
      %p209 = scmp.ne.s32.totalorder %s194, %s208
      %p210 = scmp.eq.s32.totalorder %s32, 0
      %p211 = por %p209, %p210
      %s213 = sadd.s32 %s212, 1
      %p216 = scmp.eq.s32.totalorder %s26, 1
      %p217 = scmp.ne.s32.totalorder %s212, %s214
      %p218 = scmp.eq.s32.totalorder %s26, 0
      %p219 = por %p217, %p218
      %p220 = scmp.ne.s32.totalorder %s212, %s214
      %p221 = scmp.eq.s32.totalorder %s31, 1
      %p222 = por %p220, %p221
      %p223 = scmp.ne.s32.totalorder %s214, %s215
      %p224 = scmp.eq.s32.totalorder %s31, 0
      %p225 = por %p223, %p224
      %p226 = scmp.ne.s32.totalorder %s214, %s215
      %p227 = scmp.eq.s32.totalorder %s32, 1
      %p228 = por %p226, %p227
      %p230 = scmp.ne.s32.totalorder %s215, %s229
      %p231 = scmp.eq.s32.totalorder %s32, 0
      %p232 = por %p230, %p231
      %s234 = sadd.s32 %s233, 1
      %p237 = scmp.eq.s32.totalorder %s26, 1
      %p238 = scmp.ne.s32.totalorder %s233, %s235
      %p239 = scmp.eq.s32.totalorder %s26, 0
      %p240 = por %p238, %p239
      %p241 = scmp.ne.s32.totalorder %s233, %s235
      %p242 = scmp.eq.s32.totalorder %s31, 1
      %p243 = por %p241, %p242
      %p244 = scmp.ne.s32.totalorder %s235, %s236
      %p245 = scmp.eq.s32.totalorder %s31, 0
      %p246 = por %p244, %p245
      %p247 = scmp.ne.s32.totalorder %s235, %s236
      %p248 = scmp.eq.s32.totalorder %s32, 1
      %p249 = por %p247, %p248
      %p251 = scmp.ne.s32.totalorder %s236, %s250
      %p252 = scmp.eq.s32.totalorder %s32, 0
      %p253 = por %p251, %p252
      %s254 = ssub.s32 %s26, %s33
      %p255 = scmp.eq.s32.totalorder %s254, 0
      %s257 = sadd.s32 %s256, 1
      %s258 = scalar_select %p255, %s256, %s257
      %p261 = pneg %p255
      %p262 = scmp.eq.s32.totalorder %s26, 1
      %p263 = por %p261, %p262
      %p264 = scmp.ne.s32.totalorder %s256, %s259
      %p265 = scmp.eq.s32.totalorder %s26, 0
      %p266 = por %p264, %p265
      %p267 = scmp.ne.s32.totalorder %s256, %s259
      %p268 = scmp.eq.s32.totalorder %s31, 1
      %p269 = por %p267, %p268
      %p270 = scmp.ne.s32.totalorder %s259, %s260
      %p271 = scmp.eq.s32.totalorder %s31, 0
      %p272 = por %p270, %p271
      %p273 = scmp.ne.s32.totalorder %s259, %s260
      %p274 = scmp.eq.s32.totalorder %s32, 1
      %p275 = por %p273, %p274
      %p277 = scmp.ne.s32.totalorder %s260, %s276
      %p278 = scmp.eq.s32.totalorder %s32, 0
      %p279 = por %p277, %p278
      %p280 = scmp.le.s32.totalorder 1, %s26
      %p281 = scmp.lt.s32.totalorder %s26, 3
      %p282 = pnand %p280, %p281
      %p283 = pneg %p282
      // Predicated region
      $region9: #{tpu_custom_call.1} parent=5 // pred_check
        _
      $region10: #{tpu_custom_call.1} parent=5 // pred_check_branch
        %285 = sbr.rel (%p282) target = $region12
      $region11: #{tpu_custom_call.1} parent=5 // pred_region
        %s286 = ssub.s32 %s26, 1
        // Predicated region
        $region13: #{tpu_custom_call.1} parent=11 // pred_check
          %p287 = pneg %p99
        $region14: #{tpu_custom_call.1} parent=11 // pred_check_branch
          %289 = sbr.rel (%p287) target = $region16
        $region15: #{tpu_custom_call.1} parent=11 // pred_region
          _
        $region16: #{tpu_custom_call.1} parent=11 // pred_fallthru
          _
        // Predicated region
        $region17: #{tpu_custom_call.1} parent=11 // pred_check
          %p290 = pneg %p120
        $region18: #{tpu_custom_call.1} parent=11 // pred_check_branch
          %292 = sbr.rel (%p290) target = $region20
        $region19: #{tpu_custom_call.1} parent=11 // pred_region
          _
        $region20: #{tpu_custom_call.1} parent=11 // pred_fallthru
          _
        // Predicated region
        $region21: #{tpu_custom_call.1} parent=11 // pred_check
          %p293 = pneg %p141
        $region22: #{tpu_custom_call.1} parent=11 // pred_check_branch
          %295 = sbr.rel (%p293) target = $region24
        $region23: #{tpu_custom_call.1} parent=11 // pred_region
          _
        $region24: #{tpu_custom_call.1} parent=11 // pred_fallthru
          _
        // Predicated region
        $region25: #{tpu_custom_call.1} parent=11 // pred_check
          %p296 = pneg %p162
        $region26: #{tpu_custom_call.1} parent=11 // pred_check_branch
          %298 = sbr.rel (%p296) target = $region28
        $region27: #{tpu_custom_call.1} parent=11 // pred_region
          _
        $region28: #{tpu_custom_call.1} parent=11 // pred_fallthru
          _
        // Predicated region
        $region29: #{tpu_custom_call.1} parent=11 // pred_check
          %p299 = pneg %p183
        $region30: #{tpu_custom_call.1} parent=11 // pred_check_branch
          %301 = sbr.rel (%p299) target = $region32
        $region31: #{tpu_custom_call.1} parent=11 // pred_region
          _
        $region32: #{tpu_custom_call.1} parent=11 // pred_fallthru
          _
        // Predicated region
        $region33: #{tpu_custom_call.1} parent=11 // pred_check
          %p302 = pneg %p204
        $region34: #{tpu_custom_call.1} parent=11 // pred_check_branch
          %304 = sbr.rel (%p302) target = $region36
        $region35: #{tpu_custom_call.1} parent=11 // pred_region
          _
        $region36: #{tpu_custom_call.1} parent=11 // pred_fallthru
          _
        // Predicated region
        $region37: #{tpu_custom_call.1} parent=11 // pred_check
          %p305 = pneg %p225
        $region38: #{tpu_custom_call.1} parent=11 // pred_check_branch
          %307 = sbr.rel (%p305) target = $region40
        $region39: #{tpu_custom_call.1} parent=11 // pred_region
          _
        $region40: #{tpu_custom_call.1} parent=11 // pred_fallthru
          _
        // Predicated region
        $region41: #{tpu_custom_call.1} parent=11 // pred_check
          %p308 = pneg %p246
        $region42: #{tpu_custom_call.1} parent=11 // pred_check_branch
          %310 = sbr.rel (%p308) target = $region44
        $region43: #{tpu_custom_call.1} parent=11 // pred_region
          _
        $region44: #{tpu_custom_call.1} parent=11 // pred_fallthru
          _
      $region12: #{tpu_custom_call.1} parent=5 // pred_fallthru
        _
      %p311 = scmp.lt.s32.totalorder %s26, 2
      // Predicated region
      $region45: #{tpu_custom_call.1} parent=5 // pred_check
        %p312 = pneg %p311
      $region46: #{tpu_custom_call.1} parent=5 // pred_check_branch
        %314 = sbr.rel (%p312) target = $region48
      $region47: #{tpu_custom_call.1} parent=5 // pred_region
        // Predicated region
        $region49: #{tpu_custom_call.1} parent=47 // pred_check
          %p315 = pneg %p46
        $region50: #{tpu_custom_call.1} parent=47 // pred_check_branch
          %317 = sbr.rel (%p315) target = $region52
        $region51: #{tpu_custom_call.1} parent=47 // pred_region
          %p318 = scmp.lt.s32.totalorder %s26, 1
          %s319 = scalar_select %p318, %s26, 1
          %s320 = smul.addr %s319, 8
          %s321 = scalar_lea.vmem %s1, %s320
        $region52: #{tpu_custom_call.1} parent=47 // pred_fallthru
          _
        // Predicated region
        $region53: #{tpu_custom_call.1} parent=47 // pred_check
          %p322 = pneg %p72
        $region54: #{tpu_custom_call.1} parent=47 // pred_check_branch
          %324 = sbr.rel (%p322) target = $region56
        $region55: #{tpu_custom_call.1} parent=47 // pred_region
          %p325 = scmp.lt.s32.totalorder %s26, 1
          %s326 = scalar_select %p325, %s26, 1
          %s327 = smul.addr %s326, 2
          %s328 = smul.addr %s327, 8
          %s329 = scalar_lea.vmem %s2, %s328
        $region56: #{tpu_custom_call.1} parent=47 // pred_fallthru
          _
      $region48: #{tpu_custom_call.1} parent=5 // pred_fallthru
        _
      %p330 = scmp.le.s32.totalorder 1, %s26
      %p331 = scmp.lt.s32.totalorder %s26, 3
      %p332 = pnand %p330, %p331
      %p333 = pneg %p332
      // Predicated region
      $region57: #{tpu_custom_call.1} parent=5 // pred_check
        _
      $region58: #{tpu_custom_call.1} parent=5 // pred_check_branch
        %335 = sbr.rel (%p332) target = $region60
      $region59: #{tpu_custom_call.1} parent=5 // pred_region
        %s336 = ssub.s32 %s26, 1
        %p337 = scmp.lt.s32.totalorder %s31, 1
        %s338 = scalar_select %p337, %s31, 1
        %s339 = smul.addr %s338, 8
        %s340 = scalar_lea.vmem %s1, %s339
        %p341 = pneg %p52
        %p342 = pneg %p49
        %p343 = scmp.lt.s32.totalorder %s31, 1
        %s344 = scalar_select %p343, %s31, 1
        %s345 = smul.addr %s344, 2
        %s346 = smul.addr %s345, 8
        %s347 = scalar_lea.vmem %s2, %s346
        %p348 = pneg %p78
        %p349 = pneg %p75
        %p350 = pneg %p99
        %p351 = pneg %p96
        %p352 = pneg %p120
        %p353 = pneg %p117
        %p354 = pneg %p141
        %p355 = pneg %p138
        %p356 = pneg %p162
        %p357 = pneg %p159
        %p358 = pneg %p183
        %p359 = pneg %p180
        %p360 = pneg %p204
        %p361 = pneg %p201
        %p362 = pneg %p225
        %p363 = pneg %p222
        %p364 = pneg %p246
        %p365 = pneg %p243
        %p366 = pneg %p272
        %p367 = pneg %p269
        %s368 = sand.u32 %s259, 1
        %s369 = scalar_lea.sflag [#allocation5], %s368
        %s370 = sand.u32 %s259, 1
        %s371 = smul.addr %s370, 8
        %s372 = scalar_lea.vmem [#allocation4], %s371
        %p373 = scmp.lt.s32.totalorder %s31, 1
        %s374 = scalar_select %p373, %s31, 1
        %s375 = smul.addr %s374, 8
        %s376 = scalar_lea.vmem %s1, %s375
        %p377 = scmp.lt.s32.totalorder %s31, 1
        %s378 = scalar_select %p377, %s31, 1
        %s379 = smul.addr %s378, 2
        %s380 = smul.addr %s379, 8
        %s381 = scalar_lea.vmem %s2, %s380
        %v383 = vld [vmem:[%s376] sm:$0xff]
        %v384 = vld [vmem:[%s381] sm:$0xff]
        %v385 = vld [vmem:[%s381 + $0x8] sm:$0xff]
        %v386 = vpack.c.bf16 %v385, %v384
        %v387 = vlaneseq
        %v388 = vshrl.u32 %v387, 7
        %v389 = vlaneseq
        %v390 = vand.u32 %v389, 127
        %vm391 = vcmp.le.s32.totalorder %v390, %v388
        %v392 = vsel %vm391, 1, 0
        %vm393 = vcmp.eq.s32.totalorder %v392, 1
        %s394 = sld [smem:[#allocation3 + %s31]]
        %v395 = vstv %s394
        %vm396 = vcmp.lt.s32.totalorder %v390, %v395
        %v397 = vsel %vm396, 1, 0
        %vm398 = vcmp.eq.s32.totalorder %v397, 1
        %v399 = vld [vmem:[%s3] sm:$0xf]
        %v400 = vld [vmem:[%s3 + $0x4] sm:$0xf]
        %v401 = vld [vmem:[%s3 + $0x8] sm:$0xf]
        %v402 = vld [vmem:[%s3 + $0xc] sm:$0xf]
        %v403 = vld [vmem:[%s3 + $0x10] sm:$0xf]
        %v404 = vld [vmem:[%s3 + $0x14] sm:$0xf]
        %v405 = vld [vmem:[%s3 + $0x18] sm:$0xf]
        %v406 = vld [vmem:[%s3 + $0x1c] sm:$0xf]
        %v407 = vld [vmem:[%s3 + $0x20] sm:$0xf]
        %v408 = vld [vmem:[%s3 + $0x24] sm:$0xf]
        %v409 = vld [vmem:[%s3 + $0x28] sm:$0xf]
        %v410 = vld [vmem:[%s3 + $0x2c] sm:$0xf]
        %v411 = vld [vmem:[%s3 + $0x30] sm:$0xf]
        %v412 = vld [vmem:[%s3 + $0x34] sm:$0xf]
        %v413 = vld [vmem:[%s3 + $0x38] sm:$0xf]
        %v414 = vld [vmem:[%s3 + $0x3c] sm:$0xf]
        %v415 = vld [vmem:[%s3 + $0x40] sm:$0xf]
        %v416 = vld [vmem:[%s3 + $0x44] sm:$0xf]
        %v417 = vld [vmem:[%s3 + $0x48] sm:$0xf]
        %v418 = vld [vmem:[%s3 + $0x4c] sm:$0xf]
        %v419 = vld [vmem:[%s3 + $0x50] sm:$0xf]
        %v420 = vld [vmem:[%s3 + $0x54] sm:$0xf]
        %v421 = vld [vmem:[%s3 + $0x58] sm:$0xf]
        %v422 = vld [vmem:[%s3 + $0x5c] sm:$0xf]
        %v423 = vld [vmem:[%s3 + $0x60] sm:$0xf]
        %v424 = vld [vmem:[%s3 + $0x64] sm:$0xf]
        %v425 = vld [vmem:[%s3 + $0x68] sm:$0xf]
        %v426 = vld [vmem:[%s3 + $0x6c] sm:$0xf]
        %v427 = vld [vmem:[%s3 + $0x70] sm:$0xf]
        %v428 = vld [vmem:[%s3 + $0x74] sm:$0xf]
        %v429 = vld [vmem:[%s3 + $0x78] sm:$0xf]
        %v430 = vld [vmem:[%s3 + $0x7c] sm:$0xf]
        %v431 = vld [vmem:[%s3 + $0x80] sm:$0xf]
        %v432 = vld [vmem:[%s3 + $0x84] sm:$0xf]
        %v433 = vld [vmem:[%s3 + $0x88] sm:$0xf]
        %v434 = vld [vmem:[%s3 + $0x8c] sm:$0xf]
        %v435 = vld [vmem:[%s3 + $0x90] sm:$0xf]
        %v436 = vld [vmem:[%s3 + $0x94] sm:$0xf]
        %v437 = vld [vmem:[%s3 + $0x98] sm:$0xf]
        %v438 = vld [vmem:[%s3 + $0x9c] sm:$0xf]
        %v439 = vld [vmem:[%s3 + $0xa0] sm:$0xf]
        %v440 = vld [vmem:[%s3 + $0xa4] sm:$0xf]
        %v441 = vld [vmem:[%s3 + $0xa8] sm:$0xf]
        %v442 = vld [vmem:[%s3 + $0xac] sm:$0xf]
        %v443 = vld [vmem:[%s3 + $0xb0] sm:$0xf]
        %v444 = vld [vmem:[%s3 + $0xb4] sm:$0xf]
        %v445 = vld [vmem:[%s3 + $0xb8] sm:$0xf]
        %v446 = vld [vmem:[%s3 + $0xbc] sm:$0xf]
        %v447 = vld [vmem:[%s4] sm:$0xf]
        %v448 = vld [vmem:[%s4 + $0x4] sm:$0xf]
        %v449 = vld [vmem:[%s4 + $0x8] sm:$0xf]
        %v450 = vld [vmem:[%s4 + $0xc] sm:$0xf]
        %v451 = vld [vmem:[%s5] sm:$0xf]
        %v452 = vld [vmem:[%s5 + $0x4] sm:$0xf]
        %v453 = vld [vmem:[%s5 + $0x8] sm:$0xf]
        %v454 = vld [vmem:[%s5 + $0xc] sm:$0xf]
        %v455 = vld [vmem:[%s5 + $0x10] sm:$0xf]
        %v456 = vld [vmem:[%s5 + $0x14] sm:$0xf]
        %v457 = vld [vmem:[%s5 + $0x18] sm:$0xf]
        %v458 = vld [vmem:[%s5 + $0x1c] sm:$0xf]
        %v459 = vld [vmem:[%s5 + $0x20] sm:$0xf]
        %v460 = vld [vmem:[%s5 + $0x24] sm:$0xf]
        %v461 = vld [vmem:[%s5 + $0x28] sm:$0xf]
        %v462 = vld [vmem:[%s5 + $0x2c] sm:$0xf]
        %v463 = vld [vmem:[%s5 + $0x30] sm:$0xf]
        %v464 = vld [vmem:[%s5 + $0x34] sm:$0xf]
        %v465 = vld [vmem:[%s5 + $0x38] sm:$0xf]
        %v466 = vld [vmem:[%s5 + $0x3c] sm:$0xf]
        %v467 = vld [vmem:[%s6] sm:$0xf]
        %v468 = vld [vmem:[%s6 + $0x4] sm:$0xf]
        %v469 = vld [vmem:[%s6 + $0x8] sm:$0xf]
        %v470 = vld [vmem:[%s6 + $0xc] sm:$0xf]
        %v471 = vld [vmem:[%s6 + $0x10] sm:$0xf]
        %v472 = vld [vmem:[%s6 + $0x14] sm:$0xf]
        %v473 = vld [vmem:[%s6 + $0x18] sm:$0xf]
        %v474 = vld [vmem:[%s6 + $0x1c] sm:$0xf]
        %v475 = vld [vmem:[%s6 + $0x20] sm:$0xf]
        %v476 = vld [vmem:[%s6 + $0x24] sm:$0xf]
        %v477 = vld [vmem:[%s6 + $0x28] sm:$0xf]
        %v478 = vld [vmem:[%s6 + $0x2c] sm:$0xf]
        %v479 = vld [vmem:[%s6 + $0x30] sm:$0xf]
        %v480 = vld [vmem:[%s6 + $0x34] sm:$0xf]
        %v481 = vld [vmem:[%s6 + $0x38] sm:$0xf]
        %v482 = vld [vmem:[%s6 + $0x3c] sm:$0xf]
        %v483 = vld [vmem:[%s6 + $0x40] sm:$0xf]
        %v484 = vld [vmem:[%s6 + $0x44] sm:$0xf]
        %v485 = vld [vmem:[%s6 + $0x48] sm:$0xf]
        %v486 = vld [vmem:[%s6 + $0x4c] sm:$0xf]
        %v487 = vld [vmem:[%s6 + $0x50] sm:$0xf]
        %v488 = vld [vmem:[%s6 + $0x54] sm:$0xf]
        %v489 = vld [vmem:[%s6 + $0x58] sm:$0xf]
        %v490 = vld [vmem:[%s6 + $0x5c] sm:$0xf]
        %v491 = vld [vmem:[%s6 + $0x60] sm:$0xf]
        %v492 = vld [vmem:[%s6 + $0x64] sm:$0xf]
        %v493 = vld [vmem:[%s6 + $0x68] sm:$0xf]
        %v494 = vld [vmem:[%s6 + $0x6c] sm:$0xf]
        %v495 = vld [vmem:[%s6 + $0x70] sm:$0xf]
        %v496 = vld [vmem:[%s6 + $0x74] sm:$0xf]
        %v497 = vld [vmem:[%s6 + $0x78] sm:$0xf]
        %v498 = vld [vmem:[%s6 + $0x7c] sm:$0xf]
        %v499 = vld [vmem:[%s7] sm:$0xf]
        %v500 = vld [vmem:[%s7 + $0x4] sm:$0xf]
        %v501 = vld [vmem:[%s7 + $0x8] sm:$0xf]
        %v502 = vld [vmem:[%s7 + $0xc] sm:$0xf]
        %v503 = vld [vmem:[%s8] sm:$0xf]
        %v504 = vld [vmem:[%s8 + $0x4] sm:$0xf]
        %v505 = vld [vmem:[%s8 + $0x8] sm:$0xf]
        %v506 = vld [vmem:[%s8 + $0xc] sm:$0xf]
        %v507 = vld [vmem:[%s9] sm:$0xf]
        %v508 = vld [vmem:[%s9 + $0x4] sm:$0xf]
        %v509 = vld [vmem:[%s9 + $0x8] sm:$0xf]
        %v510 = vld [vmem:[%s9 + $0xc] sm:$0xf]
        %v511 = vld [vmem:[%s9 + $0x10] sm:$0xf]
        %v512 = vld [vmem:[%s9 + $0x14] sm:$0xf]
        %v513 = vld [vmem:[%s9 + $0x18] sm:$0xf]
        %v514 = vld [vmem:[%s9 + $0x1c] sm:$0xf]
        %v515 = vld [vmem:[%s10] sm:$0xff]
        %v516 = vpack.c.bf16 %v383, %v383
        %v521 = vunpack.c.l.b16 %v399
        %v522 = vunpack.c.l.b16 %v400
        %v523 = vunpack.c.l.b16 %v401
        %v524 = vunpack.c.l.b16 %v402
        %v525 = vpack.c.b16 %v522, %v521
        %v526 = vpack.c.b16 %v524, %v523
        %vm529 = vcmask 261120
        %v531 = vsel %vm529, %v516, 0
        %533 = vmatprep.subr.bf16.mxu0 0
        %534 = vmatpush1.bf16.msra.mxu0 0
        %535 = vmatprep.subr.bf16.mxu0 0
        %536 = vmatpush1.bf16.msra.mxu0 0
        %537 = vmatprep.subr.bf16.mxu0 0
        %538 = vmatpush1.bf16.msra.mxu0 0
        %539 = vmatprep.subr.bf16.mxu0 0
        %540 = vmatpush1.bf16.msra.mxu0 0
        %541 = vmatprep.subr.bf16.mxu0 0
        %542 = vmatpush1.bf16.msra.mxu0 0
        %543 = vmatprep.subr.bf16.mxu0 0
        %544 = vmatpush1.bf16.msra.mxu0 0
        %545 = vmatprep.subr.bf16.mxu0 0
        %546 = vmatpush1.bf16.msra.mxu0 %v526
        %547 = vmatprep.subr.bf16.mxu0 0
        %548 = vmatpush1.bf16.msra.mxu0 %v525
        %549 = vmatprep.subr.bf16.mxu0 0
        %550 = vmatpush2.bf16.msra.mxu0 0
        %551 = vmatprep.subr.bf16.mxu0 0
        %552 = vmatpush2.bf16.msra.mxu0 0
        %553 = vmatprep.subr.bf16.mxu0 0
        %554 = vmatpush2.bf16.msra.mxu0 0
        %555 = vmatprep.subr.bf16.mxu0 0
        %556 = vmatpush2.bf16.msra.mxu0 0
        %557 = vmatprep.subr.bf16.mxu0 0
        %558 = vmatpush2.bf16.msra.mxu0 0
        %559 = vmatprep.subr.bf16.mxu0 0
        %560 = vmatpush2.bf16.msra.mxu0 0
        %561 = vmatprep.subr.bf16.mxu0 0
        %562 = vmatpush2.bf16.msra.mxu0 0
        %563 = vmatprep.subr.bf16.mxu0 0
        %564 = vmatpush2.bf16.msra.mxu0 0
        %565 = vmatprep.mubr.bf16.mxu0 0
        %566 = vmatmul.mubr.bf16.gmra.mxu0 %v531
        %v567 = vpop.f32.mrf.mxu0
        %v568 = vadd.f32 0.0, %v567
        %v569 = vpop.f32.mrf.mxu0
        %v570 = vpop.f32.mrf.mxu0
        %v571 = vpop.f32.mrf.mxu0
        %572 = vdwg.mxu0
        %v577 = vunpack.c.l.b16 %v403
        %v578 = vunpack.c.l.b16 %v404
        %v579 = vunpack.c.l.b16 %v405
        %v580 = vunpack.c.l.b16 %v406
        %v581 = vpack.c.b16 %v578, %v577
        %v582 = vpack.c.b16 %v580, %v579
        %585 = vmatprep.subr.bf16.mxu0 0
        %586 = vmatpush1.bf16.msra.mxu0 0
        %587 = vmatprep.subr.bf16.mxu0 0
        %588 = vmatpush1.bf16.msra.mxu0 0
        %589 = vmatprep.subr.bf16.mxu0 0
        %590 = vmatpush1.bf16.msra.mxu0 0
        %591 = vmatprep.subr.bf16.mxu0 0
        %592 = vmatpush1.bf16.msra.mxu0 0
        %593 = vmatprep.subr.bf16.mxu0 0
        %594 = vmatpush1.bf16.msra.mxu0 0
        %595 = vmatprep.subr.bf16.mxu0 0
        %596 = vmatpush1.bf16.msra.mxu0 0
        %597 = vmatprep.subr.bf16.mxu0 0
        %598 = vmatpush1.bf16.msra.mxu0 %v582
        %599 = vmatprep.subr.bf16.mxu0 0
        %600 = vmatpush1.bf16.msra.mxu0 %v581
        %601 = vmatprep.subr.bf16.mxu0 0
        %602 = vmatpush2.bf16.msra.mxu0 0
        %603 = vmatprep.subr.bf16.mxu0 0
        %604 = vmatpush2.bf16.msra.mxu0 0
        %605 = vmatprep.subr.bf16.mxu0 0
        %606 = vmatpush2.bf16.msra.mxu0 0
        %607 = vmatprep.subr.bf16.mxu0 0
        %608 = vmatpush2.bf16.msra.mxu0 0
        %609 = vmatprep.subr.bf16.mxu0 0
        %610 = vmatpush2.bf16.msra.mxu0 0
        %611 = vmatprep.subr.bf16.mxu0 0
        %612 = vmatpush2.bf16.msra.mxu0 0
        %613 = vmatprep.subr.bf16.mxu0 0
        %614 = vmatpush2.bf16.msra.mxu0 0
        %615 = vmatprep.subr.bf16.mxu0 0
        %616 = vmatpush2.bf16.msra.mxu0 0
        %617 = vmatprep.mubr.bf16.mxu0 0
        %618 = vmatmul.mubr.bf16.gmra.mxu0 %v531
        %v619 = vpop.f32.mrf.mxu0
        %v620 = vadd.f32 0.0, %v619
        %v621 = vpop.f32.mrf.mxu0
        %v622 = vpop.f32.mrf.mxu0
        %v623 = vpop.f32.mrf.mxu0
        %624 = vdwg.mxu0
        %v629 = vunpack.c.l.b16 %v407
        %v630 = vunpack.c.l.b16 %v408
        %v631 = vunpack.c.l.b16 %v409
        %v632 = vunpack.c.l.b16 %v410
        %v633 = vpack.c.b16 %v630, %v629
        %v634 = vpack.c.b16 %v632, %v631
        %637 = vmatprep.subr.bf16.mxu0 0
        %638 = vmatpush1.bf16.msra.mxu0 0
        %639 = vmatprep.subr.bf16.mxu0 0
        %640 = vmatpush1.bf16.msra.mxu0 0
        %641 = vmatprep.subr.bf16.mxu0 0
        %642 = vmatpush1.bf16.msra.mxu0 0
        %643 = vmatprep.subr.bf16.mxu0 0
        %644 = vmatpush1.bf16.msra.mxu0 0
        %645 = vmatprep.subr.bf16.mxu0 0
        %646 = vmatpush1.bf16.msra.mxu0 0
        %647 = vmatprep.subr.bf16.mxu0 0
        %648 = vmatpush1.bf16.msra.mxu0 0
        %649 = vmatprep.subr.bf16.mxu0 0
        %650 = vmatpush1.bf16.msra.mxu0 %v634
        %651 = vmatprep.subr.bf16.mxu0 0
        %652 = vmatpush1.bf16.msra.mxu0 %v633
        %653 = vmatprep.subr.bf16.mxu0 0
        %654 = vmatpush2.bf16.msra.mxu0 0
        %655 = vmatprep.subr.bf16.mxu0 0
        %656 = vmatpush2.bf16.msra.mxu0 0
        %657 = vmatprep.subr.bf16.mxu0 0
        %658 = vmatpush2.bf16.msra.mxu0 0
        %659 = vmatprep.subr.bf16.mxu0 0
        %660 = vmatpush2.bf16.msra.mxu0 0
        %661 = vmatprep.subr.bf16.mxu0 0
        %662 = vmatpush2.bf16.msra.mxu0 0
        %663 = vmatprep.subr.bf16.mxu0 0
        %664 = vmatpush2.bf16.msra.mxu0 0
        %665 = vmatprep.subr.bf16.mxu0 0
        %666 = vmatpush2.bf16.msra.mxu0 0
        %667 = vmatprep.subr.bf16.mxu0 0
        %668 = vmatpush2.bf16.msra.mxu0 0
        %669 = vmatprep.mubr.bf16.mxu0 0
        %670 = vmatmul.mubr.bf16.gmra.mxu0 %v531
        %v671 = vpop.f32.mrf.mxu0
        %v672 = vadd.f32 0.0, %v671
        %v673 = vpop.f32.mrf.mxu0
        %v674 = vpop.f32.mrf.mxu0
        %v675 = vpop.f32.mrf.mxu0
        %676 = vdwg.mxu0
        %v681 = vunpack.c.l.b16 %v411
        %v682 = vunpack.c.l.b16 %v412
        %v683 = vunpack.c.l.b16 %v413
        %v684 = vunpack.c.l.b16 %v414
        %v685 = vpack.c.b16 %v682, %v681
        %v686 = vpack.c.b16 %v684, %v683
        %689 = vmatprep.subr.bf16.mxu0 0
        %690 = vmatpush1.bf16.msra.mxu0 0
        %691 = vmatprep.subr.bf16.mxu0 0
        %692 = vmatpush1.bf16.msra.mxu0 0
        %693 = vmatprep.subr.bf16.mxu0 0
        %694 = vmatpush1.bf16.msra.mxu0 0
        %695 = vmatprep.subr.bf16.mxu0 0
        %696 = vmatpush1.bf16.msra.mxu0 0
        %697 = vmatprep.subr.bf16.mxu0 0
        %698 = vmatpush1.bf16.msra.mxu0 0
        %699 = vmatprep.subr.bf16.mxu0 0
        %700 = vmatpush1.bf16.msra.mxu0 0
        %701 = vmatprep.subr.bf16.mxu0 0
        %702 = vmatpush1.bf16.msra.mxu0 %v686
        %703 = vmatprep.subr.bf16.mxu0 0
        %704 = vmatpush1.bf16.msra.mxu0 %v685
        %705 = vmatprep.subr.bf16.mxu0 0
        %706 = vmatpush2.bf16.msra.mxu0 0
        %707 = vmatprep.subr.bf16.mxu0 0
        %708 = vmatpush2.bf16.msra.mxu0 0
        %709 = vmatprep.subr.bf16.mxu0 0
        %710 = vmatpush2.bf16.msra.mxu0 0
        %711 = vmatprep.subr.bf16.mxu0 0
        %712 = vmatpush2.bf16.msra.mxu0 0
        %713 = vmatprep.subr.bf16.mxu0 0
        %714 = vmatpush2.bf16.msra.mxu0 0
        %715 = vmatprep.subr.bf16.mxu0 0
        %716 = vmatpush2.bf16.msra.mxu0 0
        %717 = vmatprep.subr.bf16.mxu0 0
        %718 = vmatpush2.bf16.msra.mxu0 0
        %719 = vmatprep.subr.bf16.mxu0 0
        %720 = vmatpush2.bf16.msra.mxu0 0
        %721 = vmatprep.mubr.bf16.mxu0 0
        %722 = vmatmul.mubr.bf16.gmra.mxu0 %v531
        %v723 = vpop.f32.mrf.mxu0
        %v724 = vadd.f32 0.0, %v723
        %v725 = vpop.f32.mrf.mxu0
        %v726 = vpop.f32.mrf.mxu0
        %v727 = vpop.f32.mrf.mxu0
        %728 = vdwg.mxu0
        %v733 = vunpack.c.l.b16 %v415
        %v734 = vunpack.c.l.b16 %v416
        %v735 = vunpack.c.l.b16 %v417
        %v736 = vunpack.c.l.b16 %v418
        %v737 = vpack.c.b16 %v734, %v733
        %v738 = vpack.c.b16 %v736, %v735
        %741 = vmatprep.subr.bf16.mxu0 0
        %742 = vmatpush1.bf16.msra.mxu0 0
        %743 = vmatprep.subr.bf16.mxu0 0
        %744 = vmatpush1.bf16.msra.mxu0 0
        %745 = vmatprep.subr.bf16.mxu0 0
        %746 = vmatpush1.bf16.msra.mxu0 0
        %747 = vmatprep.subr.bf16.mxu0 0
        %748 = vmatpush1.bf16.msra.mxu0 0
        %749 = vmatprep.subr.bf16.mxu0 0
        %750 = vmatpush1.bf16.msra.mxu0 0
        %751 = vmatprep.subr.bf16.mxu0 0
        %752 = vmatpush1.bf16.msra.mxu0 0
        %753 = vmatprep.subr.bf16.mxu0 0
        %754 = vmatpush1.bf16.msra.mxu0 %v738
        %755 = vmatprep.subr.bf16.mxu0 0
        %756 = vmatpush1.bf16.msra.mxu0 %v737
        %757 = vmatprep.subr.bf16.mxu0 0
        %758 = vmatpush2.bf16.msra.mxu0 0
        %759 = vmatprep.subr.bf16.mxu0 0
        %760 = vmatpush2.bf16.msra.mxu0 0
        %761 = vmatprep.subr.bf16.mxu0 0
        %762 = vmatpush2.bf16.msra.mxu0 0
        %763 = vmatprep.subr.bf16.mxu0 0
        %764 = vmatpush2.bf16.msra.mxu0 0
        %765 = vmatprep.subr.bf16.mxu0 0
        %766 = vmatpush2.bf16.msra.mxu0 0
        %767 = vmatprep.subr.bf16.mxu0 0
        %768 = vmatpush2.bf16.msra.mxu0 0
        %769 = vmatprep.subr.bf16.mxu0 0
        %770 = vmatpush2.bf16.msra.mxu0 0
        %771 = vmatprep.subr.bf16.mxu0 0
        %772 = vmatpush2.bf16.msra.mxu0 0
        %773 = vmatprep.mubr.bf16.mxu0 0
        %774 = vmatmul.mubr.bf16.gmra.mxu0 %v531
        %v775 = vpop.f32.mrf.mxu0
        %v776 = vadd.f32 0.0, %v775
        %v777 = vpop.f32.mrf.mxu0
        %v778 = vpop.f32.mrf.mxu0
        %v779 = vpop.f32.mrf.mxu0
        %780 = vdwg.mxu0
        %v785 = vunpack.c.l.b16 %v419
        %v786 = vunpack.c.l.b16 %v420
        %v787 = vunpack.c.l.b16 %v421
        %v788 = vunpack.c.l.b16 %v422
        %v789 = vpack.c.b16 %v786, %v785
        %v790 = vpack.c.b16 %v788, %v787
        %793 = vmatprep.subr.bf16.mxu0 0
        %794 = vmatpush1.bf16.msra.mxu0 0
        %795 = vmatprep.subr.bf16.mxu0 0
        %796 = vmatpush1.bf16.msra.mxu0 0
        %797 = vmatprep.subr.bf16.mxu0 0
        %798 = vmatpush1.bf16.msra.mxu0 0
        %799 = vmatprep.subr.bf16.mxu0 0
        %800 = vmatpush1.bf16.msra.mxu0 0
        %801 = vmatprep.subr.bf16.mxu0 0
        %802 = vmatpush1.bf16.msra.mxu0 0
        %803 = vmatprep.subr.bf16.mxu0 0
        %804 = vmatpush1.bf16.msra.mxu0 0
        %805 = vmatprep.subr.bf16.mxu0 0
        %806 = vmatpush1.bf16.msra.mxu0 %v790
        %807 = vmatprep.subr.bf16.mxu0 0
        %808 = vmatpush1.bf16.msra.mxu0 %v789
        %809 = vmatprep.subr.bf16.mxu0 0
        %810 = vmatpush2.bf16.msra.mxu0 0
        %811 = vmatprep.subr.bf16.mxu0 0
        %812 = vmatpush2.bf16.msra.mxu0 0
        %813 = vmatprep.subr.bf16.mxu0 0
        %814 = vmatpush2.bf16.msra.mxu0 0
        %815 = vmatprep.subr.bf16.mxu0 0
        %816 = vmatpush2.bf16.msra.mxu0 0
        %817 = vmatprep.subr.bf16.mxu0 0
        %818 = vmatpush2.bf16.msra.mxu0 0
        %819 = vmatprep.subr.bf16.mxu0 0
        %820 = vmatpush2.bf16.msra.mxu0 0
        %821 = vmatprep.subr.bf16.mxu0 0
        %822 = vmatpush2.bf16.msra.mxu0 0
        %823 = vmatprep.subr.bf16.mxu0 0
        %824 = vmatpush2.bf16.msra.mxu0 0
        %825 = vmatprep.mubr.bf16.mxu0 0
        %826 = vmatmul.mubr.bf16.gmra.mxu0 %v531
        %v827 = vpop.f32.mrf.mxu0
        %v828 = vadd.f32 0.0, %v827
        %v829 = vpop.f32.mrf.mxu0
        %v830 = vpop.f32.mrf.mxu0
        %v831 = vpop.f32.mrf.mxu0
        %832 = vdwg.mxu0
        %v837 = vunpack.c.l.b16 %v423
        %v838 = vunpack.c.l.b16 %v424
        %v839 = vunpack.c.l.b16 %v425
        %v840 = vunpack.c.l.b16 %v426
        %v841 = vpack.c.b16 %v838, %v837
        %v842 = vpack.c.b16 %v840, %v839
        %845 = vmatprep.subr.bf16.mxu0 0
        %846 = vmatpush1.bf16.msra.mxu0 0
        %847 = vmatprep.subr.bf16.mxu0 0
        %848 = vmatpush1.bf16.msra.mxu0 0
        %849 = vmatprep.subr.bf16.mxu0 0
        %850 = vmatpush1.bf16.msra.mxu0 0
        %851 = vmatprep.subr.bf16.mxu0 0
        %852 = vmatpush1.bf16.msra.mxu0 0
        %853 = vmatprep.subr.bf16.mxu0 0
        %854 = vmatpush1.bf16.msra.mxu0 0
        %855 = vmatprep.subr.bf16.mxu0 0
        %856 = vmatpush1.bf16.msra.mxu0 0
        %857 = vmatprep.subr.bf16.mxu0 0
        %858 = vmatpush1.bf16.msra.mxu0 %v842
        %859 = vmatprep.subr.bf16.mxu0 0
        %860 = vmatpush1.bf16.msra.mxu0 %v841
        %861 = vmatprep.subr.bf16.mxu0 0
        %862 = vmatpush2.bf16.msra.mxu0 0
        %863 = vmatprep.subr.bf16.mxu0 0
        %864 = vmatpush2.bf16.msra.mxu0 0
        %865 = vmatprep.subr.bf16.mxu0 0
        %866 = vmatpush2.bf16.msra.mxu0 0
        %867 = vmatprep.subr.bf16.mxu0 0
        %868 = vmatpush2.bf16.msra.mxu0 0
        %869 = vmatprep.subr.bf16.mxu0 0
        %870 = vmatpush2.bf16.msra.mxu0 0
        %871 = vmatprep.subr.bf16.mxu0 0
        %872 = vmatpush2.bf16.msra.mxu0 0
        %873 = vmatprep.subr.bf16.mxu0 0
        %874 = vmatpush2.bf16.msra.mxu0 0
        %875 = vmatprep.subr.bf16.mxu0 0
        %876 = vmatpush2.bf16.msra.mxu0 0
        %877 = vmatprep.mubr.bf16.mxu0 0
        %878 = vmatmul.mubr.bf16.gmra.mxu0 %v531
        %v879 = vpop.f32.mrf.mxu0
        %v880 = vadd.f32 0.0, %v879
        %v881 = vpop.f32.mrf.mxu0
        %v882 = vpop.f32.mrf.mxu0
        %v883 = vpop.f32.mrf.mxu0
        %884 = vdwg.mxu0
        %v889 = vunpack.c.l.b16 %v427
        %v890 = vunpack.c.l.b16 %v428
        %v891 = vunpack.c.l.b16 %v429
        %v892 = vunpack.c.l.b16 %v430
        %v893 = vpack.c.b16 %v890, %v889
        %v894 = vpack.c.b16 %v892, %v891
        %897 = vmatprep.subr.bf16.mxu0 0
        %898 = vmatpush1.bf16.msra.mxu0 0
        %899 = vmatprep.subr.bf16.mxu0 0
        %900 = vmatpush1.bf16.msra.mxu0 0
        %901 = vmatprep.subr.bf16.mxu0 0
        %902 = vmatpush1.bf16.msra.mxu0 0
        %903 = vmatprep.subr.bf16.mxu0 0
        %904 = vmatpush1.bf16.msra.mxu0 0
        %905 = vmatprep.subr.bf16.mxu0 0
        %906 = vmatpush1.bf16.msra.mxu0 0
        %907 = vmatprep.subr.bf16.mxu0 0
        %908 = vmatpush1.bf16.msra.mxu0 0
        %909 = vmatprep.subr.bf16.mxu0 0
        %910 = vmatpush1.bf16.msra.mxu0 %v894
        %911 = vmatprep.subr.bf16.mxu0 0
        %912 = vmatpush1.bf16.msra.mxu0 %v893
        %913 = vmatprep.subr.bf16.mxu0 0
        %914 = vmatpush2.bf16.msra.mxu0 0
        %915 = vmatprep.subr.bf16.mxu0 0
        %916 = vmatpush2.bf16.msra.mxu0 0
        %917 = vmatprep.subr.bf16.mxu0 0
        %918 = vmatpush2.bf16.msra.mxu0 0
        %919 = vmatprep.subr.bf16.mxu0 0
        %920 = vmatpush2.bf16.msra.mxu0 0
        %921 = vmatprep.subr.bf16.mxu0 0
        %922 = vmatpush2.bf16.msra.mxu0 0
        %923 = vmatprep.subr.bf16.mxu0 0
        %924 = vmatpush2.bf16.msra.mxu0 0
        %925 = vmatprep.subr.bf16.mxu0 0
        %926 = vmatpush2.bf16.msra.mxu0 0
        %927 = vmatprep.subr.bf16.mxu0 0
        %928 = vmatpush2.bf16.msra.mxu0 0
        %929 = vmatprep.mubr.bf16.mxu0 0
        %930 = vmatmul.mubr.bf16.gmra.mxu0 %v531
        %v931 = vpop.f32.mrf.mxu0
        %v932 = vadd.f32 0.0, %v931
        %v933 = vpop.f32.mrf.mxu0
        %v934 = vpop.f32.mrf.mxu0
        %v935 = vpop.f32.mrf.mxu0
        %936 = vdwg.mxu0
        %v941 = vunpack.c.l.b16 %v431
        %v942 = vunpack.c.l.b16 %v432
        %v943 = vunpack.c.l.b16 %v433
        %v944 = vunpack.c.l.b16 %v434
        %v945 = vpack.c.b16 %v942, %v941
        %v946 = vpack.c.b16 %v944, %v943
        %949 = vmatprep.subr.bf16.mxu0 0
        %950 = vmatpush1.bf16.msra.mxu0 0
        %951 = vmatprep.subr.bf16.mxu0 0
        %952 = vmatpush1.bf16.msra.mxu0 0
        %953 = vmatprep.subr.bf16.mxu0 0
        %954 = vmatpush1.bf16.msra.mxu0 0
        %955 = vmatprep.subr.bf16.mxu0 0
        %956 = vmatpush1.bf16.msra.mxu0 0
        %957 = vmatprep.subr.bf16.mxu0 0
        %958 = vmatpush1.bf16.msra.mxu0 0
        %959 = vmatprep.subr.bf16.mxu0 0
        %960 = vmatpush1.bf16.msra.mxu0 0
        %961 = vmatprep.subr.bf16.mxu0 0
        %962 = vmatpush1.bf16.msra.mxu0 %v946
        %963 = vmatprep.subr.bf16.mxu0 0
        %964 = vmatpush1.bf16.msra.mxu0 %v945
        %965 = vmatprep.subr.bf16.mxu0 0
        %966 = vmatpush2.bf16.msra.mxu0 0
        %967 = vmatprep.subr.bf16.mxu0 0
        %968 = vmatpush2.bf16.msra.mxu0 0
        %969 = vmatprep.subr.bf16.mxu0 0
        %970 = vmatpush2.bf16.msra.mxu0 0
        %971 = vmatprep.subr.bf16.mxu0 0
        %972 = vmatpush2.bf16.msra.mxu0 0
        %973 = vmatprep.subr.bf16.mxu0 0
        %974 = vmatpush2.bf16.msra.mxu0 0
        %975 = vmatprep.subr.bf16.mxu0 0
        %976 = vmatpush2.bf16.msra.mxu0 0
        %977 = vmatprep.subr.bf16.mxu0 0
        %978 = vmatpush2.bf16.msra.mxu0 0
        %979 = vmatprep.subr.bf16.mxu0 0
        %980 = vmatpush2.bf16.msra.mxu0 0
        %981 = vmatprep.mubr.bf16.mxu0 0
        %982 = vmatmul.mubr.bf16.gmra.mxu0 %v531
        %v983 = vpop.f32.mrf.mxu0
        %v984 = vadd.f32 0.0, %v983
        %v985 = vpop.f32.mrf.mxu0
        %v986 = vpop.f32.mrf.mxu0
        %v987 = vpop.f32.mrf.mxu0
        %988 = vdwg.mxu0
        %v993 = vunpack.c.l.b16 %v435
        %v994 = vunpack.c.l.b16 %v436
        %v995 = vunpack.c.l.b16 %v437
        %v996 = vunpack.c.l.b16 %v438
        %v997 = vpack.c.b16 %v994, %v993
        %v998 = vpack.c.b16 %v996, %v995
        %1001 = vmatprep.subr.bf16.mxu0 0
        %1002 = vmatpush1.bf16.msra.mxu0 0
        %1003 = vmatprep.subr.bf16.mxu0 0
        %1004 = vmatpush1.bf16.msra.mxu0 0
        %1005 = vmatprep.subr.bf16.mxu0 0
        %1006 = vmatpush1.bf16.msra.mxu0 0
        %1007 = vmatprep.subr.bf16.mxu0 0
        %1008 = vmatpush1.bf16.msra.mxu0 0
        %1009 = vmatprep.subr.bf16.mxu0 0
        %1010 = vmatpush1.bf16.msra.mxu0 0
        %1011 = vmatprep.subr.bf16.mxu0 0
        %1012 = vmatpush1.bf16.msra.mxu0 0
        %1013 = vmatprep.subr.bf16.mxu0 0
        %1014 = vmatpush1.bf16.msra.mxu0 %v998
        %1015 = vmatprep.subr.bf16.mxu0 0
        %1016 = vmatpush1.bf16.msra.mxu0 %v997
        %1017 = vmatprep.subr.bf16.mxu0 0
        %1018 = vmatpush2.bf16.msra.mxu0 0
        %1019 = vmatprep.subr.bf16.mxu0 0
        %1020 = vmatpush2.bf16.msra.mxu0 0
        %1021 = vmatprep.subr.bf16.mxu0 0
        %1022 = vmatpush2.bf16.msra.mxu0 0
        %1023 = vmatprep.subr.bf16.mxu0 0
        %1024 = vmatpush2.bf16.msra.mxu0 0
        %1025 = vmatprep.subr.bf16.mxu0 0
        %1026 = vmatpush2.bf16.msra.mxu0 0
        %1027 = vmatprep.subr.bf16.mxu0 0
        %1028 = vmatpush2.bf16.msra.mxu0 0
        %1029 = vmatprep.subr.bf16.mxu0 0
        %1030 = vmatpush2.bf16.msra.mxu0 0
        %1031 = vmatprep.subr.bf16.mxu0 0
        %1032 = vmatpush2.bf16.msra.mxu0 0
        %1033 = vmatprep.mubr.bf16.mxu0 0
        %1034 = vmatmul.mubr.bf16.gmra.mxu0 %v531
        %v1035 = vpop.f32.mrf.mxu0
        %v1036 = vadd.f32 0.0, %v1035
        %v1037 = vpop.f32.mrf.mxu0
        %v1038 = vpop.f32.mrf.mxu0
        %v1039 = vpop.f32.mrf.mxu0
        %1040 = vdwg.mxu0
        %v1045 = vunpack.c.l.b16 %v439
        %v1046 = vunpack.c.l.b16 %v440
        %v1047 = vunpack.c.l.b16 %v441
        %v1048 = vunpack.c.l.b16 %v442
        %v1049 = vpack.c.b16 %v1046, %v1045
        %v1050 = vpack.c.b16 %v1048, %v1047
        %1053 = vmatprep.subr.bf16.mxu0 0
        %1054 = vmatpush1.bf16.msra.mxu0 0
        %1055 = vmatprep.subr.bf16.mxu0 0
        %1056 = vmatpush1.bf16.msra.mxu0 0
        %1057 = vmatprep.subr.bf16.mxu0 0
        %1058 = vmatpush1.bf16.msra.mxu0 0
        %1059 = vmatprep.subr.bf16.mxu0 0
        %1060 = vmatpush1.bf16.msra.mxu0 0
        %1061 = vmatprep.subr.bf16.mxu0 0
        %1062 = vmatpush1.bf16.msra.mxu0 0
        %1063 = vmatprep.subr.bf16.mxu0 0
        %1064 = vmatpush1.bf16.msra.mxu0 0
        %1065 = vmatprep.subr.bf16.mxu0 0
        %1066 = vmatpush1.bf16.msra.mxu0 %v1050
        %1067 = vmatprep.subr.bf16.mxu0 0
        %1068 = vmatpush1.bf16.msra.mxu0 %v1049
        %1069 = vmatprep.subr.bf16.mxu0 0
        %1070 = vmatpush2.bf16.msra.mxu0 0
        %1071 = vmatprep.subr.bf16.mxu0 0
        %1072 = vmatpush2.bf16.msra.mxu0 0
        %1073 = vmatprep.subr.bf16.mxu0 0
        %1074 = vmatpush2.bf16.msra.mxu0 0
        %1075 = vmatprep.subr.bf16.mxu0 0
        %1076 = vmatpush2.bf16.msra.mxu0 0
        %1077 = vmatprep.subr.bf16.mxu0 0
        %1078 = vmatpush2.bf16.msra.mxu0 0
        %1079 = vmatprep.subr.bf16.mxu0 0
        %1080 = vmatpush2.bf16.msra.mxu0 0
        %1081 = vmatprep.subr.bf16.mxu0 0
        %1082 = vmatpush2.bf16.msra.mxu0 0
        %1083 = vmatprep.subr.bf16.mxu0 0
        %1084 = vmatpush2.bf16.msra.mxu0 0
        %1085 = vmatprep.mubr.bf16.mxu0 0
        %1086 = vmatmul.mubr.bf16.gmra.mxu0 %v531
        %v1087 = vpop.f32.mrf.mxu0
        %v1088 = vadd.f32 0.0, %v1087
        %v1089 = vpop.f32.mrf.mxu0
        %v1090 = vpop.f32.mrf.mxu0
        %v1091 = vpop.f32.mrf.mxu0
        %1092 = vdwg.mxu0
        %v1097 = vunpack.c.l.b16 %v443
        %v1098 = vunpack.c.l.b16 %v444
        %v1099 = vunpack.c.l.b16 %v445
        %v1100 = vunpack.c.l.b16 %v446
        %v1101 = vpack.c.b16 %v1098, %v1097
        %v1102 = vpack.c.b16 %v1100, %v1099
        %1105 = vmatprep.subr.bf16.mxu0 0
        %1106 = vmatpush1.bf16.msra.mxu0 0
        %1107 = vmatprep.subr.bf16.mxu0 0
        %1108 = vmatpush1.bf16.msra.mxu0 0
        %1109 = vmatprep.subr.bf16.mxu0 0
        %1110 = vmatpush1.bf16.msra.mxu0 0
        %1111 = vmatprep.subr.bf16.mxu0 0
        %1112 = vmatpush1.bf16.msra.mxu0 0
        %1113 = vmatprep.subr.bf16.mxu0 0
        %1114 = vmatpush1.bf16.msra.mxu0 0
        %1115 = vmatprep.subr.bf16.mxu0 0
        %1116 = vmatpush1.bf16.msra.mxu0 0
        %1117 = vmatprep.subr.bf16.mxu0 0
        %1118 = vmatpush1.bf16.msra.mxu0 %v1102
        %1119 = vmatprep.subr.bf16.mxu0 0
        %1120 = vmatpush1.bf16.msra.mxu0 %v1101
        %1121 = vmatprep.subr.bf16.mxu0 0
        %1122 = vmatpush2.bf16.msra.mxu0 0
        %1123 = vmatprep.subr.bf16.mxu0 0
        %1124 = vmatpush2.bf16.msra.mxu0 0
        %1125 = vmatprep.subr.bf16.mxu0 0
        %1126 = vmatpush2.bf16.msra.mxu0 0
        %1127 = vmatprep.subr.bf16.mxu0 0
        %1128 = vmatpush2.bf16.msra.mxu0 0
        %1129 = vmatprep.subr.bf16.mxu0 0
        %1130 = vmatpush2.bf16.msra.mxu0 0
        %1131 = vmatprep.subr.bf16.mxu0 0
        %1132 = vmatpush2.bf16.msra.mxu0 0
        %1133 = vmatprep.subr.bf16.mxu0 0
        %1134 = vmatpush2.bf16.msra.mxu0 0
        %1135 = vmatprep.subr.bf16.mxu0 0
        %1136 = vmatpush2.bf16.msra.mxu0 0
        %1137 = vmatprep.mubr.bf16.mxu0 0
        %1138 = vmatmul.mubr.bf16.gmra.mxu0 %v531
        %v1139 = vpop.f32.mrf.mxu0
        %v1140 = vadd.f32 0.0, %v1139
        %v1141 = vpop.f32.mrf.mxu0
        %v1142 = vpop.f32.mrf.mxu0
        %v1143 = vpop.f32.mrf.mxu0
        %1144 = vdwg.mxu0
        %v1145 = vmul.f32 %v568, 0.35355338
        %v1146 = vmul.f32 %v620, 0.35355338
        %v1147 = vmul.f32 %v672, 0.35355338
        %v1148 = vmul.f32 %v724, 0.35355338
        %v1149 = vpack.c.bf16 %v1145, %v1145
        %v1150 = vpack.c.bf16 %v1146, %v1146
        %v1151 = vpack.c.bf16 %v1147, %v1147
        %v1152 = vpack.c.bf16 %v1148, %v1148
        %v1153 = vpack.c.bf16 %v776, %v776
        %v1154 = vpack.c.bf16 %v828, %v828
        %v1155 = vpack.c.bf16 %v880, %v880
        %v1156 = vpack.c.bf16 %v932, %v932
        %v1157 = vpack.c.bf16 %v984, %v984
        %v1158 = vpack.c.bf16 %v1036, %v1036
        %v1159 = vpack.c.bf16 %v1088, %v1088
        %v1160 = vpack.c.bf16 %v1140, %v1140
        %vm1161 = vcmask 64512
        %v1163 = vsel %vm1161, %v1149, 0
        %v1166 = vsel %vm1161, %v1153, 0
        %1168 = vmatprep.subr.bf16.mxu0 0
        %1169 = vmatpush1.bf16.xpose.msra.mxu0 0
        %1170 = vmatprep.subr.bf16.mxu0 0
        %1171 = vmatpush1.bf16.xpose.msra.mxu0 0
        %1172 = vmatprep.subr.bf16.mxu0 0
        %1173 = vmatpush1.bf16.xpose.msra.mxu0 0
        %1174 = vmatprep.subr.bf16.mxu0 0
        %1175 = vmatpush1.bf16.xpose.msra.mxu0 0
        %1176 = vmatprep.subr.bf16.mxu0 0
        %1177 = vmatpush1.bf16.xpose.msra.mxu0 0
        %1178 = vmatprep.subr.bf16.mxu0 0
        %1179 = vmatpush1.bf16.xpose.msra.mxu0 0
        %1180 = vmatprep.subr.bf16.mxu0 0
        %1181 = vmatpush1.bf16.xpose.msra.mxu0 0
        %1182 = vmatprep.subr.bf16.mxu0 0
        %1183 = vmatpush1.bf16.xpose.msra.mxu0 %v1166
        %1184 = vmatprep.subr.bf16.mxu0 0
        %1185 = vmatpush2.bf16.xpose.msra.mxu0 0
        %1186 = vmatprep.subr.bf16.mxu0 0
        %1187 = vmatpush2.bf16.xpose.msra.mxu0 0
        %1188 = vmatprep.subr.bf16.mxu0 0
        %1189 = vmatpush2.bf16.xpose.msra.mxu0 0
        %1190 = vmatprep.subr.bf16.mxu0 0
        %1191 = vmatpush2.bf16.xpose.msra.mxu0 0
        %1192 = vmatprep.subr.bf16.mxu0 0
        %1193 = vmatpush2.bf16.xpose.msra.mxu0 0
        %1194 = vmatprep.subr.bf16.mxu0 0
        %1195 = vmatpush2.bf16.xpose.msra.mxu0 0
        %1196 = vmatprep.subr.bf16.mxu0 0
        %1197 = vmatpush2.bf16.xpose.msra.mxu0 0
        %1198 = vmatprep.subr.bf16.mxu0 0
        %1199 = vmatpush2.bf16.xpose.msra.mxu0 0
        %1200 = vmatprep.mubr.bf16.mxu0 0
        %1201 = vmatmul.mubr.bf16.gmra.mxu0 %v1163
        %v1202 = vpop.f32.mrf.mxu0
        %v1203 = vadd.f32 0.0, %v1202
        %v1204 = vpop.f32.mrf.mxu0
        %v1205 = vpop.f32.mrf.mxu0
        %v1206 = vpop.f32.mrf.mxu0
        %1207 = vdwg.mxu0
        %v1209 = vsel %vm1161, %v1150, 0
        %v1212 = vsel %vm1161, %v1154, 0
        %1214 = vmatprep.subr.bf16.mxu0 0
        %1215 = vmatpush1.bf16.xpose.msra.mxu0 0
        %1216 = vmatprep.subr.bf16.mxu0 0
        %1217 = vmatpush1.bf16.xpose.msra.mxu0 0
        %1218 = vmatprep.subr.bf16.mxu0 0
        %1219 = vmatpush1.bf16.xpose.msra.mxu0 0
        %1220 = vmatprep.subr.bf16.mxu0 0
        %1221 = vmatpush1.bf16.xpose.msra.mxu0 0
        %1222 = vmatprep.subr.bf16.mxu0 0
        %1223 = vmatpush1.bf16.xpose.msra.mxu0 0
        %1224 = vmatprep.subr.bf16.mxu0 0
        %1225 = vmatpush1.bf16.xpose.msra.mxu0 0
        %1226 = vmatprep.subr.bf16.mxu0 0
        %1227 = vmatpush1.bf16.xpose.msra.mxu0 0
        %1228 = vmatprep.subr.bf16.mxu0 0
        %1229 = vmatpush1.bf16.xpose.msra.mxu0 %v1212
        %1230 = vmatprep.subr.bf16.mxu0 0
        %1231 = vmatpush2.bf16.xpose.msra.mxu0 0
        %1232 = vmatprep.subr.bf16.mxu0 0
        %1233 = vmatpush2.bf16.xpose.msra.mxu0 0
        %1234 = vmatprep.subr.bf16.mxu0 0
        %1235 = vmatpush2.bf16.xpose.msra.mxu0 0
        %1236 = vmatprep.subr.bf16.mxu0 0
        %1237 = vmatpush2.bf16.xpose.msra.mxu0 0
        %1238 = vmatprep.subr.bf16.mxu0 0
        %1239 = vmatpush2.bf16.xpose.msra.mxu0 0
        %1240 = vmatprep.subr.bf16.mxu0 0
        %1241 = vmatpush2.bf16.xpose.msra.mxu0 0
        %1242 = vmatprep.subr.bf16.mxu0 0
        %1243 = vmatpush2.bf16.xpose.msra.mxu0 0
        %1244 = vmatprep.subr.bf16.mxu0 0
        %1245 = vmatpush2.bf16.xpose.msra.mxu0 0
        %1246 = vmatprep.mubr.bf16.mxu0 0
        %1247 = vmatmul.mubr.bf16.gmra.mxu0 %v1209
        %v1248 = vpop.f32.mrf.mxu0
        %v1249 = vadd.f32 0.0, %v1248
        %v1250 = vpop.f32.mrf.mxu0
        %v1251 = vpop.f32.mrf.mxu0
        %v1252 = vpop.f32.mrf.mxu0
        %1253 = vdwg.mxu0
        %v1255 = vsel %vm1161, %v1151, 0
        %v1258 = vsel %vm1161, %v1155, 0
        %1260 = vmatprep.subr.bf16.mxu0 0
        %1261 = vmatpush1.bf16.xpose.msra.mxu0 0
        %1262 = vmatprep.subr.bf16.mxu0 0
        %1263 = vmatpush1.bf16.xpose.msra.mxu0 0
        %1264 = vmatprep.subr.bf16.mxu0 0
        %1265 = vmatpush1.bf16.xpose.msra.mxu0 0
        %1266 = vmatprep.subr.bf16.mxu0 0
        %1267 = vmatpush1.bf16.xpose.msra.mxu0 0
        %1268 = vmatprep.subr.bf16.mxu0 0
        %1269 = vmatpush1.bf16.xpose.msra.mxu0 0
        %1270 = vmatprep.subr.bf16.mxu0 0
        %1271 = vmatpush1.bf16.xpose.msra.mxu0 0
        %1272 = vmatprep.subr.bf16.mxu0 0
        %1273 = vmatpush1.bf16.xpose.msra.mxu0 0
        %1274 = vmatprep.subr.bf16.mxu0 0
        %1275 = vmatpush1.bf16.xpose.msra.mxu0 %v1258
        %1276 = vmatprep.subr.bf16.mxu0 0
        %1277 = vmatpush2.bf16.xpose.msra.mxu0 0
        %1278 = vmatprep.subr.bf16.mxu0 0
        %1279 = vmatpush2.bf16.xpose.msra.mxu0 0
        %1280 = vmatprep.subr.bf16.mxu0 0
        %1281 = vmatpush2.bf16.xpose.msra.mxu0 0
        %1282 = vmatprep.subr.bf16.mxu0 0
        %1283 = vmatpush2.bf16.xpose.msra.mxu0 0
        %1284 = vmatprep.subr.bf16.mxu0 0
        %1285 = vmatpush2.bf16.xpose.msra.mxu0 0
        %1286 = vmatprep.subr.bf16.mxu0 0
        %1287 = vmatpush2.bf16.xpose.msra.mxu0 0
        %1288 = vmatprep.subr.bf16.mxu0 0
        %1289 = vmatpush2.bf16.xpose.msra.mxu0 0
        %1290 = vmatprep.subr.bf16.mxu0 0
        %1291 = vmatpush2.bf16.xpose.msra.mxu0 0
        %1292 = vmatprep.mubr.bf16.mxu0 0
        %1293 = vmatmul.mubr.bf16.gmra.mxu0 %v1255
        %v1294 = vpop.f32.mrf.mxu0
        %v1295 = vadd.f32 0.0, %v1294
        %v1296 = vpop.f32.mrf.mxu0
        %v1297 = vpop.f32.mrf.mxu0
        %v1298 = vpop.f32.mrf.mxu0
        %1299 = vdwg.mxu0
        %v1301 = vsel %vm1161, %v1152, 0
        %v1304 = vsel %vm1161, %v1156, 0
        %1306 = vmatprep.subr.bf16.mxu0 0
        %1307 = vmatpush1.bf16.xpose.msra.mxu0 0
        %1308 = vmatprep.subr.bf16.mxu0 0
        %1309 = vmatpush1.bf16.xpose.msra.mxu0 0
        %1310 = vmatprep.subr.bf16.mxu0 0
        %1311 = vmatpush1.bf16.xpose.msra.mxu0 0
        %1312 = vmatprep.subr.bf16.mxu0 0
        %1313 = vmatpush1.bf16.xpose.msra.mxu0 0
        %1314 = vmatprep.subr.bf16.mxu0 0
        %1315 = vmatpush1.bf16.xpose.msra.mxu0 0
        %1316 = vmatprep.subr.bf16.mxu0 0
        %1317 = vmatpush1.bf16.xpose.msra.mxu0 0
        %1318 = vmatprep.subr.bf16.mxu0 0
        %1319 = vmatpush1.bf16.xpose.msra.mxu0 0
        %1320 = vmatprep.subr.bf16.mxu0 0
        %1321 = vmatpush1.bf16.xpose.msra.mxu0 %v1304
        %1322 = vmatprep.subr.bf16.mxu0 0
        %1323 = vmatpush2.bf16.xpose.msra.mxu0 0
        %1324 = vmatprep.subr.bf16.mxu0 0
        %1325 = vmatpush2.bf16.xpose.msra.mxu0 0
        %1326 = vmatprep.subr.bf16.mxu0 0
        %1327 = vmatpush2.bf16.xpose.msra.mxu0 0
        %1328 = vmatprep.subr.bf16.mxu0 0
        %1329 = vmatpush2.bf16.xpose.msra.mxu0 0
        %1330 = vmatprep.subr.bf16.mxu0 0
        %1331 = vmatpush2.bf16.xpose.msra.mxu0 0
        %1332 = vmatprep.subr.bf16.mxu0 0
        %1333 = vmatpush2.bf16.xpose.msra.mxu0 0
        %1334 = vmatprep.subr.bf16.mxu0 0
        %1335 = vmatpush2.bf16.xpose.msra.mxu0 0
        %1336 = vmatprep.subr.bf16.mxu0 0
        %1337 = vmatpush2.bf16.xpose.msra.mxu0 0
        %1338 = vmatprep.mubr.bf16.mxu0 0
        %1339 = vmatmul.mubr.bf16.gmra.mxu0 %v1301
        %v1340 = vpop.f32.mrf.mxu0
        %v1341 = vadd.f32 0.0, %v1340
        %v1342 = vpop.f32.mrf.mxu0
        %v1343 = vpop.f32.mrf.mxu0
        %v1344 = vpop.f32.mrf.mxu0
        %1345 = vdwg.mxu0
        %v1346 = vsel %vm393, %v1203, 1e-06
        %v1347 = vsel %vm393, %v1249, 1e-06
        %v1348 = vsel %vm393, %v1295, 1e-06
        %v1349 = vsel %vm393, %v1341, 1e-06
        %v1350 = vsel %vm1161, %v1346, -inf
        %1351 = vmax.xlane.f32.xlu0 %v1350
        %v1352 = vpop.xlane.xlu0 %1351
        %v1353 = vsel %vm1161, %v1347, -inf
        %1354 = vmax.xlane.f32.xlu0 %v1353
        %v1355 = vpop.xlane.xlu0 %1354
        %v1356 = vsel %vm1161, %v1348, -inf
        %1357 = vmax.xlane.f32.xlu0 %v1356
        %v1358 = vpop.xlane.xlu0 %1357
        %v1359 = vsel %vm1161, %v1349, -inf
        %1360 = vmax.xlane.f32.xlu0 %v1359
        %v1361 = vpop.xlane.xlu0 %1360
        %v1362 = vsub.f32 %v1346, %v1352
        %v1363 = vsub.f32 %v1347, %v1355
        %v1364 = vsub.f32 %v1348, %v1358
        %v1365 = vsub.f32 %v1349, %v1361
        %v1366 = vmul.f32 %v1362, 1.442695
        %v1367 = vpow.pop %v1366
        %v1368 = vmul.f32 %v1363, 1.442695
        %v1369 = vpow.pop %v1368
        %v1370 = vmul.f32 %v1364, 1.442695
        %v1371 = vpow.pop %v1370
        %v1372 = vmul.f32 %v1365, 1.442695
        %v1373 = vpow.pop %v1372
        %v1374 = vsel %vm1161, %v1367, 0.0
        %1375 = vadd.xlane.f32.xlu0 %v1374
        %v1376 = vpop.xlane.xlu0 %1375
        %v1377 = vsel %vm1161, %v1369, 0.0
        %1378 = vadd.xlane.f32.xlu0 %v1377
        %v1379 = vpop.xlane.xlu0 %1378
        %v1380 = vsel %vm1161, %v1371, 0.0
        %1381 = vadd.xlane.f32.xlu0 %v1380
        %v1382 = vpop.xlane.xlu0 %1381
        %v1383 = vsel %vm1161, %v1373, 0.0
        %1384 = vadd.xlane.f32.xlu0 %v1383
        %v1385 = vpop.xlane.xlu0 %1384
        %v1386 = vrcp.pop %v1376
        %v1387 = vrcp.pop %v1379
        %v1388 = vrcp.pop %v1382
        %v1389 = vrcp.pop %v1385
        %v1390 = vmul.f32 %v1367, %v1386
        %v1391 = vmul.f32 %v1369, %v1387
        %v1392 = vmul.f32 %v1371, %v1388
        %v1393 = vmul.f32 %v1373, %v1389
        %v1394 = vpack.c.bf16 %v1390, %v1390
        %v1395 = vpack.c.bf16 %v1391, %v1391
        %v1396 = vpack.c.bf16 %v1392, %v1392
        %v1397 = vpack.c.bf16 %v1393, %v1393
        %v1399 = vsel %vm1161, %v1394, 0
        %vm1401 = vcmask 1043456
        %v1403 = vsel %vm1401, %v1157, 0
        %1405 = vmatprep.subr.bf16.mxu0 0
        %1406 = vmatpush1.bf16.msra.mxu0 0
        %1407 = vmatprep.subr.bf16.mxu0 0
        %1408 = vmatpush1.bf16.msra.mxu0 0
        %1409 = vmatprep.subr.bf16.mxu0 0
        %1410 = vmatpush1.bf16.msra.mxu0 0
        %1411 = vmatprep.subr.bf16.mxu0 0
        %1412 = vmatpush1.bf16.msra.mxu0 0
        %1413 = vmatprep.subr.bf16.mxu0 0
        %1414 = vmatpush1.bf16.msra.mxu0 0
        %1415 = vmatprep.subr.bf16.mxu0 0
        %1416 = vmatpush1.bf16.msra.mxu0 0
        %1417 = vmatprep.subr.bf16.mxu0 0
        %1418 = vmatpush1.bf16.msra.mxu0 0
        %1419 = vmatprep.subr.bf16.mxu0 0
        %1420 = vmatpush1.bf16.msra.mxu0 %v1403
        %1421 = vmatprep.subr.bf16.mxu0 0
        %1422 = vmatpush2.bf16.msra.mxu0 0
        %1423 = vmatprep.subr.bf16.mxu0 0
        %1424 = vmatpush2.bf16.msra.mxu0 0
        %1425 = vmatprep.subr.bf16.mxu0 0
        %1426 = vmatpush2.bf16.msra.mxu0 0
        %1427 = vmatprep.subr.bf16.mxu0 0
        %1428 = vmatpush2.bf16.msra.mxu0 0
        %1429 = vmatprep.subr.bf16.mxu0 0
        %1430 = vmatpush2.bf16.msra.mxu0 0
        %1431 = vmatprep.subr.bf16.mxu0 0
        %1432 = vmatpush2.bf16.msra.mxu0 0
        %1433 = vmatprep.subr.bf16.mxu0 0
        %1434 = vmatpush2.bf16.msra.mxu0 0
        %1435 = vmatprep.subr.bf16.mxu0 0
        %1436 = vmatpush2.bf16.msra.mxu0 0
        %1437 = vmatprep.mubr.bf16.mxu0 0
        %1438 = vmatmul.mubr.bf16.gmra.mxu0 %v1399
        %v1439 = vpop.f32.mrf.mxu0
        %v1440 = vadd.f32 0.0, %v1439
        %v1441 = vpop.f32.mrf.mxu0
        %v1442 = vpop.f32.mrf.mxu0
        %v1443 = vpop.f32.mrf.mxu0
        %1444 = vdwg.mxu0
        %v1446 = vsel %vm1161, %v1395, 0
        %v1449 = vsel %vm1401, %v1158, 0
        %1451 = vmatprep.subr.bf16.mxu0 0
        %1452 = vmatpush1.bf16.msra.mxu0 0
        %1453 = vmatprep.subr.bf16.mxu0 0
        %1454 = vmatpush1.bf16.msra.mxu0 0
        %1455 = vmatprep.subr.bf16.mxu0 0
        %1456 = vmatpush1.bf16.msra.mxu0 0
        %1457 = vmatprep.subr.bf16.mxu0 0
        %1458 = vmatpush1.bf16.msra.mxu0 0
        %1459 = vmatprep.subr.bf16.mxu0 0
        %1460 = vmatpush1.bf16.msra.mxu0 0
        %1461 = vmatprep.subr.bf16.mxu0 0
        %1462 = vmatpush1.bf16.msra.mxu0 0
        %1463 = vmatprep.subr.bf16.mxu0 0
        %1464 = vmatpush1.bf16.msra.mxu0 0
        %1465 = vmatprep.subr.bf16.mxu0 0
        %1466 = vmatpush1.bf16.msra.mxu0 %v1449
        %1467 = vmatprep.subr.bf16.mxu0 0
        %1468 = vmatpush2.bf16.msra.mxu0 0
        %1469 = vmatprep.subr.bf16.mxu0 0
        %1470 = vmatpush2.bf16.msra.mxu0 0
        %1471 = vmatprep.subr.bf16.mxu0 0
        %1472 = vmatpush2.bf16.msra.mxu0 0
        %1473 = vmatprep.subr.bf16.mxu0 0
        %1474 = vmatpush2.bf16.msra.mxu0 0
        %1475 = vmatprep.subr.bf16.mxu0 0
        %1476 = vmatpush2.bf16.msra.mxu0 0
        %1477 = vmatprep.subr.bf16.mxu0 0
        %1478 = vmatpush2.bf16.msra.mxu0 0
        %1479 = vmatprep.subr.bf16.mxu0 0
        %1480 = vmatpush2.bf16.msra.mxu0 0
        %1481 = vmatprep.subr.bf16.mxu0 0
        %1482 = vmatpush2.bf16.msra.mxu0 0
        %1483 = vmatprep.mubr.bf16.mxu0 0
        %1484 = vmatmul.mubr.bf16.gmra.mxu0 %v1446
        %v1485 = vpop.f32.mrf.mxu0
        %v1486 = vadd.f32 0.0, %v1485
        %v1487 = vpop.f32.mrf.mxu0
        %v1488 = vpop.f32.mrf.mxu0
        %v1489 = vpop.f32.mrf.mxu0
        %1490 = vdwg.mxu0
        %v1492 = vsel %vm1161, %v1396, 0
        %v1495 = vsel %vm1401, %v1159, 0
        %1497 = vmatprep.subr.bf16.mxu0 0
        %1498 = vmatpush1.bf16.msra.mxu0 0
        %1499 = vmatprep.subr.bf16.mxu0 0
        %1500 = vmatpush1.bf16.msra.mxu0 0
        %1501 = vmatprep.subr.bf16.mxu0 0
        %1502 = vmatpush1.bf16.msra.mxu0 0
        %1503 = vmatprep.subr.bf16.mxu0 0
        %1504 = vmatpush1.bf16.msra.mxu0 0
        %1505 = vmatprep.subr.bf16.mxu0 0
        %1506 = vmatpush1.bf16.msra.mxu0 0
        %1507 = vmatprep.subr.bf16.mxu0 0
        %1508 = vmatpush1.bf16.msra.mxu0 0
        %1509 = vmatprep.subr.bf16.mxu0 0
        %1510 = vmatpush1.bf16.msra.mxu0 0
        %1511 = vmatprep.subr.bf16.mxu0 0
        %1512 = vmatpush1.bf16.msra.mxu0 %v1495
        %1513 = vmatprep.subr.bf16.mxu0 0
        %1514 = vmatpush2.bf16.msra.mxu0 0
        %1515 = vmatprep.subr.bf16.mxu0 0
        %1516 = vmatpush2.bf16.msra.mxu0 0
        %1517 = vmatprep.subr.bf16.mxu0 0
        %1518 = vmatpush2.bf16.msra.mxu0 0
        %1519 = vmatprep.subr.bf16.mxu0 0
        %1520 = vmatpush2.bf16.msra.mxu0 0
        %1521 = vmatprep.subr.bf16.mxu0 0
        %1522 = vmatpush2.bf16.msra.mxu0 0
        %1523 = vmatprep.subr.bf16.mxu0 0
        %1524 = vmatpush2.bf16.msra.mxu0 0
        %1525 = vmatprep.subr.bf16.mxu0 0
        %1526 = vmatpush2.bf16.msra.mxu0 0
        %1527 = vmatprep.subr.bf16.mxu0 0
        %1528 = vmatpush2.bf16.msra.mxu0 0
        %1529 = vmatprep.mubr.bf16.mxu0 0
        %1530 = vmatmul.mubr.bf16.gmra.mxu0 %v1492
        %v1531 = vpop.f32.mrf.mxu0
        %v1532 = vadd.f32 0.0, %v1531
        %v1533 = vpop.f32.mrf.mxu0
        %v1534 = vpop.f32.mrf.mxu0
        %v1535 = vpop.f32.mrf.mxu0
        %1536 = vdwg.mxu0
        %v1538 = vsel %vm1161, %v1397, 0
        %v1541 = vsel %vm1401, %v1160, 0
        %1543 = vmatprep.subr.bf16.mxu0 0
        %1544 = vmatpush1.bf16.msra.mxu0 0
        %1545 = vmatprep.subr.bf16.mxu0 0
        %1546 = vmatpush1.bf16.msra.mxu0 0
        %1547 = vmatprep.subr.bf16.mxu0 0
        %1548 = vmatpush1.bf16.msra.mxu0 0
        %1549 = vmatprep.subr.bf16.mxu0 0
        %1550 = vmatpush1.bf16.msra.mxu0 0
        %1551 = vmatprep.subr.bf16.mxu0 0
        %1552 = vmatpush1.bf16.msra.mxu0 0
        %1553 = vmatprep.subr.bf16.mxu0 0
        %1554 = vmatpush1.bf16.msra.mxu0 0
        %1555 = vmatprep.subr.bf16.mxu0 0
        %1556 = vmatpush1.bf16.msra.mxu0 0
        %1557 = vmatprep.subr.bf16.mxu0 0
        %1558 = vmatpush1.bf16.msra.mxu0 %v1541
        %1559 = vmatprep.subr.bf16.mxu0 0
        %1560 = vmatpush2.bf16.msra.mxu0 0
        %1561 = vmatprep.subr.bf16.mxu0 0
        %1562 = vmatpush2.bf16.msra.mxu0 0
        %1563 = vmatprep.subr.bf16.mxu0 0
        %1564 = vmatpush2.bf16.msra.mxu0 0
        %1565 = vmatprep.subr.bf16.mxu0 0
        %1566 = vmatpush2.bf16.msra.mxu0 0
        %1567 = vmatprep.subr.bf16.mxu0 0
        %1568 = vmatpush2.bf16.msra.mxu0 0
        %1569 = vmatprep.subr.bf16.mxu0 0
        %1570 = vmatpush2.bf16.msra.mxu0 0
        %1571 = vmatprep.subr.bf16.mxu0 0
        %1572 = vmatpush2.bf16.msra.mxu0 0
        %1573 = vmatprep.subr.bf16.mxu0 0
        %1574 = vmatpush2.bf16.msra.mxu0 0
        %1575 = vmatprep.mubr.bf16.mxu0 0
        %1576 = vmatmul.mubr.bf16.gmra.mxu0 %v1538
        %v1577 = vpop.f32.mrf.mxu0
        %v1578 = vadd.f32 0.0, %v1577
        %v1579 = vpop.f32.mrf.mxu0
        %v1580 = vpop.f32.mrf.mxu0
        %v1581 = vpop.f32.mrf.mxu0
        %1582 = vdwg.mxu0
        %v1583 = vpack.c.bf16 %v1440, %v1440
        %v1584 = vpack.c.bf16 %v1486, %v1486
        %v1585 = vpack.c.bf16 %v1532, %v1532
        %v1586 = vpack.c.bf16 %v1578, %v1578
        %v1588 = vsel %vm1161, %v1583, 0
        %v1591 = vsel %vm1401, %v447, 0
        %1593 = vmatprep.subr.bf16.mxu0 0
        %1594 = vmatpush1.bf16.msra.mxu0 0
        %1595 = vmatprep.subr.bf16.mxu0 0
        %1596 = vmatpush1.bf16.msra.mxu0 0
        %1597 = vmatprep.subr.bf16.mxu0 0
        %1598 = vmatpush1.bf16.msra.mxu0 0
        %1599 = vmatprep.subr.bf16.mxu0 0
        %1600 = vmatpush1.bf16.msra.mxu0 0
        %1601 = vmatprep.subr.bf16.mxu0 0
        %1602 = vmatpush1.bf16.msra.mxu0 0
        %1603 = vmatprep.subr.bf16.mxu0 0
        %1604 = vmatpush1.bf16.msra.mxu0 0
        %1605 = vmatprep.subr.bf16.mxu0 0
        %1606 = vmatpush1.bf16.msra.mxu0 0
        %1607 = vmatprep.subr.bf16.mxu0 0
        %1608 = vmatpush1.bf16.msra.mxu0 %v1591
        %1609 = vmatprep.subr.bf16.mxu0 0
        %1610 = vmatpush2.bf16.msra.mxu0 0
        %1611 = vmatprep.subr.bf16.mxu0 0
        %1612 = vmatpush2.bf16.msra.mxu0 0
        %1613 = vmatprep.subr.bf16.mxu0 0
        %1614 = vmatpush2.bf16.msra.mxu0 0
        %1615 = vmatprep.subr.bf16.mxu0 0
        %1616 = vmatpush2.bf16.msra.mxu0 0
        %1617 = vmatprep.subr.bf16.mxu0 0
        %1618 = vmatpush2.bf16.msra.mxu0 0
        %1619 = vmatprep.subr.bf16.mxu0 0
        %1620 = vmatpush2.bf16.msra.mxu0 0
        %1621 = vmatprep.subr.bf16.mxu0 0
        %1622 = vmatpush2.bf16.msra.mxu0 0
        %1623 = vmatprep.subr.bf16.mxu0 0
        %1624 = vmatpush2.bf16.msra.mxu0 0
        %1625 = vmatprep.mubr.bf16.mxu0 0
        %1626 = vmatmul.mubr.bf16.gmra.mxu0 %v1588
        %v1627 = vpop.f32.mrf.mxu0
        %v1628 = vadd.f32 0.0, %v1627
        %v1629 = vpop.f32.mrf.mxu0
        %v1630 = vpop.f32.mrf.mxu0
        %v1631 = vpop.f32.mrf.mxu0
        %1632 = vdwg.mxu0
        %v1634 = vsel %vm1161, %v1584, 0
        %v1637 = vsel %vm1401, %v448, 0
        %1639 = vmatprep.subr.bf16.mxu0 0
        %1640 = vmatpush1.bf16.msra.mxu0 0
        %1641 = vmatprep.subr.bf16.mxu0 0
        %1642 = vmatpush1.bf16.msra.mxu0 0
        %1643 = vmatprep.subr.bf16.mxu0 0
        %1644 = vmatpush1.bf16.msra.mxu0 0
        %1645 = vmatprep.subr.bf16.mxu0 0
        %1646 = vmatpush1.bf16.msra.mxu0 0
        %1647 = vmatprep.subr.bf16.mxu0 0
        %1648 = vmatpush1.bf16.msra.mxu0 0
        %1649 = vmatprep.subr.bf16.mxu0 0
        %1650 = vmatpush1.bf16.msra.mxu0 0
        %1651 = vmatprep.subr.bf16.mxu0 0
        %1652 = vmatpush1.bf16.msra.mxu0 0
        %1653 = vmatprep.subr.bf16.mxu0 0
        %1654 = vmatpush1.bf16.msra.mxu0 %v1637
        %1655 = vmatprep.subr.bf16.mxu0 0
        %1656 = vmatpush2.bf16.msra.mxu0 0
        %1657 = vmatprep.subr.bf16.mxu0 0
        %1658 = vmatpush2.bf16.msra.mxu0 0
        %1659 = vmatprep.subr.bf16.mxu0 0
        %1660 = vmatpush2.bf16.msra.mxu0 0
        %1661 = vmatprep.subr.bf16.mxu0 0
        %1662 = vmatpush2.bf16.msra.mxu0 0
        %1663 = vmatprep.subr.bf16.mxu0 0
        %1664 = vmatpush2.bf16.msra.mxu0 0
        %1665 = vmatprep.subr.bf16.mxu0 0
        %1666 = vmatpush2.bf16.msra.mxu0 0
        %1667 = vmatprep.subr.bf16.mxu0 0
        %1668 = vmatpush2.bf16.msra.mxu0 0
        %1669 = vmatprep.subr.bf16.mxu0 0
        %1670 = vmatpush2.bf16.msra.mxu0 0
        %1671 = vmatprep.mubr.bf16.mxu0 0
        %1672 = vmatmul.mubr.bf16.gmra.mxu0 %v1634
        %v1673 = vpop.f32.mrf.mxu0
        %v1674 = vadd.f32 0.0, %v1673
        %v1675 = vpop.f32.mrf.mxu0
        %v1676 = vpop.f32.mrf.mxu0
        %v1677 = vpop.f32.mrf.mxu0
        %1678 = vdwg.mxu0
        %v1680 = vsel %vm1161, %v1585, 0
        %v1683 = vsel %vm1401, %v449, 0
        %1685 = vmatprep.subr.bf16.mxu0 0
        %1686 = vmatpush1.bf16.msra.mxu0 0
        %1687 = vmatprep.subr.bf16.mxu0 0
        %1688 = vmatpush1.bf16.msra.mxu0 0
        %1689 = vmatprep.subr.bf16.mxu0 0
        %1690 = vmatpush1.bf16.msra.mxu0 0
        %1691 = vmatprep.subr.bf16.mxu0 0
        %1692 = vmatpush1.bf16.msra.mxu0 0
        %1693 = vmatprep.subr.bf16.mxu0 0
        %1694 = vmatpush1.bf16.msra.mxu0 0
        %1695 = vmatprep.subr.bf16.mxu0 0
        %1696 = vmatpush1.bf16.msra.mxu0 0
        %1697 = vmatprep.subr.bf16.mxu0 0
        %1698 = vmatpush1.bf16.msra.mxu0 0
        %1699 = vmatprep.subr.bf16.mxu0 0
        %1700 = vmatpush1.bf16.msra.mxu0 %v1683
        %1701 = vmatprep.subr.bf16.mxu0 0
        %1702 = vmatpush2.bf16.msra.mxu0 0
        %1703 = vmatprep.subr.bf16.mxu0 0
        %1704 = vmatpush2.bf16.msra.mxu0 0
        %1705 = vmatprep.subr.bf16.mxu0 0
        %1706 = vmatpush2.bf16.msra.mxu0 0
        %1707 = vmatprep.subr.bf16.mxu0 0
        %1708 = vmatpush2.bf16.msra.mxu0 0
        %1709 = vmatprep.subr.bf16.mxu0 0
        %1710 = vmatpush2.bf16.msra.mxu0 0
        %1711 = vmatprep.subr.bf16.mxu0 0
        %1712 = vmatpush2.bf16.msra.mxu0 0
        %1713 = vmatprep.subr.bf16.mxu0 0
        %1714 = vmatpush2.bf16.msra.mxu0 0
        %1715 = vmatprep.subr.bf16.mxu0 0
        %1716 = vmatpush2.bf16.msra.mxu0 0
        %1717 = vmatprep.mubr.bf16.mxu0 0
        %1718 = vmatmul.mubr.bf16.gmra.mxu0 %v1680
        %v1719 = vpop.f32.mrf.mxu0
        %v1720 = vadd.f32 0.0, %v1719
        %v1721 = vpop.f32.mrf.mxu0
        %v1722 = vpop.f32.mrf.mxu0
        %v1723 = vpop.f32.mrf.mxu0
        %1724 = vdwg.mxu0
        %v1726 = vsel %vm1161, %v1586, 0
        %v1729 = vsel %vm1401, %v450, 0
        %1731 = vmatprep.subr.bf16.mxu0 0
        %1732 = vmatpush1.bf16.msra.mxu0 0
        %1733 = vmatprep.subr.bf16.mxu0 0
        %1734 = vmatpush1.bf16.msra.mxu0 0
        %1735 = vmatprep.subr.bf16.mxu0 0
        %1736 = vmatpush1.bf16.msra.mxu0 0
        %1737 = vmatprep.subr.bf16.mxu0 0
        %1738 = vmatpush1.bf16.msra.mxu0 0
        %1739 = vmatprep.subr.bf16.mxu0 0
        %1740 = vmatpush1.bf16.msra.mxu0 0
        %1741 = vmatprep.subr.bf16.mxu0 0
        %1742 = vmatpush1.bf16.msra.mxu0 0
        %1743 = vmatprep.subr.bf16.mxu0 0
        %1744 = vmatpush1.bf16.msra.mxu0 0
        %1745 = vmatprep.subr.bf16.mxu0 0
        %1746 = vmatpush1.bf16.msra.mxu0 %v1729
        %1747 = vmatprep.subr.bf16.mxu0 0
        %1748 = vmatpush2.bf16.msra.mxu0 0
        %1749 = vmatprep.subr.bf16.mxu0 0
        %1750 = vmatpush2.bf16.msra.mxu0 0
        %1751 = vmatprep.subr.bf16.mxu0 0
        %1752 = vmatpush2.bf16.msra.mxu0 0
        %1753 = vmatprep.subr.bf16.mxu0 0
        %1754 = vmatpush2.bf16.msra.mxu0 0
        %1755 = vmatprep.subr.bf16.mxu0 0
        %1756 = vmatpush2.bf16.msra.mxu0 0
        %1757 = vmatprep.subr.bf16.mxu0 0
        %1758 = vmatpush2.bf16.msra.mxu0 0
        %1759 = vmatprep.subr.bf16.mxu0 0
        %1760 = vmatpush2.bf16.msra.mxu0 0
        %1761 = vmatprep.subr.bf16.mxu0 0
        %1762 = vmatpush2.bf16.msra.mxu0 0
        %1763 = vmatprep.mubr.bf16.mxu0 0
        %1764 = vmatmul.mubr.bf16.gmra.mxu0 %v1726
        %v1765 = vpop.f32.mrf.mxu0
        %v1766 = vadd.f32 0.0, %v1765
        %v1767 = vpop.f32.mrf.mxu0
        %v1768 = vpop.f32.mrf.mxu0
        %v1769 = vpop.f32.mrf.mxu0
        %1770 = vdwg.mxu0
        %v1771 = vsel %vm529, %v1628, 0.0
        %v1772 = vsel %vm529, %v1674, 0.0
        %v1773 = vadd.f32 %v1771, %v1772
        %v1774 = vsel %vm529, %v1720, 0.0
        %v1775 = vadd.f32 %v1773, %v1774
        %v1776 = vsel %vm529, %v1766, 0.0
        %v1777 = vadd.f32 %v1775, %v1776
        %v1778 = vadd.f32 %v1777, %v383
        %v1779 = vsel %vm529, %v1778, 0.0
        %1780 = vadd.xlane.f32.xlu0 %v1779
        %v1781 = vpop.xlane.xlu0 %1780
        %v1782 = vrcp.pop 32.0
        %v1783 = vmul.f32 %v1781, %v1782
        %v1784 = vsub.f32 %v1778, %v1783
        %v1785 = vmul.f32 %v1784, %v1784
        %v1786 = vsel %vm529, %v1785, 0.0
        %1787 = vadd.xlane.f32.xlu0 %v1786
        %v1788 = vpop.xlane.xlu0 %1787
        %v1789 = vmul.f32 %v1788, %v1782
        %v1790 = vadd.f32 %v1789, 1e-12
        %v1791 = vrsqrt.pop %v1790
        %v1792 = vmul.f32 %v1784, %v1791
        %v1793 = vlaneseq
        %v1794 = vshrl.u32 %v1793, 7
        %v1795 = vsub.s32 0, %v1794
        %v1796 = vrot.slane %v515, %v1795
        %v1797 = vmul.f32 %v1796, %v1792
        %v1798 = vlaneseq
        %v1799 = vshrl.u32 %v1798, 7
        %v1800 = vsub.s32 1, %v1799
        %v1801 = vrot.slane %v515, %v1800
        %v1802 = vadd.f32 %v1797, %v1801
        %v1803 = vpack.c.bf16 %v1802, %v1802
        %v1808 = vunpack.c.l.b16 %v451
        %v1809 = vunpack.c.l.b16 %v452
        %v1810 = vunpack.c.l.b16 %v453
        %v1811 = vunpack.c.l.b16 %v454
        %v1812 = vpack.c.b16 %v1809, %v1808
        %v1813 = vpack.c.b16 %v1811, %v1810
        %v1817 = vsel %vm529, %v1803, 0
        %1819 = vmatprep.subr.bf16.mxu0 0
        %1820 = vmatpush1.bf16.msra.mxu0 0
        %1821 = vmatprep.subr.bf16.mxu0 0
        %1822 = vmatpush1.bf16.msra.mxu0 0
        %1823 = vmatprep.subr.bf16.mxu0 0
        %1824 = vmatpush1.bf16.msra.mxu0 0
        %1825 = vmatprep.subr.bf16.mxu0 0
        %1826 = vmatpush1.bf16.msra.mxu0 0
        %1827 = vmatprep.subr.bf16.mxu0 0
        %1828 = vmatpush1.bf16.msra.mxu0 0
        %1829 = vmatprep.subr.bf16.mxu0 0
        %1830 = vmatpush1.bf16.msra.mxu0 0
        %1831 = vmatprep.subr.bf16.mxu0 0
        %1832 = vmatpush1.bf16.msra.mxu0 %v1813
        %1833 = vmatprep.subr.bf16.mxu0 0
        %1834 = vmatpush1.bf16.msra.mxu0 %v1812
        %1835 = vmatprep.subr.bf16.mxu0 0
        %1836 = vmatpush2.bf16.msra.mxu0 0
        %1837 = vmatprep.subr.bf16.mxu0 0
        %1838 = vmatpush2.bf16.msra.mxu0 0
        %1839 = vmatprep.subr.bf16.mxu0 0
        %1840 = vmatpush2.bf16.msra.mxu0 0
        %1841 = vmatprep.subr.bf16.mxu0 0
        %1842 = vmatpush2.bf16.msra.mxu0 0
        %1843 = vmatprep.subr.bf16.mxu0 0
        %1844 = vmatpush2.bf16.msra.mxu0 0
        %1845 = vmatprep.subr.bf16.mxu0 0
        %1846 = vmatpush2.bf16.msra.mxu0 0
        %1847 = vmatprep.subr.bf16.mxu0 0
        %1848 = vmatpush2.bf16.msra.mxu0 0
        %1849 = vmatprep.subr.bf16.mxu0 0
        %1850 = vmatpush2.bf16.msra.mxu0 0
        %1851 = vmatprep.mubr.bf16.mxu0 0
        %1852 = vmatmul.mubr.bf16.gmra.mxu0 %v1817
        %v1853 = vpop.f32.mrf.mxu0
        %v1854 = vadd.f32 0.0, %v1853
        %v1855 = vpop.f32.mrf.mxu0
        %v1856 = vpop.f32.mrf.mxu0
        %v1857 = vpop.f32.mrf.mxu0
        %1858 = vdwg.mxu0
        %v1863 = vunpack.c.l.b16 %v455
        %v1864 = vunpack.c.l.b16 %v456
        %v1865 = vunpack.c.l.b16 %v457
        %v1866 = vunpack.c.l.b16 %v458
        %v1867 = vpack.c.b16 %v1864, %v1863
        %v1868 = vpack.c.b16 %v1866, %v1865
        %1871 = vmatprep.subr.bf16.mxu0 0
        %1872 = vmatpush1.bf16.msra.mxu0 0
        %1873 = vmatprep.subr.bf16.mxu0 0
        %1874 = vmatpush1.bf16.msra.mxu0 0
        %1875 = vmatprep.subr.bf16.mxu0 0
        %1876 = vmatpush1.bf16.msra.mxu0 0
        %1877 = vmatprep.subr.bf16.mxu0 0
        %1878 = vmatpush1.bf16.msra.mxu0 0
        %1879 = vmatprep.subr.bf16.mxu0 0
        %1880 = vmatpush1.bf16.msra.mxu0 0
        %1881 = vmatprep.subr.bf16.mxu0 0
        %1882 = vmatpush1.bf16.msra.mxu0 0
        %1883 = vmatprep.subr.bf16.mxu0 0
        %1884 = vmatpush1.bf16.msra.mxu0 %v1868
        %1885 = vmatprep.subr.bf16.mxu0 0
        %1886 = vmatpush1.bf16.msra.mxu0 %v1867
        %1887 = vmatprep.subr.bf16.mxu0 0
        %1888 = vmatpush2.bf16.msra.mxu0 0
        %1889 = vmatprep.subr.bf16.mxu0 0
        %1890 = vmatpush2.bf16.msra.mxu0 0
        %1891 = vmatprep.subr.bf16.mxu0 0
        %1892 = vmatpush2.bf16.msra.mxu0 0
        %1893 = vmatprep.subr.bf16.mxu0 0
        %1894 = vmatpush2.bf16.msra.mxu0 0
        %1895 = vmatprep.subr.bf16.mxu0 0
        %1896 = vmatpush2.bf16.msra.mxu0 0
        %1897 = vmatprep.subr.bf16.mxu0 0
        %1898 = vmatpush2.bf16.msra.mxu0 0
        %1899 = vmatprep.subr.bf16.mxu0 0
        %1900 = vmatpush2.bf16.msra.mxu0 0
        %1901 = vmatprep.subr.bf16.mxu0 0
        %1902 = vmatpush2.bf16.msra.mxu0 0
        %1903 = vmatprep.mubr.bf16.mxu0 0
        %1904 = vmatmul.mubr.bf16.gmra.mxu0 %v1817
        %v1905 = vpop.f32.mrf.mxu0
        %v1906 = vadd.f32 0.0, %v1905
        %v1907 = vpop.f32.mrf.mxu0
        %v1908 = vpop.f32.mrf.mxu0
        %v1909 = vpop.f32.mrf.mxu0
        %1910 = vdwg.mxu0
        %v1915 = vunpack.c.l.b16 %v459
        %v1916 = vunpack.c.l.b16 %v460
        %v1917 = vunpack.c.l.b16 %v461
        %v1918 = vunpack.c.l.b16 %v462
        %v1919 = vpack.c.b16 %v1916, %v1915
        %v1920 = vpack.c.b16 %v1918, %v1917
        %1923 = vmatprep.subr.bf16.mxu0 0
        %1924 = vmatpush1.bf16.msra.mxu0 0
        %1925 = vmatprep.subr.bf16.mxu0 0
        %1926 = vmatpush1.bf16.msra.mxu0 0
        %1927 = vmatprep.subr.bf16.mxu0 0
        %1928 = vmatpush1.bf16.msra.mxu0 0
        %1929 = vmatprep.subr.bf16.mxu0 0
        %1930 = vmatpush1.bf16.msra.mxu0 0
        %1931 = vmatprep.subr.bf16.mxu0 0
        %1932 = vmatpush1.bf16.msra.mxu0 0
        %1933 = vmatprep.subr.bf16.mxu0 0
        %1934 = vmatpush1.bf16.msra.mxu0 0
        %1935 = vmatprep.subr.bf16.mxu0 0
        %1936 = vmatpush1.bf16.msra.mxu0 %v1920
        %1937 = vmatprep.subr.bf16.mxu0 0
        %1938 = vmatpush1.bf16.msra.mxu0 %v1919
        %1939 = vmatprep.subr.bf16.mxu0 0
        %1940 = vmatpush2.bf16.msra.mxu0 0
        %1941 = vmatprep.subr.bf16.mxu0 0
        %1942 = vmatpush2.bf16.msra.mxu0 0
        %1943 = vmatprep.subr.bf16.mxu0 0
        %1944 = vmatpush2.bf16.msra.mxu0 0
        %1945 = vmatprep.subr.bf16.mxu0 0
        %1946 = vmatpush2.bf16.msra.mxu0 0
        %1947 = vmatprep.subr.bf16.mxu0 0
        %1948 = vmatpush2.bf16.msra.mxu0 0
        %1949 = vmatprep.subr.bf16.mxu0 0
        %1950 = vmatpush2.bf16.msra.mxu0 0
        %1951 = vmatprep.subr.bf16.mxu0 0
        %1952 = vmatpush2.bf16.msra.mxu0 0
        %1953 = vmatprep.subr.bf16.mxu0 0
        %1954 = vmatpush2.bf16.msra.mxu0 0
        %1955 = vmatprep.mubr.bf16.mxu0 0
        %1956 = vmatmul.mubr.bf16.gmra.mxu0 %v1817
        %v1957 = vpop.f32.mrf.mxu0
        %v1958 = vadd.f32 0.0, %v1957
        %v1959 = vpop.f32.mrf.mxu0
        %v1960 = vpop.f32.mrf.mxu0
        %v1961 = vpop.f32.mrf.mxu0
        %1962 = vdwg.mxu0
        %v1967 = vunpack.c.l.b16 %v463
        %v1968 = vunpack.c.l.b16 %v464
        %v1969 = vunpack.c.l.b16 %v465
        %v1970 = vunpack.c.l.b16 %v466
        %v1971 = vpack.c.b16 %v1968, %v1967
        %v1972 = vpack.c.b16 %v1970, %v1969
        %1975 = vmatprep.subr.bf16.mxu0 0
        %1976 = vmatpush1.bf16.msra.mxu0 0
        %1977 = vmatprep.subr.bf16.mxu0 0
        %1978 = vmatpush1.bf16.msra.mxu0 0
        %1979 = vmatprep.subr.bf16.mxu0 0
        %1980 = vmatpush1.bf16.msra.mxu0 0
        %1981 = vmatprep.subr.bf16.mxu0 0
        %1982 = vmatpush1.bf16.msra.mxu0 0
        %1983 = vmatprep.subr.bf16.mxu0 0
        %1984 = vmatpush1.bf16.msra.mxu0 0
        %1985 = vmatprep.subr.bf16.mxu0 0
        %1986 = vmatpush1.bf16.msra.mxu0 0
        %1987 = vmatprep.subr.bf16.mxu0 0
        %1988 = vmatpush1.bf16.msra.mxu0 %v1972
        %1989 = vmatprep.subr.bf16.mxu0 0
        %1990 = vmatpush1.bf16.msra.mxu0 %v1971
        %1991 = vmatprep.subr.bf16.mxu0 0
        %1992 = vmatpush2.bf16.msra.mxu0 0
        %1993 = vmatprep.subr.bf16.mxu0 0
        %1994 = vmatpush2.bf16.msra.mxu0 0
        %1995 = vmatprep.subr.bf16.mxu0 0
        %1996 = vmatpush2.bf16.msra.mxu0 0
        %1997 = vmatprep.subr.bf16.mxu0 0
        %1998 = vmatpush2.bf16.msra.mxu0 0
        %1999 = vmatprep.subr.bf16.mxu0 0
        %2000 = vmatpush2.bf16.msra.mxu0 0
        %2001 = vmatprep.subr.bf16.mxu0 0
        %2002 = vmatpush2.bf16.msra.mxu0 0
        %2003 = vmatprep.subr.bf16.mxu0 0
        %2004 = vmatpush2.bf16.msra.mxu0 0
        %2005 = vmatprep.subr.bf16.mxu0 0
        %2006 = vmatpush2.bf16.msra.mxu0 0
        %2007 = vmatprep.mubr.bf16.mxu0 0
        %2008 = vmatmul.mubr.bf16.gmra.mxu0 %v1817
        %v2009 = vpop.f32.mrf.mxu0
        %v2010 = vadd.f32 0.0, %v2009
        %v2011 = vpop.f32.mrf.mxu0
        %v2012 = vpop.f32.mrf.mxu0
        %v2013 = vpop.f32.mrf.mxu0
        %2014 = vdwg.mxu0
        %v2015 = vmul.f32 %v1854, 0.35355338
        %v2016 = vmul.f32 %v1906, 0.35355338
        %v2017 = vmul.f32 %v1958, 0.35355338
        %v2018 = vmul.f32 %v2010, 0.35355338
        %v2019 = vpack.c.bf16 %v2015, %v2015
        %v2020 = vpack.c.bf16 %v2016, %v2016
        %v2021 = vpack.c.bf16 %v2017, %v2017
        %v2022 = vpack.c.bf16 %v2018, %v2018
        %v2027 = vunpack.c.l.b16 %v467
        %v2028 = vunpack.c.l.b16 %v468
        %v2029 = vunpack.c.l.b16 %v469
        %v2030 = vunpack.c.l.b16 %v470
        %v2031 = vpack.c.b16 %v2028, %v2027
        %v2032 = vpack.c.b16 %v2030, %v2029
        %v2036 = vsel %vm529, %v386, 0
        %2038 = vmatprep.subr.bf16.mxu0 0
        %2039 = vmatpush1.bf16.msra.mxu0 0
        %2040 = vmatprep.subr.bf16.mxu0 0
        %2041 = vmatpush1.bf16.msra.mxu0 0
        %2042 = vmatprep.subr.bf16.mxu0 0
        %2043 = vmatpush1.bf16.msra.mxu0 0
        %2044 = vmatprep.subr.bf16.mxu0 0
        %2045 = vmatpush1.bf16.msra.mxu0 0
        %2046 = vmatprep.subr.bf16.mxu0 0
        %2047 = vmatpush1.bf16.msra.mxu0 0
        %2048 = vmatprep.subr.bf16.mxu0 0
        %2049 = vmatpush1.bf16.msra.mxu0 0
        %2050 = vmatprep.subr.bf16.mxu0 0
        %2051 = vmatpush1.bf16.msra.mxu0 %v2032
        %2052 = vmatprep.subr.bf16.mxu0 0
        %2053 = vmatpush1.bf16.msra.mxu0 %v2031
        %2054 = vmatprep.subr.bf16.mxu0 0
        %2055 = vmatpush2.bf16.msra.mxu0 0
        %2056 = vmatprep.subr.bf16.mxu0 0
        %2057 = vmatpush2.bf16.msra.mxu0 0
        %2058 = vmatprep.subr.bf16.mxu0 0
        %2059 = vmatpush2.bf16.msra.mxu0 0
        %2060 = vmatprep.subr.bf16.mxu0 0
        %2061 = vmatpush2.bf16.msra.mxu0 0
        %2062 = vmatprep.subr.bf16.mxu0 0
        %2063 = vmatpush2.bf16.msra.mxu0 0
        %2064 = vmatprep.subr.bf16.mxu0 0
        %2065 = vmatpush2.bf16.msra.mxu0 0
        %2066 = vmatprep.subr.bf16.mxu0 0
        %2067 = vmatpush2.bf16.msra.mxu0 0
        %2068 = vmatprep.subr.bf16.mxu0 0
        %2069 = vmatpush2.bf16.msra.mxu0 0
        %2070 = vmatprep.mubr.bf16.mxu0 0
        %2071 = vmatmul.mubr.bf16.gmra.mxu0 %v2036
        %v2072 = vpop.f32.mrf.mxu0
        %v2073 = vadd.f32 0.0, %v2072
        %v2074 = vpop.f32.mrf.mxu0
        %v2075 = vpop.f32.mrf.mxu0
        %v2076 = vadd.f32 0.0, %v2075
        %v2077 = vpop.f32.mrf.mxu0
        %2078 = vdwg.mxu0
        %v2083 = vunpack.c.l.b16 %v471
        %v2084 = vunpack.c.l.b16 %v472
        %v2085 = vunpack.c.l.b16 %v473
        %v2086 = vunpack.c.l.b16 %v474
        %v2087 = vpack.c.b16 %v2084, %v2083
        %v2088 = vpack.c.b16 %v2086, %v2085
        %2091 = vmatprep.subr.bf16.mxu0 0
        %2092 = vmatpush1.bf16.msra.mxu0 0
        %2093 = vmatprep.subr.bf16.mxu0 0
        %2094 = vmatpush1.bf16.msra.mxu0 0
        %2095 = vmatprep.subr.bf16.mxu0 0
        %2096 = vmatpush1.bf16.msra.mxu0 0
        %2097 = vmatprep.subr.bf16.mxu0 0
        %2098 = vmatpush1.bf16.msra.mxu0 0
        %2099 = vmatprep.subr.bf16.mxu0 0
        %2100 = vmatpush1.bf16.msra.mxu0 0
        %2101 = vmatprep.subr.bf16.mxu0 0
        %2102 = vmatpush1.bf16.msra.mxu0 0
        %2103 = vmatprep.subr.bf16.mxu0 0
        %2104 = vmatpush1.bf16.msra.mxu0 %v2088
        %2105 = vmatprep.subr.bf16.mxu0 0
        %2106 = vmatpush1.bf16.msra.mxu0 %v2087
        %2107 = vmatprep.subr.bf16.mxu0 0
        %2108 = vmatpush2.bf16.msra.mxu0 0
        %2109 = vmatprep.subr.bf16.mxu0 0
        %2110 = vmatpush2.bf16.msra.mxu0 0
        %2111 = vmatprep.subr.bf16.mxu0 0
        %2112 = vmatpush2.bf16.msra.mxu0 0
        %2113 = vmatprep.subr.bf16.mxu0 0
        %2114 = vmatpush2.bf16.msra.mxu0 0
        %2115 = vmatprep.subr.bf16.mxu0 0
        %2116 = vmatpush2.bf16.msra.mxu0 0
        %2117 = vmatprep.subr.bf16.mxu0 0
        %2118 = vmatpush2.bf16.msra.mxu0 0
        %2119 = vmatprep.subr.bf16.mxu0 0
        %2120 = vmatpush2.bf16.msra.mxu0 0
        %2121 = vmatprep.subr.bf16.mxu0 0
        %2122 = vmatpush2.bf16.msra.mxu0 0
        %2123 = vmatprep.mubr.bf16.mxu0 0
        %2124 = vmatmul.mubr.bf16.gmra.mxu0 %v2036
        %v2125 = vpop.f32.mrf.mxu0
        %v2126 = vadd.f32 0.0, %v2125
        %v2127 = vpop.f32.mrf.mxu0
        %v2128 = vpop.f32.mrf.mxu0
        %v2129 = vadd.f32 0.0, %v2128
        %v2130 = vpop.f32.mrf.mxu0
        %2131 = vdwg.mxu0
        %v2136 = vunpack.c.l.b16 %v475
        %v2137 = vunpack.c.l.b16 %v476
        %v2138 = vunpack.c.l.b16 %v477
        %v2139 = vunpack.c.l.b16 %v478
        %v2140 = vpack.c.b16 %v2137, %v2136
        %v2141 = vpack.c.b16 %v2139, %v2138
        %2144 = vmatprep.subr.bf16.mxu0 0
        %2145 = vmatpush1.bf16.msra.mxu0 0
        %2146 = vmatprep.subr.bf16.mxu0 0
        %2147 = vmatpush1.bf16.msra.mxu0 0
        %2148 = vmatprep.subr.bf16.mxu0 0
        %2149 = vmatpush1.bf16.msra.mxu0 0
        %2150 = vmatprep.subr.bf16.mxu0 0
        %2151 = vmatpush1.bf16.msra.mxu0 0
        %2152 = vmatprep.subr.bf16.mxu0 0
        %2153 = vmatpush1.bf16.msra.mxu0 0
        %2154 = vmatprep.subr.bf16.mxu0 0
        %2155 = vmatpush1.bf16.msra.mxu0 0
        %2156 = vmatprep.subr.bf16.mxu0 0
        %2157 = vmatpush1.bf16.msra.mxu0 %v2141
        %2158 = vmatprep.subr.bf16.mxu0 0
        %2159 = vmatpush1.bf16.msra.mxu0 %v2140
        %2160 = vmatprep.subr.bf16.mxu0 0
        %2161 = vmatpush2.bf16.msra.mxu0 0
        %2162 = vmatprep.subr.bf16.mxu0 0
        %2163 = vmatpush2.bf16.msra.mxu0 0
        %2164 = vmatprep.subr.bf16.mxu0 0
        %2165 = vmatpush2.bf16.msra.mxu0 0
        %2166 = vmatprep.subr.bf16.mxu0 0
        %2167 = vmatpush2.bf16.msra.mxu0 0
        %2168 = vmatprep.subr.bf16.mxu0 0
        %2169 = vmatpush2.bf16.msra.mxu0 0
        %2170 = vmatprep.subr.bf16.mxu0 0
        %2171 = vmatpush2.bf16.msra.mxu0 0
        %2172 = vmatprep.subr.bf16.mxu0 0
        %2173 = vmatpush2.bf16.msra.mxu0 0
        %2174 = vmatprep.subr.bf16.mxu0 0
        %2175 = vmatpush2.bf16.msra.mxu0 0
        %2176 = vmatprep.mubr.bf16.mxu0 0
        %2177 = vmatmul.mubr.bf16.gmra.mxu0 %v2036
        %v2178 = vpop.f32.mrf.mxu0
        %v2179 = vadd.f32 0.0, %v2178
        %v2180 = vpop.f32.mrf.mxu0
        %v2181 = vpop.f32.mrf.mxu0
        %v2182 = vadd.f32 0.0, %v2181
        %v2183 = vpop.f32.mrf.mxu0
        %2184 = vdwg.mxu0
        %v2189 = vunpack.c.l.b16 %v479
        %v2190 = vunpack.c.l.b16 %v480
        %v2191 = vunpack.c.l.b16 %v481
        %v2192 = vunpack.c.l.b16 %v482
        %v2193 = vpack.c.b16 %v2190, %v2189
        %v2194 = vpack.c.b16 %v2192, %v2191
        %2197 = vmatprep.subr.bf16.mxu0 0
        %2198 = vmatpush1.bf16.msra.mxu0 0
        %2199 = vmatprep.subr.bf16.mxu0 0
        %2200 = vmatpush1.bf16.msra.mxu0 0
        %2201 = vmatprep.subr.bf16.mxu0 0
        %2202 = vmatpush1.bf16.msra.mxu0 0
        %2203 = vmatprep.subr.bf16.mxu0 0
        %2204 = vmatpush1.bf16.msra.mxu0 0
        %2205 = vmatprep.subr.bf16.mxu0 0
        %2206 = vmatpush1.bf16.msra.mxu0 0
        %2207 = vmatprep.subr.bf16.mxu0 0
        %2208 = vmatpush1.bf16.msra.mxu0 0
        %2209 = vmatprep.subr.bf16.mxu0 0
        %2210 = vmatpush1.bf16.msra.mxu0 %v2194
        %2211 = vmatprep.subr.bf16.mxu0 0
        %2212 = vmatpush1.bf16.msra.mxu0 %v2193
        %2213 = vmatprep.subr.bf16.mxu0 0
        %2214 = vmatpush2.bf16.msra.mxu0 0
        %2215 = vmatprep.subr.bf16.mxu0 0
        %2216 = vmatpush2.bf16.msra.mxu0 0
        %2217 = vmatprep.subr.bf16.mxu0 0
        %2218 = vmatpush2.bf16.msra.mxu0 0
        %2219 = vmatprep.subr.bf16.mxu0 0
        %2220 = vmatpush2.bf16.msra.mxu0 0
        %2221 = vmatprep.subr.bf16.mxu0 0
        %2222 = vmatpush2.bf16.msra.mxu0 0
        %2223 = vmatprep.subr.bf16.mxu0 0
        %2224 = vmatpush2.bf16.msra.mxu0 0
        %2225 = vmatprep.subr.bf16.mxu0 0
        %2226 = vmatpush2.bf16.msra.mxu0 0
        %2227 = vmatprep.subr.bf16.mxu0 0
        %2228 = vmatpush2.bf16.msra.mxu0 0
        %2229 = vmatprep.mubr.bf16.mxu0 0
        %2230 = vmatmul.mubr.bf16.gmra.mxu0 %v2036
        %v2231 = vpop.f32.mrf.mxu0
        %v2232 = vadd.f32 0.0, %v2231
        %v2233 = vpop.f32.mrf.mxu0
        %v2234 = vpop.f32.mrf.mxu0
        %v2235 = vadd.f32 0.0, %v2234
        %v2236 = vpop.f32.mrf.mxu0
        %2237 = vdwg.mxu0
        %v2242 = vunpack.c.l.b16 %v483
        %v2243 = vunpack.c.l.b16 %v484
        %v2244 = vunpack.c.l.b16 %v485
        %v2245 = vunpack.c.l.b16 %v486
        %v2246 = vpack.c.b16 %v2243, %v2242
        %v2247 = vpack.c.b16 %v2245, %v2244
        %2250 = vmatprep.subr.bf16.mxu0 0
        %2251 = vmatpush1.bf16.msra.mxu0 0
        %2252 = vmatprep.subr.bf16.mxu0 0
        %2253 = vmatpush1.bf16.msra.mxu0 0
        %2254 = vmatprep.subr.bf16.mxu0 0
        %2255 = vmatpush1.bf16.msra.mxu0 0
        %2256 = vmatprep.subr.bf16.mxu0 0
        %2257 = vmatpush1.bf16.msra.mxu0 0
        %2258 = vmatprep.subr.bf16.mxu0 0
        %2259 = vmatpush1.bf16.msra.mxu0 0
        %2260 = vmatprep.subr.bf16.mxu0 0
        %2261 = vmatpush1.bf16.msra.mxu0 0
        %2262 = vmatprep.subr.bf16.mxu0 0
        %2263 = vmatpush1.bf16.msra.mxu0 %v2247
        %2264 = vmatprep.subr.bf16.mxu0 0
        %2265 = vmatpush1.bf16.msra.mxu0 %v2246
        %2266 = vmatprep.subr.bf16.mxu0 0
        %2267 = vmatpush2.bf16.msra.mxu0 0
        %2268 = vmatprep.subr.bf16.mxu0 0
        %2269 = vmatpush2.bf16.msra.mxu0 0
        %2270 = vmatprep.subr.bf16.mxu0 0
        %2271 = vmatpush2.bf16.msra.mxu0 0
        %2272 = vmatprep.subr.bf16.mxu0 0
        %2273 = vmatpush2.bf16.msra.mxu0 0
        %2274 = vmatprep.subr.bf16.mxu0 0
        %2275 = vmatpush2.bf16.msra.mxu0 0
        %2276 = vmatprep.subr.bf16.mxu0 0
        %2277 = vmatpush2.bf16.msra.mxu0 0
        %2278 = vmatprep.subr.bf16.mxu0 0
        %2279 = vmatpush2.bf16.msra.mxu0 0
        %2280 = vmatprep.subr.bf16.mxu0 0
        %2281 = vmatpush2.bf16.msra.mxu0 0
        %2282 = vmatprep.mubr.bf16.mxu0 0
        %2283 = vmatmul.mubr.bf16.gmra.mxu0 %v2036
        %v2284 = vpop.f32.mrf.mxu0
        %v2285 = vadd.f32 0.0, %v2284
        %v2286 = vpop.f32.mrf.mxu0
        %v2287 = vpop.f32.mrf.mxu0
        %v2288 = vadd.f32 0.0, %v2287
        %v2289 = vpop.f32.mrf.mxu0
        %2290 = vdwg.mxu0
        %v2295 = vunpack.c.l.b16 %v487
        %v2296 = vunpack.c.l.b16 %v488
        %v2297 = vunpack.c.l.b16 %v489
        %v2298 = vunpack.c.l.b16 %v490
        %v2299 = vpack.c.b16 %v2296, %v2295
        %v2300 = vpack.c.b16 %v2298, %v2297
        %2303 = vmatprep.subr.bf16.mxu0 0
        %2304 = vmatpush1.bf16.msra.mxu0 0
        %2305 = vmatprep.subr.bf16.mxu0 0
        %2306 = vmatpush1.bf16.msra.mxu0 0
        %2307 = vmatprep.subr.bf16.mxu0 0
        %2308 = vmatpush1.bf16.msra.mxu0 0
        %2309 = vmatprep.subr.bf16.mxu0 0
        %2310 = vmatpush1.bf16.msra.mxu0 0
        %2311 = vmatprep.subr.bf16.mxu0 0
        %2312 = vmatpush1.bf16.msra.mxu0 0
        %2313 = vmatprep.subr.bf16.mxu0 0
        %2314 = vmatpush1.bf16.msra.mxu0 0
        %2315 = vmatprep.subr.bf16.mxu0 0
        %2316 = vmatpush1.bf16.msra.mxu0 %v2300
        %2317 = vmatprep.subr.bf16.mxu0 0
        %2318 = vmatpush1.bf16.msra.mxu0 %v2299
        %2319 = vmatprep.subr.bf16.mxu0 0
        %2320 = vmatpush2.bf16.msra.mxu0 0
        %2321 = vmatprep.subr.bf16.mxu0 0
        %2322 = vmatpush2.bf16.msra.mxu0 0
        %2323 = vmatprep.subr.bf16.mxu0 0
        %2324 = vmatpush2.bf16.msra.mxu0 0
        %2325 = vmatprep.subr.bf16.mxu0 0
        %2326 = vmatpush2.bf16.msra.mxu0 0
        %2327 = vmatprep.subr.bf16.mxu0 0
        %2328 = vmatpush2.bf16.msra.mxu0 0
        %2329 = vmatprep.subr.bf16.mxu0 0
        %2330 = vmatpush2.bf16.msra.mxu0 0
        %2331 = vmatprep.subr.bf16.mxu0 0
        %2332 = vmatpush2.bf16.msra.mxu0 0
        %2333 = vmatprep.subr.bf16.mxu0 0
        %2334 = vmatpush2.bf16.msra.mxu0 0
        %2335 = vmatprep.mubr.bf16.mxu0 0
        %2336 = vmatmul.mubr.bf16.gmra.mxu0 %v2036
        %v2337 = vpop.f32.mrf.mxu0
        %v2338 = vadd.f32 0.0, %v2337
        %v2339 = vpop.f32.mrf.mxu0
        %v2340 = vpop.f32.mrf.mxu0
        %v2341 = vadd.f32 0.0, %v2340
        %v2342 = vpop.f32.mrf.mxu0
        %2343 = vdwg.mxu0
        %v2348 = vunpack.c.l.b16 %v491
        %v2349 = vunpack.c.l.b16 %v492
        %v2350 = vunpack.c.l.b16 %v493
        %v2351 = vunpack.c.l.b16 %v494
        %v2352 = vpack.c.b16 %v2349, %v2348
        %v2353 = vpack.c.b16 %v2351, %v2350
        %2356 = vmatprep.subr.bf16.mxu0 0
        %2357 = vmatpush1.bf16.msra.mxu0 0
        %2358 = vmatprep.subr.bf16.mxu0 0
        %2359 = vmatpush1.bf16.msra.mxu0 0
        %2360 = vmatprep.subr.bf16.mxu0 0
        %2361 = vmatpush1.bf16.msra.mxu0 0
        %2362 = vmatprep.subr.bf16.mxu0 0
        %2363 = vmatpush1.bf16.msra.mxu0 0
        %2364 = vmatprep.subr.bf16.mxu0 0
        %2365 = vmatpush1.bf16.msra.mxu0 0
        %2366 = vmatprep.subr.bf16.mxu0 0
        %2367 = vmatpush1.bf16.msra.mxu0 0
        %2368 = vmatprep.subr.bf16.mxu0 0
        %2369 = vmatpush1.bf16.msra.mxu0 %v2353
        %2370 = vmatprep.subr.bf16.mxu0 0
        %2371 = vmatpush1.bf16.msra.mxu0 %v2352
        %2372 = vmatprep.subr.bf16.mxu0 0
        %2373 = vmatpush2.bf16.msra.mxu0 0
        %2374 = vmatprep.subr.bf16.mxu0 0
        %2375 = vmatpush2.bf16.msra.mxu0 0
        %2376 = vmatprep.subr.bf16.mxu0 0
        %2377 = vmatpush2.bf16.msra.mxu0 0
        %2378 = vmatprep.subr.bf16.mxu0 0
        %2379 = vmatpush2.bf16.msra.mxu0 0
        %2380 = vmatprep.subr.bf16.mxu0 0
        %2381 = vmatpush2.bf16.msra.mxu0 0
        %2382 = vmatprep.subr.bf16.mxu0 0
        %2383 = vmatpush2.bf16.msra.mxu0 0
        %2384 = vmatprep.subr.bf16.mxu0 0
        %2385 = vmatpush2.bf16.msra.mxu0 0
        %2386 = vmatprep.subr.bf16.mxu0 0
        %2387 = vmatpush2.bf16.msra.mxu0 0
        %2388 = vmatprep.mubr.bf16.mxu0 0
        %2389 = vmatmul.mubr.bf16.gmra.mxu0 %v2036
        %v2390 = vpop.f32.mrf.mxu0
        %v2391 = vadd.f32 0.0, %v2390
        %v2392 = vpop.f32.mrf.mxu0
        %v2393 = vpop.f32.mrf.mxu0
        %v2394 = vadd.f32 0.0, %v2393
        %v2395 = vpop.f32.mrf.mxu0
        %2396 = vdwg.mxu0
        %v2401 = vunpack.c.l.b16 %v495
        %v2402 = vunpack.c.l.b16 %v496
        %v2403 = vunpack.c.l.b16 %v497
        %v2404 = vunpack.c.l.b16 %v498
        %v2405 = vpack.c.b16 %v2402, %v2401
        %v2406 = vpack.c.b16 %v2404, %v2403
        %2409 = vmatprep.subr.bf16.mxu0 0
        %2410 = vmatpush1.bf16.msra.mxu0 0
        %2411 = vmatprep.subr.bf16.mxu0 0
        %2412 = vmatpush1.bf16.msra.mxu0 0
        %2413 = vmatprep.subr.bf16.mxu0 0
        %2414 = vmatpush1.bf16.msra.mxu0 0
        %2415 = vmatprep.subr.bf16.mxu0 0
        %2416 = vmatpush1.bf16.msra.mxu0 0
        %2417 = vmatprep.subr.bf16.mxu0 0
        %2418 = vmatpush1.bf16.msra.mxu0 0
        %2419 = vmatprep.subr.bf16.mxu0 0
        %2420 = vmatpush1.bf16.msra.mxu0 0
        %2421 = vmatprep.subr.bf16.mxu0 0
        %2422 = vmatpush1.bf16.msra.mxu0 %v2406
        %2423 = vmatprep.subr.bf16.mxu0 0
        %2424 = vmatpush1.bf16.msra.mxu0 %v2405
        %2425 = vmatprep.subr.bf16.mxu0 0
        %2426 = vmatpush2.bf16.msra.mxu0 0
        %2427 = vmatprep.subr.bf16.mxu0 0
        %2428 = vmatpush2.bf16.msra.mxu0 0
        %2429 = vmatprep.subr.bf16.mxu0 0
        %2430 = vmatpush2.bf16.msra.mxu0 0
        %2431 = vmatprep.subr.bf16.mxu0 0
        %2432 = vmatpush2.bf16.msra.mxu0 0
        %2433 = vmatprep.subr.bf16.mxu0 0
        %2434 = vmatpush2.bf16.msra.mxu0 0
        %2435 = vmatprep.subr.bf16.mxu0 0
        %2436 = vmatpush2.bf16.msra.mxu0 0
        %2437 = vmatprep.subr.bf16.mxu0 0
        %2438 = vmatpush2.bf16.msra.mxu0 0
        %2439 = vmatprep.subr.bf16.mxu0 0
        %2440 = vmatpush2.bf16.msra.mxu0 0
        %2441 = vmatprep.mubr.bf16.mxu0 0
        %2442 = vmatmul.mubr.bf16.gmra.mxu0 %v2036
        %v2443 = vpop.f32.mrf.mxu0
        %v2444 = vadd.f32 0.0, %v2443
        %v2445 = vpop.f32.mrf.mxu0
        %v2446 = vpop.f32.mrf.mxu0
        %v2447 = vadd.f32 0.0, %v2446
        %v2448 = vpop.f32.mrf.mxu0
        %2449 = vdwg.mxu0
        %v2450 = vpack.c.bf16 %v2076, %v2073
        %v2451 = vpack.c.bf16 %v2129, %v2126
        %v2452 = vpack.c.bf16 %v2182, %v2179
        %v2453 = vpack.c.bf16 %v2235, %v2232
        %v2454 = vpack.c.bf16 %v2288, %v2285
        %v2455 = vpack.c.bf16 %v2341, %v2338
        %v2456 = vpack.c.bf16 %v2394, %v2391
        %v2457 = vpack.c.bf16 %v2447, %v2444
        %v2459 = vsel %vm1161, %v2019, 0
        %v2462 = vsel %vm1161, %v2450, 0
        %2464 = vmatprep.subr.bf16.mxu0 0
        %2465 = vmatpush1.bf16.xpose.msra.mxu0 0
        %2466 = vmatprep.subr.bf16.mxu0 0
        %2467 = vmatpush1.bf16.xpose.msra.mxu0 0
        %2468 = vmatprep.subr.bf16.mxu0 0
        %2469 = vmatpush1.bf16.xpose.msra.mxu0 0
        %2470 = vmatprep.subr.bf16.mxu0 0
        %2471 = vmatpush1.bf16.xpose.msra.mxu0 0
        %2472 = vmatprep.subr.bf16.mxu0 0
        %2473 = vmatpush1.bf16.xpose.msra.mxu0 0
        %2474 = vmatprep.subr.bf16.mxu0 0
        %2475 = vmatpush1.bf16.xpose.msra.mxu0 0
        %2476 = vmatprep.subr.bf16.mxu0 0
        %2477 = vmatpush1.bf16.xpose.msra.mxu0 0
        %2478 = vmatprep.subr.bf16.mxu0 0
        %2479 = vmatpush1.bf16.xpose.msra.mxu0 %v2462
        %2480 = vmatprep.subr.bf16.mxu0 0
        %2481 = vmatpush2.bf16.xpose.msra.mxu0 0
        %2482 = vmatprep.subr.bf16.mxu0 0
        %2483 = vmatpush2.bf16.xpose.msra.mxu0 0
        %2484 = vmatprep.subr.bf16.mxu0 0
        %2485 = vmatpush2.bf16.xpose.msra.mxu0 0
        %2486 = vmatprep.subr.bf16.mxu0 0
        %2487 = vmatpush2.bf16.xpose.msra.mxu0 0
        %2488 = vmatprep.subr.bf16.mxu0 0
        %2489 = vmatpush2.bf16.xpose.msra.mxu0 0
        %2490 = vmatprep.subr.bf16.mxu0 0
        %2491 = vmatpush2.bf16.xpose.msra.mxu0 0
        %2492 = vmatprep.subr.bf16.mxu0 0
        %2493 = vmatpush2.bf16.xpose.msra.mxu0 0
        %2494 = vmatprep.subr.bf16.mxu0 0
        %2495 = vmatpush2.bf16.xpose.msra.mxu0 0
        %2496 = vmatprep.mubr.bf16.mxu0 0
        %2497 = vmatmul.mubr.bf16.gmra.mxu0 %v2459
        %v2498 = vpop.f32.mrf.mxu0
        %v2499 = vadd.f32 0.0, %v2498
        %v2500 = vpop.f32.mrf.mxu0
        %v2501 = vpop.f32.mrf.mxu0
        %v2502 = vpop.f32.mrf.mxu0
        %2503 = vdwg.mxu0
        %v2505 = vsel %vm1161, %v2020, 0
        %v2508 = vsel %vm1161, %v2451, 0
        %2510 = vmatprep.subr.bf16.mxu0 0
        %2511 = vmatpush1.bf16.xpose.msra.mxu0 0
        %2512 = vmatprep.subr.bf16.mxu0 0
        %2513 = vmatpush1.bf16.xpose.msra.mxu0 0
        %2514 = vmatprep.subr.bf16.mxu0 0
        %2515 = vmatpush1.bf16.xpose.msra.mxu0 0
        %2516 = vmatprep.subr.bf16.mxu0 0
        %2517 = vmatpush1.bf16.xpose.msra.mxu0 0
        %2518 = vmatprep.subr.bf16.mxu0 0
        %2519 = vmatpush1.bf16.xpose.msra.mxu0 0
        %2520 = vmatprep.subr.bf16.mxu0 0
        %2521 = vmatpush1.bf16.xpose.msra.mxu0 0
        %2522 = vmatprep.subr.bf16.mxu0 0
        %2523 = vmatpush1.bf16.xpose.msra.mxu0 0
        %2524 = vmatprep.subr.bf16.mxu0 0
        %2525 = vmatpush1.bf16.xpose.msra.mxu0 %v2508
        %2526 = vmatprep.subr.bf16.mxu0 0
        %2527 = vmatpush2.bf16.xpose.msra.mxu0 0
        %2528 = vmatprep.subr.bf16.mxu0 0
        %2529 = vmatpush2.bf16.xpose.msra.mxu0 0
        %2530 = vmatprep.subr.bf16.mxu0 0
        %2531 = vmatpush2.bf16.xpose.msra.mxu0 0
        %2532 = vmatprep.subr.bf16.mxu0 0
        %2533 = vmatpush2.bf16.xpose.msra.mxu0 0
        %2534 = vmatprep.subr.bf16.mxu0 0
        %2535 = vmatpush2.bf16.xpose.msra.mxu0 0
        %2536 = vmatprep.subr.bf16.mxu0 0
        %2537 = vmatpush2.bf16.xpose.msra.mxu0 0
        %2538 = vmatprep.subr.bf16.mxu0 0
        %2539 = vmatpush2.bf16.xpose.msra.mxu0 0
        %2540 = vmatprep.subr.bf16.mxu0 0
        %2541 = vmatpush2.bf16.xpose.msra.mxu0 0
        %2542 = vmatprep.mubr.bf16.mxu0 0
        %2543 = vmatmul.mubr.bf16.gmra.mxu0 %v2505
        %v2544 = vpop.f32.mrf.mxu0
        %v2545 = vadd.f32 0.0, %v2544
        %v2546 = vpop.f32.mrf.mxu0
        %v2547 = vpop.f32.mrf.mxu0
        %v2548 = vpop.f32.mrf.mxu0
        %2549 = vdwg.mxu0
        %v2551 = vsel %vm1161, %v2021, 0
        %v2554 = vsel %vm1161, %v2452, 0
        %2556 = vmatprep.subr.bf16.mxu0 0
        %2557 = vmatpush1.bf16.xpose.msra.mxu0 0
        %2558 = vmatprep.subr.bf16.mxu0 0
        %2559 = vmatpush1.bf16.xpose.msra.mxu0 0
        %2560 = vmatprep.subr.bf16.mxu0 0
        %2561 = vmatpush1.bf16.xpose.msra.mxu0 0
        %2562 = vmatprep.subr.bf16.mxu0 0
        %2563 = vmatpush1.bf16.xpose.msra.mxu0 0
        %2564 = vmatprep.subr.bf16.mxu0 0
        %2565 = vmatpush1.bf16.xpose.msra.mxu0 0
        %2566 = vmatprep.subr.bf16.mxu0 0
        %2567 = vmatpush1.bf16.xpose.msra.mxu0 0
        %2568 = vmatprep.subr.bf16.mxu0 0
        %2569 = vmatpush1.bf16.xpose.msra.mxu0 0
        %2570 = vmatprep.subr.bf16.mxu0 0
        %2571 = vmatpush1.bf16.xpose.msra.mxu0 %v2554
        %2572 = vmatprep.subr.bf16.mxu0 0
        %2573 = vmatpush2.bf16.xpose.msra.mxu0 0
        %2574 = vmatprep.subr.bf16.mxu0 0
        %2575 = vmatpush2.bf16.xpose.msra.mxu0 0
        %2576 = vmatprep.subr.bf16.mxu0 0
        %2577 = vmatpush2.bf16.xpose.msra.mxu0 0
        %2578 = vmatprep.subr.bf16.mxu0 0
        %2579 = vmatpush2.bf16.xpose.msra.mxu0 0
        %2580 = vmatprep.subr.bf16.mxu0 0
        %2581 = vmatpush2.bf16.xpose.msra.mxu0 0
        %2582 = vmatprep.subr.bf16.mxu0 0
        %2583 = vmatpush2.bf16.xpose.msra.mxu0 0
        %2584 = vmatprep.subr.bf16.mxu0 0
        %2585 = vmatpush2.bf16.xpose.msra.mxu0 0
        %2586 = vmatprep.subr.bf16.mxu0 0
        %2587 = vmatpush2.bf16.xpose.msra.mxu0 0
        %2588 = vmatprep.mubr.bf16.mxu0 0
        %2589 = vmatmul.mubr.bf16.gmra.mxu0 %v2551
        %v2590 = vpop.f32.mrf.mxu0
        %v2591 = vadd.f32 0.0, %v2590
        %v2592 = vpop.f32.mrf.mxu0
        %v2593 = vpop.f32.mrf.mxu0
        %v2594 = vpop.f32.mrf.mxu0
        %2595 = vdwg.mxu0
        %v2597 = vsel %vm1161, %v2022, 0
        %v2600 = vsel %vm1161, %v2453, 0
        %2602 = vmatprep.subr.bf16.mxu0 0
        %2603 = vmatpush1.bf16.xpose.msra.mxu0 0
        %2604 = vmatprep.subr.bf16.mxu0 0
        %2605 = vmatpush1.bf16.xpose.msra.mxu0 0
        %2606 = vmatprep.subr.bf16.mxu0 0
        %2607 = vmatpush1.bf16.xpose.msra.mxu0 0
        %2608 = vmatprep.subr.bf16.mxu0 0
        %2609 = vmatpush1.bf16.xpose.msra.mxu0 0
        %2610 = vmatprep.subr.bf16.mxu0 0
        %2611 = vmatpush1.bf16.xpose.msra.mxu0 0
        %2612 = vmatprep.subr.bf16.mxu0 0
        %2613 = vmatpush1.bf16.xpose.msra.mxu0 0
        %2614 = vmatprep.subr.bf16.mxu0 0
        %2615 = vmatpush1.bf16.xpose.msra.mxu0 0
        %2616 = vmatprep.subr.bf16.mxu0 0
        %2617 = vmatpush1.bf16.xpose.msra.mxu0 %v2600
        %2618 = vmatprep.subr.bf16.mxu0 0
        %2619 = vmatpush2.bf16.xpose.msra.mxu0 0
        %2620 = vmatprep.subr.bf16.mxu0 0
        %2621 = vmatpush2.bf16.xpose.msra.mxu0 0
        %2622 = vmatprep.subr.bf16.mxu0 0
        %2623 = vmatpush2.bf16.xpose.msra.mxu0 0
        %2624 = vmatprep.subr.bf16.mxu0 0
        %2625 = vmatpush2.bf16.xpose.msra.mxu0 0
        %2626 = vmatprep.subr.bf16.mxu0 0
        %2627 = vmatpush2.bf16.xpose.msra.mxu0 0
        %2628 = vmatprep.subr.bf16.mxu0 0
        %2629 = vmatpush2.bf16.xpose.msra.mxu0 0
        %2630 = vmatprep.subr.bf16.mxu0 0
        %2631 = vmatpush2.bf16.xpose.msra.mxu0 0
        %2632 = vmatprep.subr.bf16.mxu0 0
        %2633 = vmatpush2.bf16.xpose.msra.mxu0 0
        %2634 = vmatprep.mubr.bf16.mxu0 0
        %2635 = vmatmul.mubr.bf16.gmra.mxu0 %v2597
        %v2636 = vpop.f32.mrf.mxu0
        %v2637 = vadd.f32 0.0, %v2636
        %v2638 = vpop.f32.mrf.mxu0
        %v2639 = vpop.f32.mrf.mxu0
        %v2640 = vpop.f32.mrf.mxu0
        %2641 = vdwg.mxu0
        %v2642 = vsel %vm398, %v2499, 1e-06
        %v2643 = vsel %vm398, %v2545, 1e-06
        %v2644 = vsel %vm398, %v2591, 1e-06
        %v2645 = vsel %vm398, %v2637, 1e-06
        %vm2646 = vcmask 130048
        %v2647 = vsel %vm2646, %v2642, -inf
        %2648 = vmax.xlane.f32.xlu0 %v2647
        %v2649 = vpop.xlane.xlu0 %2648
        %v2650 = vsel %vm2646, %v2643, -inf
        %2651 = vmax.xlane.f32.xlu0 %v2650
        %v2652 = vpop.xlane.xlu0 %2651
        %v2653 = vsel %vm2646, %v2644, -inf
        %2654 = vmax.xlane.f32.xlu0 %v2653
        %v2655 = vpop.xlane.xlu0 %2654
        %v2656 = vsel %vm2646, %v2645, -inf
        %2657 = vmax.xlane.f32.xlu0 %v2656
        %v2658 = vpop.xlane.xlu0 %2657
        %v2659 = vsub.f32 %v2642, %v2649
        %v2660 = vsub.f32 %v2643, %v2652
        %v2661 = vsub.f32 %v2644, %v2655
        %v2662 = vsub.f32 %v2645, %v2658
        %v2663 = vmul.f32 %v2659, 1.442695
        %v2664 = vpow.pop %v2663
        %v2665 = vmul.f32 %v2660, 1.442695
        %v2666 = vpow.pop %v2665
        %v2667 = vmul.f32 %v2661, 1.442695
        %v2668 = vpow.pop %v2667
        %v2669 = vmul.f32 %v2662, 1.442695
        %v2670 = vpow.pop %v2669
        %v2671 = vsel %vm2646, %v2664, 0.0
        %2672 = vadd.xlane.f32.xlu0 %v2671
        %v2673 = vpop.xlane.xlu0 %2672
        %v2674 = vsel %vm2646, %v2666, 0.0
        %2675 = vadd.xlane.f32.xlu0 %v2674
        %v2676 = vpop.xlane.xlu0 %2675
        %v2677 = vsel %vm2646, %v2668, 0.0
        %2678 = vadd.xlane.f32.xlu0 %v2677
        %v2679 = vpop.xlane.xlu0 %2678
        %v2680 = vsel %vm2646, %v2670, 0.0
        %2681 = vadd.xlane.f32.xlu0 %v2680
        %v2682 = vpop.xlane.xlu0 %2681
        %v2683 = vrcp.pop %v2673
        %v2684 = vrcp.pop %v2676
        %v2685 = vrcp.pop %v2679
        %v2686 = vrcp.pop %v2682
        %v2687 = vmul.f32 %v2664, %v2683
        %v2688 = vmul.f32 %v2666, %v2684
        %v2689 = vmul.f32 %v2668, %v2685
        %v2690 = vmul.f32 %v2670, %v2686
        %v2691 = vpack.c.bf16 %v2687, %v2687
        %v2692 = vpack.c.bf16 %v2688, %v2688
        %v2693 = vpack.c.bf16 %v2689, %v2689
        %v2694 = vpack.c.bf16 %v2690, %v2690
        %v2696 = vsel %vm2646, %v2691, 0
        %2698 = vmatprep.subr.bf16.mxu0 0
        %2699 = vmatpush1.bf16.msra.mxu0 0
        %2700 = vmatprep.subr.bf16.mxu0 0
        %2701 = vmatpush1.bf16.msra.mxu0 0
        %2702 = vmatprep.subr.bf16.mxu0 0
        %2703 = vmatpush1.bf16.msra.mxu0 0
        %2704 = vmatprep.subr.bf16.mxu0 0
        %2705 = vmatpush1.bf16.msra.mxu0 0
        %2706 = vmatprep.subr.bf16.mxu0 0
        %2707 = vmatpush1.bf16.msra.mxu0 0
        %2708 = vmatprep.subr.bf16.mxu0 0
        %2709 = vmatpush1.bf16.msra.mxu0 0
        %2710 = vmatprep.subr.bf16.mxu0 0
        %2711 = vmatpush1.bf16.msra.mxu0 0
        %2712 = vmatprep.subr.bf16.mxu0 0
        %2713 = vmatpush1.bf16.msra.mxu0 %v2454
        %2714 = vmatprep.subr.bf16.mxu0 0
        %2715 = vmatpush2.bf16.msra.mxu0 0
        %2716 = vmatprep.subr.bf16.mxu0 0
        %2717 = vmatpush2.bf16.msra.mxu0 0
        %2718 = vmatprep.subr.bf16.mxu0 0
        %2719 = vmatpush2.bf16.msra.mxu0 0
        %2720 = vmatprep.subr.bf16.mxu0 0
        %2721 = vmatpush2.bf16.msra.mxu0 0
        %2722 = vmatprep.subr.bf16.mxu0 0
        %2723 = vmatpush2.bf16.msra.mxu0 0
        %2724 = vmatprep.subr.bf16.mxu0 0
        %2725 = vmatpush2.bf16.msra.mxu0 0
        %2726 = vmatprep.subr.bf16.mxu0 0
        %2727 = vmatpush2.bf16.msra.mxu0 0
        %2728 = vmatprep.subr.bf16.mxu0 0
        %2729 = vmatpush2.bf16.msra.mxu0 0
        %2730 = vmatprep.mubr.bf16.mxu0 0
        %2731 = vmatmul.mubr.bf16.gmra.mxu0 %v2696
        %v2732 = vpop.f32.mrf.mxu0
        %v2733 = vadd.f32 0.0, %v2732
        %v2734 = vpop.f32.mrf.mxu0
        %v2735 = vpop.f32.mrf.mxu0
        %v2736 = vpop.f32.mrf.mxu0
        %2737 = vdwg.mxu0
        %v2739 = vsel %vm2646, %v2692, 0
        %2741 = vmatprep.subr.bf16.mxu0 0
        %2742 = vmatpush1.bf16.msra.mxu0 0
        %2743 = vmatprep.subr.bf16.mxu0 0
        %2744 = vmatpush1.bf16.msra.mxu0 0
        %2745 = vmatprep.subr.bf16.mxu0 0
        %2746 = vmatpush1.bf16.msra.mxu0 0
        %2747 = vmatprep.subr.bf16.mxu0 0
        %2748 = vmatpush1.bf16.msra.mxu0 0
        %2749 = vmatprep.subr.bf16.mxu0 0
        %2750 = vmatpush1.bf16.msra.mxu0 0
        %2751 = vmatprep.subr.bf16.mxu0 0
        %2752 = vmatpush1.bf16.msra.mxu0 0
        %2753 = vmatprep.subr.bf16.mxu0 0
        %2754 = vmatpush1.bf16.msra.mxu0 0
        %2755 = vmatprep.subr.bf16.mxu0 0
        %2756 = vmatpush1.bf16.msra.mxu0 %v2455
        %2757 = vmatprep.subr.bf16.mxu0 0
        %2758 = vmatpush2.bf16.msra.mxu0 0
        %2759 = vmatprep.subr.bf16.mxu0 0
        %2760 = vmatpush2.bf16.msra.mxu0 0
        %2761 = vmatprep.subr.bf16.mxu0 0
        %2762 = vmatpush2.bf16.msra.mxu0 0
        %2763 = vmatprep.subr.bf16.mxu0 0
        %2764 = vmatpush2.bf16.msra.mxu0 0
        %2765 = vmatprep.subr.bf16.mxu0 0
        %2766 = vmatpush2.bf16.msra.mxu0 0
        %2767 = vmatprep.subr.bf16.mxu0 0
        %2768 = vmatpush2.bf16.msra.mxu0 0
        %2769 = vmatprep.subr.bf16.mxu0 0
        %2770 = vmatpush2.bf16.msra.mxu0 0
        %2771 = vmatprep.subr.bf16.mxu0 0
        %2772 = vmatpush2.bf16.msra.mxu0 0
        %2773 = vmatprep.mubr.bf16.mxu0 0
        %2774 = vmatmul.mubr.bf16.gmra.mxu0 %v2739
        %v2775 = vpop.f32.mrf.mxu0
        %v2776 = vadd.f32 0.0, %v2775
        %v2777 = vpop.f32.mrf.mxu0
        %v2778 = vpop.f32.mrf.mxu0
        %v2779 = vpop.f32.mrf.mxu0
        %2780 = vdwg.mxu0
        %v2782 = vsel %vm2646, %v2693, 0
        %2784 = vmatprep.subr.bf16.mxu0 0
        %2785 = vmatpush1.bf16.msra.mxu0 0
        %2786 = vmatprep.subr.bf16.mxu0 0
        %2787 = vmatpush1.bf16.msra.mxu0 0
        %2788 = vmatprep.subr.bf16.mxu0 0
        %2789 = vmatpush1.bf16.msra.mxu0 0
        %2790 = vmatprep.subr.bf16.mxu0 0
        %2791 = vmatpush1.bf16.msra.mxu0 0
        %2792 = vmatprep.subr.bf16.mxu0 0
        %2793 = vmatpush1.bf16.msra.mxu0 0
        %2794 = vmatprep.subr.bf16.mxu0 0
        %2795 = vmatpush1.bf16.msra.mxu0 0
        %2796 = vmatprep.subr.bf16.mxu0 0
        %2797 = vmatpush1.bf16.msra.mxu0 0
        %2798 = vmatprep.subr.bf16.mxu0 0
        %2799 = vmatpush1.bf16.msra.mxu0 %v2456
        %2800 = vmatprep.subr.bf16.mxu0 0
        %2801 = vmatpush2.bf16.msra.mxu0 0
        %2802 = vmatprep.subr.bf16.mxu0 0
        %2803 = vmatpush2.bf16.msra.mxu0 0
        %2804 = vmatprep.subr.bf16.mxu0 0
        %2805 = vmatpush2.bf16.msra.mxu0 0
        %2806 = vmatprep.subr.bf16.mxu0 0
        %2807 = vmatpush2.bf16.msra.mxu0 0
        %2808 = vmatprep.subr.bf16.mxu0 0
        %2809 = vmatpush2.bf16.msra.mxu0 0
        %2810 = vmatprep.subr.bf16.mxu0 0
        %2811 = vmatpush2.bf16.msra.mxu0 0
        %2812 = vmatprep.subr.bf16.mxu0 0
        %2813 = vmatpush2.bf16.msra.mxu0 0
        %2814 = vmatprep.subr.bf16.mxu0 0
        %2815 = vmatpush2.bf16.msra.mxu0 0
        %2816 = vmatprep.mubr.bf16.mxu0 0
        %2817 = vmatmul.mubr.bf16.gmra.mxu0 %v2782
        %v2818 = vpop.f32.mrf.mxu0
        %v2819 = vadd.f32 0.0, %v2818
        %v2820 = vpop.f32.mrf.mxu0
        %v2821 = vpop.f32.mrf.mxu0
        %v2822 = vpop.f32.mrf.mxu0
        %2823 = vdwg.mxu0
        %v2825 = vsel %vm2646, %v2694, 0
        %2827 = vmatprep.subr.bf16.mxu0 0
        %2828 = vmatpush1.bf16.msra.mxu0 0
        %2829 = vmatprep.subr.bf16.mxu0 0
        %2830 = vmatpush1.bf16.msra.mxu0 0
        %2831 = vmatprep.subr.bf16.mxu0 0
        %2832 = vmatpush1.bf16.msra.mxu0 0
        %2833 = vmatprep.subr.bf16.mxu0 0
        %2834 = vmatpush1.bf16.msra.mxu0 0
        %2835 = vmatprep.subr.bf16.mxu0 0
        %2836 = vmatpush1.bf16.msra.mxu0 0
        %2837 = vmatprep.subr.bf16.mxu0 0
        %2838 = vmatpush1.bf16.msra.mxu0 0
        %2839 = vmatprep.subr.bf16.mxu0 0
        %2840 = vmatpush1.bf16.msra.mxu0 0
        %2841 = vmatprep.subr.bf16.mxu0 0
        %2842 = vmatpush1.bf16.msra.mxu0 %v2457
        %2843 = vmatprep.subr.bf16.mxu0 0
        %2844 = vmatpush2.bf16.msra.mxu0 0
        %2845 = vmatprep.subr.bf16.mxu0 0
        %2846 = vmatpush2.bf16.msra.mxu0 0
        %2847 = vmatprep.subr.bf16.mxu0 0
        %2848 = vmatpush2.bf16.msra.mxu0 0
        %2849 = vmatprep.subr.bf16.mxu0 0
        %2850 = vmatpush2.bf16.msra.mxu0 0
        %2851 = vmatprep.subr.bf16.mxu0 0
        %2852 = vmatpush2.bf16.msra.mxu0 0
        %2853 = vmatprep.subr.bf16.mxu0 0
        %2854 = vmatpush2.bf16.msra.mxu0 0
        %2855 = vmatprep.subr.bf16.mxu0 0
        %2856 = vmatpush2.bf16.msra.mxu0 0
        %2857 = vmatprep.subr.bf16.mxu0 0
        %2858 = vmatpush2.bf16.msra.mxu0 0
        %2859 = vmatprep.mubr.bf16.mxu0 0
        %2860 = vmatmul.mubr.bf16.gmra.mxu0 %v2825
        %v2861 = vpop.f32.mrf.mxu0
        %v2862 = vadd.f32 0.0, %v2861
        %v2863 = vpop.f32.mrf.mxu0
        %v2864 = vpop.f32.mrf.mxu0
        %v2865 = vpop.f32.mrf.mxu0
        %2866 = vdwg.mxu0
        %v2867 = vpack.c.bf16 %v2733, %v2733
        %v2868 = vpack.c.bf16 %v2776, %v2776
        %v2869 = vpack.c.bf16 %v2819, %v2819
        %v2870 = vpack.c.bf16 %v2862, %v2862
        %v2872 = vsel %vm1161, %v2867, 0
        %v2875 = vsel %vm1401, %v499, 0
        %2877 = vmatprep.subr.bf16.mxu0 0
        %2878 = vmatpush1.bf16.msra.mxu0 0
        %2879 = vmatprep.subr.bf16.mxu0 0
        %2880 = vmatpush1.bf16.msra.mxu0 0
        %2881 = vmatprep.subr.bf16.mxu0 0
        %2882 = vmatpush1.bf16.msra.mxu0 0
        %2883 = vmatprep.subr.bf16.mxu0 0
        %2884 = vmatpush1.bf16.msra.mxu0 0
        %2885 = vmatprep.subr.bf16.mxu0 0
        %2886 = vmatpush1.bf16.msra.mxu0 0
        %2887 = vmatprep.subr.bf16.mxu0 0
        %2888 = vmatpush1.bf16.msra.mxu0 0
        %2889 = vmatprep.subr.bf16.mxu0 0
        %2890 = vmatpush1.bf16.msra.mxu0 0
        %2891 = vmatprep.subr.bf16.mxu0 0
        %2892 = vmatpush1.bf16.msra.mxu0 %v2875
        %2893 = vmatprep.subr.bf16.mxu0 0
        %2894 = vmatpush2.bf16.msra.mxu0 0
        %2895 = vmatprep.subr.bf16.mxu0 0
        %2896 = vmatpush2.bf16.msra.mxu0 0
        %2897 = vmatprep.subr.bf16.mxu0 0
        %2898 = vmatpush2.bf16.msra.mxu0 0
        %2899 = vmatprep.subr.bf16.mxu0 0
        %2900 = vmatpush2.bf16.msra.mxu0 0
        %2901 = vmatprep.subr.bf16.mxu0 0
        %2902 = vmatpush2.bf16.msra.mxu0 0
        %2903 = vmatprep.subr.bf16.mxu0 0
        %2904 = vmatpush2.bf16.msra.mxu0 0
        %2905 = vmatprep.subr.bf16.mxu0 0
        %2906 = vmatpush2.bf16.msra.mxu0 0
        %2907 = vmatprep.subr.bf16.mxu0 0
        %2908 = vmatpush2.bf16.msra.mxu0 0
        %2909 = vmatprep.mubr.bf16.mxu0 0
        %2910 = vmatmul.mubr.bf16.gmra.mxu0 %v2872
        %v2911 = vpop.f32.mrf.mxu0
        %v2912 = vadd.f32 0.0, %v2911
        %v2913 = vpop.f32.mrf.mxu0
        %v2914 = vpop.f32.mrf.mxu0
        %v2915 = vpop.f32.mrf.mxu0
        %2916 = vdwg.mxu0
        %v2918 = vsel %vm1161, %v2868, 0
        %v2921 = vsel %vm1401, %v500, 0
        %2923 = vmatprep.subr.bf16.mxu0 0
        %2924 = vmatpush1.bf16.msra.mxu0 0
        %2925 = vmatprep.subr.bf16.mxu0 0
        %2926 = vmatpush1.bf16.msra.mxu0 0
        %2927 = vmatprep.subr.bf16.mxu0 0
        %2928 = vmatpush1.bf16.msra.mxu0 0
        %2929 = vmatprep.subr.bf16.mxu0 0
        %2930 = vmatpush1.bf16.msra.mxu0 0
        %2931 = vmatprep.subr.bf16.mxu0 0
        %2932 = vmatpush1.bf16.msra.mxu0 0
        %2933 = vmatprep.subr.bf16.mxu0 0
        %2934 = vmatpush1.bf16.msra.mxu0 0
        %2935 = vmatprep.subr.bf16.mxu0 0
        %2936 = vmatpush1.bf16.msra.mxu0 0
        %2937 = vmatprep.subr.bf16.mxu0 0
        %2938 = vmatpush1.bf16.msra.mxu0 %v2921
        %2939 = vmatprep.subr.bf16.mxu0 0
        %2940 = vmatpush2.bf16.msra.mxu0 0
        %2941 = vmatprep.subr.bf16.mxu0 0
        %2942 = vmatpush2.bf16.msra.mxu0 0
        %2943 = vmatprep.subr.bf16.mxu0 0
        %2944 = vmatpush2.bf16.msra.mxu0 0
        %2945 = vmatprep.subr.bf16.mxu0 0
        %2946 = vmatpush2.bf16.msra.mxu0 0
        %2947 = vmatprep.subr.bf16.mxu0 0
        %2948 = vmatpush2.bf16.msra.mxu0 0
        %2949 = vmatprep.subr.bf16.mxu0 0
        %2950 = vmatpush2.bf16.msra.mxu0 0
        %2951 = vmatprep.subr.bf16.mxu0 0
        %2952 = vmatpush2.bf16.msra.mxu0 0
        %2953 = vmatprep.subr.bf16.mxu0 0
        %2954 = vmatpush2.bf16.msra.mxu0 0
        %2955 = vmatprep.mubr.bf16.mxu0 0
        %2956 = vmatmul.mubr.bf16.gmra.mxu0 %v2918
        %v2957 = vpop.f32.mrf.mxu0
        %v2958 = vadd.f32 0.0, %v2957
        %v2959 = vpop.f32.mrf.mxu0
        %v2960 = vpop.f32.mrf.mxu0
        %v2961 = vpop.f32.mrf.mxu0
        %2962 = vdwg.mxu0
        %v2964 = vsel %vm1161, %v2869, 0
        %v2967 = vsel %vm1401, %v501, 0
        %2969 = vmatprep.subr.bf16.mxu0 0
        %2970 = vmatpush1.bf16.msra.mxu0 0
        %2971 = vmatprep.subr.bf16.mxu0 0
        %2972 = vmatpush1.bf16.msra.mxu0 0
        %2973 = vmatprep.subr.bf16.mxu0 0
        %2974 = vmatpush1.bf16.msra.mxu0 0
        %2975 = vmatprep.subr.bf16.mxu0 0
        %2976 = vmatpush1.bf16.msra.mxu0 0
        %2977 = vmatprep.subr.bf16.mxu0 0
        %2978 = vmatpush1.bf16.msra.mxu0 0
        %2979 = vmatprep.subr.bf16.mxu0 0
        %2980 = vmatpush1.bf16.msra.mxu0 0
        %2981 = vmatprep.subr.bf16.mxu0 0
        %2982 = vmatpush1.bf16.msra.mxu0 0
        %2983 = vmatprep.subr.bf16.mxu0 0
        %2984 = vmatpush1.bf16.msra.mxu0 %v2967
        %2985 = vmatprep.subr.bf16.mxu0 0
        %2986 = vmatpush2.bf16.msra.mxu0 0
        %2987 = vmatprep.subr.bf16.mxu0 0
        %2988 = vmatpush2.bf16.msra.mxu0 0
        %2989 = vmatprep.subr.bf16.mxu0 0
        %2990 = vmatpush2.bf16.msra.mxu0 0
        %2991 = vmatprep.subr.bf16.mxu0 0
        %2992 = vmatpush2.bf16.msra.mxu0 0
        %2993 = vmatprep.subr.bf16.mxu0 0
        %2994 = vmatpush2.bf16.msra.mxu0 0
        %2995 = vmatprep.subr.bf16.mxu0 0
        %2996 = vmatpush2.bf16.msra.mxu0 0
        %2997 = vmatprep.subr.bf16.mxu0 0
        %2998 = vmatpush2.bf16.msra.mxu0 0
        %2999 = vmatprep.subr.bf16.mxu0 0
        %3000 = vmatpush2.bf16.msra.mxu0 0
        %3001 = vmatprep.mubr.bf16.mxu0 0
        %3002 = vmatmul.mubr.bf16.gmra.mxu0 %v2964
        %v3003 = vpop.f32.mrf.mxu0
        %v3004 = vadd.f32 0.0, %v3003
        %v3005 = vpop.f32.mrf.mxu0
        %v3006 = vpop.f32.mrf.mxu0
        %v3007 = vpop.f32.mrf.mxu0
        %3008 = vdwg.mxu0
        %v3010 = vsel %vm1161, %v2870, 0
        %v3013 = vsel %vm1401, %v502, 0
        %3015 = vmatprep.subr.bf16.mxu0 0
        %3016 = vmatpush1.bf16.msra.mxu0 0
        %3017 = vmatprep.subr.bf16.mxu0 0
        %3018 = vmatpush1.bf16.msra.mxu0 0
        %3019 = vmatprep.subr.bf16.mxu0 0
        %3020 = vmatpush1.bf16.msra.mxu0 0
        %3021 = vmatprep.subr.bf16.mxu0 0
        %3022 = vmatpush1.bf16.msra.mxu0 0
        %3023 = vmatprep.subr.bf16.mxu0 0
        %3024 = vmatpush1.bf16.msra.mxu0 0
        %3025 = vmatprep.subr.bf16.mxu0 0
        %3026 = vmatpush1.bf16.msra.mxu0 0
        %3027 = vmatprep.subr.bf16.mxu0 0
        %3028 = vmatpush1.bf16.msra.mxu0 0
        %3029 = vmatprep.subr.bf16.mxu0 0
        %3030 = vmatpush1.bf16.msra.mxu0 %v3013
        %3031 = vmatprep.subr.bf16.mxu0 0
        %3032 = vmatpush2.bf16.msra.mxu0 0
        %3033 = vmatprep.subr.bf16.mxu0 0
        %3034 = vmatpush2.bf16.msra.mxu0 0
        %3035 = vmatprep.subr.bf16.mxu0 0
        %3036 = vmatpush2.bf16.msra.mxu0 0
        %3037 = vmatprep.subr.bf16.mxu0 0
        %3038 = vmatpush2.bf16.msra.mxu0 0
        %3039 = vmatprep.subr.bf16.mxu0 0
        %3040 = vmatpush2.bf16.msra.mxu0 0
        %3041 = vmatprep.subr.bf16.mxu0 0
        %3042 = vmatpush2.bf16.msra.mxu0 0
        %3043 = vmatprep.subr.bf16.mxu0 0
        %3044 = vmatpush2.bf16.msra.mxu0 0
        %3045 = vmatprep.subr.bf16.mxu0 0
        %3046 = vmatpush2.bf16.msra.mxu0 0
        %3047 = vmatprep.mubr.bf16.mxu0 0
        %3048 = vmatmul.mubr.bf16.gmra.mxu0 %v3010
        %v3049 = vpop.f32.mrf.mxu0
        %v3050 = vadd.f32 0.0, %v3049
        %v3051 = vpop.f32.mrf.mxu0
        %v3052 = vpop.f32.mrf.mxu0
        %v3053 = vpop.f32.mrf.mxu0
        %3054 = vdwg.mxu0
        %v3055 = vsel %vm529, %v2912, 0.0
        %v3056 = vsel %vm529, %v2958, 0.0
        %v3057 = vadd.f32 %v3055, %v3056
        %v3058 = vsel %vm529, %v3004, 0.0
        %v3059 = vadd.f32 %v3057, %v3058
        %v3060 = vsel %vm529, %v3050, 0.0
        %v3061 = vadd.f32 %v3059, %v3060
        %v3062 = vadd.f32 %v3061, %v1802
        %v3063 = vsel %vm529, %v3062, 0.0
        %3064 = vadd.xlane.f32.xlu0 %v3063
        %v3065 = vpop.xlane.xlu0 %3064
        %v3066 = vmul.f32 %v3065, %v1782
        %v3067 = vsub.f32 %v3062, %v3066
        %v3068 = vmul.f32 %v3067, %v3067
        %v3069 = vsel %vm529, %v3068, 0.0
        %3070 = vadd.xlane.f32.xlu0 %v3069
        %v3071 = vpop.xlane.xlu0 %3070
        %v3072 = vmul.f32 %v3071, %v1782
        %v3073 = vadd.f32 %v3072, 1e-12
        %v3074 = vrsqrt.pop %v3073
        %v3075 = vmul.f32 %v3067, %v3074
        %v3076 = vlaneseq
        %v3077 = vshrl.u32 %v3076, 7
        %v3078 = vsub.s32 2, %v3077
        %v3079 = vrot.slane %v515, %v3078
        %v3080 = vmul.f32 %v3079, %v3075
        %v3081 = vlaneseq
        %v3082 = vshrl.u32 %v3081, 7
        %v3083 = vsub.s32 3, %v3082
        %v3084 = vrot.slane %v515, %v3083
        %v3085 = vadd.f32 %v3080, %v3084
        %v3086 = vpack.c.bf16 %v3085, %v3085
        %v3087 = vlaneseq
        %v3088 = vshrl.u32 %v3087, 7
        %v3089 = vsub.s32 6, %v3088
        %v3090 = vrot.slane %v515, %v3089
        %v3095 = vunpack.c.l.b16 %v503
        %v3096 = vunpack.c.l.b16 %v504
        %v3097 = vunpack.c.l.b16 %v505
        %v3098 = vunpack.c.l.b16 %v506
        %v3099 = vpack.c.b16 %v3096, %v3095
        %v3100 = vpack.c.b16 %v3098, %v3097
        %v3104 = vsel %vm529, %v3086, 0
        %3106 = vmatprep.subr.bf16.mxu0 0
        %3107 = vmatpush1.bf16.msra.mxu0 0
        %3108 = vmatprep.subr.bf16.mxu0 0
        %3109 = vmatpush1.bf16.msra.mxu0 0
        %3110 = vmatprep.subr.bf16.mxu0 0
        %3111 = vmatpush1.bf16.msra.mxu0 0
        %3112 = vmatprep.subr.bf16.mxu0 0
        %3113 = vmatpush1.bf16.msra.mxu0 0
        %3114 = vmatprep.subr.bf16.mxu0 0
        %3115 = vmatpush1.bf16.msra.mxu0 0
        %3116 = vmatprep.subr.bf16.mxu0 0
        %3117 = vmatpush1.bf16.msra.mxu0 0
        %3118 = vmatprep.subr.bf16.mxu0 0
        %3119 = vmatpush1.bf16.msra.mxu0 %v3100
        %3120 = vmatprep.subr.bf16.mxu0 0
        %3121 = vmatpush1.bf16.msra.mxu0 %v3099
        %3122 = vmatprep.subr.bf16.mxu0 0
        %3123 = vmatpush2.bf16.msra.mxu0 0
        %3124 = vmatprep.subr.bf16.mxu0 0
        %3125 = vmatpush2.bf16.msra.mxu0 0
        %3126 = vmatprep.subr.bf16.mxu0 0
        %3127 = vmatpush2.bf16.msra.mxu0 0
        %3128 = vmatprep.subr.bf16.mxu0 0
        %3129 = vmatpush2.bf16.msra.mxu0 0
        %3130 = vmatprep.subr.bf16.mxu0 0
        %3131 = vmatpush2.bf16.msra.mxu0 0
        %3132 = vmatprep.subr.bf16.mxu0 0
        %3133 = vmatpush2.bf16.msra.mxu0 0
        %3134 = vmatprep.subr.bf16.mxu0 0
        %3135 = vmatpush2.bf16.msra.mxu0 0
        %3136 = vmatprep.subr.bf16.mxu0 0
        %3137 = vmatpush2.bf16.msra.mxu0 0
        %3138 = vmatprep.mubr.bf16.mxu0 0
        %3139 = vmatmul.mubr.bf16.gmra.mxu0 %v3104
        %v3140 = vpop.f32.mrf.mxu0
        %v3141 = vadd.f32 %v3090, %v3140
        %v3142 = vpop.f32.mrf.mxu0
        %v3143 = vpop.f32.mrf.mxu0
        %v3144 = vpop.f32.mrf.mxu0
        %3145 = vdwg.mxu0
        %v3146 = vmax.f32 %v3141, 0.0
        %v3147 = vpack.c.bf16 %v3146, %v3146
        %v3148 = vlaneseq
        %v3149 = vshrl.u32 %v3148, 7
        %v3150 = vsub.s32 7, %v3149
        %v3151 = vrot.slane %v515, %v3150
        %v3160 = vunpack.c.l.b16 %v507
        %v3161 = vunpack.c.l.b16 %v508
        %v3162 = vunpack.c.l.b16 %v509
        %v3163 = vunpack.c.l.b16 %v510
        %v3164 = vunpack.c.l.b16 %v511
        %v3165 = vunpack.c.l.b16 %v512
        %v3166 = vunpack.c.l.b16 %v513
        %v3167 = vunpack.c.l.b16 %v514
        %v3168 = vpack.c.b16 %v3161, %v3160
        %v3169 = vpack.c.b16 %v3163, %v3162
        %v3170 = vpack.c.b16 %v3165, %v3164
        %v3171 = vpack.c.b16 %v3167, %v3166
        %vm3176 = vcmask 523264
        %v3178 = vsel %vm3176, %v3147, 0
        %3180 = vmatprep.subr.bf16.mxu0 0
        %3181 = vmatpush1.bf16.msra.mxu0 0
        %3182 = vmatprep.subr.bf16.mxu0 0
        %3183 = vmatpush1.bf16.msra.mxu0 0
        %3184 = vmatprep.subr.bf16.mxu0 0
        %3185 = vmatpush1.bf16.msra.mxu0 0
        %3186 = vmatprep.subr.bf16.mxu0 0
        %3187 = vmatpush1.bf16.msra.mxu0 0
        %3188 = vmatprep.subr.bf16.mxu0 0
        %3189 = vmatpush1.bf16.msra.mxu0 %v3171
        %3190 = vmatprep.subr.bf16.mxu0 0
        %3191 = vmatpush1.bf16.msra.mxu0 %v3170
        %3192 = vmatprep.subr.bf16.mxu0 0
        %3193 = vmatpush1.bf16.msra.mxu0 %v3169
        %3194 = vmatprep.subr.bf16.mxu0 0
        %3195 = vmatpush1.bf16.msra.mxu0 %v3168
        %3196 = vmatprep.subr.bf16.mxu0 0
        %3197 = vmatpush2.bf16.msra.mxu0 0
        %3198 = vmatprep.subr.bf16.mxu0 0
        %3199 = vmatpush2.bf16.msra.mxu0 0
        %3200 = vmatprep.subr.bf16.mxu0 0
        %3201 = vmatpush2.bf16.msra.mxu0 0
        %3202 = vmatprep.subr.bf16.mxu0 0
        %3203 = vmatpush2.bf16.msra.mxu0 0
        %3204 = vmatprep.subr.bf16.mxu0 0
        %3205 = vmatpush2.bf16.msra.mxu0 0
        %3206 = vmatprep.subr.bf16.mxu0 0
        %3207 = vmatpush2.bf16.msra.mxu0 0
        %3208 = vmatprep.subr.bf16.mxu0 0
        %3209 = vmatpush2.bf16.msra.mxu0 0
        %3210 = vmatprep.subr.bf16.mxu0 0
        %3211 = vmatpush2.bf16.msra.mxu0 0
        %3212 = vmatprep.mubr.bf16.mxu0 0
        %3213 = vmatmul.mubr.bf16.gmra.mxu0 %v3178
        %v3214 = vpop.f32.mrf.mxu0
        %v3215 = vadd.f32 %v3151, %v3214
        %v3216 = vpop.f32.mrf.mxu0
        %v3217 = vpop.f32.mrf.mxu0
        %v3218 = vpop.f32.mrf.mxu0
        %3219 = vdwg.mxu0
        %v3220 = vadd.f32 %v3215, %v3085
        %v3221 = vsel %vm529, %v3220, 0.0
        %3222 = vadd.xlane.f32.xlu0 %v3221
        %v3223 = vpop.xlane.xlu0 %3222
        %v3224 = vmul.f32 %v3223, %v1782
        %v3225 = vsub.f32 %v3220, %v3224
        %v3226 = vmul.f32 %v3225, %v3225
        %v3227 = vsel %vm529, %v3226, 0.0
        %3228 = vadd.xlane.f32.xlu0 %v3227
        %v3229 = vpop.xlane.xlu0 %3228
        %v3230 = vmul.f32 %v3229, %v1782
        %v3231 = vadd.f32 %v3230, 1e-12
        %v3232 = vrsqrt.pop %v3231
        %v3233 = vmul.f32 %v3225, %v3232
        %v3234 = vlaneseq
        %v3235 = vshrl.u32 %v3234, 7
        %v3236 = vsub.s32 4, %v3235
        %v3237 = vrot.slane %v515, %v3236
        %v3238 = vmul.f32 %v3237, %v3233
        %v3239 = vlaneseq
        %v3240 = vshrl.u32 %v3239, 7
        %v3241 = vsub.s32 5, %v3240
        %v3242 = vrot.slane %v515, %v3241
        %v3243 = vadd.f32 %v3238, %v3242
        %s3244 = scalar_lea.vmem %s3, 192
        %v3245 = vld [vmem:[%s3244] sm:$0xf]
        %v3246 = vld [vmem:[%s3244 + $0x4] sm:$0xf]
        %v3247 = vld [vmem:[%s3244 + $0x8] sm:$0xf]
        %v3248 = vld [vmem:[%s3244 + $0xc] sm:$0xf]
        %v3249 = vld [vmem:[%s3244 + $0x10] sm:$0xf]
        %v3250 = vld [vmem:[%s3244 + $0x14] sm:$0xf]
        %v3251 = vld [vmem:[%s3244 + $0x18] sm:$0xf]
        %v3252 = vld [vmem:[%s3244 + $0x1c] sm:$0xf]
        %v3253 = vld [vmem:[%s3244 + $0x20] sm:$0xf]
        %v3254 = vld [vmem:[%s3244 + $0x24] sm:$0xf]
        %v3255 = vld [vmem:[%s3244 + $0x28] sm:$0xf]
        %v3256 = vld [vmem:[%s3244 + $0x2c] sm:$0xf]
        %v3257 = vld [vmem:[%s3244 + $0x30] sm:$0xf]
        %v3258 = vld [vmem:[%s3244 + $0x34] sm:$0xf]
        %v3259 = vld [vmem:[%s3244 + $0x38] sm:$0xf]
        %v3260 = vld [vmem:[%s3244 + $0x3c] sm:$0xf]
        %v3261 = vld [vmem:[%s3244 + $0x40] sm:$0xf]
        %v3262 = vld [vmem:[%s3244 + $0x44] sm:$0xf]
        %v3263 = vld [vmem:[%s3244 + $0x48] sm:$0xf]
        %v3264 = vld [vmem:[%s3244 + $0x4c] sm:$0xf]
        %v3265 = vld [vmem:[%s3244 + $0x50] sm:$0xf]
        %v3266 = vld [vmem:[%s3244 + $0x54] sm:$0xf]
        %v3267 = vld [vmem:[%s3244 + $0x58] sm:$0xf]
        %v3268 = vld [vmem:[%s3244 + $0x5c] sm:$0xf]
        %v3269 = vld [vmem:[%s3244 + $0x60] sm:$0xf]
        %v3270 = vld [vmem:[%s3244 + $0x64] sm:$0xf]
        %v3271 = vld [vmem:[%s3244 + $0x68] sm:$0xf]
        %v3272 = vld [vmem:[%s3244 + $0x6c] sm:$0xf]
        %v3273 = vld [vmem:[%s3244 + $0x70] sm:$0xf]
        %v3274 = vld [vmem:[%s3244 + $0x74] sm:$0xf]
        %v3275 = vld [vmem:[%s3244 + $0x78] sm:$0xf]
        %v3276 = vld [vmem:[%s3244 + $0x7c] sm:$0xf]
        %v3277 = vld [vmem:[%s3244 + $0x80] sm:$0xf]
        %v3278 = vld [vmem:[%s3244 + $0x84] sm:$0xf]
        %v3279 = vld [vmem:[%s3244 + $0x88] sm:$0xf]
        %v3280 = vld [vmem:[%s3244 + $0x8c] sm:$0xf]
        %v3281 = vld [vmem:[%s3244 + $0x90] sm:$0xf]
        %v3282 = vld [vmem:[%s3244 + $0x94] sm:$0xf]
        %v3283 = vld [vmem:[%s3244 + $0x98] sm:$0xf]
        %v3284 = vld [vmem:[%s3244 + $0x9c] sm:$0xf]
        %v3285 = vld [vmem:[%s3244 + $0xa0] sm:$0xf]
        %v3286 = vld [vmem:[%s3244 + $0xa4] sm:$0xf]
        %v3287 = vld [vmem:[%s3244 + $0xa8] sm:$0xf]
        %v3288 = vld [vmem:[%s3244 + $0xac] sm:$0xf]
        %v3289 = vld [vmem:[%s3244 + $0xb0] sm:$0xf]
        %v3290 = vld [vmem:[%s3244 + $0xb4] sm:$0xf]
        %v3291 = vld [vmem:[%s3244 + $0xb8] sm:$0xf]
        %v3292 = vld [vmem:[%s3244 + $0xbc] sm:$0xf]
        %s3293 = scalar_lea.vmem %s4, 16
        %v3294 = vld [vmem:[%s3293] sm:$0xf]
        %v3295 = vld [vmem:[%s3293 + $0x4] sm:$0xf]
        %v3296 = vld [vmem:[%s3293 + $0x8] sm:$0xf]
        %v3297 = vld [vmem:[%s3293 + $0xc] sm:$0xf]
        %s3298 = scalar_lea.vmem %s5, 64
        %v3299 = vld [vmem:[%s3298] sm:$0xf]
        %v3300 = vld [vmem:[%s3298 + $0x4] sm:$0xf]
        %v3301 = vld [vmem:[%s3298 + $0x8] sm:$0xf]
        %v3302 = vld [vmem:[%s3298 + $0xc] sm:$0xf]
        %v3303 = vld [vmem:[%s3298 + $0x10] sm:$0xf]
        %v3304 = vld [vmem:[%s3298 + $0x14] sm:$0xf]
        %v3305 = vld [vmem:[%s3298 + $0x18] sm:$0xf]
        %v3306 = vld [vmem:[%s3298 + $0x1c] sm:$0xf]
        %v3307 = vld [vmem:[%s3298 + $0x20] sm:$0xf]
        %v3308 = vld [vmem:[%s3298 + $0x24] sm:$0xf]
        %v3309 = vld [vmem:[%s3298 + $0x28] sm:$0xf]
        %v3310 = vld [vmem:[%s3298 + $0x2c] sm:$0xf]
        %v3311 = vld [vmem:[%s3298 + $0x30] sm:$0xf]
        %v3312 = vld [vmem:[%s3298 + $0x34] sm:$0xf]
        %v3313 = vld [vmem:[%s3298 + $0x38] sm:$0xf]
        %v3314 = vld [vmem:[%s3298 + $0x3c] sm:$0xf]
        %s3315 = scalar_lea.vmem %s6, 128
        %v3316 = vld [vmem:[%s3315] sm:$0xf]
        %v3317 = vld [vmem:[%s3315 + $0x4] sm:$0xf]
        %v3318 = vld [vmem:[%s3315 + $0x8] sm:$0xf]
        %v3319 = vld [vmem:[%s3315 + $0xc] sm:$0xf]
        %v3320 = vld [vmem:[%s3315 + $0x10] sm:$0xf]
        %v3321 = vld [vmem:[%s3315 + $0x14] sm:$0xf]
        %v3322 = vld [vmem:[%s3315 + $0x18] sm:$0xf]
        %v3323 = vld [vmem:[%s3315 + $0x1c] sm:$0xf]
        %v3324 = vld [vmem:[%s3315 + $0x20] sm:$0xf]
        %v3325 = vld [vmem:[%s3315 + $0x24] sm:$0xf]
        %v3326 = vld [vmem:[%s3315 + $0x28] sm:$0xf]
        %v3327 = vld [vmem:[%s3315 + $0x2c] sm:$0xf]
        %v3328 = vld [vmem:[%s3315 + $0x30] sm:$0xf]
        %v3329 = vld [vmem:[%s3315 + $0x34] sm:$0xf]
        %v3330 = vld [vmem:[%s3315 + $0x38] sm:$0xf]
        %v3331 = vld [vmem:[%s3315 + $0x3c] sm:$0xf]
        %v3332 = vld [vmem:[%s3315 + $0x40] sm:$0xf]
        %v3333 = vld [vmem:[%s3315 + $0x44] sm:$0xf]
        %v3334 = vld [vmem:[%s3315 + $0x48] sm:$0xf]
        %v3335 = vld [vmem:[%s3315 + $0x4c] sm:$0xf]
        %v3336 = vld [vmem:[%s3315 + $0x50] sm:$0xf]
        %v3337 = vld [vmem:[%s3315 + $0x54] sm:$0xf]
        %v3338 = vld [vmem:[%s3315 + $0x58] sm:$0xf]
        %v3339 = vld [vmem:[%s3315 + $0x5c] sm:$0xf]
        %v3340 = vld [vmem:[%s3315 + $0x60] sm:$0xf]
        %v3341 = vld [vmem:[%s3315 + $0x64] sm:$0xf]
        %v3342 = vld [vmem:[%s3315 + $0x68] sm:$0xf]
        %v3343 = vld [vmem:[%s3315 + $0x6c] sm:$0xf]
        %v3344 = vld [vmem:[%s3315 + $0x70] sm:$0xf]
        %v3345 = vld [vmem:[%s3315 + $0x74] sm:$0xf]
        %v3346 = vld [vmem:[%s3315 + $0x78] sm:$0xf]
        %v3347 = vld [vmem:[%s3315 + $0x7c] sm:$0xf]
        %s3348 = scalar_lea.vmem %s7, 16
        %v3349 = vld [vmem:[%s3348] sm:$0xf]
        %v3350 = vld [vmem:[%s3348 + $0x4] sm:$0xf]
        %v3351 = vld [vmem:[%s3348 + $0x8] sm:$0xf]
        %v3352 = vld [vmem:[%s3348 + $0xc] sm:$0xf]
        %s3353 = scalar_lea.vmem %s8, 16
        %v3354 = vld [vmem:[%s3353] sm:$0xf]
        %v3355 = vld [vmem:[%s3353 + $0x4] sm:$0xf]
        %v3356 = vld [vmem:[%s3353 + $0x8] sm:$0xf]
        %v3357 = vld [vmem:[%s3353 + $0xc] sm:$0xf]
        %s3358 = scalar_lea.vmem %s9, 32
        %v3359 = vld [vmem:[%s3358] sm:$0xf]
        %v3360 = vld [vmem:[%s3358 + $0x4] sm:$0xf]
        %v3361 = vld [vmem:[%s3358 + $0x8] sm:$0xf]
        %v3362 = vld [vmem:[%s3358 + $0xc] sm:$0xf]
        %v3363 = vld [vmem:[%s3358 + $0x10] sm:$0xf]
        %v3364 = vld [vmem:[%s3358 + $0x14] sm:$0xf]
        %v3365 = vld [vmem:[%s3358 + $0x18] sm:$0xf]
        %v3366 = vld [vmem:[%s3358 + $0x1c] sm:$0xf]
        %s3367 = scalar_lea.vmem %s10, 8
        %v3368 = vld [vmem:[%s3367] sm:$0xff]
        %v3369 = vpack.c.bf16 %v3243, %v3243
        %v3374 = vunpack.c.l.b16 %v3245
        %v3375 = vunpack.c.l.b16 %v3246
        %v3376 = vunpack.c.l.b16 %v3247
        %v3377 = vunpack.c.l.b16 %v3248
        %v3378 = vpack.c.b16 %v3375, %v3374
        %v3379 = vpack.c.b16 %v3377, %v3376
        %v3383 = vsel %vm529, %v3369, 0
        %3385 = vmatprep.subr.bf16.mxu0 0
        %3386 = vmatpush1.bf16.msra.mxu0 0
        %3387 = vmatprep.subr.bf16.mxu0 0
        %3388 = vmatpush1.bf16.msra.mxu0 0
        %3389 = vmatprep.subr.bf16.mxu0 0
        %3390 = vmatpush1.bf16.msra.mxu0 0
        %3391 = vmatprep.subr.bf16.mxu0 0
        %3392 = vmatpush1.bf16.msra.mxu0 0
        %3393 = vmatprep.subr.bf16.mxu0 0
        %3394 = vmatpush1.bf16.msra.mxu0 0
        %3395 = vmatprep.subr.bf16.mxu0 0
        %3396 = vmatpush1.bf16.msra.mxu0 0
        %3397 = vmatprep.subr.bf16.mxu0 0
        %3398 = vmatpush1.bf16.msra.mxu0 %v3379
        %3399 = vmatprep.subr.bf16.mxu0 0
        %3400 = vmatpush1.bf16.msra.mxu0 %v3378
        %3401 = vmatprep.subr.bf16.mxu0 0
        %3402 = vmatpush2.bf16.msra.mxu0 0
        %3403 = vmatprep.subr.bf16.mxu0 0
        %3404 = vmatpush2.bf16.msra.mxu0 0
        %3405 = vmatprep.subr.bf16.mxu0 0
        %3406 = vmatpush2.bf16.msra.mxu0 0
        %3407 = vmatprep.subr.bf16.mxu0 0
        %3408 = vmatpush2.bf16.msra.mxu0 0
        %3409 = vmatprep.subr.bf16.mxu0 0
        %3410 = vmatpush2.bf16.msra.mxu0 0
        %3411 = vmatprep.subr.bf16.mxu0 0
        %3412 = vmatpush2.bf16.msra.mxu0 0
        %3413 = vmatprep.subr.bf16.mxu0 0
        %3414 = vmatpush2.bf16.msra.mxu0 0
        %3415 = vmatprep.subr.bf16.mxu0 0
        %3416 = vmatpush2.bf16.msra.mxu0 0
        %3417 = vmatprep.mubr.bf16.mxu0 0
        %3418 = vmatmul.mubr.bf16.gmra.mxu0 %v3383
        %v3419 = vpop.f32.mrf.mxu0
        %v3420 = vadd.f32 0.0, %v3419
        %v3421 = vpop.f32.mrf.mxu0
        %v3422 = vpop.f32.mrf.mxu0
        %v3423 = vpop.f32.mrf.mxu0
        %3424 = vdwg.mxu0
        %v3429 = vunpack.c.l.b16 %v3249
        %v3430 = vunpack.c.l.b16 %v3250
        %v3431 = vunpack.c.l.b16 %v3251
        %v3432 = vunpack.c.l.b16 %v3252
        %v3433 = vpack.c.b16 %v3430, %v3429
        %v3434 = vpack.c.b16 %v3432, %v3431
        %3437 = vmatprep.subr.bf16.mxu0 0
        %3438 = vmatpush1.bf16.msra.mxu0 0
        %3439 = vmatprep.subr.bf16.mxu0 0
        %3440 = vmatpush1.bf16.msra.mxu0 0
        %3441 = vmatprep.subr.bf16.mxu0 0
        %3442 = vmatpush1.bf16.msra.mxu0 0
        %3443 = vmatprep.subr.bf16.mxu0 0
        %3444 = vmatpush1.bf16.msra.mxu0 0
        %3445 = vmatprep.subr.bf16.mxu0 0
        %3446 = vmatpush1.bf16.msra.mxu0 0
        %3447 = vmatprep.subr.bf16.mxu0 0
        %3448 = vmatpush1.bf16.msra.mxu0 0
        %3449 = vmatprep.subr.bf16.mxu0 0
        %3450 = vmatpush1.bf16.msra.mxu0 %v3434
        %3451 = vmatprep.subr.bf16.mxu0 0
        %3452 = vmatpush1.bf16.msra.mxu0 %v3433
        %3453 = vmatprep.subr.bf16.mxu0 0
        %3454 = vmatpush2.bf16.msra.mxu0 0
        %3455 = vmatprep.subr.bf16.mxu0 0
        %3456 = vmatpush2.bf16.msra.mxu0 0
        %3457 = vmatprep.subr.bf16.mxu0 0
        %3458 = vmatpush2.bf16.msra.mxu0 0
        %3459 = vmatprep.subr.bf16.mxu0 0
        %3460 = vmatpush2.bf16.msra.mxu0 0
        %3461 = vmatprep.subr.bf16.mxu0 0
        %3462 = vmatpush2.bf16.msra.mxu0 0
        %3463 = vmatprep.subr.bf16.mxu0 0
        %3464 = vmatpush2.bf16.msra.mxu0 0
        %3465 = vmatprep.subr.bf16.mxu0 0
        %3466 = vmatpush2.bf16.msra.mxu0 0
        %3467 = vmatprep.subr.bf16.mxu0 0
        %3468 = vmatpush2.bf16.msra.mxu0 0
        %3469 = vmatprep.mubr.bf16.mxu0 0
        %3470 = vmatmul.mubr.bf16.gmra.mxu0 %v3383
        %v3471 = vpop.f32.mrf.mxu0
        %v3472 = vadd.f32 0.0, %v3471
        %v3473 = vpop.f32.mrf.mxu0
        %v3474 = vpop.f32.mrf.mxu0
        %v3475 = vpop.f32.mrf.mxu0
        %3476 = vdwg.mxu0
        %v3481 = vunpack.c.l.b16 %v3253
        %v3482 = vunpack.c.l.b16 %v3254
        %v3483 = vunpack.c.l.b16 %v3255
        %v3484 = vunpack.c.l.b16 %v3256
        %v3485 = vpack.c.b16 %v3482, %v3481
        %v3486 = vpack.c.b16 %v3484, %v3483
        %3489 = vmatprep.subr.bf16.mxu0 0
        %3490 = vmatpush1.bf16.msra.mxu0 0
        %3491 = vmatprep.subr.bf16.mxu0 0
        %3492 = vmatpush1.bf16.msra.mxu0 0
        %3493 = vmatprep.subr.bf16.mxu0 0
        %3494 = vmatpush1.bf16.msra.mxu0 0
        %3495 = vmatprep.subr.bf16.mxu0 0
        %3496 = vmatpush1.bf16.msra.mxu0 0
        %3497 = vmatprep.subr.bf16.mxu0 0
        %3498 = vmatpush1.bf16.msra.mxu0 0
        %3499 = vmatprep.subr.bf16.mxu0 0
        %3500 = vmatpush1.bf16.msra.mxu0 0
        %3501 = vmatprep.subr.bf16.mxu0 0
        %3502 = vmatpush1.bf16.msra.mxu0 %v3486
        %3503 = vmatprep.subr.bf16.mxu0 0
        %3504 = vmatpush1.bf16.msra.mxu0 %v3485
        %3505 = vmatprep.subr.bf16.mxu0 0
        %3506 = vmatpush2.bf16.msra.mxu0 0
        %3507 = vmatprep.subr.bf16.mxu0 0
        %3508 = vmatpush2.bf16.msra.mxu0 0
        %3509 = vmatprep.subr.bf16.mxu0 0
        %3510 = vmatpush2.bf16.msra.mxu0 0
        %3511 = vmatprep.subr.bf16.mxu0 0
        %3512 = vmatpush2.bf16.msra.mxu0 0
        %3513 = vmatprep.subr.bf16.mxu0 0
        %3514 = vmatpush2.bf16.msra.mxu0 0
        %3515 = vmatprep.subr.bf16.mxu0 0
        %3516 = vmatpush2.bf16.msra.mxu0 0
        %3517 = vmatprep.subr.bf16.mxu0 0
        %3518 = vmatpush2.bf16.msra.mxu0 0
        %3519 = vmatprep.subr.bf16.mxu0 0
        %3520 = vmatpush2.bf16.msra.mxu0 0
        %3521 = vmatprep.mubr.bf16.mxu0 0
        %3522 = vmatmul.mubr.bf16.gmra.mxu0 %v3383
        %v3523 = vpop.f32.mrf.mxu0
        %v3524 = vadd.f32 0.0, %v3523
        %v3525 = vpop.f32.mrf.mxu0
        %v3526 = vpop.f32.mrf.mxu0
        %v3527 = vpop.f32.mrf.mxu0
        %3528 = vdwg.mxu0
        %v3533 = vunpack.c.l.b16 %v3257
        %v3534 = vunpack.c.l.b16 %v3258
        %v3535 = vunpack.c.l.b16 %v3259
        %v3536 = vunpack.c.l.b16 %v3260
        %v3537 = vpack.c.b16 %v3534, %v3533
        %v3538 = vpack.c.b16 %v3536, %v3535
        %3541 = vmatprep.subr.bf16.mxu0 0
        %3542 = vmatpush1.bf16.msra.mxu0 0
        %3543 = vmatprep.subr.bf16.mxu0 0
        %3544 = vmatpush1.bf16.msra.mxu0 0
        %3545 = vmatprep.subr.bf16.mxu0 0
        %3546 = vmatpush1.bf16.msra.mxu0 0
        %3547 = vmatprep.subr.bf16.mxu0 0
        %3548 = vmatpush1.bf16.msra.mxu0 0
        %3549 = vmatprep.subr.bf16.mxu0 0
        %3550 = vmatpush1.bf16.msra.mxu0 0
        %3551 = vmatprep.subr.bf16.mxu0 0
        %3552 = vmatpush1.bf16.msra.mxu0 0
        %3553 = vmatprep.subr.bf16.mxu0 0
        %3554 = vmatpush1.bf16.msra.mxu0 %v3538
        %3555 = vmatprep.subr.bf16.mxu0 0
        %3556 = vmatpush1.bf16.msra.mxu0 %v3537
        %3557 = vmatprep.subr.bf16.mxu0 0
        %3558 = vmatpush2.bf16.msra.mxu0 0
        %3559 = vmatprep.subr.bf16.mxu0 0
        %3560 = vmatpush2.bf16.msra.mxu0 0
        %3561 = vmatprep.subr.bf16.mxu0 0
        %3562 = vmatpush2.bf16.msra.mxu0 0
        %3563 = vmatprep.subr.bf16.mxu0 0
        %3564 = vmatpush2.bf16.msra.mxu0 0
        %3565 = vmatprep.subr.bf16.mxu0 0
        %3566 = vmatpush2.bf16.msra.mxu0 0
        %3567 = vmatprep.subr.bf16.mxu0 0
        %3568 = vmatpush2.bf16.msra.mxu0 0
        %3569 = vmatprep.subr.bf16.mxu0 0
        %3570 = vmatpush2.bf16.msra.mxu0 0
        %3571 = vmatprep.subr.bf16.mxu0 0
        %3572 = vmatpush2.bf16.msra.mxu0 0
        %3573 = vmatprep.mubr.bf16.mxu0 0
        %3574 = vmatmul.mubr.bf16.gmra.mxu0 %v3383
        %v3575 = vpop.f32.mrf.mxu0
        %v3576 = vadd.f32 0.0, %v3575
        %v3577 = vpop.f32.mrf.mxu0
        %v3578 = vpop.f32.mrf.mxu0
        %v3579 = vpop.f32.mrf.mxu0
        %3580 = vdwg.mxu0
        %v3585 = vunpack.c.l.b16 %v3261
        %v3586 = vunpack.c.l.b16 %v3262
        %v3587 = vunpack.c.l.b16 %v3263
        %v3588 = vunpack.c.l.b16 %v3264
        %v3589 = vpack.c.b16 %v3586, %v3585
        %v3590 = vpack.c.b16 %v3588, %v3587
        %3593 = vmatprep.subr.bf16.mxu0 0
        %3594 = vmatpush1.bf16.msra.mxu0 0
        %3595 = vmatprep.subr.bf16.mxu0 0
        %3596 = vmatpush1.bf16.msra.mxu0 0
        %3597 = vmatprep.subr.bf16.mxu0 0
        %3598 = vmatpush1.bf16.msra.mxu0 0
        %3599 = vmatprep.subr.bf16.mxu0 0
        %3600 = vmatpush1.bf16.msra.mxu0 0
        %3601 = vmatprep.subr.bf16.mxu0 0
        %3602 = vmatpush1.bf16.msra.mxu0 0
        %3603 = vmatprep.subr.bf16.mxu0 0
        %3604 = vmatpush1.bf16.msra.mxu0 0
        %3605 = vmatprep.subr.bf16.mxu0 0
        %3606 = vmatpush1.bf16.msra.mxu0 %v3590
        %3607 = vmatprep.subr.bf16.mxu0 0
        %3608 = vmatpush1.bf16.msra.mxu0 %v3589
        %3609 = vmatprep.subr.bf16.mxu0 0
        %3610 = vmatpush2.bf16.msra.mxu0 0
        %3611 = vmatprep.subr.bf16.mxu0 0
        %3612 = vmatpush2.bf16.msra.mxu0 0
        %3613 = vmatprep.subr.bf16.mxu0 0
        %3614 = vmatpush2.bf16.msra.mxu0 0
        %3615 = vmatprep.subr.bf16.mxu0 0
        %3616 = vmatpush2.bf16.msra.mxu0 0
        %3617 = vmatprep.subr.bf16.mxu0 0
        %3618 = vmatpush2.bf16.msra.mxu0 0
        %3619 = vmatprep.subr.bf16.mxu0 0
        %3620 = vmatpush2.bf16.msra.mxu0 0
        %3621 = vmatprep.subr.bf16.mxu0 0
        %3622 = vmatpush2.bf16.msra.mxu0 0
        %3623 = vmatprep.subr.bf16.mxu0 0
        %3624 = vmatpush2.bf16.msra.mxu0 0
        %3625 = vmatprep.mubr.bf16.mxu0 0
        %3626 = vmatmul.mubr.bf16.gmra.mxu0 %v3383
        %v3627 = vpop.f32.mrf.mxu0
        %v3628 = vadd.f32 0.0, %v3627
        %v3629 = vpop.f32.mrf.mxu0
        %v3630 = vpop.f32.mrf.mxu0
        %v3631 = vpop.f32.mrf.mxu0
        %3632 = vdwg.mxu0
        %v3637 = vunpack.c.l.b16 %v3265
        %v3638 = vunpack.c.l.b16 %v3266
        %v3639 = vunpack.c.l.b16 %v3267
        %v3640 = vunpack.c.l.b16 %v3268
        %v3641 = vpack.c.b16 %v3638, %v3637
        %v3642 = vpack.c.b16 %v3640, %v3639
        %3645 = vmatprep.subr.bf16.mxu0 0
        %3646 = vmatpush1.bf16.msra.mxu0 0
        %3647 = vmatprep.subr.bf16.mxu0 0
        %3648 = vmatpush1.bf16.msra.mxu0 0
        %3649 = vmatprep.subr.bf16.mxu0 0
        %3650 = vmatpush1.bf16.msra.mxu0 0
        %3651 = vmatprep.subr.bf16.mxu0 0
        %3652 = vmatpush1.bf16.msra.mxu0 0
        %3653 = vmatprep.subr.bf16.mxu0 0
        %3654 = vmatpush1.bf16.msra.mxu0 0
        %3655 = vmatprep.subr.bf16.mxu0 0
        %3656 = vmatpush1.bf16.msra.mxu0 0
        %3657 = vmatprep.subr.bf16.mxu0 0
        %3658 = vmatpush1.bf16.msra.mxu0 %v3642
        %3659 = vmatprep.subr.bf16.mxu0 0
        %3660 = vmatpush1.bf16.msra.mxu0 %v3641
        %3661 = vmatprep.subr.bf16.mxu0 0
        %3662 = vmatpush2.bf16.msra.mxu0 0
        %3663 = vmatprep.subr.bf16.mxu0 0
        %3664 = vmatpush2.bf16.msra.mxu0 0
        %3665 = vmatprep.subr.bf16.mxu0 0
        %3666 = vmatpush2.bf16.msra.mxu0 0
        %3667 = vmatprep.subr.bf16.mxu0 0
        %3668 = vmatpush2.bf16.msra.mxu0 0
        %3669 = vmatprep.subr.bf16.mxu0 0
        %3670 = vmatpush2.bf16.msra.mxu0 0
        %3671 = vmatprep.subr.bf16.mxu0 0
        %3672 = vmatpush2.bf16.msra.mxu0 0
        %3673 = vmatprep.subr.bf16.mxu0 0
        %3674 = vmatpush2.bf16.msra.mxu0 0
        %3675 = vmatprep.subr.bf16.mxu0 0
        %3676 = vmatpush2.bf16.msra.mxu0 0
        %3677 = vmatprep.mubr.bf16.mxu0 0
        %3678 = vmatmul.mubr.bf16.gmra.mxu0 %v3383
        %v3679 = vpop.f32.mrf.mxu0
        %v3680 = vadd.f32 0.0, %v3679
        %v3681 = vpop.f32.mrf.mxu0
        %v3682 = vpop.f32.mrf.mxu0
        %v3683 = vpop.f32.mrf.mxu0
        %3684 = vdwg.mxu0
        %v3689 = vunpack.c.l.b16 %v3269
        %v3690 = vunpack.c.l.b16 %v3270
        %v3691 = vunpack.c.l.b16 %v3271
        %v3692 = vunpack.c.l.b16 %v3272
        %v3693 = vpack.c.b16 %v3690, %v3689
        %v3694 = vpack.c.b16 %v3692, %v3691
        %3697 = vmatprep.subr.bf16.mxu0 0
        %3698 = vmatpush1.bf16.msra.mxu0 0
        %3699 = vmatprep.subr.bf16.mxu0 0
        %3700 = vmatpush1.bf16.msra.mxu0 0
        %3701 = vmatprep.subr.bf16.mxu0 0
        %3702 = vmatpush1.bf16.msra.mxu0 0
        %3703 = vmatprep.subr.bf16.mxu0 0
        %3704 = vmatpush1.bf16.msra.mxu0 0
        %3705 = vmatprep.subr.bf16.mxu0 0
        %3706 = vmatpush1.bf16.msra.mxu0 0
        %3707 = vmatprep.subr.bf16.mxu0 0
        %3708 = vmatpush1.bf16.msra.mxu0 0
        %3709 = vmatprep.subr.bf16.mxu0 0
        %3710 = vmatpush1.bf16.msra.mxu0 %v3694
        %3711 = vmatprep.subr.bf16.mxu0 0
        %3712 = vmatpush1.bf16.msra.mxu0 %v3693
        %3713 = vmatprep.subr.bf16.mxu0 0
        %3714 = vmatpush2.bf16.msra.mxu0 0
        %3715 = vmatprep.subr.bf16.mxu0 0
        %3716 = vmatpush2.bf16.msra.mxu0 0
        %3717 = vmatprep.subr.bf16.mxu0 0
        %3718 = vmatpush2.bf16.msra.mxu0 0
        %3719 = vmatprep.subr.bf16.mxu0 0
        %3720 = vmatpush2.bf16.msra.mxu0 0
        %3721 = vmatprep.subr.bf16.mxu0 0
        %3722 = vmatpush2.bf16.msra.mxu0 0
        %3723 = vmatprep.subr.bf16.mxu0 0
        %3724 = vmatpush2.bf16.msra.mxu0 0
        %3725 = vmatprep.subr.bf16.mxu0 0
        %3726 = vmatpush2.bf16.msra.mxu0 0
        %3727 = vmatprep.subr.bf16.mxu0 0
        %3728 = vmatpush2.bf16.msra.mxu0 0
        %3729 = vmatprep.mubr.bf16.mxu0 0
        %3730 = vmatmul.mubr.bf16.gmra.mxu0 %v3383
        %v3731 = vpop.f32.mrf.mxu0
        %v3732 = vadd.f32 0.0, %v3731
        %v3733 = vpop.f32.mrf.mxu0
        %v3734 = vpop.f32.mrf.mxu0
        %v3735 = vpop.f32.mrf.mxu0
        %3736 = vdwg.mxu0
        %v3741 = vunpack.c.l.b16 %v3273
        %v3742 = vunpack.c.l.b16 %v3274
        %v3743 = vunpack.c.l.b16 %v3275
        %v3744 = vunpack.c.l.b16 %v3276
        %v3745 = vpack.c.b16 %v3742, %v3741
        %v3746 = vpack.c.b16 %v3744, %v3743
        %3749 = vmatprep.subr.bf16.mxu0 0
        %3750 = vmatpush1.bf16.msra.mxu0 0
        %3751 = vmatprep.subr.bf16.mxu0 0
        %3752 = vmatpush1.bf16.msra.mxu0 0
        %3753 = vmatprep.subr.bf16.mxu0 0
        %3754 = vmatpush1.bf16.msra.mxu0 0
        %3755 = vmatprep.subr.bf16.mxu0 0
        %3756 = vmatpush1.bf16.msra.mxu0 0
        %3757 = vmatprep.subr.bf16.mxu0 0
        %3758 = vmatpush1.bf16.msra.mxu0 0
        %3759 = vmatprep.subr.bf16.mxu0 0
        %3760 = vmatpush1.bf16.msra.mxu0 0
        %3761 = vmatprep.subr.bf16.mxu0 0
        %3762 = vmatpush1.bf16.msra.mxu0 %v3746
        %3763 = vmatprep.subr.bf16.mxu0 0
        %3764 = vmatpush1.bf16.msra.mxu0 %v3745
        %3765 = vmatprep.subr.bf16.mxu0 0
        %3766 = vmatpush2.bf16.msra.mxu0 0
        %3767 = vmatprep.subr.bf16.mxu0 0
        %3768 = vmatpush2.bf16.msra.mxu0 0
        %3769 = vmatprep.subr.bf16.mxu0 0
        %3770 = vmatpush2.bf16.msra.mxu0 0
        %3771 = vmatprep.subr.bf16.mxu0 0
        %3772 = vmatpush2.bf16.msra.mxu0 0
        %3773 = vmatprep.subr.bf16.mxu0 0
        %3774 = vmatpush2.bf16.msra.mxu0 0
        %3775 = vmatprep.subr.bf16.mxu0 0
        %3776 = vmatpush2.bf16.msra.mxu0 0
        %3777 = vmatprep.subr.bf16.mxu0 0
        %3778 = vmatpush2.bf16.msra.mxu0 0
        %3779 = vmatprep.subr.bf16.mxu0 0
        %3780 = vmatpush2.bf16.msra.mxu0 0
        %3781 = vmatprep.mubr.bf16.mxu0 0
        %3782 = vmatmul.mubr.bf16.gmra.mxu0 %v3383
        %v3783 = vpop.f32.mrf.mxu0
        %v3784 = vadd.f32 0.0, %v3783
        %v3785 = vpop.f32.mrf.mxu0
        %v3786 = vpop.f32.mrf.mxu0
        %v3787 = vpop.f32.mrf.mxu0
        %3788 = vdwg.mxu0
        %v3793 = vunpack.c.l.b16 %v3277
        %v3794 = vunpack.c.l.b16 %v3278
        %v3795 = vunpack.c.l.b16 %v3279
        %v3796 = vunpack.c.l.b16 %v3280
        %v3797 = vpack.c.b16 %v3794, %v3793
        %v3798 = vpack.c.b16 %v3796, %v3795
        %3801 = vmatprep.subr.bf16.mxu0 0
        %3802 = vmatpush1.bf16.msra.mxu0 0
        %3803 = vmatprep.subr.bf16.mxu0 0
        %3804 = vmatpush1.bf16.msra.mxu0 0
        %3805 = vmatprep.subr.bf16.mxu0 0
        %3806 = vmatpush1.bf16.msra.mxu0 0
        %3807 = vmatprep.subr.bf16.mxu0 0
        %3808 = vmatpush1.bf16.msra.mxu0 0
        %3809 = vmatprep.subr.bf16.mxu0 0
        %3810 = vmatpush1.bf16.msra.mxu0 0
        %3811 = vmatprep.subr.bf16.mxu0 0
        %3812 = vmatpush1.bf16.msra.mxu0 0
        %3813 = vmatprep.subr.bf16.mxu0 0
        %3814 = vmatpush1.bf16.msra.mxu0 %v3798
        %3815 = vmatprep.subr.bf16.mxu0 0
        %3816 = vmatpush1.bf16.msra.mxu0 %v3797
        %3817 = vmatprep.subr.bf16.mxu0 0
        %3818 = vmatpush2.bf16.msra.mxu0 0
        %3819 = vmatprep.subr.bf16.mxu0 0
        %3820 = vmatpush2.bf16.msra.mxu0 0
        %3821 = vmatprep.subr.bf16.mxu0 0
        %3822 = vmatpush2.bf16.msra.mxu0 0
        %3823 = vmatprep.subr.bf16.mxu0 0
        %3824 = vmatpush2.bf16.msra.mxu0 0
        %3825 = vmatprep.subr.bf16.mxu0 0
        %3826 = vmatpush2.bf16.msra.mxu0 0
        %3827 = vmatprep.subr.bf16.mxu0 0
        %3828 = vmatpush2.bf16.msra.mxu0 0
        %3829 = vmatprep.subr.bf16.mxu0 0
        %3830 = vmatpush2.bf16.msra.mxu0 0
        %3831 = vmatprep.subr.bf16.mxu0 0
        %3832 = vmatpush2.bf16.msra.mxu0 0
        %3833 = vmatprep.mubr.bf16.mxu0 0
        %3834 = vmatmul.mubr.bf16.gmra.mxu0 %v3383
        %v3835 = vpop.f32.mrf.mxu0
        %v3836 = vadd.f32 0.0, %v3835
        %v3837 = vpop.f32.mrf.mxu0
        %v3838 = vpop.f32.mrf.mxu0
        %v3839 = vpop.f32.mrf.mxu0
        %3840 = vdwg.mxu0
        %v3845 = vunpack.c.l.b16 %v3281
        %v3846 = vunpack.c.l.b16 %v3282
        %v3847 = vunpack.c.l.b16 %v3283
        %v3848 = vunpack.c.l.b16 %v3284
        %v3849 = vpack.c.b16 %v3846, %v3845
        %v3850 = vpack.c.b16 %v3848, %v3847
        %3853 = vmatprep.subr.bf16.mxu0 0
        %3854 = vmatpush1.bf16.msra.mxu0 0
        %3855 = vmatprep.subr.bf16.mxu0 0
        %3856 = vmatpush1.bf16.msra.mxu0 0
        %3857 = vmatprep.subr.bf16.mxu0 0
        %3858 = vmatpush1.bf16.msra.mxu0 0
        %3859 = vmatprep.subr.bf16.mxu0 0
        %3860 = vmatpush1.bf16.msra.mxu0 0
        %3861 = vmatprep.subr.bf16.mxu0 0
        %3862 = vmatpush1.bf16.msra.mxu0 0
        %3863 = vmatprep.subr.bf16.mxu0 0
        %3864 = vmatpush1.bf16.msra.mxu0 0
        %3865 = vmatprep.subr.bf16.mxu0 0
        %3866 = vmatpush1.bf16.msra.mxu0 %v3850
        %3867 = vmatprep.subr.bf16.mxu0 0
        %3868 = vmatpush1.bf16.msra.mxu0 %v3849
        %3869 = vmatprep.subr.bf16.mxu0 0
        %3870 = vmatpush2.bf16.msra.mxu0 0
        %3871 = vmatprep.subr.bf16.mxu0 0
        %3872 = vmatpush2.bf16.msra.mxu0 0
        %3873 = vmatprep.subr.bf16.mxu0 0
        %3874 = vmatpush2.bf16.msra.mxu0 0
        %3875 = vmatprep.subr.bf16.mxu0 0
        %3876 = vmatpush2.bf16.msra.mxu0 0
        %3877 = vmatprep.subr.bf16.mxu0 0
        %3878 = vmatpush2.bf16.msra.mxu0 0
        %3879 = vmatprep.subr.bf16.mxu0 0
        %3880 = vmatpush2.bf16.msra.mxu0 0
        %3881 = vmatprep.subr.bf16.mxu0 0
        %3882 = vmatpush2.bf16.msra.mxu0 0
        %3883 = vmatprep.subr.bf16.mxu0 0
        %3884 = vmatpush2.bf16.msra.mxu0 0
        %3885 = vmatprep.mubr.bf16.mxu0 0
        %3886 = vmatmul.mubr.bf16.gmra.mxu0 %v3383
        %v3887 = vpop.f32.mrf.mxu0
        %v3888 = vadd.f32 0.0, %v3887
        %v3889 = vpop.f32.mrf.mxu0
        %v3890 = vpop.f32.mrf.mxu0
        %v3891 = vpop.f32.mrf.mxu0
        %3892 = vdwg.mxu0
        %v3897 = vunpack.c.l.b16 %v3285
        %v3898 = vunpack.c.l.b16 %v3286
        %v3899 = vunpack.c.l.b16 %v3287
        %v3900 = vunpack.c.l.b16 %v3288
        %v3901 = vpack.c.b16 %v3898, %v3897
        %v3902 = vpack.c.b16 %v3900, %v3899
        %3905 = vmatprep.subr.bf16.mxu0 0
        %3906 = vmatpush1.bf16.msra.mxu0 0
        %3907 = vmatprep.subr.bf16.mxu0 0
        %3908 = vmatpush1.bf16.msra.mxu0 0
        %3909 = vmatprep.subr.bf16.mxu0 0
        %3910 = vmatpush1.bf16.msra.mxu0 0
        %3911 = vmatprep.subr.bf16.mxu0 0
        %3912 = vmatpush1.bf16.msra.mxu0 0
        %3913 = vmatprep.subr.bf16.mxu0 0
        %3914 = vmatpush1.bf16.msra.mxu0 0
        %3915 = vmatprep.subr.bf16.mxu0 0
        %3916 = vmatpush1.bf16.msra.mxu0 0
        %3917 = vmatprep.subr.bf16.mxu0 0
        %3918 = vmatpush1.bf16.msra.mxu0 %v3902
        %3919 = vmatprep.subr.bf16.mxu0 0
        %3920 = vmatpush1.bf16.msra.mxu0 %v3901
        %3921 = vmatprep.subr.bf16.mxu0 0
        %3922 = vmatpush2.bf16.msra.mxu0 0
        %3923 = vmatprep.subr.bf16.mxu0 0
        %3924 = vmatpush2.bf16.msra.mxu0 0
        %3925 = vmatprep.subr.bf16.mxu0 0
        %3926 = vmatpush2.bf16.msra.mxu0 0
        %3927 = vmatprep.subr.bf16.mxu0 0
        %3928 = vmatpush2.bf16.msra.mxu0 0
        %3929 = vmatprep.subr.bf16.mxu0 0
        %3930 = vmatpush2.bf16.msra.mxu0 0
        %3931 = vmatprep.subr.bf16.mxu0 0
        %3932 = vmatpush2.bf16.msra.mxu0 0
        %3933 = vmatprep.subr.bf16.mxu0 0
        %3934 = vmatpush2.bf16.msra.mxu0 0
        %3935 = vmatprep.subr.bf16.mxu0 0
        %3936 = vmatpush2.bf16.msra.mxu0 0
        %3937 = vmatprep.mubr.bf16.mxu0 0
        %3938 = vmatmul.mubr.bf16.gmra.mxu0 %v3383
        %v3939 = vpop.f32.mrf.mxu0
        %v3940 = vadd.f32 0.0, %v3939
        %v3941 = vpop.f32.mrf.mxu0
        %v3942 = vpop.f32.mrf.mxu0
        %v3943 = vpop.f32.mrf.mxu0
        %3944 = vdwg.mxu0
        %v3949 = vunpack.c.l.b16 %v3289
        %v3950 = vunpack.c.l.b16 %v3290
        %v3951 = vunpack.c.l.b16 %v3291
        %v3952 = vunpack.c.l.b16 %v3292
        %v3953 = vpack.c.b16 %v3950, %v3949
        %v3954 = vpack.c.b16 %v3952, %v3951
        %3957 = vmatprep.subr.bf16.mxu0 0
        %3958 = vmatpush1.bf16.msra.mxu0 0
        %3959 = vmatprep.subr.bf16.mxu0 0
        %3960 = vmatpush1.bf16.msra.mxu0 0
        %3961 = vmatprep.subr.bf16.mxu0 0
        %3962 = vmatpush1.bf16.msra.mxu0 0
        %3963 = vmatprep.subr.bf16.mxu0 0
        %3964 = vmatpush1.bf16.msra.mxu0 0
        %3965 = vmatprep.subr.bf16.mxu0 0
        %3966 = vmatpush1.bf16.msra.mxu0 0
        %3967 = vmatprep.subr.bf16.mxu0 0
        %3968 = vmatpush1.bf16.msra.mxu0 0
        %3969 = vmatprep.subr.bf16.mxu0 0
        %3970 = vmatpush1.bf16.msra.mxu0 %v3954
        %3971 = vmatprep.subr.bf16.mxu0 0
        %3972 = vmatpush1.bf16.msra.mxu0 %v3953
        %3973 = vmatprep.subr.bf16.mxu0 0
        %3974 = vmatpush2.bf16.msra.mxu0 0
        %3975 = vmatprep.subr.bf16.mxu0 0
        %3976 = vmatpush2.bf16.msra.mxu0 0
        %3977 = vmatprep.subr.bf16.mxu0 0
        %3978 = vmatpush2.bf16.msra.mxu0 0
        %3979 = vmatprep.subr.bf16.mxu0 0
        %3980 = vmatpush2.bf16.msra.mxu0 0
        %3981 = vmatprep.subr.bf16.mxu0 0
        %3982 = vmatpush2.bf16.msra.mxu0 0
        %3983 = vmatprep.subr.bf16.mxu0 0
        %3984 = vmatpush2.bf16.msra.mxu0 0
        %3985 = vmatprep.subr.bf16.mxu0 0
        %3986 = vmatpush2.bf16.msra.mxu0 0
        %3987 = vmatprep.subr.bf16.mxu0 0
        %3988 = vmatpush2.bf16.msra.mxu0 0
        %3989 = vmatprep.mubr.bf16.mxu0 0
        %3990 = vmatmul.mubr.bf16.gmra.mxu0 %v3383
        %v3991 = vpop.f32.mrf.mxu0
        %v3992 = vadd.f32 0.0, %v3991
        %v3993 = vpop.f32.mrf.mxu0
        %v3994 = vpop.f32.mrf.mxu0
        %v3995 = vpop.f32.mrf.mxu0
        %3996 = vdwg.mxu0
        %v3997 = vmul.f32 %v3420, 0.35355338
        %v3998 = vmul.f32 %v3472, 0.35355338
        %v3999 = vmul.f32 %v3524, 0.35355338
        %v4000 = vmul.f32 %v3576, 0.35355338
        %v4001 = vpack.c.bf16 %v3997, %v3997
        %v4002 = vpack.c.bf16 %v3998, %v3998
        %v4003 = vpack.c.bf16 %v3999, %v3999
        %v4004 = vpack.c.bf16 %v4000, %v4000
        %v4005 = vpack.c.bf16 %v3628, %v3628
        %v4006 = vpack.c.bf16 %v3680, %v3680
        %v4007 = vpack.c.bf16 %v3732, %v3732
        %v4008 = vpack.c.bf16 %v3784, %v3784
        %v4009 = vpack.c.bf16 %v3836, %v3836
        %v4010 = vpack.c.bf16 %v3888, %v3888
        %v4011 = vpack.c.bf16 %v3940, %v3940
        %v4012 = vpack.c.bf16 %v3992, %v3992
        %v4014 = vsel %vm1161, %v4001, 0
        %v4017 = vsel %vm1161, %v4005, 0
        %4019 = vmatprep.subr.bf16.mxu0 0
        %4020 = vmatpush1.bf16.xpose.msra.mxu0 0
        %4021 = vmatprep.subr.bf16.mxu0 0
        %4022 = vmatpush1.bf16.xpose.msra.mxu0 0
        %4023 = vmatprep.subr.bf16.mxu0 0
        %4024 = vmatpush1.bf16.xpose.msra.mxu0 0
        %4025 = vmatprep.subr.bf16.mxu0 0
        %4026 = vmatpush1.bf16.xpose.msra.mxu0 0
        %4027 = vmatprep.subr.bf16.mxu0 0
        %4028 = vmatpush1.bf16.xpose.msra.mxu0 0
        %4029 = vmatprep.subr.bf16.mxu0 0
        %4030 = vmatpush1.bf16.xpose.msra.mxu0 0
        %4031 = vmatprep.subr.bf16.mxu0 0
        %4032 = vmatpush1.bf16.xpose.msra.mxu0 0
        %4033 = vmatprep.subr.bf16.mxu0 0
        %4034 = vmatpush1.bf16.xpose.msra.mxu0 %v4017
        %4035 = vmatprep.subr.bf16.mxu0 0
        %4036 = vmatpush2.bf16.xpose.msra.mxu0 0
        %4037 = vmatprep.subr.bf16.mxu0 0
        %4038 = vmatpush2.bf16.xpose.msra.mxu0 0
        %4039 = vmatprep.subr.bf16.mxu0 0
        %4040 = vmatpush2.bf16.xpose.msra.mxu0 0
        %4041 = vmatprep.subr.bf16.mxu0 0
        %4042 = vmatpush2.bf16.xpose.msra.mxu0 0
        %4043 = vmatprep.subr.bf16.mxu0 0
        %4044 = vmatpush2.bf16.xpose.msra.mxu0 0
        %4045 = vmatprep.subr.bf16.mxu0 0
        %4046 = vmatpush2.bf16.xpose.msra.mxu0 0
        %4047 = vmatprep.subr.bf16.mxu0 0
        %4048 = vmatpush2.bf16.xpose.msra.mxu0 0
        %4049 = vmatprep.subr.bf16.mxu0 0
        %4050 = vmatpush2.bf16.xpose.msra.mxu0 0
        %4051 = vmatprep.mubr.bf16.mxu0 0
        %4052 = vmatmul.mubr.bf16.gmra.mxu0 %v4014
        %v4053 = vpop.f32.mrf.mxu0
        %v4054 = vadd.f32 0.0, %v4053
        %v4055 = vpop.f32.mrf.mxu0
        %v4056 = vpop.f32.mrf.mxu0
        %v4057 = vpop.f32.mrf.mxu0
        %4058 = vdwg.mxu0
        %v4060 = vsel %vm1161, %v4002, 0
        %v4063 = vsel %vm1161, %v4006, 0
        %4065 = vmatprep.subr.bf16.mxu0 0
        %4066 = vmatpush1.bf16.xpose.msra.mxu0 0
        %4067 = vmatprep.subr.bf16.mxu0 0
        %4068 = vmatpush1.bf16.xpose.msra.mxu0 0
        %4069 = vmatprep.subr.bf16.mxu0 0
        %4070 = vmatpush1.bf16.xpose.msra.mxu0 0
        %4071 = vmatprep.subr.bf16.mxu0 0
        %4072 = vmatpush1.bf16.xpose.msra.mxu0 0
        %4073 = vmatprep.subr.bf16.mxu0 0
        %4074 = vmatpush1.bf16.xpose.msra.mxu0 0
        %4075 = vmatprep.subr.bf16.mxu0 0
        %4076 = vmatpush1.bf16.xpose.msra.mxu0 0
        %4077 = vmatprep.subr.bf16.mxu0 0
        %4078 = vmatpush1.bf16.xpose.msra.mxu0 0
        %4079 = vmatprep.subr.bf16.mxu0 0
        %4080 = vmatpush1.bf16.xpose.msra.mxu0 %v4063
        %4081 = vmatprep.subr.bf16.mxu0 0
        %4082 = vmatpush2.bf16.xpose.msra.mxu0 0
        %4083 = vmatprep.subr.bf16.mxu0 0
        %4084 = vmatpush2.bf16.xpose.msra.mxu0 0
        %4085 = vmatprep.subr.bf16.mxu0 0
        %4086 = vmatpush2.bf16.xpose.msra.mxu0 0
        %4087 = vmatprep.subr.bf16.mxu0 0
        %4088 = vmatpush2.bf16.xpose.msra.mxu0 0
        %4089 = vmatprep.subr.bf16.mxu0 0
        %4090 = vmatpush2.bf16.xpose.msra.mxu0 0
        %4091 = vmatprep.subr.bf16.mxu0 0
        %4092 = vmatpush2.bf16.xpose.msra.mxu0 0
        %4093 = vmatprep.subr.bf16.mxu0 0
        %4094 = vmatpush2.bf16.xpose.msra.mxu0 0
        %4095 = vmatprep.subr.bf16.mxu0 0
        %4096 = vmatpush2.bf16.xpose.msra.mxu0 0
        %4097 = vmatprep.mubr.bf16.mxu0 0
        %4098 = vmatmul.mubr.bf16.gmra.mxu0 %v4060
        %v4099 = vpop.f32.mrf.mxu0
        %v4100 = vadd.f32 0.0, %v4099
        %v4101 = vpop.f32.mrf.mxu0
        %v4102 = vpop.f32.mrf.mxu0
        %v4103 = vpop.f32.mrf.mxu0
        %4104 = vdwg.mxu0
        %v4106 = vsel %vm1161, %v4003, 0
        %v4109 = vsel %vm1161, %v4007, 0
        %4111 = vmatprep.subr.bf16.mxu0 0
        %4112 = vmatpush1.bf16.xpose.msra.mxu0 0
        %4113 = vmatprep.subr.bf16.mxu0 0
        %4114 = vmatpush1.bf16.xpose.msra.mxu0 0
        %4115 = vmatprep.subr.bf16.mxu0 0
        %4116 = vmatpush1.bf16.xpose.msra.mxu0 0
        %4117 = vmatprep.subr.bf16.mxu0 0
        %4118 = vmatpush1.bf16.xpose.msra.mxu0 0
        %4119 = vmatprep.subr.bf16.mxu0 0
        %4120 = vmatpush1.bf16.xpose.msra.mxu0 0
        %4121 = vmatprep.subr.bf16.mxu0 0
        %4122 = vmatpush1.bf16.xpose.msra.mxu0 0
        %4123 = vmatprep.subr.bf16.mxu0 0
        %4124 = vmatpush1.bf16.xpose.msra.mxu0 0
        %4125 = vmatprep.subr.bf16.mxu0 0
        %4126 = vmatpush1.bf16.xpose.msra.mxu0 %v4109
        %4127 = vmatprep.subr.bf16.mxu0 0
        %4128 = vmatpush2.bf16.xpose.msra.mxu0 0
        %4129 = vmatprep.subr.bf16.mxu0 0
        %4130 = vmatpush2.bf16.xpose.msra.mxu0 0
        %4131 = vmatprep.subr.bf16.mxu0 0
        %4132 = vmatpush2.bf16.xpose.msra.mxu0 0
        %4133 = vmatprep.subr.bf16.mxu0 0
        %4134 = vmatpush2.bf16.xpose.msra.mxu0 0
        %4135 = vmatprep.subr.bf16.mxu0 0
        %4136 = vmatpush2.bf16.xpose.msra.mxu0 0
        %4137 = vmatprep.subr.bf16.mxu0 0
        %4138 = vmatpush2.bf16.xpose.msra.mxu0 0
        %4139 = vmatprep.subr.bf16.mxu0 0
        %4140 = vmatpush2.bf16.xpose.msra.mxu0 0
        %4141 = vmatprep.subr.bf16.mxu0 0
        %4142 = vmatpush2.bf16.xpose.msra.mxu0 0
        %4143 = vmatprep.mubr.bf16.mxu0 0
        %4144 = vmatmul.mubr.bf16.gmra.mxu0 %v4106
        %v4145 = vpop.f32.mrf.mxu0
        %v4146 = vadd.f32 0.0, %v4145
        %v4147 = vpop.f32.mrf.mxu0
        %v4148 = vpop.f32.mrf.mxu0
        %v4149 = vpop.f32.mrf.mxu0
        %4150 = vdwg.mxu0
        %v4152 = vsel %vm1161, %v4004, 0
        %v4155 = vsel %vm1161, %v4008, 0
        %4157 = vmatprep.subr.bf16.mxu0 0
        %4158 = vmatpush1.bf16.xpose.msra.mxu0 0
        %4159 = vmatprep.subr.bf16.mxu0 0
        %4160 = vmatpush1.bf16.xpose.msra.mxu0 0
        %4161 = vmatprep.subr.bf16.mxu0 0
        %4162 = vmatpush1.bf16.xpose.msra.mxu0 0
        %4163 = vmatprep.subr.bf16.mxu0 0
        %4164 = vmatpush1.bf16.xpose.msra.mxu0 0
        %4165 = vmatprep.subr.bf16.mxu0 0
        %4166 = vmatpush1.bf16.xpose.msra.mxu0 0
        %4167 = vmatprep.subr.bf16.mxu0 0
        %4168 = vmatpush1.bf16.xpose.msra.mxu0 0
        %4169 = vmatprep.subr.bf16.mxu0 0
        %4170 = vmatpush1.bf16.xpose.msra.mxu0 0
        %4171 = vmatprep.subr.bf16.mxu0 0
        %4172 = vmatpush1.bf16.xpose.msra.mxu0 %v4155
        %4173 = vmatprep.subr.bf16.mxu0 0
        %4174 = vmatpush2.bf16.xpose.msra.mxu0 0
        %4175 = vmatprep.subr.bf16.mxu0 0
        %4176 = vmatpush2.bf16.xpose.msra.mxu0 0
        %4177 = vmatprep.subr.bf16.mxu0 0
        %4178 = vmatpush2.bf16.xpose.msra.mxu0 0
        %4179 = vmatprep.subr.bf16.mxu0 0
        %4180 = vmatpush2.bf16.xpose.msra.mxu0 0
        %4181 = vmatprep.subr.bf16.mxu0 0
        %4182 = vmatpush2.bf16.xpose.msra.mxu0 0
        %4183 = vmatprep.subr.bf16.mxu0 0
        %4184 = vmatpush2.bf16.xpose.msra.mxu0 0
        %4185 = vmatprep.subr.bf16.mxu0 0
        %4186 = vmatpush2.bf16.xpose.msra.mxu0 0
        %4187 = vmatprep.subr.bf16.mxu0 0
        %4188 = vmatpush2.bf16.xpose.msra.mxu0 0
        %4189 = vmatprep.mubr.bf16.mxu0 0
        %4190 = vmatmul.mubr.bf16.gmra.mxu0 %v4152
        %v4191 = vpop.f32.mrf.mxu0
        %v4192 = vadd.f32 0.0, %v4191
        %v4193 = vpop.f32.mrf.mxu0
        %v4194 = vpop.f32.mrf.mxu0
        %v4195 = vpop.f32.mrf.mxu0
        %4196 = vdwg.mxu0
        %v4197 = vsel %vm393, %v4054, 1e-06
        %v4198 = vsel %vm393, %v4100, 1e-06
        %v4199 = vsel %vm393, %v4146, 1e-06
        %v4200 = vsel %vm393, %v4192, 1e-06
        %v4201 = vsel %vm1161, %v4197, -inf
        %4202 = vmax.xlane.f32.xlu0 %v4201
        %v4203 = vpop.xlane.xlu0 %4202
        %v4204 = vsel %vm1161, %v4198, -inf
        %4205 = vmax.xlane.f32.xlu0 %v4204
        %v4206 = vpop.xlane.xlu0 %4205
        %v4207 = vsel %vm1161, %v4199, -inf
        %4208 = vmax.xlane.f32.xlu0 %v4207
        %v4209 = vpop.xlane.xlu0 %4208
        %v4210 = vsel %vm1161, %v4200, -inf
        %4211 = vmax.xlane.f32.xlu0 %v4210
        %v4212 = vpop.xlane.xlu0 %4211
        %v4213 = vsub.f32 %v4197, %v4203
        %v4214 = vsub.f32 %v4198, %v4206
        %v4215 = vsub.f32 %v4199, %v4209
        %v4216 = vsub.f32 %v4200, %v4212
        %v4217 = vmul.f32 %v4213, 1.442695
        %v4218 = vpow.pop %v4217
        %v4219 = vmul.f32 %v4214, 1.442695
        %v4220 = vpow.pop %v4219
        %v4221 = vmul.f32 %v4215, 1.442695
        %v4222 = vpow.pop %v4221
        %v4223 = vmul.f32 %v4216, 1.442695
        %v4224 = vpow.pop %v4223
        %v4225 = vsel %vm1161, %v4218, 0.0
        %4226 = vadd.xlane.f32.xlu0 %v4225
        %v4227 = vpop.xlane.xlu0 %4226
        %v4228 = vsel %vm1161, %v4220, 0.0
        %4229 = vadd.xlane.f32.xlu0 %v4228
        %v4230 = vpop.xlane.xlu0 %4229
        %v4231 = vsel %vm1161, %v4222, 0.0
        %4232 = vadd.xlane.f32.xlu0 %v4231
        %v4233 = vpop.xlane.xlu0 %4232
        %v4234 = vsel %vm1161, %v4224, 0.0
        %4235 = vadd.xlane.f32.xlu0 %v4234
        %v4236 = vpop.xlane.xlu0 %4235
        %v4237 = vrcp.pop %v4227
        %v4238 = vrcp.pop %v4230
        %v4239 = vrcp.pop %v4233
        %v4240 = vrcp.pop %v4236
        %v4241 = vmul.f32 %v4218, %v4237
        %v4242 = vmul.f32 %v4220, %v4238
        %v4243 = vmul.f32 %v4222, %v4239
        %v4244 = vmul.f32 %v4224, %v4240
        %v4245 = vpack.c.bf16 %v4241, %v4241
        %v4246 = vpack.c.bf16 %v4242, %v4242
        %v4247 = vpack.c.bf16 %v4243, %v4243
        %v4248 = vpack.c.bf16 %v4244, %v4244
        %v4250 = vsel %vm1161, %v4245, 0
        %v4253 = vsel %vm1401, %v4009, 0
        %4255 = vmatprep.subr.bf16.mxu0 0
        %4256 = vmatpush1.bf16.msra.mxu0 0
        %4257 = vmatprep.subr.bf16.mxu0 0
        %4258 = vmatpush1.bf16.msra.mxu0 0
        %4259 = vmatprep.subr.bf16.mxu0 0
        %4260 = vmatpush1.bf16.msra.mxu0 0
        %4261 = vmatprep.subr.bf16.mxu0 0
        %4262 = vmatpush1.bf16.msra.mxu0 0
        %4263 = vmatprep.subr.bf16.mxu0 0
        %4264 = vmatpush1.bf16.msra.mxu0 0
        %4265 = vmatprep.subr.bf16.mxu0 0
        %4266 = vmatpush1.bf16.msra.mxu0 0
        %4267 = vmatprep.subr.bf16.mxu0 0
        %4268 = vmatpush1.bf16.msra.mxu0 0
        %4269 = vmatprep.subr.bf16.mxu0 0
        %4270 = vmatpush1.bf16.msra.mxu0 %v4253
        %4271 = vmatprep.subr.bf16.mxu0 0
        %4272 = vmatpush2.bf16.msra.mxu0 0
        %4273 = vmatprep.subr.bf16.mxu0 0
        %4274 = vmatpush2.bf16.msra.mxu0 0
        %4275 = vmatprep.subr.bf16.mxu0 0
        %4276 = vmatpush2.bf16.msra.mxu0 0
        %4277 = vmatprep.subr.bf16.mxu0 0
        %4278 = vmatpush2.bf16.msra.mxu0 0
        %4279 = vmatprep.subr.bf16.mxu0 0
        %4280 = vmatpush2.bf16.msra.mxu0 0
        %4281 = vmatprep.subr.bf16.mxu0 0
        %4282 = vmatpush2.bf16.msra.mxu0 0
        %4283 = vmatprep.subr.bf16.mxu0 0
        %4284 = vmatpush2.bf16.msra.mxu0 0
        %4285 = vmatprep.subr.bf16.mxu0 0
        %4286 = vmatpush2.bf16.msra.mxu0 0
        %4287 = vmatprep.mubr.bf16.mxu0 0
        %4288 = vmatmul.mubr.bf16.gmra.mxu0 %v4250
        %v4289 = vpop.f32.mrf.mxu0
        %v4290 = vadd.f32 0.0, %v4289
        %v4291 = vpop.f32.mrf.mxu0
        %v4292 = vpop.f32.mrf.mxu0
        %v4293 = vpop.f32.mrf.mxu0
        %4294 = vdwg.mxu0
        %v4296 = vsel %vm1161, %v4246, 0
        %v4299 = vsel %vm1401, %v4010, 0
        %4301 = vmatprep.subr.bf16.mxu0 0
        %4302 = vmatpush1.bf16.msra.mxu0 0
        %4303 = vmatprep.subr.bf16.mxu0 0
        %4304 = vmatpush1.bf16.msra.mxu0 0
        %4305 = vmatprep.subr.bf16.mxu0 0
        %4306 = vmatpush1.bf16.msra.mxu0 0
        %4307 = vmatprep.subr.bf16.mxu0 0
        %4308 = vmatpush1.bf16.msra.mxu0 0
        %4309 = vmatprep.subr.bf16.mxu0 0
        %4310 = vmatpush1.bf16.msra.mxu0 0
        %4311 = vmatprep.subr.bf16.mxu0 0
        %4312 = vmatpush1.bf16.msra.mxu0 0
        %4313 = vmatprep.subr.bf16.mxu0 0
        %4314 = vmatpush1.bf16.msra.mxu0 0
        %4315 = vmatprep.subr.bf16.mxu0 0
        %4316 = vmatpush1.bf16.msra.mxu0 %v4299
        %4317 = vmatprep.subr.bf16.mxu0 0
        %4318 = vmatpush2.bf16.msra.mxu0 0
        %4319 = vmatprep.subr.bf16.mxu0 0
        %4320 = vmatpush2.bf16.msra.mxu0 0
        %4321 = vmatprep.subr.bf16.mxu0 0
        %4322 = vmatpush2.bf16.msra.mxu0 0
        %4323 = vmatprep.subr.bf16.mxu0 0
        %4324 = vmatpush2.bf16.msra.mxu0 0
        %4325 = vmatprep.subr.bf16.mxu0 0
        %4326 = vmatpush2.bf16.msra.mxu0 0
        %4327 = vmatprep.subr.bf16.mxu0 0
        %4328 = vmatpush2.bf16.msra.mxu0 0
        %4329 = vmatprep.subr.bf16.mxu0 0
        %4330 = vmatpush2.bf16.msra.mxu0 0
        %4331 = vmatprep.subr.bf16.mxu0 0
        %4332 = vmatpush2.bf16.msra.mxu0 0
        %4333 = vmatprep.mubr.bf16.mxu0 0
        %4334 = vmatmul.mubr.bf16.gmra.mxu0 %v4296
        %v4335 = vpop.f32.mrf.mxu0
        %v4336 = vadd.f32 0.0, %v4335
        %v4337 = vpop.f32.mrf.mxu0
        %v4338 = vpop.f32.mrf.mxu0
        %v4339 = vpop.f32.mrf.mxu0
        %4340 = vdwg.mxu0
        %v4342 = vsel %vm1161, %v4247, 0
        %v4345 = vsel %vm1401, %v4011, 0
        %4347 = vmatprep.subr.bf16.mxu0 0
        %4348 = vmatpush1.bf16.msra.mxu0 0
        %4349 = vmatprep.subr.bf16.mxu0 0
        %4350 = vmatpush1.bf16.msra.mxu0 0
        %4351 = vmatprep.subr.bf16.mxu0 0
        %4352 = vmatpush1.bf16.msra.mxu0 0
        %4353 = vmatprep.subr.bf16.mxu0 0
        %4354 = vmatpush1.bf16.msra.mxu0 0
        %4355 = vmatprep.subr.bf16.mxu0 0
        %4356 = vmatpush1.bf16.msra.mxu0 0
        %4357 = vmatprep.subr.bf16.mxu0 0
        %4358 = vmatpush1.bf16.msra.mxu0 0
        %4359 = vmatprep.subr.bf16.mxu0 0
        %4360 = vmatpush1.bf16.msra.mxu0 0
        %4361 = vmatprep.subr.bf16.mxu0 0
        %4362 = vmatpush1.bf16.msra.mxu0 %v4345
        %4363 = vmatprep.subr.bf16.mxu0 0
        %4364 = vmatpush2.bf16.msra.mxu0 0
        %4365 = vmatprep.subr.bf16.mxu0 0
        %4366 = vmatpush2.bf16.msra.mxu0 0
        %4367 = vmatprep.subr.bf16.mxu0 0
        %4368 = vmatpush2.bf16.msra.mxu0 0
        %4369 = vmatprep.subr.bf16.mxu0 0
        %4370 = vmatpush2.bf16.msra.mxu0 0
        %4371 = vmatprep.subr.bf16.mxu0 0
        %4372 = vmatpush2.bf16.msra.mxu0 0
        %4373 = vmatprep.subr.bf16.mxu0 0
        %4374 = vmatpush2.bf16.msra.mxu0 0
        %4375 = vmatprep.subr.bf16.mxu0 0
        %4376 = vmatpush2.bf16.msra.mxu0 0
        %4377 = vmatprep.subr.bf16.mxu0 0
        %4378 = vmatpush2.bf16.msra.mxu0 0
        %4379 = vmatprep.mubr.bf16.mxu0 0
        %4380 = vmatmul.mubr.bf16.gmra.mxu0 %v4342
        %v4381 = vpop.f32.mrf.mxu0
        %v4382 = vadd.f32 0.0, %v4381
        %v4383 = vpop.f32.mrf.mxu0
        %v4384 = vpop.f32.mrf.mxu0
        %v4385 = vpop.f32.mrf.mxu0
        %4386 = vdwg.mxu0
        %v4388 = vsel %vm1161, %v4248, 0
        %v4391 = vsel %vm1401, %v4012, 0
        %4393 = vmatprep.subr.bf16.mxu0 0
        %4394 = vmatpush1.bf16.msra.mxu0 0
        %4395 = vmatprep.subr.bf16.mxu0 0
        %4396 = vmatpush1.bf16.msra.mxu0 0
        %4397 = vmatprep.subr.bf16.mxu0 0
        %4398 = vmatpush1.bf16.msra.mxu0 0
        %4399 = vmatprep.subr.bf16.mxu0 0
        %4400 = vmatpush1.bf16.msra.mxu0 0
        %4401 = vmatprep.subr.bf16.mxu0 0
        %4402 = vmatpush1.bf16.msra.mxu0 0
        %4403 = vmatprep.subr.bf16.mxu0 0
        %4404 = vmatpush1.bf16.msra.mxu0 0
        %4405 = vmatprep.subr.bf16.mxu0 0
        %4406 = vmatpush1.bf16.msra.mxu0 0
        %4407 = vmatprep.subr.bf16.mxu0 0
        %4408 = vmatpush1.bf16.msra.mxu0 %v4391
        %4409 = vmatprep.subr.bf16.mxu0 0
        %4410 = vmatpush2.bf16.msra.mxu0 0
        %4411 = vmatprep.subr.bf16.mxu0 0
        %4412 = vmatpush2.bf16.msra.mxu0 0
        %4413 = vmatprep.subr.bf16.mxu0 0
        %4414 = vmatpush2.bf16.msra.mxu0 0
        %4415 = vmatprep.subr.bf16.mxu0 0
        %4416 = vmatpush2.bf16.msra.mxu0 0
        %4417 = vmatprep.subr.bf16.mxu0 0
        %4418 = vmatpush2.bf16.msra.mxu0 0
        %4419 = vmatprep.subr.bf16.mxu0 0
        %4420 = vmatpush2.bf16.msra.mxu0 0
        %4421 = vmatprep.subr.bf16.mxu0 0
        %4422 = vmatpush2.bf16.msra.mxu0 0
        %4423 = vmatprep.subr.bf16.mxu0 0
        %4424 = vmatpush2.bf16.msra.mxu0 0
        %4425 = vmatprep.mubr.bf16.mxu0 0
        %4426 = vmatmul.mubr.bf16.gmra.mxu0 %v4388
        %v4427 = vpop.f32.mrf.mxu0
        %v4428 = vadd.f32 0.0, %v4427
        %v4429 = vpop.f32.mrf.mxu0
        %v4430 = vpop.f32.mrf.mxu0
        %v4431 = vpop.f32.mrf.mxu0
        %4432 = vdwg.mxu0
        %v4433 = vpack.c.bf16 %v4290, %v4290
        %v4434 = vpack.c.bf16 %v4336, %v4336
        %v4435 = vpack.c.bf16 %v4382, %v4382
        %v4436 = vpack.c.bf16 %v4428, %v4428
        %v4438 = vsel %vm1161, %v4433, 0
        %v4441 = vsel %vm1401, %v3294, 0
        %4443 = vmatprep.subr.bf16.mxu0 0
        %4444 = vmatpush1.bf16.msra.mxu0 0
        %4445 = vmatprep.subr.bf16.mxu0 0
        %4446 = vmatpush1.bf16.msra.mxu0 0
        %4447 = vmatprep.subr.bf16.mxu0 0
        %4448 = vmatpush1.bf16.msra.mxu0 0
        %4449 = vmatprep.subr.bf16.mxu0 0
        %4450 = vmatpush1.bf16.msra.mxu0 0
        %4451 = vmatprep.subr.bf16.mxu0 0
        %4452 = vmatpush1.bf16.msra.mxu0 0
        %4453 = vmatprep.subr.bf16.mxu0 0
        %4454 = vmatpush1.bf16.msra.mxu0 0
        %4455 = vmatprep.subr.bf16.mxu0 0
        %4456 = vmatpush1.bf16.msra.mxu0 0
        %4457 = vmatprep.subr.bf16.mxu0 0
        %4458 = vmatpush1.bf16.msra.mxu0 %v4441
        %4459 = vmatprep.subr.bf16.mxu0 0
        %4460 = vmatpush2.bf16.msra.mxu0 0
        %4461 = vmatprep.subr.bf16.mxu0 0
        %4462 = vmatpush2.bf16.msra.mxu0 0
        %4463 = vmatprep.subr.bf16.mxu0 0
        %4464 = vmatpush2.bf16.msra.mxu0 0
        %4465 = vmatprep.subr.bf16.mxu0 0
        %4466 = vmatpush2.bf16.msra.mxu0 0
        %4467 = vmatprep.subr.bf16.mxu0 0
        %4468 = vmatpush2.bf16.msra.mxu0 0
        %4469 = vmatprep.subr.bf16.mxu0 0
        %4470 = vmatpush2.bf16.msra.mxu0 0
        %4471 = vmatprep.subr.bf16.mxu0 0
        %4472 = vmatpush2.bf16.msra.mxu0 0
        %4473 = vmatprep.subr.bf16.mxu0 0
        %4474 = vmatpush2.bf16.msra.mxu0 0
        %4475 = vmatprep.mubr.bf16.mxu0 0
        %4476 = vmatmul.mubr.bf16.gmra.mxu0 %v4438
        %v4477 = vpop.f32.mrf.mxu0
        %v4478 = vadd.f32 0.0, %v4477
        %v4479 = vpop.f32.mrf.mxu0
        %v4480 = vpop.f32.mrf.mxu0
        %v4481 = vpop.f32.mrf.mxu0
        %4482 = vdwg.mxu0
        %v4484 = vsel %vm1161, %v4434, 0
        %v4487 = vsel %vm1401, %v3295, 0
        %4489 = vmatprep.subr.bf16.mxu0 0
        %4490 = vmatpush1.bf16.msra.mxu0 0
        %4491 = vmatprep.subr.bf16.mxu0 0
        %4492 = vmatpush1.bf16.msra.mxu0 0
        %4493 = vmatprep.subr.bf16.mxu0 0
        %4494 = vmatpush1.bf16.msra.mxu0 0
        %4495 = vmatprep.subr.bf16.mxu0 0
        %4496 = vmatpush1.bf16.msra.mxu0 0
        %4497 = vmatprep.subr.bf16.mxu0 0
        %4498 = vmatpush1.bf16.msra.mxu0 0
        %4499 = vmatprep.subr.bf16.mxu0 0
        %4500 = vmatpush1.bf16.msra.mxu0 0
        %4501 = vmatprep.subr.bf16.mxu0 0
        %4502 = vmatpush1.bf16.msra.mxu0 0
        %4503 = vmatprep.subr.bf16.mxu0 0
        %4504 = vmatpush1.bf16.msra.mxu0 %v4487
        %4505 = vmatprep.subr.bf16.mxu0 0
        %4506 = vmatpush2.bf16.msra.mxu0 0
        %4507 = vmatprep.subr.bf16.mxu0 0
        %4508 = vmatpush2.bf16.msra.mxu0 0
        %4509 = vmatprep.subr.bf16.mxu0 0
        %4510 = vmatpush2.bf16.msra.mxu0 0
        %4511 = vmatprep.subr.bf16.mxu0 0
        %4512 = vmatpush2.bf16.msra.mxu0 0
        %4513 = vmatprep.subr.bf16.mxu0 0
        %4514 = vmatpush2.bf16.msra.mxu0 0
        %4515 = vmatprep.subr.bf16.mxu0 0
        %4516 = vmatpush2.bf16.msra.mxu0 0
        %4517 = vmatprep.subr.bf16.mxu0 0
        %4518 = vmatpush2.bf16.msra.mxu0 0
        %4519 = vmatprep.subr.bf16.mxu0 0
        %4520 = vmatpush2.bf16.msra.mxu0 0
        %4521 = vmatprep.mubr.bf16.mxu0 0
        %4522 = vmatmul.mubr.bf16.gmra.mxu0 %v4484
        %v4523 = vpop.f32.mrf.mxu0
        %v4524 = vadd.f32 0.0, %v4523
        %v4525 = vpop.f32.mrf.mxu0
        %v4526 = vpop.f32.mrf.mxu0
        %v4527 = vpop.f32.mrf.mxu0
        %4528 = vdwg.mxu0
        %v4530 = vsel %vm1161, %v4435, 0
        %v4533 = vsel %vm1401, %v3296, 0
        %4535 = vmatprep.subr.bf16.mxu0 0
        %4536 = vmatpush1.bf16.msra.mxu0 0
        %4537 = vmatprep.subr.bf16.mxu0 0
        %4538 = vmatpush1.bf16.msra.mxu0 0
        %4539 = vmatprep.subr.bf16.mxu0 0
        %4540 = vmatpush1.bf16.msra.mxu0 0
        %4541 = vmatprep.subr.bf16.mxu0 0
        %4542 = vmatpush1.bf16.msra.mxu0 0
        %4543 = vmatprep.subr.bf16.mxu0 0
        %4544 = vmatpush1.bf16.msra.mxu0 0
        %4545 = vmatprep.subr.bf16.mxu0 0
        %4546 = vmatpush1.bf16.msra.mxu0 0
        %4547 = vmatprep.subr.bf16.mxu0 0
        %4548 = vmatpush1.bf16.msra.mxu0 0
        %4549 = vmatprep.subr.bf16.mxu0 0
        %4550 = vmatpush1.bf16.msra.mxu0 %v4533
        %4551 = vmatprep.subr.bf16.mxu0 0
        %4552 = vmatpush2.bf16.msra.mxu0 0
        %4553 = vmatprep.subr.bf16.mxu0 0
        %4554 = vmatpush2.bf16.msra.mxu0 0
        %4555 = vmatprep.subr.bf16.mxu0 0
        %4556 = vmatpush2.bf16.msra.mxu0 0
        %4557 = vmatprep.subr.bf16.mxu0 0
        %4558 = vmatpush2.bf16.msra.mxu0 0
        %4559 = vmatprep.subr.bf16.mxu0 0
        %4560 = vmatpush2.bf16.msra.mxu0 0
        %4561 = vmatprep.subr.bf16.mxu0 0
        %4562 = vmatpush2.bf16.msra.mxu0 0
        %4563 = vmatprep.subr.bf16.mxu0 0
        %4564 = vmatpush2.bf16.msra.mxu0 0
        %4565 = vmatprep.subr.bf16.mxu0 0
        %4566 = vmatpush2.bf16.msra.mxu0 0
        %4567 = vmatprep.mubr.bf16.mxu0 0
        %4568 = vmatmul.mubr.bf16.gmra.mxu0 %v4530
        %v4569 = vpop.f32.mrf.mxu0
        %v4570 = vadd.f32 0.0, %v4569
        %v4571 = vpop.f32.mrf.mxu0
        %v4572 = vpop.f32.mrf.mxu0
        %v4573 = vpop.f32.mrf.mxu0
        %4574 = vdwg.mxu0
        %v4576 = vsel %vm1161, %v4436, 0
        %v4579 = vsel %vm1401, %v3297, 0
        %4581 = vmatprep.subr.bf16.mxu0 0
        %4582 = vmatpush1.bf16.msra.mxu0 0
        %4583 = vmatprep.subr.bf16.mxu0 0
        %4584 = vmatpush1.bf16.msra.mxu0 0
        %4585 = vmatprep.subr.bf16.mxu0 0
        %4586 = vmatpush1.bf16.msra.mxu0 0
        %4587 = vmatprep.subr.bf16.mxu0 0
        %4588 = vmatpush1.bf16.msra.mxu0 0
        %4589 = vmatprep.subr.bf16.mxu0 0
        %4590 = vmatpush1.bf16.msra.mxu0 0
        %4591 = vmatprep.subr.bf16.mxu0 0
        %4592 = vmatpush1.bf16.msra.mxu0 0
        %4593 = vmatprep.subr.bf16.mxu0 0
        %4594 = vmatpush1.bf16.msra.mxu0 0
        %4595 = vmatprep.subr.bf16.mxu0 0
        %4596 = vmatpush1.bf16.msra.mxu0 %v4579
        %4597 = vmatprep.subr.bf16.mxu0 0
        %4598 = vmatpush2.bf16.msra.mxu0 0
        %4599 = vmatprep.subr.bf16.mxu0 0
        %4600 = vmatpush2.bf16.msra.mxu0 0
        %4601 = vmatprep.subr.bf16.mxu0 0
        %4602 = vmatpush2.bf16.msra.mxu0 0
        %4603 = vmatprep.subr.bf16.mxu0 0
        %4604 = vmatpush2.bf16.msra.mxu0 0
        %4605 = vmatprep.subr.bf16.mxu0 0
        %4606 = vmatpush2.bf16.msra.mxu0 0
        %4607 = vmatprep.subr.bf16.mxu0 0
        %4608 = vmatpush2.bf16.msra.mxu0 0
        %4609 = vmatprep.subr.bf16.mxu0 0
        %4610 = vmatpush2.bf16.msra.mxu0 0
        %4611 = vmatprep.subr.bf16.mxu0 0
        %4612 = vmatpush2.bf16.msra.mxu0 0
        %4613 = vmatprep.mubr.bf16.mxu0 0
        %4614 = vmatmul.mubr.bf16.gmra.mxu0 %v4576
        %v4615 = vpop.f32.mrf.mxu0
        %v4616 = vadd.f32 0.0, %v4615
        %v4617 = vpop.f32.mrf.mxu0
        %v4618 = vpop.f32.mrf.mxu0
        %v4619 = vpop.f32.mrf.mxu0
        %4620 = vdwg.mxu0
        %v4621 = vsel %vm529, %v4478, 0.0
        %v4622 = vsel %vm529, %v4524, 0.0
        %v4623 = vadd.f32 %v4621, %v4622
        %v4624 = vsel %vm529, %v4570, 0.0
        %v4625 = vadd.f32 %v4623, %v4624
        %v4626 = vsel %vm529, %v4616, 0.0
        %v4627 = vadd.f32 %v4625, %v4626
        %v4628 = vadd.f32 %v4627, %v3243
        %v4629 = vsel %vm529, %v4628, 0.0
        %4630 = vadd.xlane.f32.xlu0 %v4629
        %v4631 = vpop.xlane.xlu0 %4630
        %v4632 = vmul.f32 %v4631, %v1782
        %v4633 = vsub.f32 %v4628, %v4632
        %v4634 = vmul.f32 %v4633, %v4633
        %v4635 = vsel %vm529, %v4634, 0.0
        %4636 = vadd.xlane.f32.xlu0 %v4635
        %v4637 = vpop.xlane.xlu0 %4636
        %v4638 = vmul.f32 %v4637, %v1782
        %v4639 = vadd.f32 %v4638, 1e-12
        %v4640 = vrsqrt.pop %v4639
        %v4641 = vmul.f32 %v4633, %v4640
        %v4642 = vlaneseq
        %v4643 = vshrl.u32 %v4642, 7
        %v4644 = vsub.s32 0, %v4643
        %v4645 = vrot.slane %v3368, %v4644
        %v4646 = vmul.f32 %v4645, %v4641
        %v4647 = vlaneseq
        %v4648 = vshrl.u32 %v4647, 7
        %v4649 = vsub.s32 1, %v4648
        %v4650 = vrot.slane %v3368, %v4649
        %v4651 = vadd.f32 %v4646, %v4650
        %v4652 = vpack.c.bf16 %v4651, %v4651
        %v4657 = vunpack.c.l.b16 %v3299
        %v4658 = vunpack.c.l.b16 %v3300
        %v4659 = vunpack.c.l.b16 %v3301
        %v4660 = vunpack.c.l.b16 %v3302
        %v4661 = vpack.c.b16 %v4658, %v4657
        %v4662 = vpack.c.b16 %v4660, %v4659
        %v4666 = vsel %vm529, %v4652, 0
        %4668 = vmatprep.subr.bf16.mxu0 0
        %4669 = vmatpush1.bf16.msra.mxu0 0
        %4670 = vmatprep.subr.bf16.mxu0 0
        %4671 = vmatpush1.bf16.msra.mxu0 0
        %4672 = vmatprep.subr.bf16.mxu0 0
        %4673 = vmatpush1.bf16.msra.mxu0 0
        %4674 = vmatprep.subr.bf16.mxu0 0
        %4675 = vmatpush1.bf16.msra.mxu0 0
        %4676 = vmatprep.subr.bf16.mxu0 0
        %4677 = vmatpush1.bf16.msra.mxu0 0
        %4678 = vmatprep.subr.bf16.mxu0 0
        %4679 = vmatpush1.bf16.msra.mxu0 0
        %4680 = vmatprep.subr.bf16.mxu0 0
        %4681 = vmatpush1.bf16.msra.mxu0 %v4662
        %4682 = vmatprep.subr.bf16.mxu0 0
        %4683 = vmatpush1.bf16.msra.mxu0 %v4661
        %4684 = vmatprep.subr.bf16.mxu0 0
        %4685 = vmatpush2.bf16.msra.mxu0 0
        %4686 = vmatprep.subr.bf16.mxu0 0
        %4687 = vmatpush2.bf16.msra.mxu0 0
        %4688 = vmatprep.subr.bf16.mxu0 0
        %4689 = vmatpush2.bf16.msra.mxu0 0
        %4690 = vmatprep.subr.bf16.mxu0 0
        %4691 = vmatpush2.bf16.msra.mxu0 0
        %4692 = vmatprep.subr.bf16.mxu0 0
        %4693 = vmatpush2.bf16.msra.mxu0 0
        %4694 = vmatprep.subr.bf16.mxu0 0
        %4695 = vmatpush2.bf16.msra.mxu0 0
        %4696 = vmatprep.subr.bf16.mxu0 0
        %4697 = vmatpush2.bf16.msra.mxu0 0
        %4698 = vmatprep.subr.bf16.mxu0 0
        %4699 = vmatpush2.bf16.msra.mxu0 0
        %4700 = vmatprep.mubr.bf16.mxu0 0
        %4701 = vmatmul.mubr.bf16.gmra.mxu0 %v4666
        %v4702 = vpop.f32.mrf.mxu0
        %v4703 = vadd.f32 0.0, %v4702
        %v4704 = vpop.f32.mrf.mxu0
        %v4705 = vpop.f32.mrf.mxu0
        %v4706 = vpop.f32.mrf.mxu0
        %4707 = vdwg.mxu0
        %v4712 = vunpack.c.l.b16 %v3303
        %v4713 = vunpack.c.l.b16 %v3304
        %v4714 = vunpack.c.l.b16 %v3305
        %v4715 = vunpack.c.l.b16 %v3306
        %v4716 = vpack.c.b16 %v4713, %v4712
        %v4717 = vpack.c.b16 %v4715, %v4714
        %4720 = vmatprep.subr.bf16.mxu0 0
        %4721 = vmatpush1.bf16.msra.mxu0 0
        %4722 = vmatprep.subr.bf16.mxu0 0
        %4723 = vmatpush1.bf16.msra.mxu0 0
        %4724 = vmatprep.subr.bf16.mxu0 0
        %4725 = vmatpush1.bf16.msra.mxu0 0
        %4726 = vmatprep.subr.bf16.mxu0 0
        %4727 = vmatpush1.bf16.msra.mxu0 0
        %4728 = vmatprep.subr.bf16.mxu0 0
        %4729 = vmatpush1.bf16.msra.mxu0 0
        %4730 = vmatprep.subr.bf16.mxu0 0
        %4731 = vmatpush1.bf16.msra.mxu0 0
        %4732 = vmatprep.subr.bf16.mxu0 0
        %4733 = vmatpush1.bf16.msra.mxu0 %v4717
        %4734 = vmatprep.subr.bf16.mxu0 0
        %4735 = vmatpush1.bf16.msra.mxu0 %v4716
        %4736 = vmatprep.subr.bf16.mxu0 0
        %4737 = vmatpush2.bf16.msra.mxu0 0
        %4738 = vmatprep.subr.bf16.mxu0 0
        %4739 = vmatpush2.bf16.msra.mxu0 0
        %4740 = vmatprep.subr.bf16.mxu0 0
        %4741 = vmatpush2.bf16.msra.mxu0 0
        %4742 = vmatprep.subr.bf16.mxu0 0
        %4743 = vmatpush2.bf16.msra.mxu0 0
        %4744 = vmatprep.subr.bf16.mxu0 0
        %4745 = vmatpush2.bf16.msra.mxu0 0
        %4746 = vmatprep.subr.bf16.mxu0 0
        %4747 = vmatpush2.bf16.msra.mxu0 0
        %4748 = vmatprep.subr.bf16.mxu0 0
        %4749 = vmatpush2.bf16.msra.mxu0 0
        %4750 = vmatprep.subr.bf16.mxu0 0
        %4751 = vmatpush2.bf16.msra.mxu0 0
        %4752 = vmatprep.mubr.bf16.mxu0 0
        %4753 = vmatmul.mubr.bf16.gmra.mxu0 %v4666
        %v4754 = vpop.f32.mrf.mxu0
        %v4755 = vadd.f32 0.0, %v4754
        %v4756 = vpop.f32.mrf.mxu0
        %v4757 = vpop.f32.mrf.mxu0
        %v4758 = vpop.f32.mrf.mxu0
        %4759 = vdwg.mxu0
        %v4764 = vunpack.c.l.b16 %v3307
        %v4765 = vunpack.c.l.b16 %v3308
        %v4766 = vunpack.c.l.b16 %v3309
        %v4767 = vunpack.c.l.b16 %v3310
        %v4768 = vpack.c.b16 %v4765, %v4764
        %v4769 = vpack.c.b16 %v4767, %v4766
        %4772 = vmatprep.subr.bf16.mxu0 0
        %4773 = vmatpush1.bf16.msra.mxu0 0
        %4774 = vmatprep.subr.bf16.mxu0 0
        %4775 = vmatpush1.bf16.msra.mxu0 0
        %4776 = vmatprep.subr.bf16.mxu0 0
        %4777 = vmatpush1.bf16.msra.mxu0 0
        %4778 = vmatprep.subr.bf16.mxu0 0
        %4779 = vmatpush1.bf16.msra.mxu0 0
        %4780 = vmatprep.subr.bf16.mxu0 0
        %4781 = vmatpush1.bf16.msra.mxu0 0
        %4782 = vmatprep.subr.bf16.mxu0 0
        %4783 = vmatpush1.bf16.msra.mxu0 0
        %4784 = vmatprep.subr.bf16.mxu0 0
        %4785 = vmatpush1.bf16.msra.mxu0 %v4769
        %4786 = vmatprep.subr.bf16.mxu0 0
        %4787 = vmatpush1.bf16.msra.mxu0 %v4768
        %4788 = vmatprep.subr.bf16.mxu0 0
        %4789 = vmatpush2.bf16.msra.mxu0 0
        %4790 = vmatprep.subr.bf16.mxu0 0
        %4791 = vmatpush2.bf16.msra.mxu0 0
        %4792 = vmatprep.subr.bf16.mxu0 0
        %4793 = vmatpush2.bf16.msra.mxu0 0
        %4794 = vmatprep.subr.bf16.mxu0 0
        %4795 = vmatpush2.bf16.msra.mxu0 0
        %4796 = vmatprep.subr.bf16.mxu0 0
        %4797 = vmatpush2.bf16.msra.mxu0 0
        %4798 = vmatprep.subr.bf16.mxu0 0
        %4799 = vmatpush2.bf16.msra.mxu0 0
        %4800 = vmatprep.subr.bf16.mxu0 0
        %4801 = vmatpush2.bf16.msra.mxu0 0
        %4802 = vmatprep.subr.bf16.mxu0 0
        %4803 = vmatpush2.bf16.msra.mxu0 0
        %4804 = vmatprep.mubr.bf16.mxu0 0
        %4805 = vmatmul.mubr.bf16.gmra.mxu0 %v4666
        %v4806 = vpop.f32.mrf.mxu0
        %v4807 = vadd.f32 0.0, %v4806
        %v4808 = vpop.f32.mrf.mxu0
        %v4809 = vpop.f32.mrf.mxu0
        %v4810 = vpop.f32.mrf.mxu0
        %4811 = vdwg.mxu0
        %v4816 = vunpack.c.l.b16 %v3311
        %v4817 = vunpack.c.l.b16 %v3312
        %v4818 = vunpack.c.l.b16 %v3313
        %v4819 = vunpack.c.l.b16 %v3314
        %v4820 = vpack.c.b16 %v4817, %v4816
        %v4821 = vpack.c.b16 %v4819, %v4818
        %4824 = vmatprep.subr.bf16.mxu0 0
        %4825 = vmatpush1.bf16.msra.mxu0 0
        %4826 = vmatprep.subr.bf16.mxu0 0
        %4827 = vmatpush1.bf16.msra.mxu0 0
        %4828 = vmatprep.subr.bf16.mxu0 0
        %4829 = vmatpush1.bf16.msra.mxu0 0
        %4830 = vmatprep.subr.bf16.mxu0 0
        %4831 = vmatpush1.bf16.msra.mxu0 0
        %4832 = vmatprep.subr.bf16.mxu0 0
        %4833 = vmatpush1.bf16.msra.mxu0 0
        %4834 = vmatprep.subr.bf16.mxu0 0
        %4835 = vmatpush1.bf16.msra.mxu0 0
        %4836 = vmatprep.subr.bf16.mxu0 0
        %4837 = vmatpush1.bf16.msra.mxu0 %v4821
        %4838 = vmatprep.subr.bf16.mxu0 0
        %4839 = vmatpush1.bf16.msra.mxu0 %v4820
        %4840 = vmatprep.subr.bf16.mxu0 0
        %4841 = vmatpush2.bf16.msra.mxu0 0
        %4842 = vmatprep.subr.bf16.mxu0 0
        %4843 = vmatpush2.bf16.msra.mxu0 0
        %4844 = vmatprep.subr.bf16.mxu0 0
        %4845 = vmatpush2.bf16.msra.mxu0 0
        %4846 = vmatprep.subr.bf16.mxu0 0
        %4847 = vmatpush2.bf16.msra.mxu0 0
        %4848 = vmatprep.subr.bf16.mxu0 0
        %4849 = vmatpush2.bf16.msra.mxu0 0
        %4850 = vmatprep.subr.bf16.mxu0 0
        %4851 = vmatpush2.bf16.msra.mxu0 0
        %4852 = vmatprep.subr.bf16.mxu0 0
        %4853 = vmatpush2.bf16.msra.mxu0 0
        %4854 = vmatprep.subr.bf16.mxu0 0
        %4855 = vmatpush2.bf16.msra.mxu0 0
        %4856 = vmatprep.mubr.bf16.mxu0 0
        %4857 = vmatmul.mubr.bf16.gmra.mxu0 %v4666
        %v4858 = vpop.f32.mrf.mxu0
        %v4859 = vadd.f32 0.0, %v4858
        %v4860 = vpop.f32.mrf.mxu0
        %v4861 = vpop.f32.mrf.mxu0
        %v4862 = vpop.f32.mrf.mxu0
        %4863 = vdwg.mxu0
        %v4864 = vmul.f32 %v4703, 0.35355338
        %v4865 = vmul.f32 %v4755, 0.35355338
        %v4866 = vmul.f32 %v4807, 0.35355338
        %v4867 = vmul.f32 %v4859, 0.35355338
        %v4868 = vpack.c.bf16 %v4864, %v4864
        %v4869 = vpack.c.bf16 %v4865, %v4865
        %v4870 = vpack.c.bf16 %v4866, %v4866
        %v4871 = vpack.c.bf16 %v4867, %v4867
        %v4876 = vunpack.c.l.b16 %v3316
        %v4877 = vunpack.c.l.b16 %v3317
        %v4878 = vunpack.c.l.b16 %v3318
        %v4879 = vunpack.c.l.b16 %v3319
        %v4880 = vpack.c.b16 %v4877, %v4876
        %v4881 = vpack.c.b16 %v4879, %v4878
        %4884 = vmatprep.subr.bf16.mxu0 0
        %4885 = vmatpush1.bf16.msra.mxu0 0
        %4886 = vmatprep.subr.bf16.mxu0 0
        %4887 = vmatpush1.bf16.msra.mxu0 0
        %4888 = vmatprep.subr.bf16.mxu0 0
        %4889 = vmatpush1.bf16.msra.mxu0 0
        %4890 = vmatprep.subr.bf16.mxu0 0
        %4891 = vmatpush1.bf16.msra.mxu0 0
        %4892 = vmatprep.subr.bf16.mxu0 0
        %4893 = vmatpush1.bf16.msra.mxu0 0
        %4894 = vmatprep.subr.bf16.mxu0 0
        %4895 = vmatpush1.bf16.msra.mxu0 0
        %4896 = vmatprep.subr.bf16.mxu0 0
        %4897 = vmatpush1.bf16.msra.mxu0 %v4881
        %4898 = vmatprep.subr.bf16.mxu0 0
        %4899 = vmatpush1.bf16.msra.mxu0 %v4880
        %4900 = vmatprep.subr.bf16.mxu0 0
        %4901 = vmatpush2.bf16.msra.mxu0 0
        %4902 = vmatprep.subr.bf16.mxu0 0
        %4903 = vmatpush2.bf16.msra.mxu0 0
        %4904 = vmatprep.subr.bf16.mxu0 0
        %4905 = vmatpush2.bf16.msra.mxu0 0
        %4906 = vmatprep.subr.bf16.mxu0 0
        %4907 = vmatpush2.bf16.msra.mxu0 0
        %4908 = vmatprep.subr.bf16.mxu0 0
        %4909 = vmatpush2.bf16.msra.mxu0 0
        %4910 = vmatprep.subr.bf16.mxu0 0
        %4911 = vmatpush2.bf16.msra.mxu0 0
        %4912 = vmatprep.subr.bf16.mxu0 0
        %4913 = vmatpush2.bf16.msra.mxu0 0
        %4914 = vmatprep.subr.bf16.mxu0 0
        %4915 = vmatpush2.bf16.msra.mxu0 0
        %4916 = vmatprep.mubr.bf16.mxu0 0
        %4917 = vmatmul.mubr.bf16.gmra.mxu0 %v2036
        %v4918 = vpop.f32.mrf.mxu0
        %v4919 = vadd.f32 0.0, %v4918
        %v4920 = vpop.f32.mrf.mxu0
        %v4921 = vpop.f32.mrf.mxu0
        %v4922 = vadd.f32 0.0, %v4921
        %v4923 = vpop.f32.mrf.mxu0
        %4924 = vdwg.mxu0
        %v4929 = vunpack.c.l.b16 %v3320
        %v4930 = vunpack.c.l.b16 %v3321
        %v4931 = vunpack.c.l.b16 %v3322
        %v4932 = vunpack.c.l.b16 %v3323
        %v4933 = vpack.c.b16 %v4930, %v4929
        %v4934 = vpack.c.b16 %v4932, %v4931
        %4937 = vmatprep.subr.bf16.mxu0 0
        %4938 = vmatpush1.bf16.msra.mxu0 0
        %4939 = vmatprep.subr.bf16.mxu0 0
        %4940 = vmatpush1.bf16.msra.mxu0 0
        %4941 = vmatprep.subr.bf16.mxu0 0
        %4942 = vmatpush1.bf16.msra.mxu0 0
        %4943 = vmatprep.subr.bf16.mxu0 0
        %4944 = vmatpush1.bf16.msra.mxu0 0
        %4945 = vmatprep.subr.bf16.mxu0 0
        %4946 = vmatpush1.bf16.msra.mxu0 0
        %4947 = vmatprep.subr.bf16.mxu0 0
        %4948 = vmatpush1.bf16.msra.mxu0 0
        %4949 = vmatprep.subr.bf16.mxu0 0
        %4950 = vmatpush1.bf16.msra.mxu0 %v4934
        %4951 = vmatprep.subr.bf16.mxu0 0
        %4952 = vmatpush1.bf16.msra.mxu0 %v4933
        %4953 = vmatprep.subr.bf16.mxu0 0
        %4954 = vmatpush2.bf16.msra.mxu0 0
        %4955 = vmatprep.subr.bf16.mxu0 0
        %4956 = vmatpush2.bf16.msra.mxu0 0
        %4957 = vmatprep.subr.bf16.mxu0 0
        %4958 = vmatpush2.bf16.msra.mxu0 0
        %4959 = vmatprep.subr.bf16.mxu0 0
        %4960 = vmatpush2.bf16.msra.mxu0 0
        %4961 = vmatprep.subr.bf16.mxu0 0
        %4962 = vmatpush2.bf16.msra.mxu0 0
        %4963 = vmatprep.subr.bf16.mxu0 0
        %4964 = vmatpush2.bf16.msra.mxu0 0
        %4965 = vmatprep.subr.bf16.mxu0 0
        %4966 = vmatpush2.bf16.msra.mxu0 0
        %4967 = vmatprep.subr.bf16.mxu0 0
        %4968 = vmatpush2.bf16.msra.mxu0 0
        %4969 = vmatprep.mubr.bf16.mxu0 0
        %4970 = vmatmul.mubr.bf16.gmra.mxu0 %v2036
        %v4971 = vpop.f32.mrf.mxu0
        %v4972 = vadd.f32 0.0, %v4971
        %v4973 = vpop.f32.mrf.mxu0
        %v4974 = vpop.f32.mrf.mxu0
        %v4975 = vadd.f32 0.0, %v4974
        %v4976 = vpop.f32.mrf.mxu0
        %4977 = vdwg.mxu0
        %v4982 = vunpack.c.l.b16 %v3324
        %v4983 = vunpack.c.l.b16 %v3325
        %v4984 = vunpack.c.l.b16 %v3326
        %v4985 = vunpack.c.l.b16 %v3327
        %v4986 = vpack.c.b16 %v4983, %v4982
        %v4987 = vpack.c.b16 %v4985, %v4984
        %4990 = vmatprep.subr.bf16.mxu0 0
        %4991 = vmatpush1.bf16.msra.mxu0 0
        %4992 = vmatprep.subr.bf16.mxu0 0
        %4993 = vmatpush1.bf16.msra.mxu0 0
        %4994 = vmatprep.subr.bf16.mxu0 0
        %4995 = vmatpush1.bf16.msra.mxu0 0
        %4996 = vmatprep.subr.bf16.mxu0 0
        %4997 = vmatpush1.bf16.msra.mxu0 0
        %4998 = vmatprep.subr.bf16.mxu0 0
        %4999 = vmatpush1.bf16.msra.mxu0 0
        %5000 = vmatprep.subr.bf16.mxu0 0
        %5001 = vmatpush1.bf16.msra.mxu0 0
        %5002 = vmatprep.subr.bf16.mxu0 0
        %5003 = vmatpush1.bf16.msra.mxu0 %v4987
        %5004 = vmatprep.subr.bf16.mxu0 0
        %5005 = vmatpush1.bf16.msra.mxu0 %v4986
        %5006 = vmatprep.subr.bf16.mxu0 0
        %5007 = vmatpush2.bf16.msra.mxu0 0
        %5008 = vmatprep.subr.bf16.mxu0 0
        %5009 = vmatpush2.bf16.msra.mxu0 0
        %5010 = vmatprep.subr.bf16.mxu0 0
        %5011 = vmatpush2.bf16.msra.mxu0 0
        %5012 = vmatprep.subr.bf16.mxu0 0
        %5013 = vmatpush2.bf16.msra.mxu0 0
        %5014 = vmatprep.subr.bf16.mxu0 0
        %5015 = vmatpush2.bf16.msra.mxu0 0
        %5016 = vmatprep.subr.bf16.mxu0 0
        %5017 = vmatpush2.bf16.msra.mxu0 0
        %5018 = vmatprep.subr.bf16.mxu0 0
        %5019 = vmatpush2.bf16.msra.mxu0 0
        %5020 = vmatprep.subr.bf16.mxu0 0
        %5021 = vmatpush2.bf16.msra.mxu0 0
        %5022 = vmatprep.mubr.bf16.mxu0 0
        %5023 = vmatmul.mubr.bf16.gmra.mxu0 %v2036
        %v5024 = vpop.f32.mrf.mxu0
        %v5025 = vadd.f32 0.0, %v5024
        %v5026 = vpop.f32.mrf.mxu0
        %v5027 = vpop.f32.mrf.mxu0
        %v5028 = vadd.f32 0.0, %v5027
        %v5029 = vpop.f32.mrf.mxu0
        %5030 = vdwg.mxu0
        %v5035 = vunpack.c.l.b16 %v3328
        %v5036 = vunpack.c.l.b16 %v3329
        %v5037 = vunpack.c.l.b16 %v3330
        %v5038 = vunpack.c.l.b16 %v3331
        %v5039 = vpack.c.b16 %v5036, %v5035
        %v5040 = vpack.c.b16 %v5038, %v5037
        %5043 = vmatprep.subr.bf16.mxu0 0
        %5044 = vmatpush1.bf16.msra.mxu0 0
        %5045 = vmatprep.subr.bf16.mxu0 0
        %5046 = vmatpush1.bf16.msra.mxu0 0
        %5047 = vmatprep.subr.bf16.mxu0 0
        %5048 = vmatpush1.bf16.msra.mxu0 0
        %5049 = vmatprep.subr.bf16.mxu0 0
        %5050 = vmatpush1.bf16.msra.mxu0 0
        %5051 = vmatprep.subr.bf16.mxu0 0
        %5052 = vmatpush1.bf16.msra.mxu0 0
        %5053 = vmatprep.subr.bf16.mxu0 0
        %5054 = vmatpush1.bf16.msra.mxu0 0
        %5055 = vmatprep.subr.bf16.mxu0 0
        %5056 = vmatpush1.bf16.msra.mxu0 %v5040
        %5057 = vmatprep.subr.bf16.mxu0 0
        %5058 = vmatpush1.bf16.msra.mxu0 %v5039
        %5059 = vmatprep.subr.bf16.mxu0 0
        %5060 = vmatpush2.bf16.msra.mxu0 0
        %5061 = vmatprep.subr.bf16.mxu0 0
        %5062 = vmatpush2.bf16.msra.mxu0 0
        %5063 = vmatprep.subr.bf16.mxu0 0
        %5064 = vmatpush2.bf16.msra.mxu0 0
        %5065 = vmatprep.subr.bf16.mxu0 0
        %5066 = vmatpush2.bf16.msra.mxu0 0
        %5067 = vmatprep.subr.bf16.mxu0 0
        %5068 = vmatpush2.bf16.msra.mxu0 0
        %5069 = vmatprep.subr.bf16.mxu0 0
        %5070 = vmatpush2.bf16.msra.mxu0 0
        %5071 = vmatprep.subr.bf16.mxu0 0
        %5072 = vmatpush2.bf16.msra.mxu0 0
        %5073 = vmatprep.subr.bf16.mxu0 0
        %5074 = vmatpush2.bf16.msra.mxu0 0
        %5075 = vmatprep.mubr.bf16.mxu0 0
        %5076 = vmatmul.mubr.bf16.gmra.mxu0 %v2036
        %v5077 = vpop.f32.mrf.mxu0
        %v5078 = vadd.f32 0.0, %v5077
        %v5079 = vpop.f32.mrf.mxu0
        %v5080 = vpop.f32.mrf.mxu0
        %v5081 = vadd.f32 0.0, %v5080
        %v5082 = vpop.f32.mrf.mxu0
        %5083 = vdwg.mxu0
        %v5088 = vunpack.c.l.b16 %v3332
        %v5089 = vunpack.c.l.b16 %v3333
        %v5090 = vunpack.c.l.b16 %v3334
        %v5091 = vunpack.c.l.b16 %v3335
        %v5092 = vpack.c.b16 %v5089, %v5088
        %v5093 = vpack.c.b16 %v5091, %v5090
        %5096 = vmatprep.subr.bf16.mxu0 0
        %5097 = vmatpush1.bf16.msra.mxu0 0
        %5098 = vmatprep.subr.bf16.mxu0 0
        %5099 = vmatpush1.bf16.msra.mxu0 0
        %5100 = vmatprep.subr.bf16.mxu0 0
        %5101 = vmatpush1.bf16.msra.mxu0 0
        %5102 = vmatprep.subr.bf16.mxu0 0
        %5103 = vmatpush1.bf16.msra.mxu0 0
        %5104 = vmatprep.subr.bf16.mxu0 0
        %5105 = vmatpush1.bf16.msra.mxu0 0
        %5106 = vmatprep.subr.bf16.mxu0 0
        %5107 = vmatpush1.bf16.msra.mxu0 0
        %5108 = vmatprep.subr.bf16.mxu0 0
        %5109 = vmatpush1.bf16.msra.mxu0 %v5093
        %5110 = vmatprep.subr.bf16.mxu0 0
        %5111 = vmatpush1.bf16.msra.mxu0 %v5092
        %5112 = vmatprep.subr.bf16.mxu0 0
        %5113 = vmatpush2.bf16.msra.mxu0 0
        %5114 = vmatprep.subr.bf16.mxu0 0
        %5115 = vmatpush2.bf16.msra.mxu0 0
        %5116 = vmatprep.subr.bf16.mxu0 0
        %5117 = vmatpush2.bf16.msra.mxu0 0
        %5118 = vmatprep.subr.bf16.mxu0 0
        %5119 = vmatpush2.bf16.msra.mxu0 0
        %5120 = vmatprep.subr.bf16.mxu0 0
        %5121 = vmatpush2.bf16.msra.mxu0 0
        %5122 = vmatprep.subr.bf16.mxu0 0
        %5123 = vmatpush2.bf16.msra.mxu0 0
        %5124 = vmatprep.subr.bf16.mxu0 0
        %5125 = vmatpush2.bf16.msra.mxu0 0
        %5126 = vmatprep.subr.bf16.mxu0 0
        %5127 = vmatpush2.bf16.msra.mxu0 0
        %5128 = vmatprep.mubr.bf16.mxu0 0
        %5129 = vmatmul.mubr.bf16.gmra.mxu0 %v2036
        %v5130 = vpop.f32.mrf.mxu0
        %v5131 = vadd.f32 0.0, %v5130
        %v5132 = vpop.f32.mrf.mxu0
        %v5133 = vpop.f32.mrf.mxu0
        %v5134 = vadd.f32 0.0, %v5133
        %v5135 = vpop.f32.mrf.mxu0
        %5136 = vdwg.mxu0
        %v5141 = vunpack.c.l.b16 %v3336
        %v5142 = vunpack.c.l.b16 %v3337
        %v5143 = vunpack.c.l.b16 %v3338
        %v5144 = vunpack.c.l.b16 %v3339
        %v5145 = vpack.c.b16 %v5142, %v5141
        %v5146 = vpack.c.b16 %v5144, %v5143
        %5149 = vmatprep.subr.bf16.mxu0 0
        %5150 = vmatpush1.bf16.msra.mxu0 0
        %5151 = vmatprep.subr.bf16.mxu0 0
        %5152 = vmatpush1.bf16.msra.mxu0 0
        %5153 = vmatprep.subr.bf16.mxu0 0
        %5154 = vmatpush1.bf16.msra.mxu0 0
        %5155 = vmatprep.subr.bf16.mxu0 0
        %5156 = vmatpush1.bf16.msra.mxu0 0
        %5157 = vmatprep.subr.bf16.mxu0 0
        %5158 = vmatpush1.bf16.msra.mxu0 0
        %5159 = vmatprep.subr.bf16.mxu0 0
        %5160 = vmatpush1.bf16.msra.mxu0 0
        %5161 = vmatprep.subr.bf16.mxu0 0
        %5162 = vmatpush1.bf16.msra.mxu0 %v5146
        %5163 = vmatprep.subr.bf16.mxu0 0
        %5164 = vmatpush1.bf16.msra.mxu0 %v5145
        %5165 = vmatprep.subr.bf16.mxu0 0
        %5166 = vmatpush2.bf16.msra.mxu0 0
        %5167 = vmatprep.subr.bf16.mxu0 0
        %5168 = vmatpush2.bf16.msra.mxu0 0
        %5169 = vmatprep.subr.bf16.mxu0 0
        %5170 = vmatpush2.bf16.msra.mxu0 0
        %5171 = vmatprep.subr.bf16.mxu0 0
        %5172 = vmatpush2.bf16.msra.mxu0 0
        %5173 = vmatprep.subr.bf16.mxu0 0
        %5174 = vmatpush2.bf16.msra.mxu0 0
        %5175 = vmatprep.subr.bf16.mxu0 0
        %5176 = vmatpush2.bf16.msra.mxu0 0
        %5177 = vmatprep.subr.bf16.mxu0 0
        %5178 = vmatpush2.bf16.msra.mxu0 0
        %5179 = vmatprep.subr.bf16.mxu0 0
        %5180 = vmatpush2.bf16.msra.mxu0 0
        %5181 = vmatprep.mubr.bf16.mxu0 0
        %5182 = vmatmul.mubr.bf16.gmra.mxu0 %v2036
        %v5183 = vpop.f32.mrf.mxu0
        %v5184 = vadd.f32 0.0, %v5183
        %v5185 = vpop.f32.mrf.mxu0
        %v5186 = vpop.f32.mrf.mxu0
        %v5187 = vadd.f32 0.0, %v5186
        %v5188 = vpop.f32.mrf.mxu0
        %5189 = vdwg.mxu0
        %v5194 = vunpack.c.l.b16 %v3340
        %v5195 = vunpack.c.l.b16 %v3341
        %v5196 = vunpack.c.l.b16 %v3342
        %v5197 = vunpack.c.l.b16 %v3343
        %v5198 = vpack.c.b16 %v5195, %v5194
        %v5199 = vpack.c.b16 %v5197, %v5196
        %5202 = vmatprep.subr.bf16.mxu0 0
        %5203 = vmatpush1.bf16.msra.mxu0 0
        %5204 = vmatprep.subr.bf16.mxu0 0
        %5205 = vmatpush1.bf16.msra.mxu0 0
        %5206 = vmatprep.subr.bf16.mxu0 0
        %5207 = vmatpush1.bf16.msra.mxu0 0
        %5208 = vmatprep.subr.bf16.mxu0 0
        %5209 = vmatpush1.bf16.msra.mxu0 0
        %5210 = vmatprep.subr.bf16.mxu0 0
        %5211 = vmatpush1.bf16.msra.mxu0 0
        %5212 = vmatprep.subr.bf16.mxu0 0
        %5213 = vmatpush1.bf16.msra.mxu0 0
        %5214 = vmatprep.subr.bf16.mxu0 0
        %5215 = vmatpush1.bf16.msra.mxu0 %v5199
        %5216 = vmatprep.subr.bf16.mxu0 0
        %5217 = vmatpush1.bf16.msra.mxu0 %v5198
        %5218 = vmatprep.subr.bf16.mxu0 0
        %5219 = vmatpush2.bf16.msra.mxu0 0
        %5220 = vmatprep.subr.bf16.mxu0 0
        %5221 = vmatpush2.bf16.msra.mxu0 0
        %5222 = vmatprep.subr.bf16.mxu0 0
        %5223 = vmatpush2.bf16.msra.mxu0 0
        %5224 = vmatprep.subr.bf16.mxu0 0
        %5225 = vmatpush2.bf16.msra.mxu0 0
        %5226 = vmatprep.subr.bf16.mxu0 0
        %5227 = vmatpush2.bf16.msra.mxu0 0
        %5228 = vmatprep.subr.bf16.mxu0 0
        %5229 = vmatpush2.bf16.msra.mxu0 0
        %5230 = vmatprep.subr.bf16.mxu0 0
        %5231 = vmatpush2.bf16.msra.mxu0 0
        %5232 = vmatprep.subr.bf16.mxu0 0
        %5233 = vmatpush2.bf16.msra.mxu0 0
        %5234 = vmatprep.mubr.bf16.mxu0 0
        %5235 = vmatmul.mubr.bf16.gmra.mxu0 %v2036
        %v5236 = vpop.f32.mrf.mxu0
        %v5237 = vadd.f32 0.0, %v5236
        %v5238 = vpop.f32.mrf.mxu0
        %v5239 = vpop.f32.mrf.mxu0
        %v5240 = vadd.f32 0.0, %v5239
        %v5241 = vpop.f32.mrf.mxu0
        %5242 = vdwg.mxu0
        %v5247 = vunpack.c.l.b16 %v3344
        %v5248 = vunpack.c.l.b16 %v3345
        %v5249 = vunpack.c.l.b16 %v3346
        %v5250 = vunpack.c.l.b16 %v3347
        %v5251 = vpack.c.b16 %v5248, %v5247
        %v5252 = vpack.c.b16 %v5250, %v5249
        %5255 = vmatprep.subr.bf16.mxu0 0
        %5256 = vmatpush1.bf16.msra.mxu0 0
        %5257 = vmatprep.subr.bf16.mxu0 0
        %5258 = vmatpush1.bf16.msra.mxu0 0
        %5259 = vmatprep.subr.bf16.mxu0 0
        %5260 = vmatpush1.bf16.msra.mxu0 0
        %5261 = vmatprep.subr.bf16.mxu0 0
        %5262 = vmatpush1.bf16.msra.mxu0 0
        %5263 = vmatprep.subr.bf16.mxu0 0
        %5264 = vmatpush1.bf16.msra.mxu0 0
        %5265 = vmatprep.subr.bf16.mxu0 0
        %5266 = vmatpush1.bf16.msra.mxu0 0
        %5267 = vmatprep.subr.bf16.mxu0 0
        %5268 = vmatpush1.bf16.msra.mxu0 %v5252
        %5269 = vmatprep.subr.bf16.mxu0 0
        %5270 = vmatpush1.bf16.msra.mxu0 %v5251
        %5271 = vmatprep.subr.bf16.mxu0 0
        %5272 = vmatpush2.bf16.msra.mxu0 0
        %5273 = vmatprep.subr.bf16.mxu0 0
        %5274 = vmatpush2.bf16.msra.mxu0 0
        %5275 = vmatprep.subr.bf16.mxu0 0
        %5276 = vmatpush2.bf16.msra.mxu0 0
        %5277 = vmatprep.subr.bf16.mxu0 0
        %5278 = vmatpush2.bf16.msra.mxu0 0
        %5279 = vmatprep.subr.bf16.mxu0 0
        %5280 = vmatpush2.bf16.msra.mxu0 0
        %5281 = vmatprep.subr.bf16.mxu0 0
        %5282 = vmatpush2.bf16.msra.mxu0 0
        %5283 = vmatprep.subr.bf16.mxu0 0
        %5284 = vmatpush2.bf16.msra.mxu0 0
        %5285 = vmatprep.subr.bf16.mxu0 0
        %5286 = vmatpush2.bf16.msra.mxu0 0
        %5287 = vmatprep.mubr.bf16.mxu0 0
        %5288 = vmatmul.mubr.bf16.gmra.mxu0 %v2036
        %v5289 = vpop.f32.mrf.mxu0
        %v5290 = vadd.f32 0.0, %v5289
        %v5291 = vpop.f32.mrf.mxu0
        %v5292 = vpop.f32.mrf.mxu0
        %v5293 = vadd.f32 0.0, %v5292
        %v5294 = vpop.f32.mrf.mxu0
        %5295 = vdwg.mxu0
        %v5296 = vpack.c.bf16 %v4922, %v4919
        %v5297 = vpack.c.bf16 %v4975, %v4972
        %v5298 = vpack.c.bf16 %v5028, %v5025
        %v5299 = vpack.c.bf16 %v5081, %v5078
        %v5300 = vpack.c.bf16 %v5134, %v5131
        %v5301 = vpack.c.bf16 %v5187, %v5184
        %v5302 = vpack.c.bf16 %v5240, %v5237
        %v5303 = vpack.c.bf16 %v5293, %v5290
        %v5305 = vsel %vm1161, %v4868, 0
        %v5308 = vsel %vm1161, %v5296, 0
        %5310 = vmatprep.subr.bf16.mxu0 0
        %5311 = vmatpush1.bf16.xpose.msra.mxu0 0
        %5312 = vmatprep.subr.bf16.mxu0 0
        %5313 = vmatpush1.bf16.xpose.msra.mxu0 0
        %5314 = vmatprep.subr.bf16.mxu0 0
        %5315 = vmatpush1.bf16.xpose.msra.mxu0 0
        %5316 = vmatprep.subr.bf16.mxu0 0
        %5317 = vmatpush1.bf16.xpose.msra.mxu0 0
        %5318 = vmatprep.subr.bf16.mxu0 0
        %5319 = vmatpush1.bf16.xpose.msra.mxu0 0
        %5320 = vmatprep.subr.bf16.mxu0 0
        %5321 = vmatpush1.bf16.xpose.msra.mxu0 0
        %5322 = vmatprep.subr.bf16.mxu0 0
        %5323 = vmatpush1.bf16.xpose.msra.mxu0 0
        %5324 = vmatprep.subr.bf16.mxu0 0
        %5325 = vmatpush1.bf16.xpose.msra.mxu0 %v5308
        %5326 = vmatprep.subr.bf16.mxu0 0
        %5327 = vmatpush2.bf16.xpose.msra.mxu0 0
        %5328 = vmatprep.subr.bf16.mxu0 0
        %5329 = vmatpush2.bf16.xpose.msra.mxu0 0
        %5330 = vmatprep.subr.bf16.mxu0 0
        %5331 = vmatpush2.bf16.xpose.msra.mxu0 0
        %5332 = vmatprep.subr.bf16.mxu0 0
        %5333 = vmatpush2.bf16.xpose.msra.mxu0 0
        %5334 = vmatprep.subr.bf16.mxu0 0
        %5335 = vmatpush2.bf16.xpose.msra.mxu0 0
        %5336 = vmatprep.subr.bf16.mxu0 0
        %5337 = vmatpush2.bf16.xpose.msra.mxu0 0
        %5338 = vmatprep.subr.bf16.mxu0 0
        %5339 = vmatpush2.bf16.xpose.msra.mxu0 0
        %5340 = vmatprep.subr.bf16.mxu0 0
        %5341 = vmatpush2.bf16.xpose.msra.mxu0 0
        %5342 = vmatprep.mubr.bf16.mxu0 0
        %5343 = vmatmul.mubr.bf16.gmra.mxu0 %v5305
        %v5344 = vpop.f32.mrf.mxu0
        %v5345 = vadd.f32 0.0, %v5344
        %v5346 = vpop.f32.mrf.mxu0
        %v5347 = vpop.f32.mrf.mxu0
        %v5348 = vpop.f32.mrf.mxu0
        %5349 = vdwg.mxu0
        %v5351 = vsel %vm1161, %v4869, 0
        %v5354 = vsel %vm1161, %v5297, 0
        %5356 = vmatprep.subr.bf16.mxu0 0
        %5357 = vmatpush1.bf16.xpose.msra.mxu0 0
        %5358 = vmatprep.subr.bf16.mxu0 0
        %5359 = vmatpush1.bf16.xpose.msra.mxu0 0
        %5360 = vmatprep.subr.bf16.mxu0 0
        %5361 = vmatpush1.bf16.xpose.msra.mxu0 0
        %5362 = vmatprep.subr.bf16.mxu0 0
        %5363 = vmatpush1.bf16.xpose.msra.mxu0 0
        %5364 = vmatprep.subr.bf16.mxu0 0
        %5365 = vmatpush1.bf16.xpose.msra.mxu0 0
        %5366 = vmatprep.subr.bf16.mxu0 0
        %5367 = vmatpush1.bf16.xpose.msra.mxu0 0
        %5368 = vmatprep.subr.bf16.mxu0 0
        %5369 = vmatpush1.bf16.xpose.msra.mxu0 0
        %5370 = vmatprep.subr.bf16.mxu0 0
        %5371 = vmatpush1.bf16.xpose.msra.mxu0 %v5354
        %5372 = vmatprep.subr.bf16.mxu0 0
        %5373 = vmatpush2.bf16.xpose.msra.mxu0 0
        %5374 = vmatprep.subr.bf16.mxu0 0
        %5375 = vmatpush2.bf16.xpose.msra.mxu0 0
        %5376 = vmatprep.subr.bf16.mxu0 0
        %5377 = vmatpush2.bf16.xpose.msra.mxu0 0
        %5378 = vmatprep.subr.bf16.mxu0 0
        %5379 = vmatpush2.bf16.xpose.msra.mxu0 0
        %5380 = vmatprep.subr.bf16.mxu0 0
        %5381 = vmatpush2.bf16.xpose.msra.mxu0 0
        %5382 = vmatprep.subr.bf16.mxu0 0
        %5383 = vmatpush2.bf16.xpose.msra.mxu0 0
        %5384 = vmatprep.subr.bf16.mxu0 0
        %5385 = vmatpush2.bf16.xpose.msra.mxu0 0
        %5386 = vmatprep.subr.bf16.mxu0 0
        %5387 = vmatpush2.bf16.xpose.msra.mxu0 0
        %5388 = vmatprep.mubr.bf16.mxu0 0
        %5389 = vmatmul.mubr.bf16.gmra.mxu0 %v5351
        %v5390 = vpop.f32.mrf.mxu0
        %v5391 = vadd.f32 0.0, %v5390
        %v5392 = vpop.f32.mrf.mxu0
        %v5393 = vpop.f32.mrf.mxu0
        %v5394 = vpop.f32.mrf.mxu0
        %5395 = vdwg.mxu0
        %v5397 = vsel %vm1161, %v4870, 0
        %v5400 = vsel %vm1161, %v5298, 0
        %5402 = vmatprep.subr.bf16.mxu0 0
        %5403 = vmatpush1.bf16.xpose.msra.mxu0 0
        %5404 = vmatprep.subr.bf16.mxu0 0
        %5405 = vmatpush1.bf16.xpose.msra.mxu0 0
        %5406 = vmatprep.subr.bf16.mxu0 0
        %5407 = vmatpush1.bf16.xpose.msra.mxu0 0
        %5408 = vmatprep.subr.bf16.mxu0 0
        %5409 = vmatpush1.bf16.xpose.msra.mxu0 0
        %5410 = vmatprep.subr.bf16.mxu0 0
        %5411 = vmatpush1.bf16.xpose.msra.mxu0 0
        %5412 = vmatprep.subr.bf16.mxu0 0
        %5413 = vmatpush1.bf16.xpose.msra.mxu0 0
        %5414 = vmatprep.subr.bf16.mxu0 0
        %5415 = vmatpush1.bf16.xpose.msra.mxu0 0
        %5416 = vmatprep.subr.bf16.mxu0 0
        %5417 = vmatpush1.bf16.xpose.msra.mxu0 %v5400
        %5418 = vmatprep.subr.bf16.mxu0 0
        %5419 = vmatpush2.bf16.xpose.msra.mxu0 0
        %5420 = vmatprep.subr.bf16.mxu0 0
        %5421 = vmatpush2.bf16.xpose.msra.mxu0 0
        %5422 = vmatprep.subr.bf16.mxu0 0
        %5423 = vmatpush2.bf16.xpose.msra.mxu0 0
        %5424 = vmatprep.subr.bf16.mxu0 0
        %5425 = vmatpush2.bf16.xpose.msra.mxu0 0
        %5426 = vmatprep.subr.bf16.mxu0 0
        %5427 = vmatpush2.bf16.xpose.msra.mxu0 0
        %5428 = vmatprep.subr.bf16.mxu0 0
        %5429 = vmatpush2.bf16.xpose.msra.mxu0 0
        %5430 = vmatprep.subr.bf16.mxu0 0
        %5431 = vmatpush2.bf16.xpose.msra.mxu0 0
        %5432 = vmatprep.subr.bf16.mxu0 0
        %5433 = vmatpush2.bf16.xpose.msra.mxu0 0
        %5434 = vmatprep.mubr.bf16.mxu0 0
        %5435 = vmatmul.mubr.bf16.gmra.mxu0 %v5397
        %v5436 = vpop.f32.mrf.mxu0
        %v5437 = vadd.f32 0.0, %v5436
        %v5438 = vpop.f32.mrf.mxu0
        %v5439 = vpop.f32.mrf.mxu0
        %v5440 = vpop.f32.mrf.mxu0
        %5441 = vdwg.mxu0
        %v5443 = vsel %vm1161, %v4871, 0
        %v5446 = vsel %vm1161, %v5299, 0
        %5448 = vmatprep.subr.bf16.mxu0 0
        %5449 = vmatpush1.bf16.xpose.msra.mxu0 0
        %5450 = vmatprep.subr.bf16.mxu0 0
        %5451 = vmatpush1.bf16.xpose.msra.mxu0 0
        %5452 = vmatprep.subr.bf16.mxu0 0
        %5453 = vmatpush1.bf16.xpose.msra.mxu0 0
        %5454 = vmatprep.subr.bf16.mxu0 0
        %5455 = vmatpush1.bf16.xpose.msra.mxu0 0
        %5456 = vmatprep.subr.bf16.mxu0 0
        %5457 = vmatpush1.bf16.xpose.msra.mxu0 0
        %5458 = vmatprep.subr.bf16.mxu0 0
        %5459 = vmatpush1.bf16.xpose.msra.mxu0 0
        %5460 = vmatprep.subr.bf16.mxu0 0
        %5461 = vmatpush1.bf16.xpose.msra.mxu0 0
        %5462 = vmatprep.subr.bf16.mxu0 0
        %5463 = vmatpush1.bf16.xpose.msra.mxu0 %v5446
        %5464 = vmatprep.subr.bf16.mxu0 0
        %5465 = vmatpush2.bf16.xpose.msra.mxu0 0
        %5466 = vmatprep.subr.bf16.mxu0 0
        %5467 = vmatpush2.bf16.xpose.msra.mxu0 0
        %5468 = vmatprep.subr.bf16.mxu0 0
        %5469 = vmatpush2.bf16.xpose.msra.mxu0 0
        %5470 = vmatprep.subr.bf16.mxu0 0
        %5471 = vmatpush2.bf16.xpose.msra.mxu0 0
        %5472 = vmatprep.subr.bf16.mxu0 0
        %5473 = vmatpush2.bf16.xpose.msra.mxu0 0
        %5474 = vmatprep.subr.bf16.mxu0 0
        %5475 = vmatpush2.bf16.xpose.msra.mxu0 0
        %5476 = vmatprep.subr.bf16.mxu0 0
        %5477 = vmatpush2.bf16.xpose.msra.mxu0 0
        %5478 = vmatprep.subr.bf16.mxu0 0
        %5479 = vmatpush2.bf16.xpose.msra.mxu0 0
        %5480 = vmatprep.mubr.bf16.mxu0 0
        %5481 = vmatmul.mubr.bf16.gmra.mxu0 %v5443
        %v5482 = vpop.f32.mrf.mxu0
        %v5483 = vadd.f32 0.0, %v5482
        %v5484 = vpop.f32.mrf.mxu0
        %v5485 = vpop.f32.mrf.mxu0
        %v5486 = vpop.f32.mrf.mxu0
        %5487 = vdwg.mxu0
        %v5488 = vsel %vm398, %v5345, 1e-06
        %v5489 = vsel %vm398, %v5391, 1e-06
        %v5490 = vsel %vm398, %v5437, 1e-06
        %v5491 = vsel %vm398, %v5483, 1e-06
        %v5492 = vsel %vm2646, %v5488, -inf
        %5493 = vmax.xlane.f32.xlu0 %v5492
        %v5494 = vpop.xlane.xlu0 %5493
        %v5495 = vsel %vm2646, %v5489, -inf
        %5496 = vmax.xlane.f32.xlu0 %v5495
        %v5497 = vpop.xlane.xlu0 %5496
        %v5498 = vsel %vm2646, %v5490, -inf
        %5499 = vmax.xlane.f32.xlu0 %v5498
        %v5500 = vpop.xlane.xlu0 %5499
        %v5501 = vsel %vm2646, %v5491, -inf
        %5502 = vmax.xlane.f32.xlu0 %v5501
        %v5503 = vpop.xlane.xlu0 %5502
        %v5504 = vsub.f32 %v5488, %v5494
        %v5505 = vsub.f32 %v5489, %v5497
        %v5506 = vsub.f32 %v5490, %v5500
        %v5507 = vsub.f32 %v5491, %v5503
        %v5508 = vmul.f32 %v5504, 1.442695
        %v5509 = vpow.pop %v5508
        %v5510 = vmul.f32 %v5505, 1.442695
        %v5511 = vpow.pop %v5510
        %v5512 = vmul.f32 %v5506, 1.442695
        %v5513 = vpow.pop %v5512
        %v5514 = vmul.f32 %v5507, 1.442695
        %v5515 = vpow.pop %v5514
        %v5516 = vsel %vm2646, %v5509, 0.0
        %5517 = vadd.xlane.f32.xlu0 %v5516
        %v5518 = vpop.xlane.xlu0 %5517
        %v5519 = vsel %vm2646, %v5511, 0.0
        %5520 = vadd.xlane.f32.xlu0 %v5519
        %v5521 = vpop.xlane.xlu0 %5520
        %v5522 = vsel %vm2646, %v5513, 0.0
        %5523 = vadd.xlane.f32.xlu0 %v5522
        %v5524 = vpop.xlane.xlu0 %5523
        %v5525 = vsel %vm2646, %v5515, 0.0
        %5526 = vadd.xlane.f32.xlu0 %v5525
        %v5527 = vpop.xlane.xlu0 %5526
        %v5528 = vrcp.pop %v5518
        %v5529 = vrcp.pop %v5521
        %v5530 = vrcp.pop %v5524
        %v5531 = vrcp.pop %v5527
        %v5532 = vmul.f32 %v5509, %v5528
        %v5533 = vmul.f32 %v5511, %v5529
        %v5534 = vmul.f32 %v5513, %v5530
        %v5535 = vmul.f32 %v5515, %v5531
        %v5536 = vpack.c.bf16 %v5532, %v5532
        %v5537 = vpack.c.bf16 %v5533, %v5533
        %v5538 = vpack.c.bf16 %v5534, %v5534
        %v5539 = vpack.c.bf16 %v5535, %v5535
        %v5541 = vsel %vm2646, %v5536, 0
        %5543 = vmatprep.subr.bf16.mxu0 0
        %5544 = vmatpush1.bf16.msra.mxu0 0
        %5545 = vmatprep.subr.bf16.mxu0 0
        %5546 = vmatpush1.bf16.msra.mxu0 0
        %5547 = vmatprep.subr.bf16.mxu0 0
        %5548 = vmatpush1.bf16.msra.mxu0 0
        %5549 = vmatprep.subr.bf16.mxu0 0
        %5550 = vmatpush1.bf16.msra.mxu0 0
        %5551 = vmatprep.subr.bf16.mxu0 0
        %5552 = vmatpush1.bf16.msra.mxu0 0
        %5553 = vmatprep.subr.bf16.mxu0 0
        %5554 = vmatpush1.bf16.msra.mxu0 0
        %5555 = vmatprep.subr.bf16.mxu0 0
        %5556 = vmatpush1.bf16.msra.mxu0 0
        %5557 = vmatprep.subr.bf16.mxu0 0
        %5558 = vmatpush1.bf16.msra.mxu0 %v5300
        %5559 = vmatprep.subr.bf16.mxu0 0
        %5560 = vmatpush2.bf16.msra.mxu0 0
        %5561 = vmatprep.subr.bf16.mxu0 0
        %5562 = vmatpush2.bf16.msra.mxu0 0
        %5563 = vmatprep.subr.bf16.mxu0 0
        %5564 = vmatpush2.bf16.msra.mxu0 0
        %5565 = vmatprep.subr.bf16.mxu0 0
        %5566 = vmatpush2.bf16.msra.mxu0 0
        %5567 = vmatprep.subr.bf16.mxu0 0
        %5568 = vmatpush2.bf16.msra.mxu0 0
        %5569 = vmatprep.subr.bf16.mxu0 0
        %5570 = vmatpush2.bf16.msra.mxu0 0
        %5571 = vmatprep.subr.bf16.mxu0 0
        %5572 = vmatpush2.bf16.msra.mxu0 0
        %5573 = vmatprep.subr.bf16.mxu0 0
        %5574 = vmatpush2.bf16.msra.mxu0 0
        %5575 = vmatprep.mubr.bf16.mxu0 0
        %5576 = vmatmul.mubr.bf16.gmra.mxu0 %v5541
        %v5577 = vpop.f32.mrf.mxu0
        %v5578 = vadd.f32 0.0, %v5577
        %v5579 = vpop.f32.mrf.mxu0
        %v5580 = vpop.f32.mrf.mxu0
        %v5581 = vpop.f32.mrf.mxu0
        %5582 = vdwg.mxu0
        %v5584 = vsel %vm2646, %v5537, 0
        %5586 = vmatprep.subr.bf16.mxu0 0
        %5587 = vmatpush1.bf16.msra.mxu0 0
        %5588 = vmatprep.subr.bf16.mxu0 0
        %5589 = vmatpush1.bf16.msra.mxu0 0
        %5590 = vmatprep.subr.bf16.mxu0 0
        %5591 = vmatpush1.bf16.msra.mxu0 0
        %5592 = vmatprep.subr.bf16.mxu0 0
        %5593 = vmatpush1.bf16.msra.mxu0 0
        %5594 = vmatprep.subr.bf16.mxu0 0
        %5595 = vmatpush1.bf16.msra.mxu0 0
        %5596 = vmatprep.subr.bf16.mxu0 0
        %5597 = vmatpush1.bf16.msra.mxu0 0
        %5598 = vmatprep.subr.bf16.mxu0 0
        %5599 = vmatpush1.bf16.msra.mxu0 0
        %5600 = vmatprep.subr.bf16.mxu0 0
        %5601 = vmatpush1.bf16.msra.mxu0 %v5301
        %5602 = vmatprep.subr.bf16.mxu0 0
        %5603 = vmatpush2.bf16.msra.mxu0 0
        %5604 = vmatprep.subr.bf16.mxu0 0
        %5605 = vmatpush2.bf16.msra.mxu0 0
        %5606 = vmatprep.subr.bf16.mxu0 0
        %5607 = vmatpush2.bf16.msra.mxu0 0
        %5608 = vmatprep.subr.bf16.mxu0 0
        %5609 = vmatpush2.bf16.msra.mxu0 0
        %5610 = vmatprep.subr.bf16.mxu0 0
        %5611 = vmatpush2.bf16.msra.mxu0 0
        %5612 = vmatprep.subr.bf16.mxu0 0
        %5613 = vmatpush2.bf16.msra.mxu0 0
        %5614 = vmatprep.subr.bf16.mxu0 0
        %5615 = vmatpush2.bf16.msra.mxu0 0
        %5616 = vmatprep.subr.bf16.mxu0 0
        %5617 = vmatpush2.bf16.msra.mxu0 0
        %5618 = vmatprep.mubr.bf16.mxu0 0
        %5619 = vmatmul.mubr.bf16.gmra.mxu0 %v5584
        %v5620 = vpop.f32.mrf.mxu0
        %v5621 = vadd.f32 0.0, %v5620
        %v5622 = vpop.f32.mrf.mxu0
        %v5623 = vpop.f32.mrf.mxu0
        %v5624 = vpop.f32.mrf.mxu0
        %5625 = vdwg.mxu0
        %v5627 = vsel %vm2646, %v5538, 0
        %5629 = vmatprep.subr.bf16.mxu0 0
        %5630 = vmatpush1.bf16.msra.mxu0 0
        %5631 = vmatprep.subr.bf16.mxu0 0
        %5632 = vmatpush1.bf16.msra.mxu0 0
        %5633 = vmatprep.subr.bf16.mxu0 0
        %5634 = vmatpush1.bf16.msra.mxu0 0
        %5635 = vmatprep.subr.bf16.mxu0 0
        %5636 = vmatpush1.bf16.msra.mxu0 0
        %5637 = vmatprep.subr.bf16.mxu0 0
        %5638 = vmatpush1.bf16.msra.mxu0 0
        %5639 = vmatprep.subr.bf16.mxu0 0
        %5640 = vmatpush1.bf16.msra.mxu0 0
        %5641 = vmatprep.subr.bf16.mxu0 0
        %5642 = vmatpush1.bf16.msra.mxu0 0
        %5643 = vmatprep.subr.bf16.mxu0 0
        %5644 = vmatpush1.bf16.msra.mxu0 %v5302
        %5645 = vmatprep.subr.bf16.mxu0 0
        %5646 = vmatpush2.bf16.msra.mxu0 0
        %5647 = vmatprep.subr.bf16.mxu0 0
        %5648 = vmatpush2.bf16.msra.mxu0 0
        %5649 = vmatprep.subr.bf16.mxu0 0
        %5650 = vmatpush2.bf16.msra.mxu0 0
        %5651 = vmatprep.subr.bf16.mxu0 0
        %5652 = vmatpush2.bf16.msra.mxu0 0
        %5653 = vmatprep.subr.bf16.mxu0 0
        %5654 = vmatpush2.bf16.msra.mxu0 0
        %5655 = vmatprep.subr.bf16.mxu0 0
        %5656 = vmatpush2.bf16.msra.mxu0 0
        %5657 = vmatprep.subr.bf16.mxu0 0
        %5658 = vmatpush2.bf16.msra.mxu0 0
        %5659 = vmatprep.subr.bf16.mxu0 0
        %5660 = vmatpush2.bf16.msra.mxu0 0
        %5661 = vmatprep.mubr.bf16.mxu0 0
        %5662 = vmatmul.mubr.bf16.gmra.mxu0 %v5627
        %v5663 = vpop.f32.mrf.mxu0
        %v5664 = vadd.f32 0.0, %v5663
        %v5665 = vpop.f32.mrf.mxu0
        %v5666 = vpop.f32.mrf.mxu0
        %v5667 = vpop.f32.mrf.mxu0
        %5668 = vdwg.mxu0
        %v5670 = vsel %vm2646, %v5539, 0
        %5672 = vmatprep.subr.bf16.mxu0 0
        %5673 = vmatpush1.bf16.msra.mxu0 0
        %5674 = vmatprep.subr.bf16.mxu0 0
        %5675 = vmatpush1.bf16.msra.mxu0 0
        %5676 = vmatprep.subr.bf16.mxu0 0
        %5677 = vmatpush1.bf16.msra.mxu0 0
        %5678 = vmatprep.subr.bf16.mxu0 0
        %5679 = vmatpush1.bf16.msra.mxu0 0
        %5680 = vmatprep.subr.bf16.mxu0 0
        %5681 = vmatpush1.bf16.msra.mxu0 0
        %5682 = vmatprep.subr.bf16.mxu0 0
        %5683 = vmatpush1.bf16.msra.mxu0 0
        %5684 = vmatprep.subr.bf16.mxu0 0
        %5685 = vmatpush1.bf16.msra.mxu0 0
        %5686 = vmatprep.subr.bf16.mxu0 0
        %5687 = vmatpush1.bf16.msra.mxu0 %v5303
        %5688 = vmatprep.subr.bf16.mxu0 0
        %5689 = vmatpush2.bf16.msra.mxu0 0
        %5690 = vmatprep.subr.bf16.mxu0 0
        %5691 = vmatpush2.bf16.msra.mxu0 0
        %5692 = vmatprep.subr.bf16.mxu0 0
        %5693 = vmatpush2.bf16.msra.mxu0 0
        %5694 = vmatprep.subr.bf16.mxu0 0
        %5695 = vmatpush2.bf16.msra.mxu0 0
        %5696 = vmatprep.subr.bf16.mxu0 0
        %5697 = vmatpush2.bf16.msra.mxu0 0
        %5698 = vmatprep.subr.bf16.mxu0 0
        %5699 = vmatpush2.bf16.msra.mxu0 0
        %5700 = vmatprep.subr.bf16.mxu0 0
        %5701 = vmatpush2.bf16.msra.mxu0 0
        %5702 = vmatprep.subr.bf16.mxu0 0
        %5703 = vmatpush2.bf16.msra.mxu0 0
        %5704 = vmatprep.mubr.bf16.mxu0 0
        %5705 = vmatmul.mubr.bf16.gmra.mxu0 %v5670
        %v5706 = vpop.f32.mrf.mxu0
        %v5707 = vadd.f32 0.0, %v5706
        %v5708 = vpop.f32.mrf.mxu0
        %v5709 = vpop.f32.mrf.mxu0
        %v5710 = vpop.f32.mrf.mxu0
        %5711 = vdwg.mxu0
        %v5712 = vpack.c.bf16 %v5578, %v5578
        %v5713 = vpack.c.bf16 %v5621, %v5621
        %v5714 = vpack.c.bf16 %v5664, %v5664
        %v5715 = vpack.c.bf16 %v5707, %v5707
        %v5717 = vsel %vm1161, %v5712, 0
        %v5720 = vsel %vm1401, %v3349, 0
        %5722 = vmatprep.subr.bf16.mxu0 0
        %5723 = vmatpush1.bf16.msra.mxu0 0
        %5724 = vmatprep.subr.bf16.mxu0 0
        %5725 = vmatpush1.bf16.msra.mxu0 0
        %5726 = vmatprep.subr.bf16.mxu0 0
        %5727 = vmatpush1.bf16.msra.mxu0 0
        %5728 = vmatprep.subr.bf16.mxu0 0
        %5729 = vmatpush1.bf16.msra.mxu0 0
        %5730 = vmatprep.subr.bf16.mxu0 0
        %5731 = vmatpush1.bf16.msra.mxu0 0
        %5732 = vmatprep.subr.bf16.mxu0 0
        %5733 = vmatpush1.bf16.msra.mxu0 0
        %5734 = vmatprep.subr.bf16.mxu0 0
        %5735 = vmatpush1.bf16.msra.mxu0 0
        %5736 = vmatprep.subr.bf16.mxu0 0
        %5737 = vmatpush1.bf16.msra.mxu0 %v5720
        %5738 = vmatprep.subr.bf16.mxu0 0
        %5739 = vmatpush2.bf16.msra.mxu0 0
        %5740 = vmatprep.subr.bf16.mxu0 0
        %5741 = vmatpush2.bf16.msra.mxu0 0
        %5742 = vmatprep.subr.bf16.mxu0 0
        %5743 = vmatpush2.bf16.msra.mxu0 0
        %5744 = vmatprep.subr.bf16.mxu0 0
        %5745 = vmatpush2.bf16.msra.mxu0 0
        %5746 = vmatprep.subr.bf16.mxu0 0
        %5747 = vmatpush2.bf16.msra.mxu0 0
        %5748 = vmatprep.subr.bf16.mxu0 0
        %5749 = vmatpush2.bf16.msra.mxu0 0
        %5750 = vmatprep.subr.bf16.mxu0 0
        %5751 = vmatpush2.bf16.msra.mxu0 0
        %5752 = vmatprep.subr.bf16.mxu0 0
        %5753 = vmatpush2.bf16.msra.mxu0 0
        %5754 = vmatprep.mubr.bf16.mxu0 0
        %5755 = vmatmul.mubr.bf16.gmra.mxu0 %v5717
        %v5756 = vpop.f32.mrf.mxu0
        %v5757 = vadd.f32 0.0, %v5756
        %v5758 = vpop.f32.mrf.mxu0
        %v5759 = vpop.f32.mrf.mxu0
        %v5760 = vpop.f32.mrf.mxu0
        %5761 = vdwg.mxu0
        %v5763 = vsel %vm1161, %v5713, 0
        %v5766 = vsel %vm1401, %v3350, 0
        %5768 = vmatprep.subr.bf16.mxu0 0
        %5769 = vmatpush1.bf16.msra.mxu0 0
        %5770 = vmatprep.subr.bf16.mxu0 0
        %5771 = vmatpush1.bf16.msra.mxu0 0
        %5772 = vmatprep.subr.bf16.mxu0 0
        %5773 = vmatpush1.bf16.msra.mxu0 0
        %5774 = vmatprep.subr.bf16.mxu0 0
        %5775 = vmatpush1.bf16.msra.mxu0 0
        %5776 = vmatprep.subr.bf16.mxu0 0
        %5777 = vmatpush1.bf16.msra.mxu0 0
        %5778 = vmatprep.subr.bf16.mxu0 0
        %5779 = vmatpush1.bf16.msra.mxu0 0
        %5780 = vmatprep.subr.bf16.mxu0 0
        %5781 = vmatpush1.bf16.msra.mxu0 0
        %5782 = vmatprep.subr.bf16.mxu0 0
        %5783 = vmatpush1.bf16.msra.mxu0 %v5766
        %5784 = vmatprep.subr.bf16.mxu0 0
        %5785 = vmatpush2.bf16.msra.mxu0 0
        %5786 = vmatprep.subr.bf16.mxu0 0
        %5787 = vmatpush2.bf16.msra.mxu0 0
        %5788 = vmatprep.subr.bf16.mxu0 0
        %5789 = vmatpush2.bf16.msra.mxu0 0
        %5790 = vmatprep.subr.bf16.mxu0 0
        %5791 = vmatpush2.bf16.msra.mxu0 0
        %5792 = vmatprep.subr.bf16.mxu0 0
        %5793 = vmatpush2.bf16.msra.mxu0 0
        %5794 = vmatprep.subr.bf16.mxu0 0
        %5795 = vmatpush2.bf16.msra.mxu0 0
        %5796 = vmatprep.subr.bf16.mxu0 0
        %5797 = vmatpush2.bf16.msra.mxu0 0
        %5798 = vmatprep.subr.bf16.mxu0 0
        %5799 = vmatpush2.bf16.msra.mxu0 0
        %5800 = vmatprep.mubr.bf16.mxu0 0
        %5801 = vmatmul.mubr.bf16.gmra.mxu0 %v5763
        %v5802 = vpop.f32.mrf.mxu0
        %v5803 = vadd.f32 0.0, %v5802
        %v5804 = vpop.f32.mrf.mxu0
        %v5805 = vpop.f32.mrf.mxu0
        %v5806 = vpop.f32.mrf.mxu0
        %5807 = vdwg.mxu0
        %v5809 = vsel %vm1161, %v5714, 0
        %v5812 = vsel %vm1401, %v3351, 0
        %5814 = vmatprep.subr.bf16.mxu0 0
        %5815 = vmatpush1.bf16.msra.mxu0 0
        %5816 = vmatprep.subr.bf16.mxu0 0
        %5817 = vmatpush1.bf16.msra.mxu0 0
        %5818 = vmatprep.subr.bf16.mxu0 0
        %5819 = vmatpush1.bf16.msra.mxu0 0
        %5820 = vmatprep.subr.bf16.mxu0 0
        %5821 = vmatpush1.bf16.msra.mxu0 0
        %5822 = vmatprep.subr.bf16.mxu0 0
        %5823 = vmatpush1.bf16.msra.mxu0 0
        %5824 = vmatprep.subr.bf16.mxu0 0
        %5825 = vmatpush1.bf16.msra.mxu0 0
        %5826 = vmatprep.subr.bf16.mxu0 0
        %5827 = vmatpush1.bf16.msra.mxu0 0
        %5828 = vmatprep.subr.bf16.mxu0 0
        %5829 = vmatpush1.bf16.msra.mxu0 %v5812
        %5830 = vmatprep.subr.bf16.mxu0 0
        %5831 = vmatpush2.bf16.msra.mxu0 0
        %5832 = vmatprep.subr.bf16.mxu0 0
        %5833 = vmatpush2.bf16.msra.mxu0 0
        %5834 = vmatprep.subr.bf16.mxu0 0
        %5835 = vmatpush2.bf16.msra.mxu0 0
        %5836 = vmatprep.subr.bf16.mxu0 0
        %5837 = vmatpush2.bf16.msra.mxu0 0
        %5838 = vmatprep.subr.bf16.mxu0 0
        %5839 = vmatpush2.bf16.msra.mxu0 0
        %5840 = vmatprep.subr.bf16.mxu0 0
        %5841 = vmatpush2.bf16.msra.mxu0 0
        %5842 = vmatprep.subr.bf16.mxu0 0
        %5843 = vmatpush2.bf16.msra.mxu0 0
        %5844 = vmatprep.subr.bf16.mxu0 0
        %5845 = vmatpush2.bf16.msra.mxu0 0
        %5846 = vmatprep.mubr.bf16.mxu0 0
        %5847 = vmatmul.mubr.bf16.gmra.mxu0 %v5809
        %v5848 = vpop.f32.mrf.mxu0
        %v5849 = vadd.f32 0.0, %v5848
        %v5850 = vpop.f32.mrf.mxu0
        %v5851 = vpop.f32.mrf.mxu0
        %v5852 = vpop.f32.mrf.mxu0
        %5853 = vdwg.mxu0
        %v5855 = vsel %vm1161, %v5715, 0
        %v5858 = vsel %vm1401, %v3352, 0
        %5860 = vmatprep.subr.bf16.mxu0 0
        %5861 = vmatpush1.bf16.msra.mxu0 0
        %5862 = vmatprep.subr.bf16.mxu0 0
        %5863 = vmatpush1.bf16.msra.mxu0 0
        %5864 = vmatprep.subr.bf16.mxu0 0
        %5865 = vmatpush1.bf16.msra.mxu0 0
        %5866 = vmatprep.subr.bf16.mxu0 0
        %5867 = vmatpush1.bf16.msra.mxu0 0
        %5868 = vmatprep.subr.bf16.mxu0 0
        %5869 = vmatpush1.bf16.msra.mxu0 0
        %5870 = vmatprep.subr.bf16.mxu0 0
        %5871 = vmatpush1.bf16.msra.mxu0 0
        %5872 = vmatprep.subr.bf16.mxu0 0
        %5873 = vmatpush1.bf16.msra.mxu0 0
        %5874 = vmatprep.subr.bf16.mxu0 0
        %5875 = vmatpush1.bf16.msra.mxu0 %v5858
        %5876 = vmatprep.subr.bf16.mxu0 0
        %5877 = vmatpush2.bf16.msra.mxu0 0
        %5878 = vmatprep.subr.bf16.mxu0 0
        %5879 = vmatpush2.bf16.msra.mxu0 0
        %5880 = vmatprep.subr.bf16.mxu0 0
        %5881 = vmatpush2.bf16.msra.mxu0 0
        %5882 = vmatprep.subr.bf16.mxu0 0
        %5883 = vmatpush2.bf16.msra.mxu0 0
        %5884 = vmatprep.subr.bf16.mxu0 0
        %5885 = vmatpush2.bf16.msra.mxu0 0
        %5886 = vmatprep.subr.bf16.mxu0 0
        %5887 = vmatpush2.bf16.msra.mxu0 0
        %5888 = vmatprep.subr.bf16.mxu0 0
        %5889 = vmatpush2.bf16.msra.mxu0 0
        %5890 = vmatprep.subr.bf16.mxu0 0
        %5891 = vmatpush2.bf16.msra.mxu0 0
        %5892 = vmatprep.mubr.bf16.mxu0 0
        %5893 = vmatmul.mubr.bf16.gmra.mxu0 %v5855
        %v5894 = vpop.f32.mrf.mxu0
        %v5895 = vadd.f32 0.0, %v5894
        %v5896 = vpop.f32.mrf.mxu0
        %v5897 = vpop.f32.mrf.mxu0
        %v5898 = vpop.f32.mrf.mxu0
        %5899 = vdwg.mxu0
        %v5900 = vsel %vm529, %v5757, 0.0
        %v5901 = vsel %vm529, %v5803, 0.0
        %v5902 = vadd.f32 %v5900, %v5901
        %v5903 = vsel %vm529, %v5849, 0.0
        %v5904 = vadd.f32 %v5902, %v5903
        %v5905 = vsel %vm529, %v5895, 0.0
        %v5906 = vadd.f32 %v5904, %v5905
        %v5907 = vadd.f32 %v5906, %v4651
        %v5908 = vsel %vm529, %v5907, 0.0
        %5909 = vadd.xlane.f32.xlu0 %v5908
        %v5910 = vpop.xlane.xlu0 %5909
        %v5911 = vmul.f32 %v5910, %v1782
        %v5912 = vsub.f32 %v5907, %v5911
        %v5913 = vmul.f32 %v5912, %v5912
        %v5914 = vsel %vm529, %v5913, 0.0
        %5915 = vadd.xlane.f32.xlu0 %v5914
        %v5916 = vpop.xlane.xlu0 %5915
        %v5917 = vmul.f32 %v5916, %v1782
        %v5918 = vadd.f32 %v5917, 1e-12
        %v5919 = vrsqrt.pop %v5918
        %v5920 = vmul.f32 %v5912, %v5919
        %v5921 = vlaneseq
        %v5922 = vshrl.u32 %v5921, 7
        %v5923 = vsub.s32 2, %v5922
        %v5924 = vrot.slane %v3368, %v5923
        %v5925 = vmul.f32 %v5924, %v5920
        %v5926 = vlaneseq
        %v5927 = vshrl.u32 %v5926, 7
        %v5928 = vsub.s32 3, %v5927
        %v5929 = vrot.slane %v3368, %v5928
        %v5930 = vadd.f32 %v5925, %v5929
        %v5931 = vpack.c.bf16 %v5930, %v5930
        %v5932 = vlaneseq
        %v5933 = vshrl.u32 %v5932, 7
        %v5934 = vsub.s32 6, %v5933
        %v5935 = vrot.slane %v3368, %v5934
        %v5940 = vunpack.c.l.b16 %v3354
        %v5941 = vunpack.c.l.b16 %v3355
        %v5942 = vunpack.c.l.b16 %v3356
        %v5943 = vunpack.c.l.b16 %v3357
        %v5944 = vpack.c.b16 %v5941, %v5940
        %v5945 = vpack.c.b16 %v5943, %v5942
        %v5949 = vsel %vm529, %v5931, 0
        %5951 = vmatprep.subr.bf16.mxu0 0
        %5952 = vmatpush1.bf16.msra.mxu0 0
        %5953 = vmatprep.subr.bf16.mxu0 0
        %5954 = vmatpush1.bf16.msra.mxu0 0
        %5955 = vmatprep.subr.bf16.mxu0 0
        %5956 = vmatpush1.bf16.msra.mxu0 0
        %5957 = vmatprep.subr.bf16.mxu0 0
        %5958 = vmatpush1.bf16.msra.mxu0 0
        %5959 = vmatprep.subr.bf16.mxu0 0
        %5960 = vmatpush1.bf16.msra.mxu0 0
        %5961 = vmatprep.subr.bf16.mxu0 0
        %5962 = vmatpush1.bf16.msra.mxu0 0
        %5963 = vmatprep.subr.bf16.mxu0 0
        %5964 = vmatpush1.bf16.msra.mxu0 %v5945
        %5965 = vmatprep.subr.bf16.mxu0 0
        %5966 = vmatpush1.bf16.msra.mxu0 %v5944
        %5967 = vmatprep.subr.bf16.mxu0 0
        %5968 = vmatpush2.bf16.msra.mxu0 0
        %5969 = vmatprep.subr.bf16.mxu0 0
        %5970 = vmatpush2.bf16.msra.mxu0 0
        %5971 = vmatprep.subr.bf16.mxu0 0
        %5972 = vmatpush2.bf16.msra.mxu0 0
        %5973 = vmatprep.subr.bf16.mxu0 0
        %5974 = vmatpush2.bf16.msra.mxu0 0
        %5975 = vmatprep.subr.bf16.mxu0 0
        %5976 = vmatpush2.bf16.msra.mxu0 0
        %5977 = vmatprep.subr.bf16.mxu0 0
        %5978 = vmatpush2.bf16.msra.mxu0 0
        %5979 = vmatprep.subr.bf16.mxu0 0
        %5980 = vmatpush2.bf16.msra.mxu0 0
        %5981 = vmatprep.subr.bf16.mxu0 0
        %5982 = vmatpush2.bf16.msra.mxu0 0
        %5983 = vmatprep.mubr.bf16.mxu0 0
        %5984 = vmatmul.mubr.bf16.gmra.mxu0 %v5949
        %v5985 = vpop.f32.mrf.mxu0
        %v5986 = vadd.f32 %v5935, %v5985
        %v5987 = vpop.f32.mrf.mxu0
        %v5988 = vpop.f32.mrf.mxu0
        %v5989 = vpop.f32.mrf.mxu0
        %5990 = vdwg.mxu0
        %v5991 = vmax.f32 %v5986, 0.0
        %v5992 = vpack.c.bf16 %v5991, %v5991
        %v5993 = vlaneseq
        %v5994 = vshrl.u32 %v5993, 7
        %v5995 = vsub.s32 7, %v5994
        %v5996 = vrot.slane %v3368, %v5995
        %v6005 = vunpack.c.l.b16 %v3359
        %v6006 = vunpack.c.l.b16 %v3360
        %v6007 = vunpack.c.l.b16 %v3361
        %v6008 = vunpack.c.l.b16 %v3362
        %v6009 = vunpack.c.l.b16 %v3363
        %v6010 = vunpack.c.l.b16 %v3364
        %v6011 = vunpack.c.l.b16 %v3365
        %v6012 = vunpack.c.l.b16 %v3366
        %v6013 = vpack.c.b16 %v6006, %v6005
        %v6014 = vpack.c.b16 %v6008, %v6007
        %v6015 = vpack.c.b16 %v6010, %v6009
        %v6016 = vpack.c.b16 %v6012, %v6011
        %v6022 = vsel %vm3176, %v5992, 0
        %6024 = vmatprep.subr.bf16.mxu0 0
        %6025 = vmatpush1.bf16.msra.mxu0 0
        %6026 = vmatprep.subr.bf16.mxu0 0
        %6027 = vmatpush1.bf16.msra.mxu0 0
        %6028 = vmatprep.subr.bf16.mxu0 0
        %6029 = vmatpush1.bf16.msra.mxu0 0
        %6030 = vmatprep.subr.bf16.mxu0 0
        %6031 = vmatpush1.bf16.msra.mxu0 0
        %6032 = vmatprep.subr.bf16.mxu0 0
        %6033 = vmatpush1.bf16.msra.mxu0 %v6016
        %6034 = vmatprep.subr.bf16.mxu0 0
        %6035 = vmatpush1.bf16.msra.mxu0 %v6015
        %6036 = vmatprep.subr.bf16.mxu0 0
        %6037 = vmatpush1.bf16.msra.mxu0 %v6014
        %6038 = vmatprep.subr.bf16.mxu0 0
        %6039 = vmatpush1.bf16.msra.mxu0 %v6013
        %6040 = vmatprep.subr.bf16.mxu0 0
        %6041 = vmatpush2.bf16.msra.mxu0 0
        %6042 = vmatprep.subr.bf16.mxu0 0
        %6043 = vmatpush2.bf16.msra.mxu0 0
        %6044 = vmatprep.subr.bf16.mxu0 0
        %6045 = vmatpush2.bf16.msra.mxu0 0
        %6046 = vmatprep.subr.bf16.mxu0 0
        %6047 = vmatpush2.bf16.msra.mxu0 0
        %6048 = vmatprep.subr.bf16.mxu0 0
        %6049 = vmatpush2.bf16.msra.mxu0 0
        %6050 = vmatprep.subr.bf16.mxu0 0
        %6051 = vmatpush2.bf16.msra.mxu0 0
        %6052 = vmatprep.subr.bf16.mxu0 0
        %6053 = vmatpush2.bf16.msra.mxu0 0
        %6054 = vmatprep.subr.bf16.mxu0 0
        %6055 = vmatpush2.bf16.msra.mxu0 0
        %6056 = vmatprep.mubr.bf16.mxu0 0
        %6057 = vmatmul.mubr.bf16.gmra.mxu0 %v6022
        %v6058 = vpop.f32.mrf.mxu0
        %v6059 = vadd.f32 %v5996, %v6058
        %v6060 = vpop.f32.mrf.mxu0
        %v6061 = vpop.f32.mrf.mxu0
        %v6062 = vpop.f32.mrf.mxu0
        %6063 = vdwg.mxu0
        %v6064 = vadd.f32 %v6059, %v5930
        %v6065 = vsel %vm529, %v6064, 0.0
        %6066 = vadd.xlane.f32.xlu0 %v6065
        %v6067 = vpop.xlane.xlu0 %6066
        %v6068 = vmul.f32 %v6067, %v1782
        %v6069 = vsub.f32 %v6064, %v6068
        %v6070 = vmul.f32 %v6069, %v6069
        %v6071 = vsel %vm529, %v6070, 0.0
        %6072 = vadd.xlane.f32.xlu0 %v6071
        %v6073 = vpop.xlane.xlu0 %6072
        %v6074 = vmul.f32 %v6073, %v1782
        %v6075 = vadd.f32 %v6074, 1e-12
        %v6076 = vrsqrt.pop %v6075
        %v6077 = vmul.f32 %v6069, %v6076
        %v6078 = vlaneseq
        %v6079 = vshrl.u32 %v6078, 7
        %v6080 = vsub.s32 4, %v6079
        %v6081 = vrot.slane %v3368, %v6080
        %v6082 = vmul.f32 %v6081, %v6077
        %v6083 = vlaneseq
        %v6084 = vshrl.u32 %v6083, 7
        %v6085 = vsub.s32 5, %v6084
        %v6086 = vrot.slane %v3368, %v6085
        %v6087 = vadd.f32 %v6082, %v6086
        %6088 = vst.msk [vmem:[%s372] sm:$0xff] %vm529, %v6087
        %s6089 = sand.u32 %s259, 1
        %s6090 = scalar_lea.sflag [#allocation5], %s6089
        %s6091 = sand.u32 %s259, 1
        %s6092 = smul.addr %s6091, 8
        %s6093 = scalar_lea.vmem [#allocation4], %s6092
        // Predicated region
        $region61: #{tpu_custom_call.1} parent=59 // pred_check
          %p6094 = pneg %p269
        $region62: #{tpu_custom_call.1} parent=59 // pred_check_branch
          %6096 = sbr.rel (%p6094) target = $region64
        $region63: #{tpu_custom_call.1} parent=59 // pred_region
          %s6098 = ssub.s32 128, 128
          %6099 = vsyncadd %s6090, %s6098
          %s6100 = smul.addr %s31, 128
          %s6101 = scalar_lea.hbm %s11, %s6100
          %s6103 = sshll.u32 %s6093, 4
          %s6104 = int_to_ptr.vmem [resolvable:$true] %s6103
          %6106 = dma.vmem_to_hbm [thread:$0]  %s6104, 128, %s6101, %s6090
        $region64: #{tpu_custom_call.1} parent=59 // pred_fallthru
          _
      $region60: #{tpu_custom_call.1} parent=5 // pred_fallthru
        _
      %p6107 = scmp.le.s32.totalorder 2, %s26
      // Predicated region
      $region65: #{tpu_custom_call.1} parent=5 // pred_check
        %p6108 = pneg %p6107
      $region66: #{tpu_custom_call.1} parent=5 // pred_check_branch
        %6110 = sbr.rel (%p6108) target = $region68
      $region67: #{tpu_custom_call.1} parent=5 // pred_region
        %s6111 = ssub.s32 %s26, 2
        // Predicated region
        $region69: #{tpu_custom_call.1} parent=67 // pred_check
          %p6112 = pneg %p275
        $region70: #{tpu_custom_call.1} parent=67 // pred_check_branch
          %6114 = sbr.rel (%p6112) target = $region72
        $region71: #{tpu_custom_call.1} parent=67 // pred_region
          %s6115 = sand.u32 %s260, 1
          %s6116 = scalar_lea.sflag [#allocation5], %s6115
          %s6117 = sand.u32 %s260, 1
          %s6118 = smul.addr %s6117, 8
          %s6119 = scalar_lea.vmem [#allocation4], %s6118
          %6120 = dma.done %s6116, 128
        $region72: #{tpu_custom_call.1} parent=67 // pred_fallthru
          _
      $region68: #{tpu_custom_call.1} parent=5 // pred_fallthru
        _
    $region6: #{tpu_custom_call.1} parent=1 // loop_footer
      %s30 = sadd.s32 1, %s26
    $region7: #{tpu_custom_call.1} parent=1 // loop_footer_branch
      %25 = sbr.rel target = $region3
    $region8: #{tpu_custom_call.1} parent=1 // loop_exit
      _
    %6121 = vsyncpa [#allocation5], 1
    %s6122 = scalar_lea.sflag [#allocation5], 1
    %6123 = vsyncpa %s6122, 1

</llo_original>
